<compile_context>
chip_gen: v7x
topology: tpu7x:2x2x1
jax: 0.10.0
libtpu: 0.0.40
codegen_flags: <defaults>
</compile_context>

<pallas_src>
import functools
import numpy as np

import jax
import jax.numpy as jnp
from jax.experimental import pallas as pl
from jax.experimental.pallas import tpu as pltpu

# ----------------------------- hyper-parameters ------------------------------
HIDDEN = 32
NUM_RADIAL = 2
NUM_SPHERICAL = 2
NUM_BILINEAR = 1
NUM_BLOCKS = 3
NUM_BEFORE_SKIP = 1
NUM_AFTER_SKIP = 2
NUM_OUTPUT_LAYERS = 3
CUTOFF = 5.0
ENVELOPE_EXP = 5
RADIAL_PAD = 8                      # pad the 2 radial features to 8 (tiny, one-time)

Y00 = 0.28209479177387814           # real sph. harmonic Y_0^0
C10 = 0.4886025119029199            # real sph. harmonic Y_1^0 coefficient


# --------------------------- basis-function helpers ---------------------------
def envelope(x):
    p = ENVELOPE_EXP + 1
    a = -(p + 1) * (p + 2) / 2.0
    b = p * (p + 2) * 1.0
    c = -p * (p + 1) / 2.0
    xp0 = x ** (p - 1)
    xp1 = xp0 * x
    xp2 = xp1 * x
    return (1.0 / x + a * xp0 + b * xp1 + c * xp2) * (x < 1.0).astype(x.dtype)


def _sph_j(n, x):
    if n == 0:
        return np.sin(x) / x
    if n == 1:
        return np.sin(x) / x ** 2 - np.cos(x) / x
    return (3.0 / x ** 2 - 1.0) * np.sin(x) / x - 3.0 * np.cos(x) / x ** 2


def _bisect(f, lo, hi, iters=200):
    flo = f(lo)
    for _ in range(iters):
        mid = 0.5 * (lo + hi)
        if flo * f(mid) <= 0.0:
            hi = mid
        else:
            lo, flo = mid, f(mid)
    return 0.5 * (lo + hi)


# zeros / normalizers of the spherical Bessel basis (num_spherical=2, num_radial=2)
_Z0 = np.array([np.pi, 2 * np.pi])
_Z1 = np.array([
    _bisect(lambda x: _sph_j(1, x), np.pi + 1e-4, 2 * np.pi - 1e-4),
    _bisect(lambda x: _sph_j(1, x), 2 * np.pi + 1e-4, 3 * np.pi - 1e-4),
])
_N0 = 1.0 / np.sqrt(0.5 * _sph_j(1, _Z0) ** 2)
_N1 = 1.0 / np.sqrt(0.5 * _sph_j(2, _Z1) ** 2)


def sph_bessel_basis(d):
    """Columns ordered spherical-major (l=0 r=0, l=0 r=1, l=1 r=0, l=1 r=1)."""
    cols = []
    for i in range(NUM_RADIAL):
        z, n = float(_Z0[i]), float(_N0[i])
        cols.append(n * jnp.sin(z * d) / (z * d))
    for i in range(NUM_RADIAL):
        z, n = float(_Z1[i]), float(_N1[i])
        y = z * d
        cols.append(n * (jnp.sin(y) / y ** 2 - jnp.cos(y) / y))
    return jnp.stack(cols, axis=1)


# ------------------------------ parameter setup -------------------------------
def _linear(key, fan_in, fan_out, bias=True):
    k1, k2 = jax.random.split(key)
    bound = 1.0 / np.sqrt(fan_in)
    w = jax.random.uniform(k1, (fan_in, fan_out), jnp.float32, -bound, bound)
    b = (jax.random.uniform(k2, (fan_out,), jnp.float32, -bound, bound)
         if bias else None)
    return w, b


def init_params(key, H):
    keys = iter(jax.random.split(key, 256))
    p = {}
    p["freq"] = jnp.arange(1, NUM_RADIAL + 1, dtype=jnp.float32) * np.pi
    p["emb_table"] = jax.random.uniform(
        next(keys), (95, H), jnp.float32, -np.sqrt(3.0), np.sqrt(3.0))
    p["emb_lin_rbf"] = _linear(next(keys), NUM_RADIAL, H)
    p["emb_lin"] = _linear(next(keys), 3 * H, H)
    p["out_blocks"] = []
    for _ in range(NUM_BLOCKS + 1):
        p["out_blocks"].append({
            "lin_rbf": _linear(next(keys), NUM_RADIAL, H, bias=False)[0],
            "lins": [_linear(next(keys), H, H) for _ in range(NUM_OUTPUT_LAYERS)],
            "lin": _linear(next(keys), H, H, bias=False)[0],
        })
    p["int_blocks"] = []
    for _ in range(NUM_BLOCKS):
        p["int_blocks"].append({
            "lin_rbf": _linear(next(keys), NUM_RADIAL, H, bias=False)[0],
            "lin_sbf": _linear(next(keys), NUM_SPHERICAL * NUM_RADIAL,
                               NUM_BILINEAR, bias=False)[0],
            "lin_kj": _linear(next(keys), H, H),
            "lin_ji": _linear(next(keys), H, H),
            "W": jax.random.normal(next(keys), (H, NUM_BILINEAR, H),
                                   jnp.float32) * (2.0 / H),
            "before_skip": [(_linear(next(keys), H, H), _linear(next(keys), H, H))
                            for _ in range(NUM_BEFORE_SKIP)],
            "lin": _linear(next(keys), H, H),
            "after_skip": [(_linear(next(keys), H, H), _linear(next(keys), H, H))
                           for _ in range(NUM_AFTER_SKIP)],
        })
    p["head"] = _linear(next(keys), H, 1)
    return p


# -------------------------- one-time parameter packing ------------------------
def pack_params(params):
    """Stack all weights into a few VMEM-resident arrays; return (arrays, idx)."""
    H = HIDDEN
    hh_idx, hh_arrs = {}, []          # [H,H] weights
    b_idx, b_arrs = {}, []            # [1,H] biases
    r_idx, r_arrs = {}, []            # [RADIAL_PAD,H] rbf-projection weights

    def add_hh(name, w):
        hh_idx[name] = len(hh_arrs)
        hh_arrs.append(jnp.asarray(w, jnp.float32))

    def add_b(name, b):
        b_idx[name] = len(b_arrs)
        b_arrs.append(jnp.asarray(b, jnp.float32).reshape(1, H))

    def add_r(name, w):               # w: [NUM_RADIAL,H] -> padded [RADIAL_PAD,H]
        r_idx[name] = len(r_arrs)
        wp = jnp.zeros((RADIAL_PAD, H), jnp.float32).at[:w.shape[0]].set(
            jnp.asarray(w, jnp.float32))
        r_arrs.append(wp)

    # embedding block (split the 3H->H weight so no concat is needed in-kernel)
    w_emb, b_emb = params["emb_lin"]
    add_hh("emb_i", w_emb[0:H])
    add_hh("emb_j", w_emb[H:2 * H])
    add_hh("emb_r", w_emb[2 * H:3 * H])
    add_b("emb", b_emb)
    w_er, b_er = params["emb_lin_rbf"]
    add_r("emb_rbf", w_er)
    add_b("emb_rbf", b_er)

    # output blocks
    for bi, ob in enumerate(params["out_blocks"]):
        add_r(f"ob{bi}_rbf", ob["lin_rbf"])
        for li, (w, bb) in enumerate(ob["lins"]):
            add_hh(f"ob{bi}_l{li}", w)
            add_b(f"ob{bi}_l{li}", bb)
        add_hh(f"ob{bi}_out", ob["lin"])

    # interaction blocks
    lin_sbf = []
    for bi, ib in enumerate(params["int_blocks"]):
        add_r(f"ib{bi}_rbf", ib["lin_rbf"])
        lin_sbf.append(jnp.asarray(ib["lin_sbf"], jnp.float32))
        w, bb = ib["lin_ji"]; add_hh(f"ib{bi}_ji", w); add_b(f"ib{bi}_ji", bb)
        w, bb = ib["lin_kj"]; add_hh(f"ib{bi}_kj", w); add_b(f"ib{bi}_kj", bb)
        add_hh(f"ib{bi}_bil", ib["W"][:, 0, :].T)     # transpose hoisted here
        for si, (l1, l2) in enumerate(ib["before_skip"]):
            (w1, b1), (w2, b2) = l1, l2
            add_hh(f"ib{bi}_bs{si}a", w1); add_b(f"ib{bi}_bs{si}a", b1)
            add_hh(f"ib{bi}_bs{si}b", w2); add_b(f"ib{bi}_bs{si}b", b2)
        w, bb = ib["lin"]; add_hh(f"ib{bi}_lin", w); add_b(f"ib{bi}_lin", bb)
        for si, (l1, l2) in enumerate(ib["after_skip"]):
            (w1, b1), (w2, b2) = l1, l2
            add_hh(f"ib{bi}_as{si}a", w1); add_b(f"ib{bi}_as{si}a", b1)
            add_hh(f"ib{bi}_as{si}b", w2); add_b(f"ib{bi}_as{si}b", b2)

    arrays = {
        "whh": jnp.stack(hh_arrs),                         # [nw, H, H]
        "bh": jnp.stack(b_arrs)[:, None, :].reshape(len(b_arrs), 1, H),  # [nb,1,H]
        "wrbf": jnp.stack(r_arrs),                         # [nr, RADIAL_PAD, H]
        "lin_sbf": jnp.stack(lin_sbf),                     # [3, 4, 1]
        "emb_table": jnp.asarray(params["emb_table"], jnp.float32),
        "head_w": jnp.asarray(params["head"][0], jnp.float32).T,      # [1, H]
        "head_b": jnp.asarray(params["head"][1], jnp.float32).reshape(1, 1),
        "freq": jnp.asarray(params["freq"], jnp.float32),
    }
    idx = {"hh": hh_idx, "b": b_idx, "rbf": r_idx}
    return arrays, idx


# ------------------------------ fused Pallas kernel ----------------------------
def make_fused_kernel(idx):
    def kernel(xn_ref, rbf_ref, gi_ref, gj_ref, ns_ref, gs_ref, m_ref,
               whh_ref, bh_ref, wrbf_ref, hw_ref, hb_ref, out_ref):
        def W(n):  return whh_ref[idx["hh"][n]]        # [H, H]
        def B(n):  return bh_ref[idx["b"][n]]          # [1, H]
        def Wr(n): return wrbf_ref[idx["rbf"][n]]      # [RADIAL_PAD, H]

        def swish(v):
            return v * jax.nn.sigmoid(v)

        def dot(a, b):
            return jnp.dot(a, b, preferred_element_type=jnp.float32)

        def lin(x, name, act=False):
            y = dot(x, W(name)) + B(name)
            return swish(y) if act else y

        xn = xn_ref[...]          # [N, H]  node embeddings
        rbf = rbf_ref[...]        # [E, RADIAL_PAD]

        # ---------------- embedding block ----------------
        rbf_h = swish(dot(rbf, Wr("emb_rbf")) + B("emb_rbf"))
        x_i = dot(gi_ref[...], xn)            # gather node i features per edge
        x_j = dot(gj_ref[...], xn)            # gather node j features per edge
        x = swish(dot(x_i, W("emb_i")) + dot(x_j, W("emb_j"))
                  + dot(rbf_h, W("emb_r")) + B("emb"))

        # ---------------- output block -------------------
        def output_block(bi, x_e):
            g = dot(rbf, Wr(f"ob{bi}_rbf")) * x_e          # lin_rbf(rbf) * x
            p = dot(ns_ref[...], g)                        # masked edge->node sum
            for li in range(NUM_OUTPUT_LAYERS):
                p = lin(p, f"ob{bi}_l{li}", act=True)
            return dot(p, W(f"ob{bi}_out"))                # final lin, no bias/act

        # ---------------- interaction block ---------------
        def interaction_block(bi, x_e):
            rbf_p = dot(rbf, Wr(f"ib{bi}_rbf"))
            x_ji = lin(x_e, f"ib{bi}_ji", act=True)
            x_kj = lin(x_e, f"ib{bi}_kj", act=True) * rbf_p
            # bilinear (num_bilinear=1) + masked triplet->edge scatter,
            # folded into one [E,E] mixer matmul (no [T,H] gather materialized)
            y2 = dot(x_kj, W(f"ib{bi}_bil"))               # x_kj @ W[:,0,:].T
            agg = dot(m_ref[bi], y2)                       # [E,E] @ [E,H]
            h = x_ji + agg
            for si in range(NUM_BEFORE_SKIP):
                h = h + lin(lin(h, f"ib{bi}_bs{si}a", act=True),
                            f"ib{bi}_bs{si}b", act=True)
            h = lin(h, f"ib{bi}_lin", act=True) + x_e
            for si in range(NUM_AFTER_SKIP):
                h = h + lin(lin(h, f"ib{bi}_as{si}a", act=True),
                            f"ib{bi}_as{si}b", act=True)
            return h

        P = output_block(0, x)
        for blk in range(NUM_BLOCKS):
            x = interaction_block(blk, x)
            P = P + output_block(blk + 1, x)

        # ---------------- graph readout + head ------------
        pg = dot(gs_ref[...], P)                           # [G, H]
        out_ref[...] = (jnp.sum(pg * hw_ref[...], axis=-1, keepdims=True)
                        + hb_ref[...])                     # [G, 1]
    return kernel


def _full_spec(shape):
    nd = len(shape)
    return pl.BlockSpec(tuple(shape), lambda i, _n=nd: (0,) * _n)


# --------------------------------- forward -------------------------------------
def make_forward(idx, num_graphs):
    @jax.jit
    def forward(arrays, z, pos, batch):
        H = HIDDEN
        N = z.shape[0]
        E = N * N
        T = N * N * N

        # --- radius_graph (dense all-pairs + mask) -----------------------------
        # TODO(synk): max_num_neighbors cap of radius_graph is not enforced (it
        # never binds at this scale).
        diff = pos[:, None, :] - pos[None, :, :]
        dist_mat = jnp.sqrt(jnp.sum(diff ** 2, axis=-1))
        same_batch = batch[:, None] == batch[None, :]
        not_self = ~jnp.eye(N, dtype=bool)
        edge_mask_mat = (dist_mat <= CUTOFF) & same_batch & not_self   # [i,j]: j->i
        emask = edge_mask_mat.reshape(E)
        dist = jnp.where(emask, dist_mat.reshape(E), 0.5 * CUTOFF)

        # --- triplets k -> j -> i ----------------------------------------------
        tmask = (edge_mask_mat[:, :, None]
                 & edge_mask_mat[None, :, :]
                 & (~jnp.eye(N, dtype=bool))[:, None, :]).reshape(T)
        # TODO(synk): angle is taken at node i (older PyG DimeNet); newer PyG
        # versions compute the angle at node j between j->i and k->j.
        pji = pos[None, :, :] - pos[:, None, :]            # [i,j] = pos_j - pos_i
        pji_t = jnp.broadcast_to(pji[:, :, None, :], (N, N, N, 3))
        pki_t = jnp.broadcast_to(pji[:, None, :, :], (N, N, N, 3))
        a = jnp.sum(pji_t * pki_t, axis=-1)
        b = jnp.linalg.norm(jnp.cross(pji_t, pki_t, axis=-1), axis=-1)
        angle = jnp.arctan2(b, a).reshape(T)

        # --- radial basis (BesselBasisLayer) -------------------------------------
        d_norm = dist / CUTOFF
        env = envelope(d_norm)
        rbf = env[:, None] * jnp.sin(arrays["freq"][None, :] * d_norm[:, None])
        rbf_pad = jnp.zeros((E, RADIAL_PAD), jnp.float32).at[:, :NUM_RADIAL].set(rbf)

        # --- spherical basis (SphericalBasisLayer) -------------------------------
        nsr = NUM_SPHERICAL * NUM_RADIAL
        rbf_s = env[:, None] * sph_bessel_basis(d_norm)                  # [E, 4]
        rbf_kj = jnp.broadcast_to(rbf_s.reshape(1, N, N, nsr),
                                  (N, N, N, nsr)).reshape(T, nsr)
        cbf = jnp.stack([jnp.full((T,), Y00, jnp.float32),
                         C10 * jnp.cos(angle)], axis=1)                  # [T, 2]
        sbf = (rbf_kj.reshape(T, NUM_SPHERICAL, NUM_RADIAL)
               * cbf[:, :, None]).reshape(T, nsr)                        # [T, 4]

        # --- per-block triplet-mixer matrices M[b]: [E, E] -----------------------
        #   M[(i,j),(j',k)] = delta(j,j') * tmask(i,j,k) * (sbf @ lin_sbf_b)(i,j,k)
        eyeN = jnp.eye(N, dtype=jnp.float32)
        tmask_f = tmask.astype(jnp.float32)
        Ms = []
        for blk in range(NUM_BLOCKS):
            sbf_p = (sbf @ arrays["lin_sbf"][blk])[:, 0]                 # [T]
            S = (tmask_f * sbf_p).reshape(N, N, N)                       # [i,j,k]
            M4 = S[:, :, None, :] * eyeN[None, :, :, None]               # [i,j,j',k]
            Ms.append(M4.reshape(E, E))
        M = jnp.stack(Ms)                                                # [3, E, E]

        # --- small gather / scatter matrices -------------------------------------
        ar = jnp.arange(E)
        Gi = jax.nn.one_hot(ar // N, N, dtype=jnp.float32)               # [E, N]
        Gj = jax.nn.one_hot(ar % N, N, dtype=jnp.float32)                # [E, N]
        NS = (jax.nn.one_hot(ar // N, N, dtype=jnp.float32).T
              * emask.astype(jnp.float32)[None, :])                      # [N, E]
        GS = jax.nn.one_hot(batch, num_graphs, dtype=jnp.float32).T      # [G, N]

        # --- node embeddings (table lookup) ---------------------------------------
        x_nodes = arrays["emb_table"][z]                                 # [N, H]

        # --- single fused Pallas kernel -------------------------------------------
        kernel = make_fused_kernel(idx)
        ins = [x_nodes, rbf_pad, Gi, Gj, NS, GS, M,
               arrays["whh"], arrays["bh"], arrays["wrbf"],
               arrays["head_w"], arrays["head_b"]]
        out = pl.pallas_call(
            kernel,
            grid=(1,),
            in_specs=[_full_spec(x.shape) for x in ins],
            out_specs=_full_spec((num_graphs, 1)),
            out_shape=jax.ShapeDtypeStruct((num_graphs, 1), jnp.float32),
            compiler_params=pltpu.CompilerParams(
                dimension_semantics=("arbitrary",)),
        )(*ins)
        return out

    return forward


# ----------------------------------- main --------------------------------------
if __name__ == "__main__":
    key = jax.random.PRNGKey(0)
    kp, kz, kpos = jax.random.split(key, 3)

    params = init_params(kp, HIDDEN)
    arrays, idx = pack_params(params)          # one-time packing (hoisted)

    N = 8
    num_graphs = 2
    z = jax.random.randint(kz, (N,), 1, 10)                       # atomic numbers
    pos = jax.random.normal(kpos, (N, 3), jnp.float32) * 2.0      # positions
    batch = jnp.array([0, 0, 0, 0, 1, 1, 1, 1], dtype=jnp.int32)  # 2 graphs

    forward = make_forward(idx, num_graphs)
    out = forward(arrays, z, pos, batch)
    out = jax.block_until_ready(out)

    assert out.shape == (num_graphs, 1)
    assert bool(jnp.all(jnp.isfinite(out)))
    print("KERNEL_OK")
</pallas_src>

<mosaic_0001>
module attributes {stable_mosaic.version = 11 : i64} {
  func.func @kernel(%arg0: i32, %arg1: memref<8x32xf32, #tpu.memory_space<vmem>>, %arg2: memref<64x8xf32, #tpu.memory_space<vmem>>, %arg3: memref<64x8xf32, #tpu.memory_space<vmem>>, %arg4: memref<64x8xf32, #tpu.memory_space<vmem>>, %arg5: memref<8x64xf32, #tpu.memory_space<vmem>>, %arg6: memref<2x8xf32, #tpu.memory_space<vmem>>, %arg7: memref<3x64x64xf32, #tpu.memory_space<vmem>>, %arg8: memref<49x32x32xf32, #tpu.memory_space<vmem>>, %arg9: memref<41x1x32xf32, #tpu.memory_space<vmem>>, %arg10: memref<8x8x32xf32, #tpu.memory_space<vmem>>, %arg11: memref<1x32xf32, #tpu.memory_space<vmem>>, %arg12: memref<1x1xf32, #tpu.memory_space<vmem>>, %arg13: memref<2x1xf32, #tpu.memory_space<vmem>>) attributes {dimension_semantics = [#tpu.dimension_semantics<arbitrary>], iteration_bounds = array<i64: 1>, scalar_prefetch = 0 : i64, scratch_operands = 0 : i64, tpu.core_type = #tpu.core_type<tc>, window_params = [{pipeline_mode = #tpu.pipeline_mode<synchronous>, transform_indices = @transform_0, window_bounds = array<i64: 8, 32>}, {pipeline_mode = #tpu.pipeline_mode<synchronous>, transform_indices = @transform_1, window_bounds = array<i64: 64, 8>}, {pipeline_mode = #tpu.pipeline_mode<synchronous>, transform_indices = @transform_2, window_bounds = array<i64: 64, 8>}, {pipeline_mode = #tpu.pipeline_mode<synchronous>, transform_indices = @transform_3, window_bounds = array<i64: 64, 8>}, {pipeline_mode = #tpu.pipeline_mode<synchronous>, transform_indices = @transform_4, window_bounds = array<i64: 8, 64>}, {pipeline_mode = #tpu.pipeline_mode<synchronous>, transform_indices = @transform_5, window_bounds = array<i64: 2, 8>}, {pipeline_mode = #tpu.pipeline_mode<synchronous>, transform_indices = @transform_6, window_bounds = array<i64: 3, 64, 64>}, {pipeline_mode = #tpu.pipeline_mode<synchronous>, transform_indices = @transform_7, window_bounds = array<i64: 49, 32, 32>}, {pipeline_mode = #tpu.pipeline_mode<synchronous>, transform_indices = @transform_8, window_bounds = array<i64: 41, 1, 32>}, {pipeline_mode = #tpu.pipeline_mode<synchronous>, transform_indices = @transform_9, window_bounds = array<i64: 8, 8, 32>}, {pipeline_mode = #tpu.pipeline_mode<synchronous>, transform_indices = @transform_10, window_bounds = array<i64: 1, 32>}, {pipeline_mode = #tpu.pipeline_mode<synchronous>, transform_indices = @transform_11, window_bounds = array<i64: 1, 1>}, {pipeline_mode = #tpu.pipeline_mode<synchronous>, transform_indices = @transform_12, window_bounds = array<i64: 2, 1>}]} {
    %c0 = arith.constant 0 : index
    %c0_0 = arith.constant 0 : index
    %0 = vector.load %arg1[%c0, %c0_0] : memref<8x32xf32, #tpu.memory_space<vmem>>, vector<8x32xf32>
    %c0_1 = arith.constant 0 : index
    %c0_2 = arith.constant 0 : index
    %1 = vector.load %arg2[%c0_1, %c0_2] : memref<64x8xf32, #tpu.memory_space<vmem>>, vector<64x8xf32>
    %c0_3 = arith.constant 0 : index
    %c0_4 = arith.constant 0 : index
    %c0_5 = arith.constant 0 : index
    %2 = vector.load %arg10[%c0_3, %c0_4, %c0_5] : memref<8x8x32xf32, #tpu.memory_space<vmem>>, vector<1x8x32xf32>
    %3 = vector.shape_cast %2 : vector<1x8x32xf32> to vector<8x32xf32>
    %cst = arith.constant dense<0.000000e+00> : vector<64x32xf32>
    %4 = tpu.matmul %1, %3, %cst {dimension_numbers = #tpu.dot_dimension_numbers<[1], [0], [0], [1], [0, 0, 1, 1], [], []>} : vector<64x8xf32>, vector<8x32xf32>, vector<64x32xf32> -> vector<64x32xf32>
    %c1 = arith.constant 1 : index
    %c0_6 = arith.constant 0 : index
    %c0_7 = arith.constant 0 : index
    %5 = vector.load %arg9[%c1, %c0_6, %c0_7] : memref<41x1x32xf32, #tpu.memory_space<vmem>>, vector<1x1x32xf32>
    %6 = vector.shape_cast %5 : vector<1x1x32xf32> to vector<1x32xf32>
    %7 = vector.broadcast %6 : vector<1x32xf32> to vector<64x32xf32>
    %8 = arith.addf %4, %7 : vector<64x32xf32>
    %9 = arith.negf %8 : vector<64x32xf32>
    %10 = math.exp %9 : vector<64x32xf32>
    %cst_8 = arith.constant 1.000000e+00 : f32
    %11 = vector.broadcast %cst_8 : f32 to vector<64x32xf32>
    %12 = arith.addf %11, %10 : vector<64x32xf32>
    %13 = arith.divf %11, %12 : vector<64x32xf32>
    %14 = arith.mulf %8, %13 : vector<64x32xf32>
    %c0_9 = arith.constant 0 : index
    %c0_10 = arith.constant 0 : index
    %15 = vector.load %arg3[%c0_9, %c0_10] : memref<64x8xf32, #tpu.memory_space<vmem>>, vector<64x8xf32>
    %cst_11 = arith.constant dense<0.000000e+00> : vector<64x32xf32>
    %16 = tpu.matmul %15, %0, %cst_11 {dimension_numbers = #tpu.dot_dimension_numbers<[1], [0], [0], [1], [0, 0, 1, 1], [], []>} : vector<64x8xf32>, vector<8x32xf32>, vector<64x32xf32> -> vector<64x32xf32>
    %c0_12 = arith.constant 0 : index
    %c0_13 = arith.constant 0 : index
    %17 = vector.load %arg4[%c0_12, %c0_13] : memref<64x8xf32, #tpu.memory_space<vmem>>, vector<64x8xf32>
    %cst_14 = arith.constant dense<0.000000e+00> : vector<64x32xf32>
    %18 = tpu.matmul %17, %0, %cst_14 {dimension_numbers = #tpu.dot_dimension_numbers<[1], [0], [0], [1], [0, 0, 1, 1], [], []>} : vector<64x8xf32>, vector<8x32xf32>, vector<64x32xf32> -> vector<64x32xf32>
    %c0_15 = arith.constant 0 : index
    %c0_16 = arith.constant 0 : index
    %c0_17 = arith.constant 0 : index
    %19 = vector.load %arg8[%c0_15, %c0_16, %c0_17] : memref<49x32x32xf32, #tpu.memory_space<vmem>>, vector<1x32x32xf32>
    %20 = vector.shape_cast %19 : vector<1x32x32xf32> to vector<32x32xf32>
    %cst_18 = arith.constant dense<0.000000e+00> : vector<64x32xf32>
    %21 = tpu.matmul %16, %20, %cst_18 {dimension_numbers = #tpu.dot_dimension_numbers<[1], [0], [0], [1], [0, 0, 1, 1], [], []>} : vector<64x32xf32>, vector<32x32xf32>, vector<64x32xf32> -> vector<64x32xf32>
    %c1_19 = arith.constant 1 : index
    %c0_20 = arith.constant 0 : index
    %c0_21 = arith.constant 0 : index
    %22 = vector.load %arg8[%c1_19, %c0_20, %c0_21] : memref<49x32x32xf32, #tpu.memory_space<vmem>>, vector<1x32x32xf32>
    %23 = vector.shape_cast %22 : vector<1x32x32xf32> to vector<32x32xf32>
    %cst_22 = arith.constant dense<0.000000e+00> : vector<64x32xf32>
    %24 = tpu.matmul %18, %23, %cst_22 {dimension_numbers = #tpu.dot_dimension_numbers<[1], [0], [0], [1], [0, 0, 1, 1], [], []>} : vector<64x32xf32>, vector<32x32xf32>, vector<64x32xf32> -> vector<64x32xf32>
    %25 = arith.addf %21, %24 : vector<64x32xf32>
    %c2 = arith.constant 2 : index
    %c0_23 = arith.constant 0 : index
    %c0_24 = arith.constant 0 : index
    %26 = vector.load %arg8[%c2, %c0_23, %c0_24] : memref<49x32x32xf32, #tpu.memory_space<vmem>>, vector<1x32x32xf32>
    %27 = vector.shape_cast %26 : vector<1x32x32xf32> to vector<32x32xf32>
    %cst_25 = arith.constant dense<0.000000e+00> : vector<64x32xf32>
    %28 = tpu.matmul %14, %27, %cst_25 {dimension_numbers = #tpu.dot_dimension_numbers<[1], [0], [0], [1], [0, 0, 1, 1], [], []>} : vector<64x32xf32>, vector<32x32xf32>, vector<64x32xf32> -> vector<64x32xf32>
    %29 = arith.addf %25, %28 : vector<64x32xf32>
    %c0_26 = arith.constant 0 : index
    %c0_27 = arith.constant 0 : index
    %c0_28 = arith.constant 0 : index
    %30 = vector.load %arg9[%c0_26, %c0_27, %c0_28] : memref<41x1x32xf32, #tpu.memory_space<vmem>>, vector<1x1x32xf32>
    %31 = vector.shape_cast %30 : vector<1x1x32xf32> to vector<1x32xf32>
    %32 = vector.broadcast %31 : vector<1x32xf32> to vector<64x32xf32>
    %33 = arith.addf %29, %32 : vector<64x32xf32>
    %34 = arith.negf %33 : vector<64x32xf32>
    %35 = math.exp %34 : vector<64x32xf32>
    %cst_29 = arith.constant 1.000000e+00 : f32
    %36 = vector.broadcast %cst_29 : f32 to vector<64x32xf32>
    %37 = arith.addf %36, %35 : vector<64x32xf32>
    %38 = arith.divf %36, %37 : vector<64x32xf32>
    %39 = arith.mulf %33, %38 : vector<64x32xf32>
    %c1_30 = arith.constant 1 : index
    %c0_31 = arith.constant 0 : index
    %c0_32 = arith.constant 0 : index
    %40 = vector.load %arg10[%c1_30, %c0_31, %c0_32] : memref<8x8x32xf32, #tpu.memory_space<vmem>>, vector<1x8x32xf32>
    %41 = vector.shape_cast %40 : vector<1x8x32xf32> to vector<8x32xf32>
    %cst_33 = arith.constant dense<0.000000e+00> : vector<64x32xf32>
    %42 = tpu.matmul %1, %41, %cst_33 {dimension_numbers = #tpu.dot_dimension_numbers<[1], [0], [0], [1], [0, 0, 1, 1], [], []>} : vector<64x8xf32>, vector<8x32xf32>, vector<64x32xf32> -> vector<64x32xf32>
    %43 = arith.mulf %42, %39 : vector<64x32xf32>
    %c0_34 = arith.constant 0 : index
    %c0_35 = arith.constant 0 : index
    %44 = vector.load %arg5[%c0_34, %c0_35] : memref<8x64xf32, #tpu.memory_space<vmem>>, vector<8x64xf32>
    %cst_36 = arith.constant dense<0.000000e+00> : vector<8x32xf32>
    %45 = tpu.matmul %44, %43, %cst_36 {dimension_numbers = #tpu.dot_dimension_numbers<[1], [0], [0], [1], [0, 0, 1, 1], [], []>} : vector<8x64xf32>, vector<64x32xf32>, vector<8x32xf32> -> vector<8x32xf32>
    %c3 = arith.constant 3 : index
    %c0_37 = arith.constant 0 : index
    %c0_38 = arith.constant 0 : index
    %46 = vector.load %arg8[%c3, %c0_37, %c0_38] : memref<49x32x32xf32, #tpu.memory_space<vmem>>, vector<1x32x32xf32>
    %47 = vector.shape_cast %46 : vector<1x32x32xf32> to vector<32x32xf32>
    %cst_39 = arith.constant dense<0.000000e+00> : vector<8x32xf32>
    %48 = tpu.matmul %45, %47, %cst_39 {dimension_numbers = #tpu.dot_dimension_numbers<[1], [0], [0], [1], [0, 0, 1, 1], [], []>} : vector<8x32xf32>, vector<32x32xf32>, vector<8x32xf32> -> vector<8x32xf32>
    %c2_40 = arith.constant 2 : index
    %c0_41 = arith.constant 0 : index
    %c0_42 = arith.constant 0 : index
    %49 = vector.load %arg9[%c2_40, %c0_41, %c0_42] : memref<41x1x32xf32, #tpu.memory_space<vmem>>, vector<1x1x32xf32>
    %50 = vector.shape_cast %49 : vector<1x1x32xf32> to vector<1x32xf32>
    %51 = vector.broadcast %50 : vector<1x32xf32> to vector<8x32xf32>
    %52 = arith.addf %48, %51 : vector<8x32xf32>
    %53 = arith.negf %52 : vector<8x32xf32>
    %54 = math.exp %53 : vector<8x32xf32>
    %cst_43 = arith.constant 1.000000e+00 : f32
    %55 = vector.broadcast %cst_43 : f32 to vector<8x32xf32>
    %56 = arith.addf %55, %54 : vector<8x32xf32>
    %57 = arith.divf %55, %56 : vector<8x32xf32>
    %58 = arith.mulf %52, %57 : vector<8x32xf32>
    %c4 = arith.constant 4 : index
    %c0_44 = arith.constant 0 : index
    %c0_45 = arith.constant 0 : index
    %59 = vector.load %arg8[%c4, %c0_44, %c0_45] : memref<49x32x32xf32, #tpu.memory_space<vmem>>, vector<1x32x32xf32>
    %60 = vector.shape_cast %59 : vector<1x32x32xf32> to vector<32x32xf32>
    %cst_46 = arith.constant dense<0.000000e+00> : vector<8x32xf32>
    %61 = tpu.matmul %58, %60, %cst_46 {dimension_numbers = #tpu.dot_dimension_numbers<[1], [0], [0], [1], [0, 0, 1, 1], [], []>} : vector<8x32xf32>, vector<32x32xf32>, vector<8x32xf32> -> vector<8x32xf32>
    %c3_47 = arith.constant 3 : index
    %c0_48 = arith.constant 0 : index
    %c0_49 = arith.constant 0 : index
    %62 = vector.load %arg9[%c3_47, %c0_48, %c0_49] : memref<41x1x32xf32, #tpu.memory_space<vmem>>, vector<1x1x32xf32>
    %63 = vector.shape_cast %62 : vector<1x1x32xf32> to vector<1x32xf32>
    %64 = vector.broadcast %63 : vector<1x32xf32> to vector<8x32xf32>
    %65 = arith.addf %61, %64 : vector<8x32xf32>
    %66 = arith.negf %65 : vector<8x32xf32>
    %67 = math.exp %66 : vector<8x32xf32>
    %cst_50 = arith.constant 1.000000e+00 : f32
    %68 = vector.broadcast %cst_50 : f32 to vector<8x32xf32>
    %69 = arith.addf %68, %67 : vector<8x32xf32>
    %70 = arith.divf %68, %69 : vector<8x32xf32>
    %71 = arith.mulf %65, %70 : vector<8x32xf32>
    %c5 = arith.constant 5 : index
    %c0_51 = arith.constant 0 : index
    %c0_52 = arith.constant 0 : index
    %72 = vector.load %arg8[%c5, %c0_51, %c0_52] : memref<49x32x32xf32, #tpu.memory_space<vmem>>, vector<1x32x32xf32>
    %73 = vector.shape_cast %72 : vector<1x32x32xf32> to vector<32x32xf32>
    %cst_53 = arith.constant dense<0.000000e+00> : vector<8x32xf32>
    %74 = tpu.matmul %71, %73, %cst_53 {dimension_numbers = #tpu.dot_dimension_numbers<[1], [0], [0], [1], [0, 0, 1, 1], [], []>} : vector<8x32xf32>, vector<32x32xf32>, vector<8x32xf32> -> vector<8x32xf32>
    %c4_54 = arith.constant 4 : index
    %c0_55 = arith.constant 0 : index
    %c0_56 = arith.constant 0 : index
    %75 = vector.load %arg9[%c4_54, %c0_55, %c0_56] : memref<41x1x32xf32, #tpu.memory_space<vmem>>, vector<1x1x32xf32>
    %76 = vector.shape_cast %75 : vector<1x1x32xf32> to vector<1x32xf32>
    %77 = vector.broadcast %76 : vector<1x32xf32> to vector<8x32xf32>
    %78 = arith.addf %74, %77 : vector<8x32xf32>
    %79 = arith.negf %78 : vector<8x32xf32>
    %80 = math.exp %79 : vector<8x32xf32>
    %cst_57 = arith.constant 1.000000e+00 : f32
    %81 = vector.broadcast %cst_57 : f32 to vector<8x32xf32>
    %82 = arith.addf %81, %80 : vector<8x32xf32>
    %83 = arith.divf %81, %82 : vector<8x32xf32>
    %84 = arith.mulf %78, %83 : vector<8x32xf32>
    %c6 = arith.constant 6 : index
    %c0_58 = arith.constant 0 : index
    %c0_59 = arith.constant 0 : index
    %85 = vector.load %arg8[%c6, %c0_58, %c0_59] : memref<49x32x32xf32, #tpu.memory_space<vmem>>, vector<1x32x32xf32>
    %86 = vector.shape_cast %85 : vector<1x32x32xf32> to vector<32x32xf32>
    %cst_60 = arith.constant dense<0.000000e+00> : vector<8x32xf32>
    %87 = tpu.matmul %84, %86, %cst_60 {dimension_numbers = #tpu.dot_dimension_numbers<[1], [0], [0], [1], [0, 0, 1, 1], [], []>} : vector<8x32xf32>, vector<32x32xf32>, vector<8x32xf32> -> vector<8x32xf32>
    %c5_61 = arith.constant 5 : index
    %c0_62 = arith.constant 0 : index
    %c0_63 = arith.constant 0 : index
    %88 = vector.load %arg10[%c5_61, %c0_62, %c0_63] : memref<8x8x32xf32, #tpu.memory_space<vmem>>, vector<1x8x32xf32>
    %89 = vector.shape_cast %88 : vector<1x8x32xf32> to vector<8x32xf32>
    %cst_64 = arith.constant dense<0.000000e+00> : vector<64x32xf32>
    %90 = tpu.matmul %1, %89, %cst_64 {dimension_numbers = #tpu.dot_dimension_numbers<[1], [0], [0], [1], [0, 0, 1, 1], [], []>} : vector<64x8xf32>, vector<8x32xf32>, vector<64x32xf32> -> vector<64x32xf32>
    %c19 = arith.constant 19 : index
    %c0_65 = arith.constant 0 : index
    %c0_66 = arith.constant 0 : index
    %91 = vector.load %arg8[%c19, %c0_65, %c0_66] : memref<49x32x32xf32, #tpu.memory_space<vmem>>, vector<1x32x32xf32>
    %92 = vector.shape_cast %91 : vector<1x32x32xf32> to vector<32x32xf32>
    %cst_67 = arith.constant dense<0.000000e+00> : vector<64x32xf32>
    %93 = tpu.matmul %39, %92, %cst_67 {dimension_numbers = #tpu.dot_dimension_numbers<[1], [0], [0], [1], [0, 0, 1, 1], [], []>} : vector<64x32xf32>, vector<32x32xf32>, vector<64x32xf32> -> vector<64x32xf32>
    %c14 = arith.constant 14 : index
    %c0_68 = arith.constant 0 : index
    %c0_69 = arith.constant 0 : index
    %94 = vector.load %arg9[%c14, %c0_68, %c0_69] : memref<41x1x32xf32, #tpu.memory_space<vmem>>, vector<1x1x32xf32>
    %95 = vector.shape_cast %94 : vector<1x1x32xf32> to vector<1x32xf32>
    %96 = vector.broadcast %95 : vector<1x32xf32> to vector<64x32xf32>
    %97 = arith.addf %93, %96 : vector<64x32xf32>
    %98 = arith.negf %97 : vector<64x32xf32>
    %99 = math.exp %98 : vector<64x32xf32>
    %cst_70 = arith.constant 1.000000e+00 : f32
    %100 = vector.broadcast %cst_70 : f32 to vector<64x32xf32>
    %101 = arith.addf %100, %99 : vector<64x32xf32>
    %102 = arith.divf %100, %101 : vector<64x32xf32>
    %103 = arith.mulf %97, %102 : vector<64x32xf32>
    %c20 = arith.constant 20 : index
    %c0_71 = arith.constant 0 : index
    %c0_72 = arith.constant 0 : index
    %104 = vector.load %arg8[%c20, %c0_71, %c0_72] : memref<49x32x32xf32, #tpu.memory_space<vmem>>, vector<1x32x32xf32>
    %105 = vector.shape_cast %104 : vector<1x32x32xf32> to vector<32x32xf32>
    %cst_73 = arith.constant dense<0.000000e+00> : vector<64x32xf32>
    %106 = tpu.matmul %39, %105, %cst_73 {dimension_numbers = #tpu.dot_dimension_numbers<[1], [0], [0], [1], [0, 0, 1, 1], [], []>} : vector<64x32xf32>, vector<32x32xf32>, vector<64x32xf32> -> vector<64x32xf32>
    %c15 = arith.constant 15 : index
    %c0_74 = arith.constant 0 : index
    %c0_75 = arith.constant 0 : index
    %107 = vector.load %arg9[%c15, %c0_74, %c0_75] : memref<41x1x32xf32, #tpu.memory_space<vmem>>, vector<1x1x32xf32>
    %108 = vector.shape_cast %107 : vector<1x1x32xf32> to vector<1x32xf32>
    %109 = vector.broadcast %108 : vector<1x32xf32> to vector<64x32xf32>
    %110 = arith.addf %106, %109 : vector<64x32xf32>
    %111 = arith.negf %110 : vector<64x32xf32>
    %112 = math.exp %111 : vector<64x32xf32>
    %cst_76 = arith.constant 1.000000e+00 : f32
    %113 = vector.broadcast %cst_76 : f32 to vector<64x32xf32>
    %114 = arith.addf %113, %112 : vector<64x32xf32>
    %115 = arith.divf %113, %114 : vector<64x32xf32>
    %116 = arith.mulf %110, %115 : vector<64x32xf32>
    %117 = arith.mulf %116, %90 : vector<64x32xf32>
    %c21 = arith.constant 21 : index
    %c0_77 = arith.constant 0 : index
    %c0_78 = arith.constant 0 : index
    %118 = vector.load %arg8[%c21, %c0_77, %c0_78] : memref<49x32x32xf32, #tpu.memory_space<vmem>>, vector<1x32x32xf32>
    %119 = vector.shape_cast %118 : vector<1x32x32xf32> to vector<32x32xf32>
    %cst_79 = arith.constant dense<0.000000e+00> : vector<64x32xf32>
    %120 = tpu.matmul %117, %119, %cst_79 {dimension_numbers = #tpu.dot_dimension_numbers<[1], [0], [0], [1], [0, 0, 1, 1], [], []>} : vector<64x32xf32>, vector<32x32xf32>, vector<64x32xf32> -> vector<64x32xf32>
    %c0_80 = arith.constant 0 : index
    %c0_81 = arith.constant 0 : index
    %c0_82 = arith.constant 0 : index
    %121 = vector.load %arg7[%c0_80, %c0_81, %c0_82] : memref<3x64x64xf32, #tpu.memory_space<vmem>>, vector<1x64x64xf32>
    %122 = vector.shape_cast %121 : vector<1x64x64xf32> to vector<64x64xf32>
    %cst_83 = arith.constant dense<0.000000e+00> : vector<64x32xf32>
    %123 = tpu.matmul %122, %120, %cst_83 {dimension_numbers = #tpu.dot_dimension_numbers<[1], [0], [0], [1], [0, 0, 1, 1], [], []>} : vector<64x64xf32>, vector<64x32xf32>, vector<64x32xf32> -> vector<64x32xf32>
    %124 = arith.addf %103, %123 : vector<64x32xf32>
    %c22 = arith.constant 22 : index
    %c0_84 = arith.constant 0 : index
    %c0_85 = arith.constant 0 : index
    %125 = vector.load %arg8[%c22, %c0_84, %c0_85] : memref<49x32x32xf32, #tpu.memory_space<vmem>>, vector<1x32x32xf32>
    %126 = vector.shape_cast %125 : vector<1x32x32xf32> to vector<32x32xf32>
    %cst_86 = arith.constant dense<0.000000e+00> : vector<64x32xf32>
    %127 = tpu.matmul %124, %126, %cst_86 {dimension_numbers = #tpu.dot_dimension_numbers<[1], [0], [0], [1], [0, 0, 1, 1], [], []>} : vector<64x32xf32>, vector<32x32xf32>, vector<64x32xf32> -> vector<64x32xf32>
    %c16 = arith.constant 16 : index
    %c0_87 = arith.constant 0 : index
    %c0_88 = arith.constant 0 : index
    %128 = vector.load %arg9[%c16, %c0_87, %c0_88] : memref<41x1x32xf32, #tpu.memory_space<vmem>>, vector<1x1x32xf32>
    %129 = vector.shape_cast %128 : vector<1x1x32xf32> to vector<1x32xf32>
    %130 = vector.broadcast %129 : vector<1x32xf32> to vector<64x32xf32>
    %131 = arith.addf %127, %130 : vector<64x32xf32>
    %132 = arith.negf %131 : vector<64x32xf32>
    %133 = math.exp %132 : vector<64x32xf32>
    %cst_89 = arith.constant 1.000000e+00 : f32
    %134 = vector.broadcast %cst_89 : f32 to vector<64x32xf32>
    %135 = arith.addf %134, %133 : vector<64x32xf32>
    %136 = arith.divf %134, %135 : vector<64x32xf32>
    %137 = arith.mulf %131, %136 : vector<64x32xf32>
    %c23 = arith.constant 23 : index
    %c0_90 = arith.constant 0 : index
    %c0_91 = arith.constant 0 : index
    %138 = vector.load %arg8[%c23, %c0_90, %c0_91] : memref<49x32x32xf32, #tpu.memory_space<vmem>>, vector<1x32x32xf32>
    %139 = vector.shape_cast %138 : vector<1x32x32xf32> to vector<32x32xf32>
    %cst_92 = arith.constant dense<0.000000e+00> : vector<64x32xf32>
    %140 = tpu.matmul %137, %139, %cst_92 {dimension_numbers = #tpu.dot_dimension_numbers<[1], [0], [0], [1], [0, 0, 1, 1], [], []>} : vector<64x32xf32>, vector<32x32xf32>, vector<64x32xf32> -> vector<64x32xf32>
    %c17 = arith.constant 17 : index
    %c0_93 = arith.constant 0 : index
    %c0_94 = arith.constant 0 : index
    %141 = vector.load %arg9[%c17, %c0_93, %c0_94] : memref<41x1x32xf32, #tpu.memory_space<vmem>>, vector<1x1x32xf32>
    %142 = vector.shape_cast %141 : vector<1x1x32xf32> to vector<1x32xf32>
    %143 = vector.broadcast %142 : vector<1x32xf32> to vector<64x32xf32>
    %144 = arith.addf %140, %143 : vector<64x32xf32>
    %145 = arith.negf %144 : vector<64x32xf32>
    %146 = math.exp %145 : vector<64x32xf32>
    %cst_95 = arith.constant 1.000000e+00 : f32
    %147 = vector.broadcast %cst_95 : f32 to vector<64x32xf32>
    %148 = arith.addf %147, %146 : vector<64x32xf32>
    %149 = arith.divf %147, %148 : vector<64x32xf32>
    %150 = arith.mulf %144, %149 : vector<64x32xf32>
    %151 = arith.addf %124, %150 : vector<64x32xf32>
    %c24 = arith.constant 24 : index
    %c0_96 = arith.constant 0 : index
    %c0_97 = arith.constant 0 : index
    %152 = vector.load %arg8[%c24, %c0_96, %c0_97] : memref<49x32x32xf32, #tpu.memory_space<vmem>>, vector<1x32x32xf32>
    %153 = vector.shape_cast %152 : vector<1x32x32xf32> to vector<32x32xf32>
    %cst_98 = arith.constant dense<0.000000e+00> : vector<64x32xf32>
    %154 = tpu.matmul %151, %153, %cst_98 {dimension_numbers = #tpu.dot_dimension_numbers<[1], [0], [0], [1], [0, 0, 1, 1], [], []>} : vector<64x32xf32>, vector<32x32xf32>, vector<64x32xf32> -> vector<64x32xf32>
    %c18 = arith.constant 18 : index
    %c0_99 = arith.constant 0 : index
    %c0_100 = arith.constant 0 : index
    %155 = vector.load %arg9[%c18, %c0_99, %c0_100] : memref<41x1x32xf32, #tpu.memory_space<vmem>>, vector<1x1x32xf32>
    %156 = vector.shape_cast %155 : vector<1x1x32xf32> to vector<1x32xf32>
    %157 = vector.broadcast %156 : vector<1x32xf32> to vector<64x32xf32>
    %158 = arith.addf %154, %157 : vector<64x32xf32>
    %159 = arith.negf %158 : vector<64x32xf32>
    %160 = math.exp %159 : vector<64x32xf32>
    %cst_101 = arith.constant 1.000000e+00 : f32
    %161 = vector.broadcast %cst_101 : f32 to vector<64x32xf32>
    %162 = arith.addf %161, %160 : vector<64x32xf32>
    %163 = arith.divf %161, %162 : vector<64x32xf32>
    %164 = arith.mulf %158, %163 : vector<64x32xf32>
    %165 = arith.addf %164, %39 : vector<64x32xf32>
    %c25 = arith.constant 25 : index
    %c0_102 = arith.constant 0 : index
    %c0_103 = arith.constant 0 : index
    %166 = vector.load %arg8[%c25, %c0_102, %c0_103] : memref<49x32x32xf32, #tpu.memory_space<vmem>>, vector<1x32x32xf32>
    %167 = vector.shape_cast %166 : vector<1x32x32xf32> to vector<32x32xf32>
    %cst_104 = arith.constant dense<0.000000e+00> : vector<64x32xf32>
    %168 = tpu.matmul %165, %167, %cst_104 {dimension_numbers = #tpu.dot_dimension_numbers<[1], [0], [0], [1], [0, 0, 1, 1], [], []>} : vector<64x32xf32>, vector<32x32xf32>, vector<64x32xf32> -> vector<64x32xf32>
    %c19_105 = arith.constant 19 : index
    %c0_106 = arith.constant 0 : index
    %c0_107 = arith.constant 0 : index
    %169 = vector.load %arg9[%c19_105, %c0_106, %c0_107] : memref<41x1x32xf32, #tpu.memory_space<vmem>>, vector<1x1x32xf32>
    %170 = vector.shape_cast %169 : vector<1x1x32xf32> to vector<1x32xf32>
    %171 = vector.broadcast %170 : vector<1x32xf32> to vector<64x32xf32>
    %172 = arith.addf %168, %171 : vector<64x32xf32>
    %173 = arith.negf %172 : vector<64x32xf32>
    %174 = math.exp %173 : vector<64x32xf32>
    %cst_108 = arith.constant 1.000000e+00 : f32
    %175 = vector.broadcast %cst_108 : f32 to vector<64x32xf32>
    %176 = arith.addf %175, %174 : vector<64x32xf32>
    %177 = arith.divf %175, %176 : vector<64x32xf32>
    %178 = arith.mulf %172, %177 : vector<64x32xf32>
    %c26 = arith.constant 26 : index
    %c0_109 = arith.constant 0 : index
    %c0_110 = arith.constant 0 : index
    %179 = vector.load %arg8[%c26, %c0_109, %c0_110] : memref<49x32x32xf32, #tpu.memory_space<vmem>>, vector<1x32x32xf32>
    %180 = vector.shape_cast %179 : vector<1x32x32xf32> to vector<32x32xf32>
    %cst_111 = arith.constant dense<0.000000e+00> : vector<64x32xf32>
    %181 = tpu.matmul %178, %180, %cst_111 {dimension_numbers = #tpu.dot_dimension_numbers<[1], [0], [0], [1], [0, 0, 1, 1], [], []>} : vector<64x32xf32>, vector<32x32xf32>, vector<64x32xf32> -> vector<64x32xf32>
    %c20_112 = arith.constant 20 : index
    %c0_113 = arith.constant 0 : index
    %c0_114 = arith.constant 0 : index
    %182 = vector.load %arg9[%c20_112, %c0_113, %c0_114] : memref<41x1x32xf32, #tpu.memory_space<vmem>>, vector<1x1x32xf32>
    %183 = vector.shape_cast %182 : vector<1x1x32xf32> to vector<1x32xf32>
    %184 = vector.broadcast %183 : vector<1x32xf32> to vector<64x32xf32>
    %185 = arith.addf %181, %184 : vector<64x32xf32>
    %186 = arith.negf %185 : vector<64x32xf32>
    %187 = math.exp %186 : vector<64x32xf32>
    %cst_115 = arith.constant 1.000000e+00 : f32
    %188 = vector.broadcast %cst_115 : f32 to vector<64x32xf32>
    %189 = arith.addf %188, %187 : vector<64x32xf32>
    %190 = arith.divf %188, %189 : vector<64x32xf32>
    %191 = arith.mulf %185, %190 : vector<64x32xf32>
    %192 = arith.addf %165, %191 : vector<64x32xf32>
    %c27 = arith.constant 27 : index
    %c0_116 = arith.constant 0 : index
    %c0_117 = arith.constant 0 : index
    %193 = vector.load %arg8[%c27, %c0_116, %c0_117] : memref<49x32x32xf32, #tpu.memory_space<vmem>>, vector<1x32x32xf32>
    %194 = vector.shape_cast %193 : vector<1x32x32xf32> to vector<32x32xf32>
    %cst_118 = arith.constant dense<0.000000e+00> : vector<64x32xf32>
    %195 = tpu.matmul %192, %194, %cst_118 {dimension_numbers = #tpu.dot_dimension_numbers<[1], [0], [0], [1], [0, 0, 1, 1], [], []>} : vector<64x32xf32>, vector<32x32xf32>, vector<64x32xf32> -> vector<64x32xf32>
    %c21_119 = arith.constant 21 : index
    %c0_120 = arith.constant 0 : index
    %c0_121 = arith.constant 0 : index
    %196 = vector.load %arg9[%c21_119, %c0_120, %c0_121] : memref<41x1x32xf32, #tpu.memory_space<vmem>>, vector<1x1x32xf32>
    %197 = vector.shape_cast %196 : vector<1x1x32xf32> to vector<1x32xf32>
    %198 = vector.broadcast %197 : vector<1x32xf32> to vector<64x32xf32>
    %199 = arith.addf %195, %198 : vector<64x32xf32>
    %200 = arith.negf %199 : vector<64x32xf32>
    %201 = math.exp %200 : vector<64x32xf32>
    %cst_122 = arith.constant 1.000000e+00 : f32
    %202 = vector.broadcast %cst_122 : f32 to vector<64x32xf32>
    %203 = arith.addf %202, %201 : vector<64x32xf32>
    %204 = arith.divf %202, %203 : vector<64x32xf32>
    %205 = arith.mulf %199, %204 : vector<64x32xf32>
    %c28 = arith.constant 28 : index
    %c0_123 = arith.constant 0 : index
    %c0_124 = arith.constant 0 : index
    %206 = vector.load %arg8[%c28, %c0_123, %c0_124] : memref<49x32x32xf32, #tpu.memory_space<vmem>>, vector<1x32x32xf32>
    %207 = vector.shape_cast %206 : vector<1x32x32xf32> to vector<32x32xf32>
    %cst_125 = arith.constant dense<0.000000e+00> : vector<64x32xf32>
    %208 = tpu.matmul %205, %207, %cst_125 {dimension_numbers = #tpu.dot_dimension_numbers<[1], [0], [0], [1], [0, 0, 1, 1], [], []>} : vector<64x32xf32>, vector<32x32xf32>, vector<64x32xf32> -> vector<64x32xf32>
    %c22_126 = arith.constant 22 : index
    %c0_127 = arith.constant 0 : index
    %c0_128 = arith.constant 0 : index
    %209 = vector.load %arg9[%c22_126, %c0_127, %c0_128] : memref<41x1x32xf32, #tpu.memory_space<vmem>>, vector<1x1x32xf32>
    %210 = vector.shape_cast %209 : vector<1x1x32xf32> to vector<1x32xf32>
    %211 = vector.broadcast %210 : vector<1x32xf32> to vector<64x32xf32>
    %212 = arith.addf %208, %211 : vector<64x32xf32>
    %213 = arith.negf %212 : vector<64x32xf32>
    %214 = math.exp %213 : vector<64x32xf32>
    %cst_129 = arith.constant 1.000000e+00 : f32
    %215 = vector.broadcast %cst_129 : f32 to vector<64x32xf32>
    %216 = arith.addf %215, %214 : vector<64x32xf32>
    %217 = arith.divf %215, %216 : vector<64x32xf32>
    %218 = arith.mulf %212, %217 : vector<64x32xf32>
    %219 = arith.addf %192, %218 : vector<64x32xf32>
    %c2_130 = arith.constant 2 : index
    %c0_131 = arith.constant 0 : index
    %c0_132 = arith.constant 0 : index
    %220 = vector.load %arg10[%c2_130, %c0_131, %c0_132] : memref<8x8x32xf32, #tpu.memory_space<vmem>>, vector<1x8x32xf32>
    %221 = vector.shape_cast %220 : vector<1x8x32xf32> to vector<8x32xf32>
    %cst_133 = arith.constant dense<0.000000e+00> : vector<64x32xf32>
    %222 = tpu.matmul %1, %221, %cst_133 {dimension_numbers = #tpu.dot_dimension_numbers<[1], [0], [0], [1], [0, 0, 1, 1], [], []>} : vector<64x8xf32>, vector<8x32xf32>, vector<64x32xf32> -> vector<64x32xf32>
    %223 = arith.mulf %222, %219 : vector<64x32xf32>
    %c0_134 = arith.constant 0 : index
    %c0_135 = arith.constant 0 : index
    %224 = vector.load %arg5[%c0_134, %c0_135] : memref<8x64xf32, #tpu.memory_space<vmem>>, vector<8x64xf32>
    %cst_136 = arith.constant dense<0.000000e+00> : vector<8x32xf32>
    %225 = tpu.matmul %224, %223, %cst_136 {dimension_numbers = #tpu.dot_dimension_numbers<[1], [0], [0], [1], [0, 0, 1, 1], [], []>} : vector<8x64xf32>, vector<64x32xf32>, vector<8x32xf32> -> vector<8x32xf32>
    %c7 = arith.constant 7 : index
    %c0_137 = arith.constant 0 : index
    %c0_138 = arith.constant 0 : index
    %226 = vector.load %arg8[%c7, %c0_137, %c0_138] : memref<49x32x32xf32, #tpu.memory_space<vmem>>, vector<1x32x32xf32>
    %227 = vector.shape_cast %226 : vector<1x32x32xf32> to vector<32x32xf32>
    %cst_139 = arith.constant dense<0.000000e+00> : vector<8x32xf32>
    %228 = tpu.matmul %225, %227, %cst_139 {dimension_numbers = #tpu.dot_dimension_numbers<[1], [0], [0], [1], [0, 0, 1, 1], [], []>} : vector<8x32xf32>, vector<32x32xf32>, vector<8x32xf32> -> vector<8x32xf32>
    %c5_140 = arith.constant 5 : index
    %c0_141 = arith.constant 0 : index
    %c0_142 = arith.constant 0 : index
    %229 = vector.load %arg9[%c5_140, %c0_141, %c0_142] : memref<41x1x32xf32, #tpu.memory_space<vmem>>, vector<1x1x32xf32>
    %230 = vector.shape_cast %229 : vector<1x1x32xf32> to vector<1x32xf32>
    %231 = vector.broadcast %230 : vector<1x32xf32> to vector<8x32xf32>
    %232 = arith.addf %228, %231 : vector<8x32xf32>
    %233 = arith.negf %232 : vector<8x32xf32>
    %234 = math.exp %233 : vector<8x32xf32>
    %cst_143 = arith.constant 1.000000e+00 : f32
    %235 = vector.broadcast %cst_143 : f32 to vector<8x32xf32>
    %236 = arith.addf %235, %234 : vector<8x32xf32>
    %237 = arith.divf %235, %236 : vector<8x32xf32>
    %238 = arith.mulf %232, %237 : vector<8x32xf32>
    %c8 = arith.constant 8 : index
    %c0_144 = arith.constant 0 : index
    %c0_145 = arith.constant 0 : index
    %239 = vector.load %arg8[%c8, %c0_144, %c0_145] : memref<49x32x32xf32, #tpu.memory_space<vmem>>, vector<1x32x32xf32>
    %240 = vector.shape_cast %239 : vector<1x32x32xf32> to vector<32x32xf32>
    %cst_146 = arith.constant dense<0.000000e+00> : vector<8x32xf32>
    %241 = tpu.matmul %238, %240, %cst_146 {dimension_numbers = #tpu.dot_dimension_numbers<[1], [0], [0], [1], [0, 0, 1, 1], [], []>} : vector<8x32xf32>, vector<32x32xf32>, vector<8x32xf32> -> vector<8x32xf32>
    %c6_147 = arith.constant 6 : index
    %c0_148 = arith.constant 0 : index
    %c0_149 = arith.constant 0 : index
    %242 = vector.load %arg9[%c6_147, %c0_148, %c0_149] : memref<41x1x32xf32, #tpu.memory_space<vmem>>, vector<1x1x32xf32>
    %243 = vector.shape_cast %242 : vector<1x1x32xf32> to vector<1x32xf32>
    %244 = vector.broadcast %243 : vector<1x32xf32> to vector<8x32xf32>
    %245 = arith.addf %241, %244 : vector<8x32xf32>
    %246 = arith.negf %245 : vector<8x32xf32>
    %247 = math.exp %246 : vector<8x32xf32>
    %cst_150 = arith.constant 1.000000e+00 : f32
    %248 = vector.broadcast %cst_150 : f32 to vector<8x32xf32>
    %249 = arith.addf %248, %247 : vector<8x32xf32>
    %250 = arith.divf %248, %249 : vector<8x32xf32>
    %251 = arith.mulf %245, %250 : vector<8x32xf32>
    %c9 = arith.constant 9 : index
    %c0_151 = arith.constant 0 : index
    %c0_152 = arith.constant 0 : index
    %252 = vector.load %arg8[%c9, %c0_151, %c0_152] : memref<49x32x32xf32, #tpu.memory_space<vmem>>, vector<1x32x32xf32>
    %253 = vector.shape_cast %252 : vector<1x32x32xf32> to vector<32x32xf32>
    %cst_153 = arith.constant dense<0.000000e+00> : vector<8x32xf32>
    %254 = tpu.matmul %251, %253, %cst_153 {dimension_numbers = #tpu.dot_dimension_numbers<[1], [0], [0], [1], [0, 0, 1, 1], [], []>} : vector<8x32xf32>, vector<32x32xf32>, vector<8x32xf32> -> vector<8x32xf32>
    %c7_154 = arith.constant 7 : index
    %c0_155 = arith.constant 0 : index
    %c0_156 = arith.constant 0 : index
    %255 = vector.load %arg9[%c7_154, %c0_155, %c0_156] : memref<41x1x32xf32, #tpu.memory_space<vmem>>, vector<1x1x32xf32>
    %256 = vector.shape_cast %255 : vector<1x1x32xf32> to vector<1x32xf32>
    %257 = vector.broadcast %256 : vector<1x32xf32> to vector<8x32xf32>
    %258 = arith.addf %254, %257 : vector<8x32xf32>
    %259 = arith.negf %258 : vector<8x32xf32>
    %260 = math.exp %259 : vector<8x32xf32>
    %cst_157 = arith.constant 1.000000e+00 : f32
    %261 = vector.broadcast %cst_157 : f32 to vector<8x32xf32>
    %262 = arith.addf %261, %260 : vector<8x32xf32>
    %263 = arith.divf %261, %262 : vector<8x32xf32>
    %264 = arith.mulf %258, %263 : vector<8x32xf32>
    %c10 = arith.constant 10 : index
    %c0_158 = arith.constant 0 : index
    %c0_159 = arith.constant 0 : index
    %265 = vector.load %arg8[%c10, %c0_158, %c0_159] : memref<49x32x32xf32, #tpu.memory_space<vmem>>, vector<1x32x32xf32>
    %266 = vector.shape_cast %265 : vector<1x32x32xf32> to vector<32x32xf32>
    %cst_160 = arith.constant dense<0.000000e+00> : vector<8x32xf32>
    %267 = tpu.matmul %264, %266, %cst_160 {dimension_numbers = #tpu.dot_dimension_numbers<[1], [0], [0], [1], [0, 0, 1, 1], [], []>} : vector<8x32xf32>, vector<32x32xf32>, vector<8x32xf32> -> vector<8x32xf32>
    %268 = arith.addf %87, %267 : vector<8x32xf32>
    %c6_161 = arith.constant 6 : index
    %c0_162 = arith.constant 0 : index
    %c0_163 = arith.constant 0 : index
    %269 = vector.load %arg10[%c6_161, %c0_162, %c0_163] : memref<8x8x32xf32, #tpu.memory_space<vmem>>, vector<1x8x32xf32>
    %270 = vector.shape_cast %269 : vector<1x8x32xf32> to vector<8x32xf32>
    %cst_164 = arith.constant dense<0.000000e+00> : vector<64x32xf32>
    %271 = tpu.matmul %1, %270, %cst_164 {dimension_numbers = #tpu.dot_dimension_numbers<[1], [0], [0], [1], [0, 0, 1, 1], [], []>} : vector<64x8xf32>, vector<8x32xf32>, vector<64x32xf32> -> vector<64x32xf32>
    %c29 = arith.constant 29 : index
    %c0_165 = arith.constant 0 : index
    %c0_166 = arith.constant 0 : index
    %272 = vector.load %arg8[%c29, %c0_165, %c0_166] : memref<49x32x32xf32, #tpu.memory_space<vmem>>, vector<1x32x32xf32>
    %273 = vector.shape_cast %272 : vector<1x32x32xf32> to vector<32x32xf32>
    %cst_167 = arith.constant dense<0.000000e+00> : vector<64x32xf32>
    %274 = tpu.matmul %219, %273, %cst_167 {dimension_numbers = #tpu.dot_dimension_numbers<[1], [0], [0], [1], [0, 0, 1, 1], [], []>} : vector<64x32xf32>, vector<32x32xf32>, vector<64x32xf32> -> vector<64x32xf32>
    %c23_168 = arith.constant 23 : index
    %c0_169 = arith.constant 0 : index
    %c0_170 = arith.constant 0 : index
    %275 = vector.load %arg9[%c23_168, %c0_169, %c0_170] : memref<41x1x32xf32, #tpu.memory_space<vmem>>, vector<1x1x32xf32>
    %276 = vector.shape_cast %275 : vector<1x1x32xf32> to vector<1x32xf32>
    %277 = vector.broadcast %276 : vector<1x32xf32> to vector<64x32xf32>
    %278 = arith.addf %274, %277 : vector<64x32xf32>
    %279 = arith.negf %278 : vector<64x32xf32>
    %280 = math.exp %279 : vector<64x32xf32>
    %cst_171 = arith.constant 1.000000e+00 : f32
    %281 = vector.broadcast %cst_171 : f32 to vector<64x32xf32>
    %282 = arith.addf %281, %280 : vector<64x32xf32>
    %283 = arith.divf %281, %282 : vector<64x32xf32>
    %284 = arith.mulf %278, %283 : vector<64x32xf32>
    %c30 = arith.constant 30 : index
    %c0_172 = arith.constant 0 : index
    %c0_173 = arith.constant 0 : index
    %285 = vector.load %arg8[%c30, %c0_172, %c0_173] : memref<49x32x32xf32, #tpu.memory_space<vmem>>, vector<1x32x32xf32>
    %286 = vector.shape_cast %285 : vector<1x32x32xf32> to vector<32x32xf32>
    %cst_174 = arith.constant dense<0.000000e+00> : vector<64x32xf32>
    %287 = tpu.matmul %219, %286, %cst_174 {dimension_numbers = #tpu.dot_dimension_numbers<[1], [0], [0], [1], [0, 0, 1, 1], [], []>} : vector<64x32xf32>, vector<32x32xf32>, vector<64x32xf32> -> vector<64x32xf32>
    %c24_175 = arith.constant 24 : index
    %c0_176 = arith.constant 0 : index
    %c0_177 = arith.constant 0 : index
    %288 = vector.load %arg9[%c24_175, %c0_176, %c0_177] : memref<41x1x32xf32, #tpu.memory_space<vmem>>, vector<1x1x32xf32>
    %289 = vector.shape_cast %288 : vector<1x1x32xf32> to vector<1x32xf32>
    %290 = vector.broadcast %289 : vector<1x32xf32> to vector<64x32xf32>
    %291 = arith.addf %287, %290 : vector<64x32xf32>
    %292 = arith.negf %291 : vector<64x32xf32>
    %293 = math.exp %292 : vector<64x32xf32>
    %cst_178 = arith.constant 1.000000e+00 : f32
    %294 = vector.broadcast %cst_178 : f32 to vector<64x32xf32>
    %295 = arith.addf %294, %293 : vector<64x32xf32>
    %296 = arith.divf %294, %295 : vector<64x32xf32>
    %297 = arith.mulf %291, %296 : vector<64x32xf32>
    %298 = arith.mulf %297, %271 : vector<64x32xf32>
    %c31 = arith.constant 31 : index
    %c0_179 = arith.constant 0 : index
    %c0_180 = arith.constant 0 : index
    %299 = vector.load %arg8[%c31, %c0_179, %c0_180] : memref<49x32x32xf32, #tpu.memory_space<vmem>>, vector<1x32x32xf32>
    %300 = vector.shape_cast %299 : vector<1x32x32xf32> to vector<32x32xf32>
    %cst_181 = arith.constant dense<0.000000e+00> : vector<64x32xf32>
    %301 = tpu.matmul %298, %300, %cst_181 {dimension_numbers = #tpu.dot_dimension_numbers<[1], [0], [0], [1], [0, 0, 1, 1], [], []>} : vector<64x32xf32>, vector<32x32xf32>, vector<64x32xf32> -> vector<64x32xf32>
    %c1_182 = arith.constant 1 : index
    %c0_183 = arith.constant 0 : index
    %c0_184 = arith.constant 0 : index
    %302 = vector.load %arg7[%c1_182, %c0_183, %c0_184] : memref<3x64x64xf32, #tpu.memory_space<vmem>>, vector<1x64x64xf32>
    %303 = vector.shape_cast %302 : vector<1x64x64xf32> to vector<64x64xf32>
    %cst_185 = arith.constant dense<0.000000e+00> : vector<64x32xf32>
    %304 = tpu.matmul %303, %301, %cst_185 {dimension_numbers = #tpu.dot_dimension_numbers<[1], [0], [0], [1], [0, 0, 1, 1], [], []>} : vector<64x64xf32>, vector<64x32xf32>, vector<64x32xf32> -> vector<64x32xf32>
    %305 = arith.addf %284, %304 : vector<64x32xf32>
    %c32 = arith.constant 32 : index
    %c0_186 = arith.constant 0 : index
    %c0_187 = arith.constant 0 : index
    %306 = vector.load %arg8[%c32, %c0_186, %c0_187] : memref<49x32x32xf32, #tpu.memory_space<vmem>>, vector<1x32x32xf32>
    %307 = vector.shape_cast %306 : vector<1x32x32xf32> to vector<32x32xf32>
    %cst_188 = arith.constant dense<0.000000e+00> : vector<64x32xf32>
    %308 = tpu.matmul %305, %307, %cst_188 {dimension_numbers = #tpu.dot_dimension_numbers<[1], [0], [0], [1], [0, 0, 1, 1], [], []>} : vector<64x32xf32>, vector<32x32xf32>, vector<64x32xf32> -> vector<64x32xf32>
    %c25_189 = arith.constant 25 : index
    %c0_190 = arith.constant 0 : index
    %c0_191 = arith.constant 0 : index
    %309 = vector.load %arg9[%c25_189, %c0_190, %c0_191] : memref<41x1x32xf32, #tpu.memory_space<vmem>>, vector<1x1x32xf32>
    %310 = vector.shape_cast %309 : vector<1x1x32xf32> to vector<1x32xf32>
    %311 = vector.broadcast %310 : vector<1x32xf32> to vector<64x32xf32>
    %312 = arith.addf %308, %311 : vector<64x32xf32>
    %313 = arith.negf %312 : vector<64x32xf32>
    %314 = math.exp %313 : vector<64x32xf32>
    %cst_192 = arith.constant 1.000000e+00 : f32
    %315 = vector.broadcast %cst_192 : f32 to vector<64x32xf32>
    %316 = arith.addf %315, %314 : vector<64x32xf32>
    %317 = arith.divf %315, %316 : vector<64x32xf32>
    %318 = arith.mulf %312, %317 : vector<64x32xf32>
    %c33 = arith.constant 33 : index
    %c0_193 = arith.constant 0 : index
    %c0_194 = arith.constant 0 : index
    %319 = vector.load %arg8[%c33, %c0_193, %c0_194] : memref<49x32x32xf32, #tpu.memory_space<vmem>>, vector<1x32x32xf32>
    %320 = vector.shape_cast %319 : vector<1x32x32xf32> to vector<32x32xf32>
    %cst_195 = arith.constant dense<0.000000e+00> : vector<64x32xf32>
    %321 = tpu.matmul %318, %320, %cst_195 {dimension_numbers = #tpu.dot_dimension_numbers<[1], [0], [0], [1], [0, 0, 1, 1], [], []>} : vector<64x32xf32>, vector<32x32xf32>, vector<64x32xf32> -> vector<64x32xf32>
    %c26_196 = arith.constant 26 : index
    %c0_197 = arith.constant 0 : index
    %c0_198 = arith.constant 0 : index
    %322 = vector.load %arg9[%c26_196, %c0_197, %c0_198] : memref<41x1x32xf32, #tpu.memory_space<vmem>>, vector<1x1x32xf32>
    %323 = vector.shape_cast %322 : vector<1x1x32xf32> to vector<1x32xf32>
    %324 = vector.broadcast %323 : vector<1x32xf32> to vector<64x32xf32>
    %325 = arith.addf %321, %324 : vector<64x32xf32>
    %326 = arith.negf %325 : vector<64x32xf32>
    %327 = math.exp %326 : vector<64x32xf32>
    %cst_199 = arith.constant 1.000000e+00 : f32
    %328 = vector.broadcast %cst_199 : f32 to vector<64x32xf32>
    %329 = arith.addf %328, %327 : vector<64x32xf32>
    %330 = arith.divf %328, %329 : vector<64x32xf32>
    %331 = arith.mulf %325, %330 : vector<64x32xf32>
    %332 = arith.addf %305, %331 : vector<64x32xf32>
    %c34 = arith.constant 34 : index
    %c0_200 = arith.constant 0 : index
    %c0_201 = arith.constant 0 : index
    %333 = vector.load %arg8[%c34, %c0_200, %c0_201] : memref<49x32x32xf32, #tpu.memory_space<vmem>>, vector<1x32x32xf32>
    %334 = vector.shape_cast %333 : vector<1x32x32xf32> to vector<32x32xf32>
    %cst_202 = arith.constant dense<0.000000e+00> : vector<64x32xf32>
    %335 = tpu.matmul %332, %334, %cst_202 {dimension_numbers = #tpu.dot_dimension_numbers<[1], [0], [0], [1], [0, 0, 1, 1], [], []>} : vector<64x32xf32>, vector<32x32xf32>, vector<64x32xf32> -> vector<64x32xf32>
    %c27_203 = arith.constant 27 : index
    %c0_204 = arith.constant 0 : index
    %c0_205 = arith.constant 0 : index
    %336 = vector.load %arg9[%c27_203, %c0_204, %c0_205] : memref<41x1x32xf32, #tpu.memory_space<vmem>>, vector<1x1x32xf32>
    %337 = vector.shape_cast %336 : vector<1x1x32xf32> to vector<1x32xf32>
    %338 = vector.broadcast %337 : vector<1x32xf32> to vector<64x32xf32>
    %339 = arith.addf %335, %338 : vector<64x32xf32>
    %340 = arith.negf %339 : vector<64x32xf32>
    %341 = math.exp %340 : vector<64x32xf32>
    %cst_206 = arith.constant 1.000000e+00 : f32
    %342 = vector.broadcast %cst_206 : f32 to vector<64x32xf32>
    %343 = arith.addf %342, %341 : vector<64x32xf32>
    %344 = arith.divf %342, %343 : vector<64x32xf32>
    %345 = arith.mulf %339, %344 : vector<64x32xf32>
    %346 = arith.addf %345, %219 : vector<64x32xf32>
    %c35 = arith.constant 35 : index
    %c0_207 = arith.constant 0 : index
    %c0_208 = arith.constant 0 : index
    %347 = vector.load %arg8[%c35, %c0_207, %c0_208] : memref<49x32x32xf32, #tpu.memory_space<vmem>>, vector<1x32x32xf32>
    %348 = vector.shape_cast %347 : vector<1x32x32xf32> to vector<32x32xf32>
    %cst_209 = arith.constant dense<0.000000e+00> : vector<64x32xf32>
    %349 = tpu.matmul %346, %348, %cst_209 {dimension_numbers = #tpu.dot_dimension_numbers<[1], [0], [0], [1], [0, 0, 1, 1], [], []>} : vector<64x32xf32>, vector<32x32xf32>, vector<64x32xf32> -> vector<64x32xf32>
    %c28_210 = arith.constant 28 : index
    %c0_211 = arith.constant 0 : index
    %c0_212 = arith.constant 0 : index
    %350 = vector.load %arg9[%c28_210, %c0_211, %c0_212] : memref<41x1x32xf32, #tpu.memory_space<vmem>>, vector<1x1x32xf32>
    %351 = vector.shape_cast %350 : vector<1x1x32xf32> to vector<1x32xf32>
    %352 = vector.broadcast %351 : vector<1x32xf32> to vector<64x32xf32>
    %353 = arith.addf %349, %352 : vector<64x32xf32>
    %354 = arith.negf %353 : vector<64x32xf32>
    %355 = math.exp %354 : vector<64x32xf32>
    %cst_213 = arith.constant 1.000000e+00 : f32
    %356 = vector.broadcast %cst_213 : f32 to vector<64x32xf32>
    %357 = arith.addf %356, %355 : vector<64x32xf32>
    %358 = arith.divf %356, %357 : vector<64x32xf32>
    %359 = arith.mulf %353, %358 : vector<64x32xf32>
    %c36 = arith.constant 36 : index
    %c0_214 = arith.constant 0 : index
    %c0_215 = arith.constant 0 : index
    %360 = vector.load %arg8[%c36, %c0_214, %c0_215] : memref<49x32x32xf32, #tpu.memory_space<vmem>>, vector<1x32x32xf32>
    %361 = vector.shape_cast %360 : vector<1x32x32xf32> to vector<32x32xf32>
    %cst_216 = arith.constant dense<0.000000e+00> : vector<64x32xf32>
    %362 = tpu.matmul %359, %361, %cst_216 {dimension_numbers = #tpu.dot_dimension_numbers<[1], [0], [0], [1], [0, 0, 1, 1], [], []>} : vector<64x32xf32>, vector<32x32xf32>, vector<64x32xf32> -> vector<64x32xf32>
    %c29_217 = arith.constant 29 : index
    %c0_218 = arith.constant 0 : index
    %c0_219 = arith.constant 0 : index
    %363 = vector.load %arg9[%c29_217, %c0_218, %c0_219] : memref<41x1x32xf32, #tpu.memory_space<vmem>>, vector<1x1x32xf32>
    %364 = vector.shape_cast %363 : vector<1x1x32xf32> to vector<1x32xf32>
    %365 = vector.broadcast %364 : vector<1x32xf32> to vector<64x32xf32>
    %366 = arith.addf %362, %365 : vector<64x32xf32>
    %367 = arith.negf %366 : vector<64x32xf32>
    %368 = math.exp %367 : vector<64x32xf32>
    %cst_220 = arith.constant 1.000000e+00 : f32
    %369 = vector.broadcast %cst_220 : f32 to vector<64x32xf32>
    %370 = arith.addf %369, %368 : vector<64x32xf32>
    %371 = arith.divf %369, %370 : vector<64x32xf32>
    %372 = arith.mulf %366, %371 : vector<64x32xf32>
    %373 = arith.addf %346, %372 : vector<64x32xf32>
    %c37 = arith.constant 37 : index
    %c0_221 = arith.constant 0 : index
    %c0_222 = arith.constant 0 : index
    %374 = vector.load %arg8[%c37, %c0_221, %c0_222] : memref<49x32x32xf32, #tpu.memory_space<vmem>>, vector<1x32x32xf32>
    %375 = vector.shape_cast %374 : vector<1x32x32xf32> to vector<32x32xf32>
    %cst_223 = arith.constant dense<0.000000e+00> : vector<64x32xf32>
    %376 = tpu.matmul %373, %375, %cst_223 {dimension_numbers = #tpu.dot_dimension_numbers<[1], [0], [0], [1], [0, 0, 1, 1], [], []>} : vector<64x32xf32>, vector<32x32xf32>, vector<64x32xf32> -> vector<64x32xf32>
    %c30_224 = arith.constant 30 : index
    %c0_225 = arith.constant 0 : index
    %c0_226 = arith.constant 0 : index
    %377 = vector.load %arg9[%c30_224, %c0_225, %c0_226] : memref<41x1x32xf32, #tpu.memory_space<vmem>>, vector<1x1x32xf32>
    %378 = vector.shape_cast %377 : vector<1x1x32xf32> to vector<1x32xf32>
    %379 = vector.broadcast %378 : vector<1x32xf32> to vector<64x32xf32>
    %380 = arith.addf %376, %379 : vector<64x32xf32>
    %381 = arith.negf %380 : vector<64x32xf32>
    %382 = math.exp %381 : vector<64x32xf32>
    %cst_227 = arith.constant 1.000000e+00 : f32
    %383 = vector.broadcast %cst_227 : f32 to vector<64x32xf32>
    %384 = arith.addf %383, %382 : vector<64x32xf32>
    %385 = arith.divf %383, %384 : vector<64x32xf32>
    %386 = arith.mulf %380, %385 : vector<64x32xf32>
    %c38 = arith.constant 38 : index
    %c0_228 = arith.constant 0 : index
    %c0_229 = arith.constant 0 : index
    %387 = vector.load %arg8[%c38, %c0_228, %c0_229] : memref<49x32x32xf32, #tpu.memory_space<vmem>>, vector<1x32x32xf32>
    %388 = vector.shape_cast %387 : vector<1x32x32xf32> to vector<32x32xf32>
    %cst_230 = arith.constant dense<0.000000e+00> : vector<64x32xf32>
    %389 = tpu.matmul %386, %388, %cst_230 {dimension_numbers = #tpu.dot_dimension_numbers<[1], [0], [0], [1], [0, 0, 1, 1], [], []>} : vector<64x32xf32>, vector<32x32xf32>, vector<64x32xf32> -> vector<64x32xf32>
    %c31_231 = arith.constant 31 : index
    %c0_232 = arith.constant 0 : index
    %c0_233 = arith.constant 0 : index
    %390 = vector.load %arg9[%c31_231, %c0_232, %c0_233] : memref<41x1x32xf32, #tpu.memory_space<vmem>>, vector<1x1x32xf32>
    %391 = vector.shape_cast %390 : vector<1x1x32xf32> to vector<1x32xf32>
    %392 = vector.broadcast %391 : vector<1x32xf32> to vector<64x32xf32>
    %393 = arith.addf %389, %392 : vector<64x32xf32>
    %394 = arith.negf %393 : vector<64x32xf32>
    %395 = math.exp %394 : vector<64x32xf32>
    %cst_234 = arith.constant 1.000000e+00 : f32
    %396 = vector.broadcast %cst_234 : f32 to vector<64x32xf32>
    %397 = arith.addf %396, %395 : vector<64x32xf32>
    %398 = arith.divf %396, %397 : vector<64x32xf32>
    %399 = arith.mulf %393, %398 : vector<64x32xf32>
    %400 = arith.addf %373, %399 : vector<64x32xf32>
    %c3_235 = arith.constant 3 : index
    %c0_236 = arith.constant 0 : index
    %c0_237 = arith.constant 0 : index
    %401 = vector.load %arg10[%c3_235, %c0_236, %c0_237] : memref<8x8x32xf32, #tpu.memory_space<vmem>>, vector<1x8x32xf32>
    %402 = vector.shape_cast %401 : vector<1x8x32xf32> to vector<8x32xf32>
    %cst_238 = arith.constant dense<0.000000e+00> : vector<64x32xf32>
    %403 = tpu.matmul %1, %402, %cst_238 {dimension_numbers = #tpu.dot_dimension_numbers<[1], [0], [0], [1], [0, 0, 1, 1], [], []>} : vector<64x8xf32>, vector<8x32xf32>, vector<64x32xf32> -> vector<64x32xf32>
    %404 = arith.mulf %403, %400 : vector<64x32xf32>
    %c0_239 = arith.constant 0 : index
    %c0_240 = arith.constant 0 : index
    %405 = vector.load %arg5[%c0_239, %c0_240] : memref<8x64xf32, #tpu.memory_space<vmem>>, vector<8x64xf32>
    %cst_241 = arith.constant dense<0.000000e+00> : vector<8x32xf32>
    %406 = tpu.matmul %405, %404, %cst_241 {dimension_numbers = #tpu.dot_dimension_numbers<[1], [0], [0], [1], [0, 0, 1, 1], [], []>} : vector<8x64xf32>, vector<64x32xf32>, vector<8x32xf32> -> vector<8x32xf32>
    %c11 = arith.constant 11 : index
    %c0_242 = arith.constant 0 : index
    %c0_243 = arith.constant 0 : index
    %407 = vector.load %arg8[%c11, %c0_242, %c0_243] : memref<49x32x32xf32, #tpu.memory_space<vmem>>, vector<1x32x32xf32>
    %408 = vector.shape_cast %407 : vector<1x32x32xf32> to vector<32x32xf32>
    %cst_244 = arith.constant dense<0.000000e+00> : vector<8x32xf32>
    %409 = tpu.matmul %406, %408, %cst_244 {dimension_numbers = #tpu.dot_dimension_numbers<[1], [0], [0], [1], [0, 0, 1, 1], [], []>} : vector<8x32xf32>, vector<32x32xf32>, vector<8x32xf32> -> vector<8x32xf32>
    %c8_245 = arith.constant 8 : index
    %c0_246 = arith.constant 0 : index
    %c0_247 = arith.constant 0 : index
    %410 = vector.load %arg9[%c8_245, %c0_246, %c0_247] : memref<41x1x32xf32, #tpu.memory_space<vmem>>, vector<1x1x32xf32>
    %411 = vector.shape_cast %410 : vector<1x1x32xf32> to vector<1x32xf32>
    %412 = vector.broadcast %411 : vector<1x32xf32> to vector<8x32xf32>
    %413 = arith.addf %409, %412 : vector<8x32xf32>
    %414 = arith.negf %413 : vector<8x32xf32>
    %415 = math.exp %414 : vector<8x32xf32>
    %cst_248 = arith.constant 1.000000e+00 : f32
    %416 = vector.broadcast %cst_248 : f32 to vector<8x32xf32>
    %417 = arith.addf %416, %415 : vector<8x32xf32>
    %418 = arith.divf %416, %417 : vector<8x32xf32>
    %419 = arith.mulf %413, %418 : vector<8x32xf32>
    %c12 = arith.constant 12 : index
    %c0_249 = arith.constant 0 : index
    %c0_250 = arith.constant 0 : index
    %420 = vector.load %arg8[%c12, %c0_249, %c0_250] : memref<49x32x32xf32, #tpu.memory_space<vmem>>, vector<1x32x32xf32>
    %421 = vector.shape_cast %420 : vector<1x32x32xf32> to vector<32x32xf32>
    %cst_251 = arith.constant dense<0.000000e+00> : vector<8x32xf32>
    %422 = tpu.matmul %419, %421, %cst_251 {dimension_numbers = #tpu.dot_dimension_numbers<[1], [0], [0], [1], [0, 0, 1, 1], [], []>} : vector<8x32xf32>, vector<32x32xf32>, vector<8x32xf32> -> vector<8x32xf32>
    %c9_252 = arith.constant 9 : index
    %c0_253 = arith.constant 0 : index
    %c0_254 = arith.constant 0 : index
    %423 = vector.load %arg9[%c9_252, %c0_253, %c0_254] : memref<41x1x32xf32, #tpu.memory_space<vmem>>, vector<1x1x32xf32>
    %424 = vector.shape_cast %423 : vector<1x1x32xf32> to vector<1x32xf32>
    %425 = vector.broadcast %424 : vector<1x32xf32> to vector<8x32xf32>
    %426 = arith.addf %422, %425 : vector<8x32xf32>
    %427 = arith.negf %426 : vector<8x32xf32>
    %428 = math.exp %427 : vector<8x32xf32>
    %cst_255 = arith.constant 1.000000e+00 : f32
    %429 = vector.broadcast %cst_255 : f32 to vector<8x32xf32>
    %430 = arith.addf %429, %428 : vector<8x32xf32>
    %431 = arith.divf %429, %430 : vector<8x32xf32>
    %432 = arith.mulf %426, %431 : vector<8x32xf32>
    %c13 = arith.constant 13 : index
    %c0_256 = arith.constant 0 : index
    %c0_257 = arith.constant 0 : index
    %433 = vector.load %arg8[%c13, %c0_256, %c0_257] : memref<49x32x32xf32, #tpu.memory_space<vmem>>, vector<1x32x32xf32>
    %434 = vector.shape_cast %433 : vector<1x32x32xf32> to vector<32x32xf32>
    %cst_258 = arith.constant dense<0.000000e+00> : vector<8x32xf32>
    %435 = tpu.matmul %432, %434, %cst_258 {dimension_numbers = #tpu.dot_dimension_numbers<[1], [0], [0], [1], [0, 0, 1, 1], [], []>} : vector<8x32xf32>, vector<32x32xf32>, vector<8x32xf32> -> vector<8x32xf32>
    %c10_259 = arith.constant 10 : index
    %c0_260 = arith.constant 0 : index
    %c0_261 = arith.constant 0 : index
    %436 = vector.load %arg9[%c10_259, %c0_260, %c0_261] : memref<41x1x32xf32, #tpu.memory_space<vmem>>, vector<1x1x32xf32>
    %437 = vector.shape_cast %436 : vector<1x1x32xf32> to vector<1x32xf32>
    %438 = vector.broadcast %437 : vector<1x32xf32> to vector<8x32xf32>
    %439 = arith.addf %435, %438 : vector<8x32xf32>
    %440 = arith.negf %439 : vector<8x32xf32>
    %441 = math.exp %440 : vector<8x32xf32>
    %cst_262 = arith.constant 1.000000e+00 : f32
    %442 = vector.broadcast %cst_262 : f32 to vector<8x32xf32>
    %443 = arith.addf %442, %441 : vector<8x32xf32>
    %444 = arith.divf %442, %443 : vector<8x32xf32>
    %445 = arith.mulf %439, %444 : vector<8x32xf32>
    %c14_263 = arith.constant 14 : index
    %c0_264 = arith.constant 0 : index
    %c0_265 = arith.constant 0 : index
    %446 = vector.load %arg8[%c14_263, %c0_264, %c0_265] : memref<49x32x32xf32, #tpu.memory_space<vmem>>, vector<1x32x32xf32>
    %447 = vector.shape_cast %446 : vector<1x32x32xf32> to vector<32x32xf32>
    %cst_266 = arith.constant dense<0.000000e+00> : vector<8x32xf32>
    %448 = tpu.matmul %445, %447, %cst_266 {dimension_numbers = #tpu.dot_dimension_numbers<[1], [0], [0], [1], [0, 0, 1, 1], [], []>} : vector<8x32xf32>, vector<32x32xf32>, vector<8x32xf32> -> vector<8x32xf32>
    %449 = arith.addf %268, %448 : vector<8x32xf32>
    %c7_267 = arith.constant 7 : index
    %c0_268 = arith.constant 0 : index
    %c0_269 = arith.constant 0 : index
    %450 = vector.load %arg10[%c7_267, %c0_268, %c0_269] : memref<8x8x32xf32, #tpu.memory_space<vmem>>, vector<1x8x32xf32>
    %451 = vector.shape_cast %450 : vector<1x8x32xf32> to vector<8x32xf32>
    %cst_270 = arith.constant dense<0.000000e+00> : vector<64x32xf32>
    %452 = tpu.matmul %1, %451, %cst_270 {dimension_numbers = #tpu.dot_dimension_numbers<[1], [0], [0], [1], [0, 0, 1, 1], [], []>} : vector<64x8xf32>, vector<8x32xf32>, vector<64x32xf32> -> vector<64x32xf32>
    %c39 = arith.constant 39 : index
    %c0_271 = arith.constant 0 : index
    %c0_272 = arith.constant 0 : index
    %453 = vector.load %arg8[%c39, %c0_271, %c0_272] : memref<49x32x32xf32, #tpu.memory_space<vmem>>, vector<1x32x32xf32>
    %454 = vector.shape_cast %453 : vector<1x32x32xf32> to vector<32x32xf32>
    %cst_273 = arith.constant dense<0.000000e+00> : vector<64x32xf32>
    %455 = tpu.matmul %400, %454, %cst_273 {dimension_numbers = #tpu.dot_dimension_numbers<[1], [0], [0], [1], [0, 0, 1, 1], [], []>} : vector<64x32xf32>, vector<32x32xf32>, vector<64x32xf32> -> vector<64x32xf32>
    %c32_274 = arith.constant 32 : index
    %c0_275 = arith.constant 0 : index
    %c0_276 = arith.constant 0 : index
    %456 = vector.load %arg9[%c32_274, %c0_275, %c0_276] : memref<41x1x32xf32, #tpu.memory_space<vmem>>, vector<1x1x32xf32>
    %457 = vector.shape_cast %456 : vector<1x1x32xf32> to vector<1x32xf32>
    %458 = vector.broadcast %457 : vector<1x32xf32> to vector<64x32xf32>
    %459 = arith.addf %455, %458 : vector<64x32xf32>
    %460 = arith.negf %459 : vector<64x32xf32>
    %461 = math.exp %460 : vector<64x32xf32>
    %cst_277 = arith.constant 1.000000e+00 : f32
    %462 = vector.broadcast %cst_277 : f32 to vector<64x32xf32>
    %463 = arith.addf %462, %461 : vector<64x32xf32>
    %464 = arith.divf %462, %463 : vector<64x32xf32>
    %465 = arith.mulf %459, %464 : vector<64x32xf32>
    %c40 = arith.constant 40 : index
    %c0_278 = arith.constant 0 : index
    %c0_279 = arith.constant 0 : index
    %466 = vector.load %arg8[%c40, %c0_278, %c0_279] : memref<49x32x32xf32, #tpu.memory_space<vmem>>, vector<1x32x32xf32>
    %467 = vector.shape_cast %466 : vector<1x32x32xf32> to vector<32x32xf32>
    %cst_280 = arith.constant dense<0.000000e+00> : vector<64x32xf32>
    %468 = tpu.matmul %400, %467, %cst_280 {dimension_numbers = #tpu.dot_dimension_numbers<[1], [0], [0], [1], [0, 0, 1, 1], [], []>} : vector<64x32xf32>, vector<32x32xf32>, vector<64x32xf32> -> vector<64x32xf32>
    %c33_281 = arith.constant 33 : index
    %c0_282 = arith.constant 0 : index
    %c0_283 = arith.constant 0 : index
    %469 = vector.load %arg9[%c33_281, %c0_282, %c0_283] : memref<41x1x32xf32, #tpu.memory_space<vmem>>, vector<1x1x32xf32>
    %470 = vector.shape_cast %469 : vector<1x1x32xf32> to vector<1x32xf32>
    %471 = vector.broadcast %470 : vector<1x32xf32> to vector<64x32xf32>
    %472 = arith.addf %468, %471 : vector<64x32xf32>
    %473 = arith.negf %472 : vector<64x32xf32>
    %474 = math.exp %473 : vector<64x32xf32>
    %cst_284 = arith.constant 1.000000e+00 : f32
    %475 = vector.broadcast %cst_284 : f32 to vector<64x32xf32>
    %476 = arith.addf %475, %474 : vector<64x32xf32>
    %477 = arith.divf %475, %476 : vector<64x32xf32>
    %478 = arith.mulf %472, %477 : vector<64x32xf32>
    %479 = arith.mulf %478, %452 : vector<64x32xf32>
    %c41 = arith.constant 41 : index
    %c0_285 = arith.constant 0 : index
    %c0_286 = arith.constant 0 : index
    %480 = vector.load %arg8[%c41, %c0_285, %c0_286] : memref<49x32x32xf32, #tpu.memory_space<vmem>>, vector<1x32x32xf32>
    %481 = vector.shape_cast %480 : vector<1x32x32xf32> to vector<32x32xf32>
    %cst_287 = arith.constant dense<0.000000e+00> : vector<64x32xf32>
    %482 = tpu.matmul %479, %481, %cst_287 {dimension_numbers = #tpu.dot_dimension_numbers<[1], [0], [0], [1], [0, 0, 1, 1], [], []>} : vector<64x32xf32>, vector<32x32xf32>, vector<64x32xf32> -> vector<64x32xf32>
    %c2_288 = arith.constant 2 : index
    %c0_289 = arith.constant 0 : index
    %c0_290 = arith.constant 0 : index
    %483 = vector.load %arg7[%c2_288, %c0_289, %c0_290] : memref<3x64x64xf32, #tpu.memory_space<vmem>>, vector<1x64x64xf32>
    %484 = vector.shape_cast %483 : vector<1x64x64xf32> to vector<64x64xf32>
    %cst_291 = arith.constant dense<0.000000e+00> : vector<64x32xf32>
    %485 = tpu.matmul %484, %482, %cst_291 {dimension_numbers = #tpu.dot_dimension_numbers<[1], [0], [0], [1], [0, 0, 1, 1], [], []>} : vector<64x64xf32>, vector<64x32xf32>, vector<64x32xf32> -> vector<64x32xf32>
    %486 = arith.addf %465, %485 : vector<64x32xf32>
    %c42 = arith.constant 42 : index
    %c0_292 = arith.constant 0 : index
    %c0_293 = arith.constant 0 : index
    %487 = vector.load %arg8[%c42, %c0_292, %c0_293] : memref<49x32x32xf32, #tpu.memory_space<vmem>>, vector<1x32x32xf32>
    %488 = vector.shape_cast %487 : vector<1x32x32xf32> to vector<32x32xf32>
    %cst_294 = arith.constant dense<0.000000e+00> : vector<64x32xf32>
    %489 = tpu.matmul %486, %488, %cst_294 {dimension_numbers = #tpu.dot_dimension_numbers<[1], [0], [0], [1], [0, 0, 1, 1], [], []>} : vector<64x32xf32>, vector<32x32xf32>, vector<64x32xf32> -> vector<64x32xf32>
    %c34_295 = arith.constant 34 : index
    %c0_296 = arith.constant 0 : index
    %c0_297 = arith.constant 0 : index
    %490 = vector.load %arg9[%c34_295, %c0_296, %c0_297] : memref<41x1x32xf32, #tpu.memory_space<vmem>>, vector<1x1x32xf32>
    %491 = vector.shape_cast %490 : vector<1x1x32xf32> to vector<1x32xf32>
    %492 = vector.broadcast %491 : vector<1x32xf32> to vector<64x32xf32>
    %493 = arith.addf %489, %492 : vector<64x32xf32>
    %494 = arith.negf %493 : vector<64x32xf32>
    %495 = math.exp %494 : vector<64x32xf32>
    %cst_298 = arith.constant 1.000000e+00 : f32
    %496 = vector.broadcast %cst_298 : f32 to vector<64x32xf32>
    %497 = arith.addf %496, %495 : vector<64x32xf32>
    %498 = arith.divf %496, %497 : vector<64x32xf32>
    %499 = arith.mulf %493, %498 : vector<64x32xf32>
    %c43 = arith.constant 43 : index
    %c0_299 = arith.constant 0 : index
    %c0_300 = arith.constant 0 : index
    %500 = vector.load %arg8[%c43, %c0_299, %c0_300] : memref<49x32x32xf32, #tpu.memory_space<vmem>>, vector<1x32x32xf32>
    %501 = vector.shape_cast %500 : vector<1x32x32xf32> to vector<32x32xf32>
    %cst_301 = arith.constant dense<0.000000e+00> : vector<64x32xf32>
    %502 = tpu.matmul %499, %501, %cst_301 {dimension_numbers = #tpu.dot_dimension_numbers<[1], [0], [0], [1], [0, 0, 1, 1], [], []>} : vector<64x32xf32>, vector<32x32xf32>, vector<64x32xf32> -> vector<64x32xf32>
    %c35_302 = arith.constant 35 : index
    %c0_303 = arith.constant 0 : index
    %c0_304 = arith.constant 0 : index
    %503 = vector.load %arg9[%c35_302, %c0_303, %c0_304] : memref<41x1x32xf32, #tpu.memory_space<vmem>>, vector<1x1x32xf32>
    %504 = vector.shape_cast %503 : vector<1x1x32xf32> to vector<1x32xf32>
    %505 = vector.broadcast %504 : vector<1x32xf32> to vector<64x32xf32>
    %506 = arith.addf %502, %505 : vector<64x32xf32>
    %507 = arith.negf %506 : vector<64x32xf32>
    %508 = math.exp %507 : vector<64x32xf32>
    %cst_305 = arith.constant 1.000000e+00 : f32
    %509 = vector.broadcast %cst_305 : f32 to vector<64x32xf32>
    %510 = arith.addf %509, %508 : vector<64x32xf32>
    %511 = arith.divf %509, %510 : vector<64x32xf32>
    %512 = arith.mulf %506, %511 : vector<64x32xf32>
    %513 = arith.addf %486, %512 : vector<64x32xf32>
    %c44 = arith.constant 44 : index
    %c0_306 = arith.constant 0 : index
    %c0_307 = arith.constant 0 : index
    %514 = vector.load %arg8[%c44, %c0_306, %c0_307] : memref<49x32x32xf32, #tpu.memory_space<vmem>>, vector<1x32x32xf32>
    %515 = vector.shape_cast %514 : vector<1x32x32xf32> to vector<32x32xf32>
    %cst_308 = arith.constant dense<0.000000e+00> : vector<64x32xf32>
    %516 = tpu.matmul %513, %515, %cst_308 {dimension_numbers = #tpu.dot_dimension_numbers<[1], [0], [0], [1], [0, 0, 1, 1], [], []>} : vector<64x32xf32>, vector<32x32xf32>, vector<64x32xf32> -> vector<64x32xf32>
    %c36_309 = arith.constant 36 : index
    %c0_310 = arith.constant 0 : index
    %c0_311 = arith.constant 0 : index
    %517 = vector.load %arg9[%c36_309, %c0_310, %c0_311] : memref<41x1x32xf32, #tpu.memory_space<vmem>>, vector<1x1x32xf32>
    %518 = vector.shape_cast %517 : vector<1x1x32xf32> to vector<1x32xf32>
    %519 = vector.broadcast %518 : vector<1x32xf32> to vector<64x32xf32>
    %520 = arith.addf %516, %519 : vector<64x32xf32>
    %521 = arith.negf %520 : vector<64x32xf32>
    %522 = math.exp %521 : vector<64x32xf32>
    %cst_312 = arith.constant 1.000000e+00 : f32
    %523 = vector.broadcast %cst_312 : f32 to vector<64x32xf32>
    %524 = arith.addf %523, %522 : vector<64x32xf32>
    %525 = arith.divf %523, %524 : vector<64x32xf32>
    %526 = arith.mulf %520, %525 : vector<64x32xf32>
    %527 = arith.addf %526, %400 : vector<64x32xf32>
    %c45 = arith.constant 45 : index
    %c0_313 = arith.constant 0 : index
    %c0_314 = arith.constant 0 : index
    %528 = vector.load %arg8[%c45, %c0_313, %c0_314] : memref<49x32x32xf32, #tpu.memory_space<vmem>>, vector<1x32x32xf32>
    %529 = vector.shape_cast %528 : vector<1x32x32xf32> to vector<32x32xf32>
    %cst_315 = arith.constant dense<0.000000e+00> : vector<64x32xf32>
    %530 = tpu.matmul %527, %529, %cst_315 {dimension_numbers = #tpu.dot_dimension_numbers<[1], [0], [0], [1], [0, 0, 1, 1], [], []>} : vector<64x32xf32>, vector<32x32xf32>, vector<64x32xf32> -> vector<64x32xf32>
    %c37_316 = arith.constant 37 : index
    %c0_317 = arith.constant 0 : index
    %c0_318 = arith.constant 0 : index
    %531 = vector.load %arg9[%c37_316, %c0_317, %c0_318] : memref<41x1x32xf32, #tpu.memory_space<vmem>>, vector<1x1x32xf32>
    %532 = vector.shape_cast %531 : vector<1x1x32xf32> to vector<1x32xf32>
    %533 = vector.broadcast %532 : vector<1x32xf32> to vector<64x32xf32>
    %534 = arith.addf %530, %533 : vector<64x32xf32>
    %535 = arith.negf %534 : vector<64x32xf32>
    %536 = math.exp %535 : vector<64x32xf32>
    %cst_319 = arith.constant 1.000000e+00 : f32
    %537 = vector.broadcast %cst_319 : f32 to vector<64x32xf32>
    %538 = arith.addf %537, %536 : vector<64x32xf32>
    %539 = arith.divf %537, %538 : vector<64x32xf32>
    %540 = arith.mulf %534, %539 : vector<64x32xf32>
    %c46 = arith.constant 46 : index
    %c0_320 = arith.constant 0 : index
    %c0_321 = arith.constant 0 : index
    %541 = vector.load %arg8[%c46, %c0_320, %c0_321] : memref<49x32x32xf32, #tpu.memory_space<vmem>>, vector<1x32x32xf32>
    %542 = vector.shape_cast %541 : vector<1x32x32xf32> to vector<32x32xf32>
    %cst_322 = arith.constant dense<0.000000e+00> : vector<64x32xf32>
    %543 = tpu.matmul %540, %542, %cst_322 {dimension_numbers = #tpu.dot_dimension_numbers<[1], [0], [0], [1], [0, 0, 1, 1], [], []>} : vector<64x32xf32>, vector<32x32xf32>, vector<64x32xf32> -> vector<64x32xf32>
    %c38_323 = arith.constant 38 : index
    %c0_324 = arith.constant 0 : index
    %c0_325 = arith.constant 0 : index
    %544 = vector.load %arg9[%c38_323, %c0_324, %c0_325] : memref<41x1x32xf32, #tpu.memory_space<vmem>>, vector<1x1x32xf32>
    %545 = vector.shape_cast %544 : vector<1x1x32xf32> to vector<1x32xf32>
    %546 = vector.broadcast %545 : vector<1x32xf32> to vector<64x32xf32>
    %547 = arith.addf %543, %546 : vector<64x32xf32>
    %548 = arith.negf %547 : vector<64x32xf32>
    %549 = math.exp %548 : vector<64x32xf32>
    %cst_326 = arith.constant 1.000000e+00 : f32
    %550 = vector.broadcast %cst_326 : f32 to vector<64x32xf32>
    %551 = arith.addf %550, %549 : vector<64x32xf32>
    %552 = arith.divf %550, %551 : vector<64x32xf32>
    %553 = arith.mulf %547, %552 : vector<64x32xf32>
    %554 = arith.addf %527, %553 : vector<64x32xf32>
    %c47 = arith.constant 47 : index
    %c0_327 = arith.constant 0 : index
    %c0_328 = arith.constant 0 : index
    %555 = vector.load %arg8[%c47, %c0_327, %c0_328] : memref<49x32x32xf32, #tpu.memory_space<vmem>>, vector<1x32x32xf32>
    %556 = vector.shape_cast %555 : vector<1x32x32xf32> to vector<32x32xf32>
    %cst_329 = arith.constant dense<0.000000e+00> : vector<64x32xf32>
    %557 = tpu.matmul %554, %556, %cst_329 {dimension_numbers = #tpu.dot_dimension_numbers<[1], [0], [0], [1], [0, 0, 1, 1], [], []>} : vector<64x32xf32>, vector<32x32xf32>, vector<64x32xf32> -> vector<64x32xf32>
    %c39_330 = arith.constant 39 : index
    %c0_331 = arith.constant 0 : index
    %c0_332 = arith.constant 0 : index
    %558 = vector.load %arg9[%c39_330, %c0_331, %c0_332] : memref<41x1x32xf32, #tpu.memory_space<vmem>>, vector<1x1x32xf32>
    %559 = vector.shape_cast %558 : vector<1x1x32xf32> to vector<1x32xf32>
    %560 = vector.broadcast %559 : vector<1x32xf32> to vector<64x32xf32>
    %561 = arith.addf %557, %560 : vector<64x32xf32>
    %562 = arith.negf %561 : vector<64x32xf32>
    %563 = math.exp %562 : vector<64x32xf32>
    %cst_333 = arith.constant 1.000000e+00 : f32
    %564 = vector.broadcast %cst_333 : f32 to vector<64x32xf32>
    %565 = arith.addf %564, %563 : vector<64x32xf32>
    %566 = arith.divf %564, %565 : vector<64x32xf32>
    %567 = arith.mulf %561, %566 : vector<64x32xf32>
    %c48 = arith.constant 48 : index
    %c0_334 = arith.constant 0 : index
    %c0_335 = arith.constant 0 : index
    %568 = vector.load %arg8[%c48, %c0_334, %c0_335] : memref<49x32x32xf32, #tpu.memory_space<vmem>>, vector<1x32x32xf32>
    %569 = vector.shape_cast %568 : vector<1x32x32xf32> to vector<32x32xf32>
    %cst_336 = arith.constant dense<0.000000e+00> : vector<64x32xf32>
    %570 = tpu.matmul %567, %569, %cst_336 {dimension_numbers = #tpu.dot_dimension_numbers<[1], [0], [0], [1], [0, 0, 1, 1], [], []>} : vector<64x32xf32>, vector<32x32xf32>, vector<64x32xf32> -> vector<64x32xf32>
    %c40_337 = arith.constant 40 : index
    %c0_338 = arith.constant 0 : index
    %c0_339 = arith.constant 0 : index
    %571 = vector.load %arg9[%c40_337, %c0_338, %c0_339] : memref<41x1x32xf32, #tpu.memory_space<vmem>>, vector<1x1x32xf32>
    %572 = vector.shape_cast %571 : vector<1x1x32xf32> to vector<1x32xf32>
    %573 = vector.broadcast %572 : vector<1x32xf32> to vector<64x32xf32>
    %574 = arith.addf %570, %573 : vector<64x32xf32>
    %575 = arith.negf %574 : vector<64x32xf32>
    %576 = math.exp %575 : vector<64x32xf32>
    %cst_340 = arith.constant 1.000000e+00 : f32
    %577 = vector.broadcast %cst_340 : f32 to vector<64x32xf32>
    %578 = arith.addf %577, %576 : vector<64x32xf32>
    %579 = arith.divf %577, %578 : vector<64x32xf32>
    %580 = arith.mulf %574, %579 : vector<64x32xf32>
    %581 = arith.addf %554, %580 : vector<64x32xf32>
    %c4_341 = arith.constant 4 : index
    %c0_342 = arith.constant 0 : index
    %c0_343 = arith.constant 0 : index
    %582 = vector.load %arg10[%c4_341, %c0_342, %c0_343] : memref<8x8x32xf32, #tpu.memory_space<vmem>>, vector<1x8x32xf32>
    %583 = vector.shape_cast %582 : vector<1x8x32xf32> to vector<8x32xf32>
    %cst_344 = arith.constant dense<0.000000e+00> : vector<64x32xf32>
    %584 = tpu.matmul %1, %583, %cst_344 {dimension_numbers = #tpu.dot_dimension_numbers<[1], [0], [0], [1], [0, 0, 1, 1], [], []>} : vector<64x8xf32>, vector<8x32xf32>, vector<64x32xf32> -> vector<64x32xf32>
    %585 = arith.mulf %584, %581 : vector<64x32xf32>
    %c0_345 = arith.constant 0 : index
    %c0_346 = arith.constant 0 : index
    %586 = vector.load %arg5[%c0_345, %c0_346] : memref<8x64xf32, #tpu.memory_space<vmem>>, vector<8x64xf32>
    %cst_347 = arith.constant dense<0.000000e+00> : vector<8x32xf32>
    %587 = tpu.matmul %586, %585, %cst_347 {dimension_numbers = #tpu.dot_dimension_numbers<[1], [0], [0], [1], [0, 0, 1, 1], [], []>} : vector<8x64xf32>, vector<64x32xf32>, vector<8x32xf32> -> vector<8x32xf32>
    %c15_348 = arith.constant 15 : index
    %c0_349 = arith.constant 0 : index
    %c0_350 = arith.constant 0 : index
    %588 = vector.load %arg8[%c15_348, %c0_349, %c0_350] : memref<49x32x32xf32, #tpu.memory_space<vmem>>, vector<1x32x32xf32>
    %589 = vector.shape_cast %588 : vector<1x32x32xf32> to vector<32x32xf32>
    %cst_351 = arith.constant dense<0.000000e+00> : vector<8x32xf32>
    %590 = tpu.matmul %587, %589, %cst_351 {dimension_numbers = #tpu.dot_dimension_numbers<[1], [0], [0], [1], [0, 0, 1, 1], [], []>} : vector<8x32xf32>, vector<32x32xf32>, vector<8x32xf32> -> vector<8x32xf32>
    %c11_352 = arith.constant 11 : index
    %c0_353 = arith.constant 0 : index
    %c0_354 = arith.constant 0 : index
    %591 = vector.load %arg9[%c11_352, %c0_353, %c0_354] : memref<41x1x32xf32, #tpu.memory_space<vmem>>, vector<1x1x32xf32>
    %592 = vector.shape_cast %591 : vector<1x1x32xf32> to vector<1x32xf32>
    %593 = vector.broadcast %592 : vector<1x32xf32> to vector<8x32xf32>
    %594 = arith.addf %590, %593 : vector<8x32xf32>
    %595 = arith.negf %594 : vector<8x32xf32>
    %596 = math.exp %595 : vector<8x32xf32>
    %cst_355 = arith.constant 1.000000e+00 : f32
    %597 = vector.broadcast %cst_355 : f32 to vector<8x32xf32>
    %598 = arith.addf %597, %596 : vector<8x32xf32>
    %599 = arith.divf %597, %598 : vector<8x32xf32>
    %600 = arith.mulf %594, %599 : vector<8x32xf32>
    %c16_356 = arith.constant 16 : index
    %c0_357 = arith.constant 0 : index
    %c0_358 = arith.constant 0 : index
    %601 = vector.load %arg8[%c16_356, %c0_357, %c0_358] : memref<49x32x32xf32, #tpu.memory_space<vmem>>, vector<1x32x32xf32>
    %602 = vector.shape_cast %601 : vector<1x32x32xf32> to vector<32x32xf32>
    %cst_359 = arith.constant dense<0.000000e+00> : vector<8x32xf32>
    %603 = tpu.matmul %600, %602, %cst_359 {dimension_numbers = #tpu.dot_dimension_numbers<[1], [0], [0], [1], [0, 0, 1, 1], [], []>} : vector<8x32xf32>, vector<32x32xf32>, vector<8x32xf32> -> vector<8x32xf32>
    %c12_360 = arith.constant 12 : index
    %c0_361 = arith.constant 0 : index
    %c0_362 = arith.constant 0 : index
    %604 = vector.load %arg9[%c12_360, %c0_361, %c0_362] : memref<41x1x32xf32, #tpu.memory_space<vmem>>, vector<1x1x32xf32>
    %605 = vector.shape_cast %604 : vector<1x1x32xf32> to vector<1x32xf32>
    %606 = vector.broadcast %605 : vector<1x32xf32> to vector<8x32xf32>
    %607 = arith.addf %603, %606 : vector<8x32xf32>
    %608 = arith.negf %607 : vector<8x32xf32>
    %609 = math.exp %608 : vector<8x32xf32>
    %cst_363 = arith.constant 1.000000e+00 : f32
    %610 = vector.broadcast %cst_363 : f32 to vector<8x32xf32>
    %611 = arith.addf %610, %609 : vector<8x32xf32>
    %612 = arith.divf %610, %611 : vector<8x32xf32>
    %613 = arith.mulf %607, %612 : vector<8x32xf32>
    %c17_364 = arith.constant 17 : index
    %c0_365 = arith.constant 0 : index
    %c0_366 = arith.constant 0 : index
    %614 = vector.load %arg8[%c17_364, %c0_365, %c0_366] : memref<49x32x32xf32, #tpu.memory_space<vmem>>, vector<1x32x32xf32>
    %615 = vector.shape_cast %614 : vector<1x32x32xf32> to vector<32x32xf32>
    %cst_367 = arith.constant dense<0.000000e+00> : vector<8x32xf32>
    %616 = tpu.matmul %613, %615, %cst_367 {dimension_numbers = #tpu.dot_dimension_numbers<[1], [0], [0], [1], [0, 0, 1, 1], [], []>} : vector<8x32xf32>, vector<32x32xf32>, vector<8x32xf32> -> vector<8x32xf32>
    %c13_368 = arith.constant 13 : index
    %c0_369 = arith.constant 0 : index
    %c0_370 = arith.constant 0 : index
    %617 = vector.load %arg9[%c13_368, %c0_369, %c0_370] : memref<41x1x32xf32, #tpu.memory_space<vmem>>, vector<1x1x32xf32>
    %618 = vector.shape_cast %617 : vector<1x1x32xf32> to vector<1x32xf32>
    %619 = vector.broadcast %618 : vector<1x32xf32> to vector<8x32xf32>
    %620 = arith.addf %616, %619 : vector<8x32xf32>
    %621 = arith.negf %620 : vector<8x32xf32>
    %622 = math.exp %621 : vector<8x32xf32>
    %cst_371 = arith.constant 1.000000e+00 : f32
    %623 = vector.broadcast %cst_371 : f32 to vector<8x32xf32>
    %624 = arith.addf %623, %622 : vector<8x32xf32>
    %625 = arith.divf %623, %624 : vector<8x32xf32>
    %626 = arith.mulf %620, %625 : vector<8x32xf32>
    %c18_372 = arith.constant 18 : index
    %c0_373 = arith.constant 0 : index
    %c0_374 = arith.constant 0 : index
    %627 = vector.load %arg8[%c18_372, %c0_373, %c0_374] : memref<49x32x32xf32, #tpu.memory_space<vmem>>, vector<1x32x32xf32>
    %628 = vector.shape_cast %627 : vector<1x32x32xf32> to vector<32x32xf32>
    %cst_375 = arith.constant dense<0.000000e+00> : vector<8x32xf32>
    %629 = tpu.matmul %626, %628, %cst_375 {dimension_numbers = #tpu.dot_dimension_numbers<[1], [0], [0], [1], [0, 0, 1, 1], [], []>} : vector<8x32xf32>, vector<32x32xf32>, vector<8x32xf32> -> vector<8x32xf32>
    %630 = arith.addf %449, %629 : vector<8x32xf32>
    %c0_376 = arith.constant 0 : index
    %c0_377 = arith.constant 0 : index
    %631 = vector.load %arg6[%c0_376, %c0_377] : memref<2x8xf32, #tpu.memory_space<vmem>>, vector<2x8xf32>
    %cst_378 = arith.constant dense<0.000000e+00> : vector<2x32xf32>
    %632 = tpu.matmul %631, %630, %cst_378 {dimension_numbers = #tpu.dot_dimension_numbers<[1], [0], [0], [1], [0, 0, 1, 1], [], []>} : vector<2x8xf32>, vector<8x32xf32>, vector<2x32xf32> -> vector<2x32xf32>
    %c0_379 = arith.constant 0 : index
    %c0_380 = arith.constant 0 : index
    %633 = vector.load %arg11[%c0_379, %c0_380] : memref<1x32xf32, #tpu.memory_space<vmem>>, vector<1x32xf32>
    %634 = vector.broadcast %633 : vector<1x32xf32> to vector<2x32xf32>
    %635 = arith.mulf %632, %634 : vector<2x32xf32>
    %cst_381 = arith.constant dense<0.000000e+00> : vector<2xf32>
    %636 = vector.multi_reduction <add>, %635, %cst_381 [1] : vector<2x32xf32> to vector<2xf32>
    %637 = vector.shape_cast %636 : vector<2xf32> to vector<2x1xf32>
    %c0_382 = arith.constant 0 : index
    %c0_383 = arith.constant 0 : index
    %638 = vector.load %arg12[%c0_382, %c0_383] : memref<1x1xf32, #tpu.memory_space<vmem>>, vector<1x1xf32>
    %639 = vector.broadcast %638 : vector<1x1xf32> to vector<2x1xf32>
    %640 = arith.addf %637, %639 : vector<2x1xf32>
    %c0_384 = arith.constant 0 : index
    %c0_385 = arith.constant 0 : index
    %641 = vector.load %arg13[%c0_384, %c0_385] : memref<2x1xf32, #tpu.memory_space<vmem>>, vector<2x1xf32>
    tpu.vector_store %arg13[%c0_384, %c0_385], %640 {strides = array<i32>} : memref<2x1xf32, #tpu.memory_space<vmem>>, vector<2x1xf32>,
    return
  }
  func.func @transform_0(%arg0: i32) -> (i32, i32) {
    %c0_i32 = arith.constant 0 : i32
    %c0_i32_0 = arith.constant 0 : i32
    %c0_i32_1 = arith.constant 0 : i32
    return %c0_i32, %c0_i32_0 : i32, i32
  }
  func.func @transform_1(%arg0: i32) -> (i32, i32) {
    %c0_i32 = arith.constant 0 : i32
    %c0_i32_0 = arith.constant 0 : i32
    %c0_i32_1 = arith.constant 0 : i32
    return %c0_i32, %c0_i32_0 : i32, i32
  }
  func.func @transform_2(%arg0: i32) -> (i32, i32) {
    %c0_i32 = arith.constant 0 : i32
    %c0_i32_0 = arith.constant 0 : i32
    %c0_i32_1 = arith.constant 0 : i32
    return %c0_i32, %c0_i32_0 : i32, i32
  }
  func.func @transform_3(%arg0: i32) -> (i32, i32) {
    %c0_i32 = arith.constant 0 : i32
    %c0_i32_0 = arith.constant 0 : i32
    %c0_i32_1 = arith.constant 0 : i32
    return %c0_i32, %c0_i32_0 : i32, i32
  }
  func.func @transform_4(%arg0: i32) -> (i32, i32) {
    %c0_i32 = arith.constant 0 : i32
    %c0_i32_0 = arith.constant 0 : i32
    %c0_i32_1 = arith.constant 0 : i32
    return %c0_i32, %c0_i32_0 : i32, i32
  }
  func.func @transform_5(%arg0: i32) -> (i32, i32) {
    %c0_i32 = arith.constant 0 : i32
    %c0_i32_0 = arith.constant 0 : i32
    %c0_i32_1 = arith.constant 0 : i32
    return %c0_i32, %c0_i32_0 : i32, i32
  }
  func.func @transform_6(%arg0: i32) -> (i32, i32, i32) {
    %c0_i32 = arith.constant 0 : i32
    %c0_i32_0 = arith.constant 0 : i32
    %c0_i32_1 = arith.constant 0 : i32
    %c0_i32_2 = arith.constant 0 : i32
    return %c0_i32, %c0_i32_0, %c0_i32_1 : i32, i32, i32
  }
  func.func @transform_7(%arg0: i32) -> (i32, i32, i32) {
    %c0_i32 = arith.constant 0 : i32
    %c0_i32_0 = arith.constant 0 : i32
    %c0_i32_1 = arith.constant 0 : i32
    %c0_i32_2 = arith.constant 0 : i32
    return %c0_i32, %c0_i32_0, %c0_i32_1 : i32, i32, i32
  }
  func.func @transform_8(%arg0: i32) -> (i32, i32, i32) {
    %c0_i32 = arith.constant 0 : i32
    %c0_i32_0 = arith.constant 0 : i32
    %c0_i32_1 = arith.constant 0 : i32
    %c0_i32_2 = arith.constant 0 : i32
    return %c0_i32, %c0_i32_0, %c0_i32_1 : i32, i32, i32
  }
  func.func @transform_9(%arg0: i32) -> (i32, i32, i32) {
    %c0_i32 = arith.constant 0 : i32
    %c0_i32_0 = arith.constant 0 : i32
    %c0_i32_1 = arith.constant 0 : i32
    %c0_i32_2 = arith.constant 0 : i32
    return %c0_i32, %c0_i32_0, %c0_i32_1 : i32, i32, i32
  }
  func.func @transform_10(%arg0: i32) -> (i32, i32) {
    %c0_i32 = arith.constant 0 : i32
    %c0_i32_0 = arith.constant 0 : i32
    %c0_i32_1 = arith.constant 0 : i32
    return %c0_i32, %c0_i32_0 : i32, i32
  }
  func.func @transform_11(%arg0: i32) -> (i32, i32) {
    %c0_i32 = arith.constant 0 : i32
    %c0_i32_0 = arith.constant 0 : i32
    %c0_i32_1 = arith.constant 0 : i32
    return %c0_i32, %c0_i32_0 : i32, i32
  }
  func.func @transform_12(%arg0: i32) -> (i32, i32) {
    %c0_i32 = arith.constant 0 : i32
    %c0_i32_0 = arith.constant 0 : i32
    %c0_i32_1 = arith.constant 0 : i32
    return %c0_i32, %c0_i32_0 : i32, i32
  }
}

</mosaic_0001>

<llo_original>
// kernel: forward.1
$region0: #{forward.1}
  #allocation0 [shape = 'u32[]', space=smem, size = 0x4, offset = 0x4, fixed_abs, tag = 'smem constant byte address 0x4 - core index']
  #allocation1 [shape = 'u32[144,128]{1,0:T(1,128)}', space=vmem, size = 0x12000, scoped, tag = 'internal scratch']
  #allocation2 [shape = 'f32[1,1]{1,0:T(1,128)S(1)}', space=vmem, size = 0x200, scoped, tag = 'scoped memory for forward.1']
  %s0 = inlined_call_operand.vmem [shape: f32[8,32], index: 0, kind: input, shape index: {}]
  %s1 = inlined_call_operand.vmem [shape: f32[64,8], index: 1, kind: input, shape index: {}]
  %s2 = inlined_call_operand.vmem [shape: f32[64,8], index: 2, kind: input, shape index: {}]
  %s3 = inlined_call_operand.vmem [shape: f32[64,8], index: 3, kind: input, shape index: {}]
  %s4 = inlined_call_operand.vmem [shape: f32[8,64], index: 4, kind: input, shape index: {}]
  %s5 = inlined_call_operand.vmem [shape: f32[2,8], index: 5, kind: input, shape index: {}]
  %s6 = inlined_call_operand.vmem [shape: f32[3,64,64], index: 6, kind: input, shape index: {}]
  %s7 = inlined_call_operand.vmem [shape: f32[49,32,32], index: 7, kind: input, shape index: {}]
  %s8 = inlined_call_operand.vmem [shape: f32[41,1,32], index: 8, kind: input, shape index: {}]
  %s9 = inlined_call_operand.vmem [shape: f32[8,8,32], index: 9, kind: input, shape index: {}]
  %s10 = inlined_call_operand.vmem [shape: f32[1,32], index: 10, kind: input, shape index: {}]
  %s11 = inlined_call_operand.<no memory space> [shape: f32[1,1], index: 11, kind: input, shape index: {}]
  %s12 = inlined_call_operand.vmem [shape: f32[2,1], index: 12, kind: output, shape index: {}]
  %s13 = sld [smem:[#allocation0]]
  $region58: #{forward.1} parent=0
    _
  %s15 = ssub.s32 1, %s13
  %s16 = scalar_select 0, %s15, %s13
  %v17 = vstv %s11
  %18 = vst [vmem:[#allocation2] sm:$0x1] %v17
  // Predicated region
  $region2: #{forward.1} parent=0 // pred_check
    _
  $region3: #{forward.1} parent=0 // pred_check_branch
    %20 = sbr.rel (0) target = $region5
  $region4: #{forward.1} parent=0 // pred_region
    _
  $region5: #{forward.1} parent=0 // pred_fallthru
    _
  // Predicated region
  $region6: #{forward.1} parent=0 // pred_check
    _
  $region7: #{forward.1} parent=0 // pred_check_branch
    %22 = sbr.rel (0) target = $region9
  $region8: #{forward.1} parent=0 // pred_region
    _
  $region9: #{forward.1} parent=0 // pred_fallthru
    _
  // Predicated region
  $region10: #{forward.1} parent=0 // pred_check
    _
  $region11: #{forward.1} parent=0 // pred_check_branch
    %24 = sbr.rel (0) target = $region13
  $region12: #{forward.1} parent=0 // pred_region
    _
  $region13: #{forward.1} parent=0 // pred_fallthru
    _
  // Predicated region
  $region14: #{forward.1} parent=0 // pred_check
    _
  $region15: #{forward.1} parent=0 // pred_check_branch
    %26 = sbr.rel (0) target = $region17
  $region16: #{forward.1} parent=0 // pred_region
    _
  $region17: #{forward.1} parent=0 // pred_fallthru
    _
  // Predicated region
  $region18: #{forward.1} parent=0 // pred_check
    _
  $region19: #{forward.1} parent=0 // pred_check_branch
    %28 = sbr.rel (0) target = $region21
  $region20: #{forward.1} parent=0 // pred_region
    _
  $region21: #{forward.1} parent=0 // pred_fallthru
    _
  // Predicated region
  $region22: #{forward.1} parent=0 // pred_check
    _
  $region23: #{forward.1} parent=0 // pred_check_branch
    %30 = sbr.rel (0) target = $region25
  $region24: #{forward.1} parent=0 // pred_region
    _
  $region25: #{forward.1} parent=0 // pred_fallthru
    _
  // Predicated region
  $region26: #{forward.1} parent=0 // pred_check
    _
  $region27: #{forward.1} parent=0 // pred_check_branch
    %32 = sbr.rel (0) target = $region29
  $region28: #{forward.1} parent=0 // pred_region
    _
  $region29: #{forward.1} parent=0 // pred_fallthru
    _
  // Predicated region
  $region30: #{forward.1} parent=0 // pred_check
    _
  $region31: #{forward.1} parent=0 // pred_check_branch
    %34 = sbr.rel (0) target = $region33
  $region32: #{forward.1} parent=0 // pred_region
    _
  $region33: #{forward.1} parent=0 // pred_fallthru
    _
  // Predicated region
  $region34: #{forward.1} parent=0 // pred_check
    _
  $region35: #{forward.1} parent=0 // pred_check_branch
    %36 = sbr.rel (0) target = $region37
  $region36: #{forward.1} parent=0 // pred_region
    _
  $region37: #{forward.1} parent=0 // pred_fallthru
    _
  // Predicated region
  $region38: #{forward.1} parent=0 // pred_check
    _
  $region39: #{forward.1} parent=0 // pred_check_branch
    %38 = sbr.rel (0) target = $region41
  $region40: #{forward.1} parent=0 // pred_region
    _
  $region41: #{forward.1} parent=0 // pred_fallthru
    _
  // Predicated region
  $region42: #{forward.1} parent=0 // pred_check
    _
  $region43: #{forward.1} parent=0 // pred_check_branch
    %40 = sbr.rel (0) target = $region45
  $region44: #{forward.1} parent=0 // pred_region
    _
  $region45: #{forward.1} parent=0 // pred_fallthru
    _
  // Predicated region
  $region46: #{forward.1} parent=0 // pred_check
    _
  $region47: #{forward.1} parent=0 // pred_check_branch
    %42 = sbr.rel (0) target = $region49
  $region48: #{forward.1} parent=0 // pred_region
    _
  $region49: #{forward.1} parent=0 // pred_fallthru
    _
  %v43 = vld [vmem:[%s0] sm:$0xff]
  %v44 = vld [vmem:[%s1] sm:$0xff]
  %v45 = vld [vmem:[%s1 + $0x8] sm:$0xff]
  %v46 = vld [vmem:[%s1 + $0x10] sm:$0xff]
  %v47 = vld [vmem:[%s1 + $0x18] sm:$0xff]
  %v48 = vld [vmem:[%s1 + $0x20] sm:$0xff]
  %v49 = vld [vmem:[%s1 + $0x28] sm:$0xff]
  %v50 = vld [vmem:[%s1 + $0x30] sm:$0xff]
  %v51 = vld [vmem:[%s1 + $0x38] sm:$0xff]
  %v52 = vld [vmem:[%s9] sm:$0xff]
  %s53 = scalar_lea.vmem %s8, 1
  %v54 = vld [vmem:[%s53] sm:$0x1]
  %v56 = vlaneseq
  %v57 = vshrl.u32 %v56, 7
  %v58 = vsub.s32 0, %v57
  %v59 = vrot.slane %v54, %v58
  %vm61 = vcmask 64512
  %v63 = vsel %vm61, %v44, 0
  %v66 = vsel %vm61, %v45, 0
  %v69 = vsel %vm61, %v46, 0
  %v72 = vsel %vm61, %v47, 0
  %v75 = vsel %vm61, %v48, 0
  %v78 = vsel %vm61, %v49, 0
  %v81 = vsel %vm61, %v50, 0
  %v84 = vsel %vm61, %v51, 0
  %86 = vmatprep.subr.mxu0 0.0
  %87 = vmatpush1.msra.mxu0 %v52
  %88 = vmatprep.subr.mxu0 0.0
  %89 = vmatpush1.msra.mxu0 0.0
  %90 = vmatprep.subr.mxu0 0.0
  %91 = vmatpush1.msra.mxu0 0.0
  %92 = vmatprep.subr.mxu0 0.0
  %93 = vmatpush1.msra.mxu0 0.0
  %94 = vmatprep.subr.mxu0 0.0
  %95 = vmatpush1.msra.mxu0 0.0
  %96 = vmatprep.subr.mxu0 0.0
  %97 = vmatpush1.msra.mxu0 0.0
  %98 = vmatprep.subr.mxu0 0.0
  %99 = vmatpush1.msra.mxu0 0.0
  %100 = vmatprep.subr.mxu0 0.0
  %101 = vmatpush1.msra.mxu0 0.0
  %102 = vmatprep.subr.mxu0 0.0
  %103 = vmatpush1.msra.mxu0 0.0
  %104 = vmatprep.subr.mxu0 0.0
  %105 = vmatpush1.msra.mxu0 0.0
  %106 = vmatprep.subr.mxu0 0.0
  %107 = vmatpush1.msra.mxu0 0.0
  %108 = vmatprep.subr.mxu0 0.0
  %109 = vmatpush1.msra.mxu0 0.0
  %110 = vmatprep.subr.mxu0 0.0
  %111 = vmatpush1.msra.mxu0 0.0
  %112 = vmatprep.subr.mxu0 0.0
  %113 = vmatpush1.msra.mxu0 0.0
  %114 = vmatprep.subr.mxu0 0.0
  %115 = vmatpush1.msra.mxu0 0.0
  %116 = vmatprep.subr.mxu0 0.0
  %117 = vmatpush1.msra.mxu0 0.0
  %118 = vmatprep.subr.mxu0 0.0
  %119 = vmatpush1.msra.mxu0 0.0
  %120 = vmatprep.subr.mxu0 0.0
  %121 = vmatpush1.msra.mxu0 0.0
  %122 = vmatprep.subr.mxu0 0.0
  %123 = vmatpush1.msra.mxu0 0.0
  %124 = vmatprep.subr.mxu0 0.0
  %125 = vmatpush1.msra.mxu0 0.0
  %126 = vmatprep.subr.mxu0 0.0
  %127 = vmatpush1.msra.mxu0 0.0
  %128 = vmatprep.subr.mxu0 0.0
  %129 = vmatpush1.msra.mxu0 0.0
  %130 = vmatprep.subr.mxu0 0.0
  %131 = vmatpush1.msra.mxu0 0.0
  %132 = vmatprep.subr.mxu0 0.0
  %133 = vmatpush1.msra.mxu0 0.0
  %134 = vmatprep.subr.mxu0 0.0
  %135 = vmatpush1.msra.mxu0 0.0
  %136 = vmatprep.subr.mxu0 0.0
  %137 = vmatpush1.msra.mxu0 0.0
  %138 = vmatprep.subr.mxu0 0.0
  %139 = vmatpush1.msra.mxu0 0.0
  %140 = vmatprep.subr.mxu0 0.0
  %141 = vmatpush1.msra.mxu0 0.0
  %142 = vmatprep.subr.mxu0 0.0
  %143 = vmatpush1.msra.mxu0 0.0
  %144 = vmatprep.subr.mxu0 0.0
  %145 = vmatpush1.msra.mxu0 0.0
  %146 = vmatprep.subr.mxu0 0.0
  %147 = vmatpush1.msra.mxu0 0.0
  %148 = vmatprep.subr.mxu0 0.0
  %149 = vmatpush1.msra.mxu0 0.0
  %150 = vmatprep.mubr.f32.mxu0 0.0
  %151 = vmatmul.mubr.f32.gmra.mrb[0].mxu0 %v63
  %v152 = vpop.f32.mrb[0].mxu0
  %v153 = vadd.f32 %v59, %v152
  %v154 = vpop.f32.mrb[0].mxu0
  %155 = vmatprep.mubr.f32.mxu0 0.0
  %156 = vmatmul.mubr.f32.gmra.mrb[0].mxu0 %v66
  %v157 = vpop.f32.mrb[0].mxu0
  %v158 = vadd.f32 %v59, %v157
  %v159 = vpop.f32.mrb[0].mxu0
  %160 = vmatprep.mubr.f32.mxu0 0.0
  %161 = vmatmul.mubr.f32.gmra.mrb[0].mxu0 %v69
  %v162 = vpop.f32.mrb[0].mxu0
  %v163 = vadd.f32 %v59, %v162
  %v164 = vpop.f32.mrb[0].mxu0
  %165 = vmatprep.mubr.f32.mxu0 0.0
  %166 = vmatmul.mubr.f32.gmra.mrb[0].mxu0 %v72
  %v167 = vpop.f32.mrb[0].mxu0
  %v168 = vadd.f32 %v59, %v167
  %v169 = vpop.f32.mrb[0].mxu0
  %170 = vmatprep.mubr.f32.mxu0 0.0
  %171 = vmatmul.mubr.f32.gmra.mrb[0].mxu0 %v75
  %v172 = vpop.f32.mrb[0].mxu0
  %v173 = vadd.f32 %v59, %v172
  %v174 = vpop.f32.mrb[0].mxu0
  %175 = vmatprep.mubr.f32.mxu0 0.0
  %176 = vmatmul.mubr.f32.gmra.mrb[0].mxu0 %v78
  %v177 = vpop.f32.mrb[0].mxu0
  %v178 = vadd.f32 %v59, %v177
  %v179 = vpop.f32.mrb[0].mxu0
  %180 = vmatprep.mubr.f32.mxu0 0.0
  %181 = vmatmul.mubr.f32.gmra.mrb[0].mxu0 %v81
  %v182 = vpop.f32.mrb[0].mxu0
  %v183 = vadd.f32 %v59, %v182
  %v184 = vpop.f32.mrb[0].mxu0
  %185 = vmatprep.mubr.f32.mxu0 0.0
  %186 = vmatmul.mubr.f32.gmra.mrb[0].mxu0 %v84
  %v187 = vpop.f32.mrb[0].mxu0
  %v188 = vadd.f32 %v59, %v187
  %v189 = vpop.f32.mrb[0].mxu0
  %190 = vdwg.mxu0
  %v191 = vxor.u32 %v153, 2147483648
  %v192 = vxor.u32 %v158, 2147483648
  %v193 = vxor.u32 %v163, 2147483648
  %v194 = vxor.u32 %v168, 2147483648
  %v195 = vxor.u32 %v173, 2147483648
  %v196 = vxor.u32 %v178, 2147483648
  %v197 = vxor.u32 %v183, 2147483648
  %v198 = vxor.u32 %v188, 2147483648
  %v199 = vmul.f32 %v191, 1.442695
  %v200 = vpow.pop %v199
  %v201 = vmul.f32 %v192, 1.442695
  %v202 = vpow.pop %v201
  %v203 = vmul.f32 %v193, 1.442695
  %v204 = vpow.pop %v203
  %v205 = vmul.f32 %v194, 1.442695
  %v206 = vpow.pop %v205
  %v207 = vmul.f32 %v195, 1.442695
  %v208 = vpow.pop %v207
  %v209 = vmul.f32 %v196, 1.442695
  %v210 = vpow.pop %v209
  %v211 = vmul.f32 %v197, 1.442695
  %v212 = vpow.pop %v211
  %v213 = vmul.f32 %v198, 1.442695
  %v214 = vpow.pop %v213
  %v215 = vadd.f32 %v200, 1.0
  %v216 = vadd.f32 %v202, 1.0
  %v217 = vadd.f32 %v204, 1.0
  %v218 = vadd.f32 %v206, 1.0
  %v219 = vadd.f32 %v208, 1.0
  %v220 = vadd.f32 %v210, 1.0
  %v221 = vadd.f32 %v212, 1.0
  %v222 = vadd.f32 %v214, 1.0
  %v223 = vrcp.pop %v215
  %v224 = vmul.f32 1.0, %v223
  %v225 = vrcp.pop %v216
  %v226 = vmul.f32 1.0, %v225
  %v227 = vrcp.pop %v217
  %v228 = vmul.f32 1.0, %v227
  %v229 = vrcp.pop %v218
  %v230 = vmul.f32 1.0, %v229
  %v231 = vrcp.pop %v219
  %v232 = vmul.f32 1.0, %v231
  %v233 = vrcp.pop %v220
  %v234 = vmul.f32 1.0, %v233
  %v235 = vrcp.pop %v221
  %v236 = vmul.f32 1.0, %v235
  %v237 = vrcp.pop %v222
  %v238 = vmul.f32 1.0, %v237
  %v239 = vmul.f32 %v153, %v224
  %v240 = vmul.f32 %v158, %v226
  %v241 = vmul.f32 %v163, %v228
  %v242 = vmul.f32 %v168, %v230
  %v243 = vmul.f32 %v173, %v232
  %v244 = vmul.f32 %v178, %v234
  %v245 = vmul.f32 %v183, %v236
  %v246 = vmul.f32 %v188, %v238
  %v247 = vld [vmem:[%s2] sm:$0xff]
  %v248 = vld [vmem:[%s2 + $0x8] sm:$0xff]
  %v249 = vld [vmem:[%s2 + $0x10] sm:$0xff]
  %v250 = vld [vmem:[%s2 + $0x18] sm:$0xff]
  %v251 = vld [vmem:[%s2 + $0x20] sm:$0xff]
  %v252 = vld [vmem:[%s2 + $0x28] sm:$0xff]
  %v253 = vld [vmem:[%s2 + $0x30] sm:$0xff]
  %v254 = vld [vmem:[%s2 + $0x38] sm:$0xff]
  %v256 = vsel %vm61, %v247, 0
  %v259 = vsel %vm61, %v248, 0
  %v262 = vsel %vm61, %v249, 0
  %v265 = vsel %vm61, %v250, 0
  %v268 = vsel %vm61, %v251, 0
  %v271 = vsel %vm61, %v252, 0
  %v274 = vsel %vm61, %v253, 0
  %v277 = vsel %vm61, %v254, 0
  %279 = vmatprep.subr.mxu0 0.0
  %280 = vmatpush1.msra.mxu0 %v43
  %281 = vmatprep.subr.mxu0 0.0
  %282 = vmatpush1.msra.mxu0 0.0
  %283 = vmatprep.subr.mxu0 0.0
  %284 = vmatpush1.msra.mxu0 0.0
  %285 = vmatprep.subr.mxu0 0.0
  %286 = vmatpush1.msra.mxu0 0.0
  %287 = vmatprep.subr.mxu0 0.0
  %288 = vmatpush1.msra.mxu0 0.0
  %289 = vmatprep.subr.mxu0 0.0
  %290 = vmatpush1.msra.mxu0 0.0
  %291 = vmatprep.subr.mxu0 0.0
  %292 = vmatpush1.msra.mxu0 0.0
  %293 = vmatprep.subr.mxu0 0.0
  %294 = vmatpush1.msra.mxu0 0.0
  %295 = vmatprep.subr.mxu0 0.0
  %296 = vmatpush1.msra.mxu0 0.0
  %297 = vmatprep.subr.mxu0 0.0
  %298 = vmatpush1.msra.mxu0 0.0
  %299 = vmatprep.subr.mxu0 0.0
  %300 = vmatpush1.msra.mxu0 0.0
  %301 = vmatprep.subr.mxu0 0.0
  %302 = vmatpush1.msra.mxu0 0.0
  %303 = vmatprep.subr.mxu0 0.0
  %304 = vmatpush1.msra.mxu0 0.0
  %305 = vmatprep.subr.mxu0 0.0
  %306 = vmatpush1.msra.mxu0 0.0
  %307 = vmatprep.subr.mxu0 0.0
  %308 = vmatpush1.msra.mxu0 0.0
  %309 = vmatprep.subr.mxu0 0.0
  %310 = vmatpush1.msra.mxu0 0.0
  %311 = vmatprep.subr.mxu0 0.0
  %312 = vmatpush1.msra.mxu0 0.0
  %313 = vmatprep.subr.mxu0 0.0
  %314 = vmatpush1.msra.mxu0 0.0
  %315 = vmatprep.subr.mxu0 0.0
  %316 = vmatpush1.msra.mxu0 0.0
  %317 = vmatprep.subr.mxu0 0.0
  %318 = vmatpush1.msra.mxu0 0.0
  %319 = vmatprep.subr.mxu0 0.0
  %320 = vmatpush1.msra.mxu0 0.0
  %321 = vmatprep.subr.mxu0 0.0
  %322 = vmatpush1.msra.mxu0 0.0
  %323 = vmatprep.subr.mxu0 0.0
  %324 = vmatpush1.msra.mxu0 0.0
  %325 = vmatprep.subr.mxu0 0.0
  %326 = vmatpush1.msra.mxu0 0.0
  %327 = vmatprep.subr.mxu0 0.0
  %328 = vmatpush1.msra.mxu0 0.0
  %329 = vmatprep.subr.mxu0 0.0
  %330 = vmatpush1.msra.mxu0 0.0
  %331 = vmatprep.subr.mxu0 0.0
  %332 = vmatpush1.msra.mxu0 0.0
  %333 = vmatprep.subr.mxu0 0.0
  %334 = vmatpush1.msra.mxu0 0.0
  %335 = vmatprep.subr.mxu0 0.0
  %336 = vmatpush1.msra.mxu0 0.0
  %337 = vmatprep.subr.mxu0 0.0
  %338 = vmatpush1.msra.mxu0 0.0
  %339 = vmatprep.subr.mxu0 0.0
  %340 = vmatpush1.msra.mxu0 0.0
  %341 = vmatprep.subr.mxu0 0.0
  %342 = vmatpush1.msra.mxu0 0.0
  %343 = vmatprep.mubr.f32.mxu0 0.0
  %344 = vmatmul.mubr.f32.gmra.mrb[0].mxu0 %v256
  %v345 = vpop.f32.mrb[0].mxu0
  %v346 = vadd.f32 0.0, %v345
  %v347 = vpop.f32.mrb[0].mxu0
  %348 = vmatprep.mubr.f32.mxu0 0.0
  %349 = vmatmul.mubr.f32.gmra.mrb[0].mxu0 %v259
  %v350 = vpop.f32.mrb[0].mxu0
  %v351 = vadd.f32 0.0, %v350
  %v352 = vpop.f32.mrb[0].mxu0
  %353 = vmatprep.mubr.f32.mxu0 0.0
  %354 = vmatmul.mubr.f32.gmra.mrb[0].mxu0 %v262
  %v355 = vpop.f32.mrb[0].mxu0
  %v356 = vadd.f32 0.0, %v355
  %v357 = vpop.f32.mrb[0].mxu0
  %358 = vmatprep.mubr.f32.mxu0 0.0
  %359 = vmatmul.mubr.f32.gmra.mrb[0].mxu0 %v265
  %v360 = vpop.f32.mrb[0].mxu0
  %v361 = vadd.f32 0.0, %v360
  %v362 = vpop.f32.mrb[0].mxu0
  %363 = vmatprep.mubr.f32.mxu0 0.0
  %364 = vmatmul.mubr.f32.gmra.mrb[0].mxu0 %v268
  %v365 = vpop.f32.mrb[0].mxu0
  %v366 = vadd.f32 0.0, %v365
  %v367 = vpop.f32.mrb[0].mxu0
  %368 = vmatprep.mubr.f32.mxu0 0.0
  %369 = vmatmul.mubr.f32.gmra.mrb[0].mxu0 %v271
  %v370 = vpop.f32.mrb[0].mxu0
  %v371 = vadd.f32 0.0, %v370
  %v372 = vpop.f32.mrb[0].mxu0
  %373 = vmatprep.mubr.f32.mxu0 0.0
  %374 = vmatmul.mubr.f32.gmra.mrb[0].mxu0 %v274
  %v375 = vpop.f32.mrb[0].mxu0
  %v376 = vadd.f32 0.0, %v375
  %v377 = vpop.f32.mrb[0].mxu0
  %378 = vmatprep.mubr.f32.mxu0 0.0
  %379 = vmatmul.mubr.f32.gmra.mrb[0].mxu0 %v277
  %v380 = vpop.f32.mrb[0].mxu0
  %v381 = vadd.f32 0.0, %v380
  %v382 = vpop.f32.mrb[0].mxu0
  %383 = vdwg.mxu0
  %v384 = vld [vmem:[%s3] sm:$0xff]
  %v385 = vld [vmem:[%s3 + $0x8] sm:$0xff]
  %v386 = vld [vmem:[%s3 + $0x10] sm:$0xff]
  %v387 = vld [vmem:[%s3 + $0x18] sm:$0xff]
  %v388 = vld [vmem:[%s3 + $0x20] sm:$0xff]
  %v389 = vld [vmem:[%s3 + $0x28] sm:$0xff]
  %v390 = vld [vmem:[%s3 + $0x30] sm:$0xff]
  %v391 = vld [vmem:[%s3 + $0x38] sm:$0xff]
  %v393 = vsel %vm61, %v384, 0
  %v396 = vsel %vm61, %v385, 0
  %v399 = vsel %vm61, %v386, 0
  %v402 = vsel %vm61, %v387, 0
  %v405 = vsel %vm61, %v388, 0
  %v408 = vsel %vm61, %v389, 0
  %v411 = vsel %vm61, %v390, 0
  %v414 = vsel %vm61, %v391, 0
  %416 = vmatprep.subr.mxu0 0.0
  %417 = vmatpush1.msra.mxu0 %v43
  %418 = vmatprep.subr.mxu0 0.0
  %419 = vmatpush1.msra.mxu0 0.0
  %420 = vmatprep.subr.mxu0 0.0
  %421 = vmatpush1.msra.mxu0 0.0
  %422 = vmatprep.subr.mxu0 0.0
  %423 = vmatpush1.msra.mxu0 0.0
  %424 = vmatprep.subr.mxu0 0.0
  %425 = vmatpush1.msra.mxu0 0.0
  %426 = vmatprep.subr.mxu0 0.0
  %427 = vmatpush1.msra.mxu0 0.0
  %428 = vmatprep.subr.mxu0 0.0
  %429 = vmatpush1.msra.mxu0 0.0
  %430 = vmatprep.subr.mxu0 0.0
  %431 = vmatpush1.msra.mxu0 0.0
  %432 = vmatprep.subr.mxu0 0.0
  %433 = vmatpush1.msra.mxu0 0.0
  %434 = vmatprep.subr.mxu0 0.0
  %435 = vmatpush1.msra.mxu0 0.0
  %436 = vmatprep.subr.mxu0 0.0
  %437 = vmatpush1.msra.mxu0 0.0
  %438 = vmatprep.subr.mxu0 0.0
  %439 = vmatpush1.msra.mxu0 0.0
  %440 = vmatprep.subr.mxu0 0.0
  %441 = vmatpush1.msra.mxu0 0.0
  %442 = vmatprep.subr.mxu0 0.0
  %443 = vmatpush1.msra.mxu0 0.0
  %444 = vmatprep.subr.mxu0 0.0
  %445 = vmatpush1.msra.mxu0 0.0
  %446 = vmatprep.subr.mxu0 0.0
  %447 = vmatpush1.msra.mxu0 0.0
  %448 = vmatprep.subr.mxu0 0.0
  %449 = vmatpush1.msra.mxu0 0.0
  %450 = vmatprep.subr.mxu0 0.0
  %451 = vmatpush1.msra.mxu0 0.0
  %452 = vmatprep.subr.mxu0 0.0
  %453 = vmatpush1.msra.mxu0 0.0
  %454 = vmatprep.subr.mxu0 0.0
  %455 = vmatpush1.msra.mxu0 0.0
  %456 = vmatprep.subr.mxu0 0.0
  %457 = vmatpush1.msra.mxu0 0.0
  %458 = vmatprep.subr.mxu0 0.0
  %459 = vmatpush1.msra.mxu0 0.0
  %460 = vmatprep.subr.mxu0 0.0
  %461 = vmatpush1.msra.mxu0 0.0
  %462 = vmatprep.subr.mxu0 0.0
  %463 = vmatpush1.msra.mxu0 0.0
  %464 = vmatprep.subr.mxu0 0.0
  %465 = vmatpush1.msra.mxu0 0.0
  %466 = vmatprep.subr.mxu0 0.0
  %467 = vmatpush1.msra.mxu0 0.0
  %468 = vmatprep.subr.mxu0 0.0
  %469 = vmatpush1.msra.mxu0 0.0
  %470 = vmatprep.subr.mxu0 0.0
  %471 = vmatpush1.msra.mxu0 0.0
  %472 = vmatprep.subr.mxu0 0.0
  %473 = vmatpush1.msra.mxu0 0.0
  %474 = vmatprep.subr.mxu0 0.0
  %475 = vmatpush1.msra.mxu0 0.0
  %476 = vmatprep.subr.mxu0 0.0
  %477 = vmatpush1.msra.mxu0 0.0
  %478 = vmatprep.subr.mxu0 0.0
  %479 = vmatpush1.msra.mxu0 0.0
  %480 = vmatprep.mubr.f32.mxu0 0.0
  %481 = vmatmul.mubr.f32.gmra.mrb[0].mxu0 %v393
  %v482 = vpop.f32.mrb[0].mxu0
  %v483 = vadd.f32 0.0, %v482
  %v484 = vpop.f32.mrb[0].mxu0
  %485 = vmatprep.mubr.f32.mxu0 0.0
  %486 = vmatmul.mubr.f32.gmra.mrb[0].mxu0 %v396
  %v487 = vpop.f32.mrb[0].mxu0
  %v488 = vadd.f32 0.0, %v487
  %v489 = vpop.f32.mrb[0].mxu0
  %490 = vmatprep.mubr.f32.mxu0 0.0
  %491 = vmatmul.mubr.f32.gmra.mrb[0].mxu0 %v399
  %v492 = vpop.f32.mrb[0].mxu0
  %v493 = vadd.f32 0.0, %v492
  %v494 = vpop.f32.mrb[0].mxu0
  %495 = vmatprep.mubr.f32.mxu0 0.0
  %496 = vmatmul.mubr.f32.gmra.mrb[0].mxu0 %v402
  %v497 = vpop.f32.mrb[0].mxu0
  %v498 = vadd.f32 0.0, %v497
  %v499 = vpop.f32.mrb[0].mxu0
  %500 = vmatprep.mubr.f32.mxu0 0.0
  %501 = vmatmul.mubr.f32.gmra.mrb[0].mxu0 %v405
  %v502 = vpop.f32.mrb[0].mxu0
  %v503 = vadd.f32 0.0, %v502
  %v504 = vpop.f32.mrb[0].mxu0
  %505 = vmatprep.mubr.f32.mxu0 0.0
  %506 = vmatmul.mubr.f32.gmra.mrb[0].mxu0 %v408
  %v507 = vpop.f32.mrb[0].mxu0
  %v508 = vadd.f32 0.0, %v507
  %v509 = vpop.f32.mrb[0].mxu0
  %510 = vmatprep.mubr.f32.mxu0 0.0
  %511 = vmatmul.mubr.f32.gmra.mrb[0].mxu0 %v411
  %v512 = vpop.f32.mrb[0].mxu0
  %v513 = vadd.f32 0.0, %v512
  %v514 = vpop.f32.mrb[0].mxu0
  %515 = vmatprep.mubr.f32.mxu0 0.0
  %516 = vmatmul.mubr.f32.gmra.mrb[0].mxu0 %v414
  %v517 = vpop.f32.mrb[0].mxu0
  %v518 = vadd.f32 0.0, %v517
  %v519 = vpop.f32.mrb[0].mxu0
  %520 = vdwg.mxu0
  %v521 = vld [vmem:[%s7] sm:$0xff]
  %v522 = vld [vmem:[%s7 + $0x8] sm:$0xff]
  %v523 = vld [vmem:[%s7 + $0x10] sm:$0xff]
  %v524 = vld [vmem:[%s7 + $0x18] sm:$0xff]
  %s525 = scalar_lea.vmem %s7, 32
  %v526 = vld [vmem:[%s525] sm:$0xff]
  %v527 = vld [vmem:[%s525 + $0x8] sm:$0xff]
  %v528 = vld [vmem:[%s525 + $0x10] sm:$0xff]
  %v529 = vld [vmem:[%s525 + $0x18] sm:$0xff]
  %vm530 = vcmask 261120
  %v532 = vsel %vm530, %v483, 0
  %v535 = vsel %vm530, %v488, 0
  %v538 = vsel %vm530, %v493, 0
  %v541 = vsel %vm530, %v498, 0
  %v544 = vsel %vm530, %v503, 0
  %v547 = vsel %vm530, %v508, 0
  %v550 = vsel %vm530, %v513, 0
  %v553 = vsel %vm530, %v518, 0
  %555 = vmatprep.subr.mxu0 0.0
  %556 = vmatpush1.msra.mxu0 %v526
  %557 = vmatprep.subr.mxu0 0.0
  %558 = vmatpush1.msra.mxu0 %v527
  %559 = vmatprep.subr.mxu0 0.0
  %560 = vmatpush1.msra.mxu0 %v528
  %561 = vmatprep.subr.mxu0 0.0
  %562 = vmatpush1.msra.mxu0 %v529
  %563 = vmatprep.subr.mxu0 0.0
  %564 = vmatpush1.msra.mxu0 0.0
  %565 = vmatprep.subr.mxu0 0.0
  %566 = vmatpush1.msra.mxu0 0.0
  %567 = vmatprep.subr.mxu0 0.0
  %568 = vmatpush1.msra.mxu0 0.0
  %569 = vmatprep.subr.mxu0 0.0
  %570 = vmatpush1.msra.mxu0 0.0
  %571 = vmatprep.subr.mxu0 0.0
  %572 = vmatpush1.msra.mxu0 0.0
  %573 = vmatprep.subr.mxu0 0.0
  %574 = vmatpush1.msra.mxu0 0.0
  %575 = vmatprep.subr.mxu0 0.0
  %576 = vmatpush1.msra.mxu0 0.0
  %577 = vmatprep.subr.mxu0 0.0
  %578 = vmatpush1.msra.mxu0 0.0
  %579 = vmatprep.subr.mxu0 0.0
  %580 = vmatpush1.msra.mxu0 0.0
  %581 = vmatprep.subr.mxu0 0.0
  %582 = vmatpush1.msra.mxu0 0.0
  %583 = vmatprep.subr.mxu0 0.0
  %584 = vmatpush1.msra.mxu0 0.0
  %585 = vmatprep.subr.mxu0 0.0
  %586 = vmatpush1.msra.mxu0 0.0
  %587 = vmatprep.subr.mxu0 0.0
  %588 = vmatpush1.msra.mxu0 0.0
  %589 = vmatprep.subr.mxu0 0.0
  %590 = vmatpush1.msra.mxu0 0.0
  %591 = vmatprep.subr.mxu0 0.0
  %592 = vmatpush1.msra.mxu0 0.0
  %593 = vmatprep.subr.mxu0 0.0
  %594 = vmatpush1.msra.mxu0 0.0
  %595 = vmatprep.subr.mxu0 0.0
  %596 = vmatpush1.msra.mxu0 0.0
  %597 = vmatprep.subr.mxu0 0.0
  %598 = vmatpush1.msra.mxu0 0.0
  %599 = vmatprep.subr.mxu0 0.0
  %600 = vmatpush1.msra.mxu0 0.0
  %601 = vmatprep.subr.mxu0 0.0
  %602 = vmatpush1.msra.mxu0 0.0
  %603 = vmatprep.subr.mxu0 0.0
  %604 = vmatpush1.msra.mxu0 0.0
  %605 = vmatprep.subr.mxu0 0.0
  %606 = vmatpush1.msra.mxu0 0.0
  %607 = vmatprep.subr.mxu0 0.0
  %608 = vmatpush1.msra.mxu0 0.0
  %609 = vmatprep.subr.mxu0 0.0
  %610 = vmatpush1.msra.mxu0 0.0
  %611 = vmatprep.subr.mxu0 0.0
  %612 = vmatpush1.msra.mxu0 0.0
  %613 = vmatprep.subr.mxu0 0.0
  %614 = vmatpush1.msra.mxu0 0.0
  %615 = vmatprep.subr.mxu0 0.0
  %616 = vmatpush1.msra.mxu0 0.0
  %617 = vmatprep.subr.mxu0 0.0
  %618 = vmatpush1.msra.mxu0 0.0
  %619 = vmatprep.mubr.f32.mxu0 0.0
  %620 = vmatmul.mubr.f32.gmra.mrb[0].mxu0 %v532
  %v621 = vpop.f32.mrb[0].mxu0
  %v622 = vadd.f32 0.0, %v621
  %v623 = vpop.f32.mrb[0].mxu0
  %624 = vmatprep.mubr.f32.mxu0 0.0
  %625 = vmatmul.mubr.f32.gmra.mrb[0].mxu0 %v535
  %v626 = vpop.f32.mrb[0].mxu0
  %v627 = vadd.f32 0.0, %v626
  %v628 = vpop.f32.mrb[0].mxu0
  %629 = vmatprep.mubr.f32.mxu0 0.0
  %630 = vmatmul.mubr.f32.gmra.mrb[0].mxu0 %v538
  %v631 = vpop.f32.mrb[0].mxu0
  %v632 = vadd.f32 0.0, %v631
  %v633 = vpop.f32.mrb[0].mxu0
  %634 = vmatprep.mubr.f32.mxu0 0.0
  %635 = vmatmul.mubr.f32.gmra.mrb[0].mxu0 %v541
  %v636 = vpop.f32.mrb[0].mxu0
  %v637 = vadd.f32 0.0, %v636
  %v638 = vpop.f32.mrb[0].mxu0
  %639 = vmatprep.mubr.f32.mxu0 0.0
  %640 = vmatmul.mubr.f32.gmra.mrb[0].mxu0 %v544
  %v641 = vpop.f32.mrb[0].mxu0
  %v642 = vadd.f32 0.0, %v641
  %v643 = vpop.f32.mrb[0].mxu0
  %644 = vmatprep.mubr.f32.mxu0 0.0
  %645 = vmatmul.mubr.f32.gmra.mrb[0].mxu0 %v547
  %v646 = vpop.f32.mrb[0].mxu0
  %v647 = vadd.f32 0.0, %v646
  %v648 = vpop.f32.mrb[0].mxu0
  %649 = vmatprep.mubr.f32.mxu0 0.0
  %650 = vmatmul.mubr.f32.gmra.mrb[0].mxu0 %v550
  %v651 = vpop.f32.mrb[0].mxu0
  %v652 = vadd.f32 0.0, %v651
  %v653 = vpop.f32.mrb[0].mxu0
  %654 = vmatprep.mubr.f32.mxu0 0.0
  %655 = vmatmul.mubr.f32.gmra.mrb[0].mxu0 %v553
  %v656 = vpop.f32.mrb[0].mxu0
  %v657 = vadd.f32 0.0, %v656
  %v658 = vpop.f32.mrb[0].mxu0
  %659 = vdwg.mxu0
  %v661 = vsel %vm530, %v346, 0
  %v664 = vsel %vm530, %v351, 0
  %v667 = vsel %vm530, %v356, 0
  %v670 = vsel %vm530, %v361, 0
  %v673 = vsel %vm530, %v366, 0
  %v676 = vsel %vm530, %v371, 0
  %v679 = vsel %vm530, %v376, 0
  %v682 = vsel %vm530, %v381, 0
  %684 = vmatprep.subr.mxu0 0.0
  %685 = vmatpush1.msra.mxu0 %v521
  %686 = vmatprep.subr.mxu0 0.0
  %687 = vmatpush1.msra.mxu0 %v522
  %688 = vmatprep.subr.mxu0 0.0
  %689 = vmatpush1.msra.mxu0 %v523
  %690 = vmatprep.subr.mxu0 0.0
  %691 = vmatpush1.msra.mxu0 %v524
  %692 = vmatprep.subr.mxu0 0.0
  %693 = vmatpush1.msra.mxu0 0.0
  %694 = vmatprep.subr.mxu0 0.0
  %695 = vmatpush1.msra.mxu0 0.0
  %696 = vmatprep.subr.mxu0 0.0
  %697 = vmatpush1.msra.mxu0 0.0
  %698 = vmatprep.subr.mxu0 0.0
  %699 = vmatpush1.msra.mxu0 0.0
  %700 = vmatprep.subr.mxu0 0.0
  %701 = vmatpush1.msra.mxu0 0.0
  %702 = vmatprep.subr.mxu0 0.0
  %703 = vmatpush1.msra.mxu0 0.0
  %704 = vmatprep.subr.mxu0 0.0
  %705 = vmatpush1.msra.mxu0 0.0
  %706 = vmatprep.subr.mxu0 0.0
  %707 = vmatpush1.msra.mxu0 0.0
  %708 = vmatprep.subr.mxu0 0.0
  %709 = vmatpush1.msra.mxu0 0.0
  %710 = vmatprep.subr.mxu0 0.0
  %711 = vmatpush1.msra.mxu0 0.0
  %712 = vmatprep.subr.mxu0 0.0
  %713 = vmatpush1.msra.mxu0 0.0
  %714 = vmatprep.subr.mxu0 0.0
  %715 = vmatpush1.msra.mxu0 0.0
  %716 = vmatprep.subr.mxu0 0.0
  %717 = vmatpush1.msra.mxu0 0.0
  %718 = vmatprep.subr.mxu0 0.0
  %719 = vmatpush1.msra.mxu0 0.0
  %720 = vmatprep.subr.mxu0 0.0
  %721 = vmatpush1.msra.mxu0 0.0
  %722 = vmatprep.subr.mxu0 0.0
  %723 = vmatpush1.msra.mxu0 0.0
  %724 = vmatprep.subr.mxu0 0.0
  %725 = vmatpush1.msra.mxu0 0.0
  %726 = vmatprep.subr.mxu0 0.0
  %727 = vmatpush1.msra.mxu0 0.0
  %728 = vmatprep.subr.mxu0 0.0
  %729 = vmatpush1.msra.mxu0 0.0
  %730 = vmatprep.subr.mxu0 0.0
  %731 = vmatpush1.msra.mxu0 0.0
  %732 = vmatprep.subr.mxu0 0.0
  %733 = vmatpush1.msra.mxu0 0.0
  %734 = vmatprep.subr.mxu0 0.0
  %735 = vmatpush1.msra.mxu0 0.0
  %736 = vmatprep.subr.mxu0 0.0
  %737 = vmatpush1.msra.mxu0 0.0
  %738 = vmatprep.subr.mxu0 0.0
  %739 = vmatpush1.msra.mxu0 0.0
  %740 = vmatprep.subr.mxu0 0.0
  %741 = vmatpush1.msra.mxu0 0.0
  %742 = vmatprep.subr.mxu0 0.0
  %743 = vmatpush1.msra.mxu0 0.0
  %744 = vmatprep.subr.mxu0 0.0
  %745 = vmatpush1.msra.mxu0 0.0
  %746 = vmatprep.subr.mxu0 0.0
  %747 = vmatpush1.msra.mxu0 0.0
  %748 = vmatprep.mubr.f32.mxu0 0.0
  %749 = vmatmul.mubr.f32.gmra.mrb[0].mxu0 %v661
  %v750 = vpop.f32.mrb[0].mxu0
  %v751 = vadd.f32 %v622, %v750
  %v752 = vpop.f32.mrb[0].mxu0
  %753 = vmatprep.mubr.f32.mxu0 0.0
  %754 = vmatmul.mubr.f32.gmra.mrb[0].mxu0 %v664
  %v755 = vpop.f32.mrb[0].mxu0
  %v756 = vadd.f32 %v627, %v755
  %v757 = vpop.f32.mrb[0].mxu0
  %758 = vmatprep.mubr.f32.mxu0 0.0
  %759 = vmatmul.mubr.f32.gmra.mrb[0].mxu0 %v667
  %v760 = vpop.f32.mrb[0].mxu0
  %v761 = vadd.f32 %v632, %v760
  %v762 = vpop.f32.mrb[0].mxu0
  %763 = vmatprep.mubr.f32.mxu0 0.0
  %764 = vmatmul.mubr.f32.gmra.mrb[0].mxu0 %v670
  %v765 = vpop.f32.mrb[0].mxu0
  %v766 = vadd.f32 %v637, %v765
  %v767 = vpop.f32.mrb[0].mxu0
  %768 = vmatprep.mubr.f32.mxu0 0.0
  %769 = vmatmul.mubr.f32.gmra.mrb[0].mxu0 %v673
  %v770 = vpop.f32.mrb[0].mxu0
  %v771 = vadd.f32 %v642, %v770
  %v772 = vpop.f32.mrb[0].mxu0
  %773 = vmatprep.mubr.f32.mxu0 0.0
  %774 = vmatmul.mubr.f32.gmra.mrb[0].mxu0 %v676
  %v775 = vpop.f32.mrb[0].mxu0
  %v776 = vadd.f32 %v647, %v775
  %v777 = vpop.f32.mrb[0].mxu0
  %778 = vmatprep.mubr.f32.mxu0 0.0
  %779 = vmatmul.mubr.f32.gmra.mrb[0].mxu0 %v679
  %v780 = vpop.f32.mrb[0].mxu0
  %v781 = vadd.f32 %v652, %v780
  %v782 = vpop.f32.mrb[0].mxu0
  %783 = vmatprep.mubr.f32.mxu0 0.0
  %784 = vmatmul.mubr.f32.gmra.mrb[0].mxu0 %v682
  %v785 = vpop.f32.mrb[0].mxu0
  %v786 = vadd.f32 %v657, %v785
  %v787 = vpop.f32.mrb[0].mxu0
  %788 = vdwg.mxu0
  %s789 = scalar_lea.vmem %s7, 64
  %v790 = vld [vmem:[%s789] sm:$0xff]
  %v791 = vld [vmem:[%s789 + $0x8] sm:$0xff]
  %v792 = vld [vmem:[%s789 + $0x10] sm:$0xff]
  %v793 = vld [vmem:[%s789 + $0x18] sm:$0xff]
  %v795 = vsel %vm530, %v239, 0
  %v798 = vsel %vm530, %v240, 0
  %v801 = vsel %vm530, %v241, 0
  %v804 = vsel %vm530, %v242, 0
  %v807 = vsel %vm530, %v243, 0
  %v810 = vsel %vm530, %v244, 0
  %v813 = vsel %vm530, %v245, 0
  %v816 = vsel %vm530, %v246, 0
  %818 = vmatprep.subr.mxu0 0.0
  %819 = vmatpush1.msra.mxu0 %v790
  %820 = vmatprep.subr.mxu0 0.0
  %821 = vmatpush1.msra.mxu0 %v791
  %822 = vmatprep.subr.mxu0 0.0
  %823 = vmatpush1.msra.mxu0 %v792
  %824 = vmatprep.subr.mxu0 0.0
  %825 = vmatpush1.msra.mxu0 %v793
  %826 = vmatprep.subr.mxu0 0.0
  %827 = vmatpush1.msra.mxu0 0.0
  %828 = vmatprep.subr.mxu0 0.0
  %829 = vmatpush1.msra.mxu0 0.0
  %830 = vmatprep.subr.mxu0 0.0
  %831 = vmatpush1.msra.mxu0 0.0
  %832 = vmatprep.subr.mxu0 0.0
  %833 = vmatpush1.msra.mxu0 0.0
  %834 = vmatprep.subr.mxu0 0.0
  %835 = vmatpush1.msra.mxu0 0.0
  %836 = vmatprep.subr.mxu0 0.0
  %837 = vmatpush1.msra.mxu0 0.0
  %838 = vmatprep.subr.mxu0 0.0
  %839 = vmatpush1.msra.mxu0 0.0
  %840 = vmatprep.subr.mxu0 0.0
  %841 = vmatpush1.msra.mxu0 0.0
  %842 = vmatprep.subr.mxu0 0.0
  %843 = vmatpush1.msra.mxu0 0.0
  %844 = vmatprep.subr.mxu0 0.0
  %845 = vmatpush1.msra.mxu0 0.0
  %846 = vmatprep.subr.mxu0 0.0
  %847 = vmatpush1.msra.mxu0 0.0
  %848 = vmatprep.subr.mxu0 0.0
  %849 = vmatpush1.msra.mxu0 0.0
  %850 = vmatprep.subr.mxu0 0.0
  %851 = vmatpush1.msra.mxu0 0.0
  %852 = vmatprep.subr.mxu0 0.0
  %853 = vmatpush1.msra.mxu0 0.0
  %854 = vmatprep.subr.mxu0 0.0
  %855 = vmatpush1.msra.mxu0 0.0
  %856 = vmatprep.subr.mxu0 0.0
  %857 = vmatpush1.msra.mxu0 0.0
  %858 = vmatprep.subr.mxu0 0.0
  %859 = vmatpush1.msra.mxu0 0.0
  %860 = vmatprep.subr.mxu0 0.0
  %861 = vmatpush1.msra.mxu0 0.0
  %862 = vmatprep.subr.mxu0 0.0
  %863 = vmatpush1.msra.mxu0 0.0
  %864 = vmatprep.subr.mxu0 0.0
  %865 = vmatpush1.msra.mxu0 0.0
  %866 = vmatprep.subr.mxu0 0.0
  %867 = vmatpush1.msra.mxu0 0.0
  %868 = vmatprep.subr.mxu0 0.0
  %869 = vmatpush1.msra.mxu0 0.0
  %870 = vmatprep.subr.mxu0 0.0
  %871 = vmatpush1.msra.mxu0 0.0
  %872 = vmatprep.subr.mxu0 0.0
  %873 = vmatpush1.msra.mxu0 0.0
  %874 = vmatprep.subr.mxu0 0.0
  %875 = vmatpush1.msra.mxu0 0.0
  %876 = vmatprep.subr.mxu0 0.0
  %877 = vmatpush1.msra.mxu0 0.0
  %878 = vmatprep.subr.mxu0 0.0
  %879 = vmatpush1.msra.mxu0 0.0
  %880 = vmatprep.subr.mxu0 0.0
  %881 = vmatpush1.msra.mxu0 0.0
  %882 = vmatprep.mubr.f32.mxu0 0.0
  %883 = vmatmul.mubr.f32.gmra.mrb[0].mxu0 %v795
  %v884 = vpop.f32.mrb[0].mxu0
  %v885 = vadd.f32 0.0, %v884
  %v886 = vpop.f32.mrb[0].mxu0
  %887 = vmatprep.mubr.f32.mxu0 0.0
  %888 = vmatmul.mubr.f32.gmra.mrb[0].mxu0 %v798
  %v889 = vpop.f32.mrb[0].mxu0
  %v890 = vadd.f32 0.0, %v889
  %v891 = vpop.f32.mrb[0].mxu0
  %892 = vmatprep.mubr.f32.mxu0 0.0
  %893 = vmatmul.mubr.f32.gmra.mrb[0].mxu0 %v801
  %v894 = vpop.f32.mrb[0].mxu0
  %v895 = vadd.f32 0.0, %v894
  %v896 = vpop.f32.mrb[0].mxu0
  %897 = vmatprep.mubr.f32.mxu0 0.0
  %898 = vmatmul.mubr.f32.gmra.mrb[0].mxu0 %v804
  %v899 = vpop.f32.mrb[0].mxu0
  %v900 = vadd.f32 0.0, %v899
  %v901 = vpop.f32.mrb[0].mxu0
  %902 = vmatprep.mubr.f32.mxu0 0.0
  %903 = vmatmul.mubr.f32.gmra.mrb[0].mxu0 %v807
  %v904 = vpop.f32.mrb[0].mxu0
  %v905 = vadd.f32 0.0, %v904
  %v906 = vpop.f32.mrb[0].mxu0
  %907 = vmatprep.mubr.f32.mxu0 0.0
  %908 = vmatmul.mubr.f32.gmra.mrb[0].mxu0 %v810
  %v909 = vpop.f32.mrb[0].mxu0
  %v910 = vadd.f32 0.0, %v909
  %v911 = vpop.f32.mrb[0].mxu0
  %912 = vmatprep.mubr.f32.mxu0 0.0
  %913 = vmatmul.mubr.f32.gmra.mrb[0].mxu0 %v813
  %v914 = vpop.f32.mrb[0].mxu0
  %v915 = vadd.f32 0.0, %v914
  %v916 = vpop.f32.mrb[0].mxu0
  %917 = vmatprep.mubr.f32.mxu0 0.0
  %918 = vmatmul.mubr.f32.gmra.mrb[0].mxu0 %v816
  %v919 = vpop.f32.mrb[0].mxu0
  %v920 = vadd.f32 0.0, %v919
  %v921 = vpop.f32.mrb[0].mxu0
  %922 = vdwg.mxu0
  %v923 = vadd.f32 %v751, %v885
  %v924 = vadd.f32 %v756, %v890
  %v925 = vadd.f32 %v761, %v895
  %v926 = vadd.f32 %v766, %v900
  %v927 = vadd.f32 %v771, %v905
  %v928 = vadd.f32 %v776, %v910
  %v929 = vadd.f32 %v781, %v915
  %v930 = vadd.f32 %v786, %v920
  %v931 = vld [vmem:[%s8] sm:$0x1]
  %v933 = vlaneseq
  %v934 = vshrl.u32 %v933, 7
  %v935 = vsub.s32 0, %v934
  %v936 = vrot.slane %v931, %v935
  %v938 = vadd.f32 %v923, %v936
  %v939 = vadd.f32 %v924, %v936
  %v940 = vadd.f32 %v925, %v936
  %v941 = vadd.f32 %v926, %v936
  %v942 = vadd.f32 %v927, %v936
  %v943 = vadd.f32 %v928, %v936
  %v944 = vadd.f32 %v929, %v936
  %v945 = vadd.f32 %v930, %v936
  %v946 = vxor.u32 %v938, 2147483648
  %v947 = vxor.u32 %v939, 2147483648
  %v948 = vxor.u32 %v940, 2147483648
  %v949 = vxor.u32 %v941, 2147483648
  %v950 = vxor.u32 %v942, 2147483648
  %v951 = vxor.u32 %v943, 2147483648
  %v952 = vxor.u32 %v944, 2147483648
  %v953 = vxor.u32 %v945, 2147483648
  %v954 = vmul.f32 %v946, 1.442695
  %v955 = vpow.pop %v954
  %v956 = vmul.f32 %v947, 1.442695
  %v957 = vpow.pop %v956
  %v958 = vmul.f32 %v948, 1.442695
  %v959 = vpow.pop %v958
  %v960 = vmul.f32 %v949, 1.442695
  %v961 = vpow.pop %v960
  %v962 = vmul.f32 %v950, 1.442695
  %v963 = vpow.pop %v962
  %v964 = vmul.f32 %v951, 1.442695
  %v965 = vpow.pop %v964
  %v966 = vmul.f32 %v952, 1.442695
  %v967 = vpow.pop %v966
  %v968 = vmul.f32 %v953, 1.442695
  %v969 = vpow.pop %v968
  %v970 = vadd.f32 %v955, 1.0
  %v971 = vadd.f32 %v957, 1.0
  %v972 = vadd.f32 %v959, 1.0
  %v973 = vadd.f32 %v961, 1.0
  %v974 = vadd.f32 %v963, 1.0
  %v975 = vadd.f32 %v965, 1.0
  %v976 = vadd.f32 %v967, 1.0
  %v977 = vadd.f32 %v969, 1.0
  %v978 = vrcp.pop %v970
  %v979 = vmul.f32 1.0, %v978
  %v980 = vrcp.pop %v971
  %v981 = vmul.f32 1.0, %v980
  %v982 = vrcp.pop %v972
  %v983 = vmul.f32 1.0, %v982
  %v984 = vrcp.pop %v973
  %v985 = vmul.f32 1.0, %v984
  %v986 = vrcp.pop %v974
  %v987 = vmul.f32 1.0, %v986
  %v988 = vrcp.pop %v975
  %v989 = vmul.f32 1.0, %v988
  %v990 = vrcp.pop %v976
  %v991 = vmul.f32 1.0, %v990
  %v992 = vrcp.pop %v977
  %v993 = vmul.f32 1.0, %v992
  %v994 = vmul.f32 %v938, %v979
  %v995 = vmul.f32 %v939, %v981
  %v996 = vmul.f32 %v940, %v983
  %v997 = vmul.f32 %v941, %v985
  %v998 = vmul.f32 %v942, %v987
  %v999 = vmul.f32 %v943, %v989
  %v1000 = vmul.f32 %v944, %v991
  %v1001 = vmul.f32 %v945, %v993
  %s1002 = scalar_lea.vmem %s9, 8
  %v1003 = vld [vmem:[%s1002] sm:$0xff]
  %1004 = vmatprep.subr.mxu0 0.0
  %1005 = vmatpush1.msra.mxu0 %v1003
  %1006 = vmatprep.subr.mxu0 0.0
  %1007 = vmatpush1.msra.mxu0 0.0
  %1008 = vmatprep.subr.mxu0 0.0
  %1009 = vmatpush1.msra.mxu0 0.0
  %1010 = vmatprep.subr.mxu0 0.0
  %1011 = vmatpush1.msra.mxu0 0.0
  %1012 = vmatprep.subr.mxu0 0.0
  %1013 = vmatpush1.msra.mxu0 0.0
  %1014 = vmatprep.subr.mxu0 0.0
  %1015 = vmatpush1.msra.mxu0 0.0
  %1016 = vmatprep.subr.mxu0 0.0
  %1017 = vmatpush1.msra.mxu0 0.0
  %1018 = vmatprep.subr.mxu0 0.0
  %1019 = vmatpush1.msra.mxu0 0.0
  %1020 = vmatprep.subr.mxu0 0.0
  %1021 = vmatpush1.msra.mxu0 0.0
  %1022 = vmatprep.subr.mxu0 0.0
  %1023 = vmatpush1.msra.mxu0 0.0
  %1024 = vmatprep.subr.mxu0 0.0
  %1025 = vmatpush1.msra.mxu0 0.0
  %1026 = vmatprep.subr.mxu0 0.0
  %1027 = vmatpush1.msra.mxu0 0.0
  %1028 = vmatprep.subr.mxu0 0.0
  %1029 = vmatpush1.msra.mxu0 0.0
  %1030 = vmatprep.subr.mxu0 0.0
  %1031 = vmatpush1.msra.mxu0 0.0
  %1032 = vmatprep.subr.mxu0 0.0
  %1033 = vmatpush1.msra.mxu0 0.0
  %1034 = vmatprep.subr.mxu0 0.0
  %1035 = vmatpush1.msra.mxu0 0.0
  %1036 = vmatprep.subr.mxu0 0.0
  %1037 = vmatpush1.msra.mxu0 0.0
  %1038 = vmatprep.subr.mxu0 0.0
  %1039 = vmatpush1.msra.mxu0 0.0
  %1040 = vmatprep.subr.mxu0 0.0
  %1041 = vmatpush1.msra.mxu0 0.0
  %1042 = vmatprep.subr.mxu0 0.0
  %1043 = vmatpush1.msra.mxu0 0.0
  %1044 = vmatprep.subr.mxu0 0.0
  %1045 = vmatpush1.msra.mxu0 0.0
  %1046 = vmatprep.subr.mxu0 0.0
  %1047 = vmatpush1.msra.mxu0 0.0
  %1048 = vmatprep.subr.mxu0 0.0
  %1049 = vmatpush1.msra.mxu0 0.0
  %1050 = vmatprep.subr.mxu0 0.0
  %1051 = vmatpush1.msra.mxu0 0.0
  %1052 = vmatprep.subr.mxu0 0.0
  %1053 = vmatpush1.msra.mxu0 0.0
  %1054 = vmatprep.subr.mxu0 0.0
  %1055 = vmatpush1.msra.mxu0 0.0
  %1056 = vmatprep.subr.mxu0 0.0
  %1057 = vmatpush1.msra.mxu0 0.0
  %1058 = vmatprep.subr.mxu0 0.0
  %1059 = vmatpush1.msra.mxu0 0.0
  %1060 = vmatprep.subr.mxu0 0.0
  %1061 = vmatpush1.msra.mxu0 0.0
  %1062 = vmatprep.subr.mxu0 0.0
  %1063 = vmatpush1.msra.mxu0 0.0
  %1064 = vmatprep.subr.mxu0 0.0
  %1065 = vmatpush1.msra.mxu0 0.0
  %1066 = vmatprep.subr.mxu0 0.0
  %1067 = vmatpush1.msra.mxu0 0.0
  %1068 = vmatprep.mubr.f32.mxu0 0.0
  %1069 = vmatmul.mubr.f32.gmra.mrb[0].mxu0 %v63
  %v1070 = vpop.f32.mrb[0].mxu0
  %v1071 = vadd.f32 0.0, %v1070
  %v1072 = vpop.f32.mrb[0].mxu0
  %1073 = vmatprep.mubr.f32.mxu0 0.0
  %1074 = vmatmul.mubr.f32.gmra.mrb[0].mxu0 %v66
  %v1075 = vpop.f32.mrb[0].mxu0
  %v1076 = vadd.f32 0.0, %v1075
  %v1077 = vpop.f32.mrb[0].mxu0
  %1078 = vmatprep.mubr.f32.mxu0 0.0
  %1079 = vmatmul.mubr.f32.gmra.mrb[0].mxu0 %v69
  %v1080 = vpop.f32.mrb[0].mxu0
  %v1081 = vadd.f32 0.0, %v1080
  %v1082 = vpop.f32.mrb[0].mxu0
  %1083 = vmatprep.mubr.f32.mxu0 0.0
  %1084 = vmatmul.mubr.f32.gmra.mrb[0].mxu0 %v72
  %v1085 = vpop.f32.mrb[0].mxu0
  %v1086 = vadd.f32 0.0, %v1085
  %v1087 = vpop.f32.mrb[0].mxu0
  %1088 = vmatprep.mubr.f32.mxu0 0.0
  %1089 = vmatmul.mubr.f32.gmra.mrb[0].mxu0 %v75
  %v1090 = vpop.f32.mrb[0].mxu0
  %v1091 = vadd.f32 0.0, %v1090
  %v1092 = vpop.f32.mrb[0].mxu0
  %1093 = vmatprep.mubr.f32.mxu0 0.0
  %1094 = vmatmul.mubr.f32.gmra.mrb[0].mxu0 %v78
  %v1095 = vpop.f32.mrb[0].mxu0
  %v1096 = vadd.f32 0.0, %v1095
  %v1097 = vpop.f32.mrb[0].mxu0
  %1098 = vmatprep.mubr.f32.mxu0 0.0
  %1099 = vmatmul.mubr.f32.gmra.mrb[0].mxu0 %v81
  %v1100 = vpop.f32.mrb[0].mxu0
  %v1101 = vadd.f32 0.0, %v1100
  %v1102 = vpop.f32.mrb[0].mxu0
  %1103 = vmatprep.mubr.f32.mxu0 0.0
  %1104 = vmatmul.mubr.f32.gmra.mrb[0].mxu0 %v84
  %v1105 = vpop.f32.mrb[0].mxu0
  %v1106 = vadd.f32 0.0, %v1105
  %v1107 = vpop.f32.mrb[0].mxu0
  %1108 = vdwg.mxu0
  %v1109 = vmul.f32 %v1071, %v994
  %v1110 = vmul.f32 %v1076, %v995
  %v1111 = vmul.f32 %v1081, %v996
  %v1112 = vmul.f32 %v1086, %v997
  %v1113 = vmul.f32 %v1091, %v998
  %v1114 = vmul.f32 %v1096, %v999
  %v1115 = vmul.f32 %v1101, %v1000
  %v1116 = vmul.f32 %v1106, %v1001
  %v1117 = vld [vmem:[%s4] sm:$0xff]
  %vm1118 = vcmask 523264
  %v1120 = vsel %vm1118, %v1117, 0
  %1122 = vmatprep.subr.mxu0 0.0
  %1123 = vmatpush1.msra.mxu0 %v1109
  %1124 = vmatprep.subr.mxu0 0.0
  %1125 = vmatpush1.msra.mxu0 %v1110
  %1126 = vmatprep.subr.mxu0 0.0
  %1127 = vmatpush1.msra.mxu0 %v1111
  %1128 = vmatprep.subr.mxu0 0.0
  %1129 = vmatpush1.msra.mxu0 %v1112
  %1130 = vmatprep.subr.mxu0 0.0
  %1131 = vmatpush1.msra.mxu0 %v1113
  %1132 = vmatprep.subr.mxu0 0.0
  %1133 = vmatpush1.msra.mxu0 %v1114
  %1134 = vmatprep.subr.mxu0 0.0
  %1135 = vmatpush1.msra.mxu0 %v1115
  %1136 = vmatprep.subr.mxu0 0.0
  %1137 = vmatpush1.msra.mxu0 %v1116
  %1138 = vmatprep.subr.mxu0 0.0
  %1139 = vmatpush1.msra.mxu0 0.0
  %1140 = vmatprep.subr.mxu0 0.0
  %1141 = vmatpush1.msra.mxu0 0.0
  %1142 = vmatprep.subr.mxu0 0.0
  %1143 = vmatpush1.msra.mxu0 0.0
  %1144 = vmatprep.subr.mxu0 0.0
  %1145 = vmatpush1.msra.mxu0 0.0
  %1146 = vmatprep.subr.mxu0 0.0
  %1147 = vmatpush1.msra.mxu0 0.0
  %1148 = vmatprep.subr.mxu0 0.0
  %1149 = vmatpush1.msra.mxu0 0.0
  %1150 = vmatprep.subr.mxu0 0.0
  %1151 = vmatpush1.msra.mxu0 0.0
  %1152 = vmatprep.subr.mxu0 0.0
  %1153 = vmatpush1.msra.mxu0 0.0
  %1154 = vmatprep.subr.mxu0 0.0
  %1155 = vmatpush1.msra.mxu0 0.0
  %1156 = vmatprep.subr.mxu0 0.0
  %1157 = vmatpush1.msra.mxu0 0.0
  %1158 = vmatprep.subr.mxu0 0.0
  %1159 = vmatpush1.msra.mxu0 0.0
  %1160 = vmatprep.subr.mxu0 0.0
  %1161 = vmatpush1.msra.mxu0 0.0
  %1162 = vmatprep.subr.mxu0 0.0
  %1163 = vmatpush1.msra.mxu0 0.0
  %1164 = vmatprep.subr.mxu0 0.0
  %1165 = vmatpush1.msra.mxu0 0.0
  %1166 = vmatprep.subr.mxu0 0.0
  %1167 = vmatpush1.msra.mxu0 0.0
  %1168 = vmatprep.subr.mxu0 0.0
  %1169 = vmatpush1.msra.mxu0 0.0
  %1170 = vmatprep.subr.mxu0 0.0
  %1171 = vmatpush1.msra.mxu0 0.0
  %1172 = vmatprep.subr.mxu0 0.0
  %1173 = vmatpush1.msra.mxu0 0.0
  %1174 = vmatprep.subr.mxu0 0.0
  %1175 = vmatpush1.msra.mxu0 0.0
  %1176 = vmatprep.subr.mxu0 0.0
  %1177 = vmatpush1.msra.mxu0 0.0
  %1178 = vmatprep.subr.mxu0 0.0
  %1179 = vmatpush1.msra.mxu0 0.0
  %1180 = vmatprep.subr.mxu0 0.0
  %1181 = vmatpush1.msra.mxu0 0.0
  %1182 = vmatprep.subr.mxu0 0.0
  %1183 = vmatpush1.msra.mxu0 0.0
  %1184 = vmatprep.subr.mxu0 0.0
  %1185 = vmatpush1.msra.mxu0 0.0
  %1186 = vmatprep.mubr.f32.mxu0 0.0
  %1187 = vmatmul.mubr.f32.gmra.mrb[0].mxu0 %v1120
  %v1188 = vpop.f32.mrb[0].mxu0
  %v1189 = vadd.f32 0.0, %v1188
  %v1190 = vpop.f32.mrb[0].mxu0
  %1191 = vdwg.mxu0
  %s1192 = scalar_lea.vmem %s7, 96
  %v1193 = vld [vmem:[%s1192] sm:$0xff]
  %v1194 = vld [vmem:[%s1192 + $0x8] sm:$0xff]
  %v1195 = vld [vmem:[%s1192 + $0x10] sm:$0xff]
  %v1196 = vld [vmem:[%s1192 + $0x18] sm:$0xff]
  %s1197 = scalar_lea.vmem %s8, 2
  %v1198 = vld [vmem:[%s1197] sm:$0x1]
  %v1200 = vlaneseq
  %v1201 = vshrl.u32 %v1200, 7
  %v1202 = vsub.s32 0, %v1201
  %v1203 = vrot.slane %v1198, %v1202
  %v1206 = vsel %vm530, %v1189, 0
  %1208 = vmatprep.subr.mxu0 0.0
  %1209 = vmatpush1.msra.mxu0 %v1193
  %1210 = vmatprep.subr.mxu0 0.0
  %1211 = vmatpush1.msra.mxu0 %v1194
  %1212 = vmatprep.subr.mxu0 0.0
  %1213 = vmatpush1.msra.mxu0 %v1195
  %1214 = vmatprep.subr.mxu0 0.0
  %1215 = vmatpush1.msra.mxu0 %v1196
  %1216 = vmatprep.subr.mxu0 0.0
  %1217 = vmatpush1.msra.mxu0 0.0
  %1218 = vmatprep.subr.mxu0 0.0
  %1219 = vmatpush1.msra.mxu0 0.0
  %1220 = vmatprep.subr.mxu0 0.0
  %1221 = vmatpush1.msra.mxu0 0.0
  %1222 = vmatprep.subr.mxu0 0.0
  %1223 = vmatpush1.msra.mxu0 0.0
  %1224 = vmatprep.subr.mxu0 0.0
  %1225 = vmatpush1.msra.mxu0 0.0
  %1226 = vmatprep.subr.mxu0 0.0
  %1227 = vmatpush1.msra.mxu0 0.0
  %1228 = vmatprep.subr.mxu0 0.0
  %1229 = vmatpush1.msra.mxu0 0.0
  %1230 = vmatprep.subr.mxu0 0.0
  %1231 = vmatpush1.msra.mxu0 0.0
  %1232 = vmatprep.subr.mxu0 0.0
  %1233 = vmatpush1.msra.mxu0 0.0
  %1234 = vmatprep.subr.mxu0 0.0
  %1235 = vmatpush1.msra.mxu0 0.0
  %1236 = vmatprep.subr.mxu0 0.0
  %1237 = vmatpush1.msra.mxu0 0.0
  %1238 = vmatprep.subr.mxu0 0.0
  %1239 = vmatpush1.msra.mxu0 0.0
  %1240 = vmatprep.subr.mxu0 0.0
  %1241 = vmatpush1.msra.mxu0 0.0
  %1242 = vmatprep.subr.mxu0 0.0
  %1243 = vmatpush1.msra.mxu0 0.0
  %1244 = vmatprep.subr.mxu0 0.0
  %1245 = vmatpush1.msra.mxu0 0.0
  %1246 = vmatprep.subr.mxu0 0.0
  %1247 = vmatpush1.msra.mxu0 0.0
  %1248 = vmatprep.subr.mxu0 0.0
  %1249 = vmatpush1.msra.mxu0 0.0
  %1250 = vmatprep.subr.mxu0 0.0
  %1251 = vmatpush1.msra.mxu0 0.0
  %1252 = vmatprep.subr.mxu0 0.0
  %1253 = vmatpush1.msra.mxu0 0.0
  %1254 = vmatprep.subr.mxu0 0.0
  %1255 = vmatpush1.msra.mxu0 0.0
  %1256 = vmatprep.subr.mxu0 0.0
  %1257 = vmatpush1.msra.mxu0 0.0
  %1258 = vmatprep.subr.mxu0 0.0
  %1259 = vmatpush1.msra.mxu0 0.0
  %1260 = vmatprep.subr.mxu0 0.0
  %1261 = vmatpush1.msra.mxu0 0.0
  %1262 = vmatprep.subr.mxu0 0.0
  %1263 = vmatpush1.msra.mxu0 0.0
  %1264 = vmatprep.subr.mxu0 0.0
  %1265 = vmatpush1.msra.mxu0 0.0
  %1266 = vmatprep.subr.mxu0 0.0
  %1267 = vmatpush1.msra.mxu0 0.0
  %1268 = vmatprep.subr.mxu0 0.0
  %1269 = vmatpush1.msra.mxu0 0.0
  %1270 = vmatprep.subr.mxu0 0.0
  %1271 = vmatpush1.msra.mxu0 0.0
  %1272 = vmatprep.mubr.f32.mxu0 0.0
  %1273 = vmatmul.mubr.f32.gmra.mrb[0].mxu0 %v1206
  %v1274 = vpop.f32.mrb[0].mxu0
  %v1275 = vadd.f32 %v1203, %v1274
  %v1276 = vpop.f32.mrb[0].mxu0
  %1277 = vdwg.mxu0
  %v1278 = vxor.u32 %v1275, 2147483648
  %v1279 = vmul.f32 %v1278, 1.442695
  %v1280 = vpow.pop %v1279
  %v1281 = vadd.f32 %v1280, 1.0
  %v1282 = vrcp.pop %v1281
  %v1283 = vmul.f32 1.0, %v1282
  %v1284 = vmul.f32 %v1275, %v1283
  %s1285 = scalar_lea.vmem %s7, 128
  %v1286 = vld [vmem:[%s1285] sm:$0xff]
  %v1287 = vld [vmem:[%s1285 + $0x8] sm:$0xff]
  %v1288 = vld [vmem:[%s1285 + $0x10] sm:$0xff]
  %v1289 = vld [vmem:[%s1285 + $0x18] sm:$0xff]
  %s1290 = scalar_lea.vmem %s8, 3
  %v1291 = vld [vmem:[%s1290] sm:$0x1]
  %v1293 = vlaneseq
  %v1294 = vshrl.u32 %v1293, 7
  %v1295 = vsub.s32 0, %v1294
  %v1296 = vrot.slane %v1291, %v1295
  %v1299 = vsel %vm530, %v1284, 0
  %1301 = vmatprep.subr.mxu0 0.0
  %1302 = vmatpush1.msra.mxu0 %v1286
  %1303 = vmatprep.subr.mxu0 0.0
  %1304 = vmatpush1.msra.mxu0 %v1287
  %1305 = vmatprep.subr.mxu0 0.0
  %1306 = vmatpush1.msra.mxu0 %v1288
  %1307 = vmatprep.subr.mxu0 0.0
  %1308 = vmatpush1.msra.mxu0 %v1289
  %1309 = vmatprep.subr.mxu0 0.0
  %1310 = vmatpush1.msra.mxu0 0.0
  %1311 = vmatprep.subr.mxu0 0.0
  %1312 = vmatpush1.msra.mxu0 0.0
  %1313 = vmatprep.subr.mxu0 0.0
  %1314 = vmatpush1.msra.mxu0 0.0
  %1315 = vmatprep.subr.mxu0 0.0
  %1316 = vmatpush1.msra.mxu0 0.0
  %1317 = vmatprep.subr.mxu0 0.0
  %1318 = vmatpush1.msra.mxu0 0.0
  %1319 = vmatprep.subr.mxu0 0.0
  %1320 = vmatpush1.msra.mxu0 0.0
  %1321 = vmatprep.subr.mxu0 0.0
  %1322 = vmatpush1.msra.mxu0 0.0
  %1323 = vmatprep.subr.mxu0 0.0
  %1324 = vmatpush1.msra.mxu0 0.0
  %1325 = vmatprep.subr.mxu0 0.0
  %1326 = vmatpush1.msra.mxu0 0.0
  %1327 = vmatprep.subr.mxu0 0.0
  %1328 = vmatpush1.msra.mxu0 0.0
  %1329 = vmatprep.subr.mxu0 0.0
  %1330 = vmatpush1.msra.mxu0 0.0
  %1331 = vmatprep.subr.mxu0 0.0
  %1332 = vmatpush1.msra.mxu0 0.0
  %1333 = vmatprep.subr.mxu0 0.0
  %1334 = vmatpush1.msra.mxu0 0.0
  %1335 = vmatprep.subr.mxu0 0.0
  %1336 = vmatpush1.msra.mxu0 0.0
  %1337 = vmatprep.subr.mxu0 0.0
  %1338 = vmatpush1.msra.mxu0 0.0
  %1339 = vmatprep.subr.mxu0 0.0
  %1340 = vmatpush1.msra.mxu0 0.0
  %1341 = vmatprep.subr.mxu0 0.0
  %1342 = vmatpush1.msra.mxu0 0.0
  %1343 = vmatprep.subr.mxu0 0.0
  %1344 = vmatpush1.msra.mxu0 0.0
  %1345 = vmatprep.subr.mxu0 0.0
  %1346 = vmatpush1.msra.mxu0 0.0
  %1347 = vmatprep.subr.mxu0 0.0
  %1348 = vmatpush1.msra.mxu0 0.0
  %1349 = vmatprep.subr.mxu0 0.0
  %1350 = vmatpush1.msra.mxu0 0.0
  %1351 = vmatprep.subr.mxu0 0.0
  %1352 = vmatpush1.msra.mxu0 0.0
  %1353 = vmatprep.subr.mxu0 0.0
  %1354 = vmatpush1.msra.mxu0 0.0
  %1355 = vmatprep.subr.mxu0 0.0
  %1356 = vmatpush1.msra.mxu0 0.0
  %1357 = vmatprep.subr.mxu0 0.0
  %1358 = vmatpush1.msra.mxu0 0.0
  %1359 = vmatprep.subr.mxu0 0.0
  %1360 = vmatpush1.msra.mxu0 0.0
  %1361 = vmatprep.subr.mxu0 0.0
  %1362 = vmatpush1.msra.mxu0 0.0
  %1363 = vmatprep.subr.mxu0 0.0
  %1364 = vmatpush1.msra.mxu0 0.0
  %1365 = vmatprep.mubr.f32.mxu0 0.0
  %1366 = vmatmul.mubr.f32.gmra.mrb[0].mxu0 %v1299
  %v1367 = vpop.f32.mrb[0].mxu0
  %v1368 = vadd.f32 %v1296, %v1367
  %v1369 = vpop.f32.mrb[0].mxu0
  %1370 = vdwg.mxu0
  %v1371 = vxor.u32 %v1368, 2147483648
  %v1372 = vmul.f32 %v1371, 1.442695
  %v1373 = vpow.pop %v1372
  %v1374 = vadd.f32 %v1373, 1.0
  %v1375 = vrcp.pop %v1374
  %v1376 = vmul.f32 1.0, %v1375
  %v1377 = vmul.f32 %v1368, %v1376
  %s1378 = scalar_lea.vmem %s7, 160
  %v1379 = vld [vmem:[%s1378] sm:$0xff]
  %v1380 = vld [vmem:[%s1378 + $0x8] sm:$0xff]
  %v1381 = vld [vmem:[%s1378 + $0x10] sm:$0xff]
  %v1382 = vld [vmem:[%s1378 + $0x18] sm:$0xff]
  %s1383 = scalar_lea.vmem %s8, 4
  %v1384 = vld [vmem:[%s1383] sm:$0x1]
  %v1386 = vlaneseq
  %v1387 = vshrl.u32 %v1386, 7
  %v1388 = vsub.s32 0, %v1387
  %v1389 = vrot.slane %v1384, %v1388
  %v1392 = vsel %vm530, %v1377, 0
  %1394 = vmatprep.subr.mxu0 0.0
  %1395 = vmatpush1.msra.mxu0 %v1379
  %1396 = vmatprep.subr.mxu0 0.0
  %1397 = vmatpush1.msra.mxu0 %v1380
  %1398 = vmatprep.subr.mxu0 0.0
  %1399 = vmatpush1.msra.mxu0 %v1381
  %1400 = vmatprep.subr.mxu0 0.0
  %1401 = vmatpush1.msra.mxu0 %v1382
  %1402 = vmatprep.subr.mxu0 0.0
  %1403 = vmatpush1.msra.mxu0 0.0
  %1404 = vmatprep.subr.mxu0 0.0
  %1405 = vmatpush1.msra.mxu0 0.0
  %1406 = vmatprep.subr.mxu0 0.0
  %1407 = vmatpush1.msra.mxu0 0.0
  %1408 = vmatprep.subr.mxu0 0.0
  %1409 = vmatpush1.msra.mxu0 0.0
  %1410 = vmatprep.subr.mxu0 0.0
  %1411 = vmatpush1.msra.mxu0 0.0
  %1412 = vmatprep.subr.mxu0 0.0
  %1413 = vmatpush1.msra.mxu0 0.0
  %1414 = vmatprep.subr.mxu0 0.0
  %1415 = vmatpush1.msra.mxu0 0.0
  %1416 = vmatprep.subr.mxu0 0.0
  %1417 = vmatpush1.msra.mxu0 0.0
  %1418 = vmatprep.subr.mxu0 0.0
  %1419 = vmatpush1.msra.mxu0 0.0
  %1420 = vmatprep.subr.mxu0 0.0
  %1421 = vmatpush1.msra.mxu0 0.0
  %1422 = vmatprep.subr.mxu0 0.0
  %1423 = vmatpush1.msra.mxu0 0.0
  %1424 = vmatprep.subr.mxu0 0.0
  %1425 = vmatpush1.msra.mxu0 0.0
  %1426 = vmatprep.subr.mxu0 0.0
  %1427 = vmatpush1.msra.mxu0 0.0
  %1428 = vmatprep.subr.mxu0 0.0
  %1429 = vmatpush1.msra.mxu0 0.0
  %1430 = vmatprep.subr.mxu0 0.0
  %1431 = vmatpush1.msra.mxu0 0.0
  %1432 = vmatprep.subr.mxu0 0.0
  %1433 = vmatpush1.msra.mxu0 0.0
  %1434 = vmatprep.subr.mxu0 0.0
  %1435 = vmatpush1.msra.mxu0 0.0
  %1436 = vmatprep.subr.mxu0 0.0
  %1437 = vmatpush1.msra.mxu0 0.0
  %1438 = vmatprep.subr.mxu0 0.0
  %1439 = vmatpush1.msra.mxu0 0.0
  %1440 = vmatprep.subr.mxu0 0.0
  %1441 = vmatpush1.msra.mxu0 0.0
  %1442 = vmatprep.subr.mxu0 0.0
  %1443 = vmatpush1.msra.mxu0 0.0
  %1444 = vmatprep.subr.mxu0 0.0
  %1445 = vmatpush1.msra.mxu0 0.0
  %1446 = vmatprep.subr.mxu0 0.0
  %1447 = vmatpush1.msra.mxu0 0.0
  %1448 = vmatprep.subr.mxu0 0.0
  %1449 = vmatpush1.msra.mxu0 0.0
  %1450 = vmatprep.subr.mxu0 0.0
  %1451 = vmatpush1.msra.mxu0 0.0
  %1452 = vmatprep.subr.mxu0 0.0
  %1453 = vmatpush1.msra.mxu0 0.0
  %1454 = vmatprep.subr.mxu0 0.0
  %1455 = vmatpush1.msra.mxu0 0.0
  %1456 = vmatprep.subr.mxu0 0.0
  %1457 = vmatpush1.msra.mxu0 0.0
  %1458 = vmatprep.mubr.f32.mxu0 0.0
  %1459 = vmatmul.mubr.f32.gmra.mrb[0].mxu0 %v1392
  %v1460 = vpop.f32.mrb[0].mxu0
  %v1461 = vadd.f32 %v1389, %v1460
  %v1462 = vpop.f32.mrb[0].mxu0
  %1463 = vdwg.mxu0
  %v1464 = vxor.u32 %v1461, 2147483648
  %v1465 = vmul.f32 %v1464, 1.442695
  %v1466 = vpow.pop %v1465
  %v1467 = vadd.f32 %v1466, 1.0
  %v1468 = vrcp.pop %v1467
  %v1469 = vmul.f32 1.0, %v1468
  %v1470 = vmul.f32 %v1461, %v1469
  %s1471 = scalar_lea.vmem %s7, 192
  %v1472 = vld [vmem:[%s1471] sm:$0xff]
  %v1473 = vld [vmem:[%s1471 + $0x8] sm:$0xff]
  %v1474 = vld [vmem:[%s1471 + $0x10] sm:$0xff]
  %v1475 = vld [vmem:[%s1471 + $0x18] sm:$0xff]
  %s1476 = scalar_lea.vmem %s9, 40
  %v1477 = vld [vmem:[%s1476] sm:$0xff]
  %1478 = vmatprep.subr.mxu0 0.0
  %1479 = vmatpush1.msra.mxu0 %v1477
  %1480 = vmatprep.subr.mxu0 0.0
  %1481 = vmatpush1.msra.mxu0 0.0
  %1482 = vmatprep.subr.mxu0 0.0
  %1483 = vmatpush1.msra.mxu0 0.0
  %1484 = vmatprep.subr.mxu0 0.0
  %1485 = vmatpush1.msra.mxu0 0.0
  %1486 = vmatprep.subr.mxu0 0.0
  %1487 = vmatpush1.msra.mxu0 0.0
  %1488 = vmatprep.subr.mxu0 0.0
  %1489 = vmatpush1.msra.mxu0 0.0
  %1490 = vmatprep.subr.mxu0 0.0
  %1491 = vmatpush1.msra.mxu0 0.0
  %1492 = vmatprep.subr.mxu0 0.0
  %1493 = vmatpush1.msra.mxu0 0.0
  %1494 = vmatprep.subr.mxu0 0.0
  %1495 = vmatpush1.msra.mxu0 0.0
  %1496 = vmatprep.subr.mxu0 0.0
  %1497 = vmatpush1.msra.mxu0 0.0
  %1498 = vmatprep.subr.mxu0 0.0
  %1499 = vmatpush1.msra.mxu0 0.0
  %1500 = vmatprep.subr.mxu0 0.0
  %1501 = vmatpush1.msra.mxu0 0.0
  %1502 = vmatprep.subr.mxu0 0.0
  %1503 = vmatpush1.msra.mxu0 0.0
  %1504 = vmatprep.subr.mxu0 0.0
  %1505 = vmatpush1.msra.mxu0 0.0
  %1506 = vmatprep.subr.mxu0 0.0
  %1507 = vmatpush1.msra.mxu0 0.0
  %1508 = vmatprep.subr.mxu0 0.0
  %1509 = vmatpush1.msra.mxu0 0.0
  %1510 = vmatprep.subr.mxu0 0.0
  %1511 = vmatpush1.msra.mxu0 0.0
  %1512 = vmatprep.subr.mxu0 0.0
  %1513 = vmatpush1.msra.mxu0 0.0
  %1514 = vmatprep.subr.mxu0 0.0
  %1515 = vmatpush1.msra.mxu0 0.0
  %1516 = vmatprep.subr.mxu0 0.0
  %1517 = vmatpush1.msra.mxu0 0.0
  %1518 = vmatprep.subr.mxu0 0.0
  %1519 = vmatpush1.msra.mxu0 0.0
  %1520 = vmatprep.subr.mxu0 0.0
  %1521 = vmatpush1.msra.mxu0 0.0
  %1522 = vmatprep.subr.mxu0 0.0
  %1523 = vmatpush1.msra.mxu0 0.0
  %1524 = vmatprep.subr.mxu0 0.0
  %1525 = vmatpush1.msra.mxu0 0.0
  %1526 = vmatprep.subr.mxu0 0.0
  %1527 = vmatpush1.msra.mxu0 0.0
  %1528 = vmatprep.subr.mxu0 0.0
  %1529 = vmatpush1.msra.mxu0 0.0
  %1530 = vmatprep.subr.mxu0 0.0
  %1531 = vmatpush1.msra.mxu0 0.0
  %1532 = vmatprep.subr.mxu0 0.0
  %1533 = vmatpush1.msra.mxu0 0.0
  %1534 = vmatprep.subr.mxu0 0.0
  %1535 = vmatpush1.msra.mxu0 0.0
  %1536 = vmatprep.subr.mxu0 0.0
  %1537 = vmatpush1.msra.mxu0 0.0
  %1538 = vmatprep.subr.mxu0 0.0
  %1539 = vmatpush1.msra.mxu0 0.0
  %1540 = vmatprep.subr.mxu0 0.0
  %1541 = vmatpush1.msra.mxu0 0.0
  %1542 = vmatprep.mubr.f32.mxu0 0.0
  %1543 = vmatmul.mubr.f32.gmra.mrb[0].mxu0 %v63
  %v1544 = vpop.f32.mrb[0].mxu0
  %v1545 = vadd.f32 0.0, %v1544
  %v1546 = vpop.f32.mrb[0].mxu0
  %1547 = vmatprep.mubr.f32.mxu0 0.0
  %1548 = vmatmul.mubr.f32.gmra.mrb[0].mxu0 %v66
  %v1549 = vpop.f32.mrb[0].mxu0
  %v1550 = vadd.f32 0.0, %v1549
  %v1551 = vpop.f32.mrb[0].mxu0
  %1552 = vmatprep.mubr.f32.mxu0 0.0
  %1553 = vmatmul.mubr.f32.gmra.mrb[0].mxu0 %v69
  %v1554 = vpop.f32.mrb[0].mxu0
  %v1555 = vadd.f32 0.0, %v1554
  %v1556 = vpop.f32.mrb[0].mxu0
  %1557 = vmatprep.mubr.f32.mxu0 0.0
  %1558 = vmatmul.mubr.f32.gmra.mrb[0].mxu0 %v72
  %v1559 = vpop.f32.mrb[0].mxu0
  %v1560 = vadd.f32 0.0, %v1559
  %v1561 = vpop.f32.mrb[0].mxu0
  %1562 = vmatprep.mubr.f32.mxu0 0.0
  %1563 = vmatmul.mubr.f32.gmra.mrb[0].mxu0 %v75
  %v1564 = vpop.f32.mrb[0].mxu0
  %v1565 = vadd.f32 0.0, %v1564
  %v1566 = vpop.f32.mrb[0].mxu0
  %1567 = vmatprep.mubr.f32.mxu0 0.0
  %1568 = vmatmul.mubr.f32.gmra.mrb[0].mxu0 %v78
  %v1569 = vpop.f32.mrb[0].mxu0
  %v1570 = vadd.f32 0.0, %v1569
  %v1571 = vpop.f32.mrb[0].mxu0
  %1572 = vmatprep.mubr.f32.mxu0 0.0
  %1573 = vmatmul.mubr.f32.gmra.mrb[0].mxu0 %v81
  %v1574 = vpop.f32.mrb[0].mxu0
  %v1575 = vadd.f32 0.0, %v1574
  %v1576 = vpop.f32.mrb[0].mxu0
  %1577 = vmatprep.mubr.f32.mxu0 0.0
  %1578 = vmatmul.mubr.f32.gmra.mrb[0].mxu0 %v84
  %v1579 = vpop.f32.mrb[0].mxu0
  %v1580 = vadd.f32 0.0, %v1579
  %v1581 = vpop.f32.mrb[0].mxu0
  %1582 = vdwg.mxu0
  %s1583 = scalar_lea.vmem %s7, 608
  %v1584 = vld [vmem:[%s1583] sm:$0xff]
  %v1585 = vld [vmem:[%s1583 + $0x8] sm:$0xff]
  %v1586 = vld [vmem:[%s1583 + $0x10] sm:$0xff]
  %v1587 = vld [vmem:[%s1583 + $0x18] sm:$0xff]
  %s1588 = scalar_lea.vmem %s8, 14
  %v1589 = vld [vmem:[%s1588] sm:$0x1]
  %v1591 = vlaneseq
  %v1592 = vshrl.u32 %v1591, 7
  %v1593 = vsub.s32 0, %v1592
  %v1594 = vrot.slane %v1589, %v1593
  %v1597 = vsel %vm530, %v994, 0
  %v1600 = vsel %vm530, %v995, 0
  %v1603 = vsel %vm530, %v996, 0
  %v1606 = vsel %vm530, %v997, 0
  %v1609 = vsel %vm530, %v998, 0
  %v1612 = vsel %vm530, %v999, 0
  %v1615 = vsel %vm530, %v1000, 0
  %v1618 = vsel %vm530, %v1001, 0
  %1620 = vmatprep.subr.mxu0 0.0
  %1621 = vmatpush1.msra.mxu0 %v1584
  %1622 = vmatprep.subr.mxu0 0.0
  %1623 = vmatpush1.msra.mxu0 %v1585
  %1624 = vmatprep.subr.mxu0 0.0
  %1625 = vmatpush1.msra.mxu0 %v1586
  %1626 = vmatprep.subr.mxu0 0.0
  %1627 = vmatpush1.msra.mxu0 %v1587
  %1628 = vmatprep.subr.mxu0 0.0
  %1629 = vmatpush1.msra.mxu0 0.0
  %1630 = vmatprep.subr.mxu0 0.0
  %1631 = vmatpush1.msra.mxu0 0.0
  %1632 = vmatprep.subr.mxu0 0.0
  %1633 = vmatpush1.msra.mxu0 0.0
  %1634 = vmatprep.subr.mxu0 0.0
  %1635 = vmatpush1.msra.mxu0 0.0
  %1636 = vmatprep.subr.mxu0 0.0
  %1637 = vmatpush1.msra.mxu0 0.0
  %1638 = vmatprep.subr.mxu0 0.0
  %1639 = vmatpush1.msra.mxu0 0.0
  %1640 = vmatprep.subr.mxu0 0.0
  %1641 = vmatpush1.msra.mxu0 0.0
  %1642 = vmatprep.subr.mxu0 0.0
  %1643 = vmatpush1.msra.mxu0 0.0
  %1644 = vmatprep.subr.mxu0 0.0
  %1645 = vmatpush1.msra.mxu0 0.0
  %1646 = vmatprep.subr.mxu0 0.0
  %1647 = vmatpush1.msra.mxu0 0.0
  %1648 = vmatprep.subr.mxu0 0.0
  %1649 = vmatpush1.msra.mxu0 0.0
  %1650 = vmatprep.subr.mxu0 0.0
  %1651 = vmatpush1.msra.mxu0 0.0
  %1652 = vmatprep.subr.mxu0 0.0
  %1653 = vmatpush1.msra.mxu0 0.0
  %1654 = vmatprep.subr.mxu0 0.0
  %1655 = vmatpush1.msra.mxu0 0.0
  %1656 = vmatprep.subr.mxu0 0.0
  %1657 = vmatpush1.msra.mxu0 0.0
  %1658 = vmatprep.subr.mxu0 0.0
  %1659 = vmatpush1.msra.mxu0 0.0
  %1660 = vmatprep.subr.mxu0 0.0
  %1661 = vmatpush1.msra.mxu0 0.0
  %1662 = vmatprep.subr.mxu0 0.0
  %1663 = vmatpush1.msra.mxu0 0.0
  %1664 = vmatprep.subr.mxu0 0.0
  %1665 = vmatpush1.msra.mxu0 0.0
  %1666 = vmatprep.subr.mxu0 0.0
  %1667 = vmatpush1.msra.mxu0 0.0
  %1668 = vmatprep.subr.mxu0 0.0
  %1669 = vmatpush1.msra.mxu0 0.0
  %1670 = vmatprep.subr.mxu0 0.0
  %1671 = vmatpush1.msra.mxu0 0.0
  %1672 = vmatprep.subr.mxu0 0.0
  %1673 = vmatpush1.msra.mxu0 0.0
  %1674 = vmatprep.subr.mxu0 0.0
  %1675 = vmatpush1.msra.mxu0 0.0
  %1676 = vmatprep.subr.mxu0 0.0
  %1677 = vmatpush1.msra.mxu0 0.0
  %1678 = vmatprep.subr.mxu0 0.0
  %1679 = vmatpush1.msra.mxu0 0.0
  %1680 = vmatprep.subr.mxu0 0.0
  %1681 = vmatpush1.msra.mxu0 0.0
  %1682 = vmatprep.subr.mxu0 0.0
  %1683 = vmatpush1.msra.mxu0 0.0
  %1684 = vmatprep.mubr.f32.mxu0 0.0
  %1685 = vmatmul.mubr.f32.gmra.mrb[0].mxu0 %v1597
  %v1686 = vpop.f32.mrb[0].mxu0
  %v1687 = vadd.f32 %v1594, %v1686
  %v1688 = vpop.f32.mrb[0].mxu0
  %1689 = vmatprep.mubr.f32.mxu0 0.0
  %1690 = vmatmul.mubr.f32.gmra.mrb[0].mxu0 %v1600
  %v1691 = vpop.f32.mrb[0].mxu0
  %v1692 = vadd.f32 %v1594, %v1691
  %v1693 = vpop.f32.mrb[0].mxu0
  %1694 = vmatprep.mubr.f32.mxu0 0.0
  %1695 = vmatmul.mubr.f32.gmra.mrb[0].mxu0 %v1603
  %v1696 = vpop.f32.mrb[0].mxu0
  %v1697 = vadd.f32 %v1594, %v1696
  %v1698 = vpop.f32.mrb[0].mxu0
  %1699 = vmatprep.mubr.f32.mxu0 0.0
  %1700 = vmatmul.mubr.f32.gmra.mrb[0].mxu0 %v1606
  %v1701 = vpop.f32.mrb[0].mxu0
  %v1702 = vadd.f32 %v1594, %v1701
  %v1703 = vpop.f32.mrb[0].mxu0
  %1704 = vmatprep.mubr.f32.mxu0 0.0
  %1705 = vmatmul.mubr.f32.gmra.mrb[0].mxu0 %v1609
  %v1706 = vpop.f32.mrb[0].mxu0
  %v1707 = vadd.f32 %v1594, %v1706
  %v1708 = vpop.f32.mrb[0].mxu0
  %1709 = vmatprep.mubr.f32.mxu0 0.0
  %1710 = vmatmul.mubr.f32.gmra.mrb[0].mxu0 %v1612
  %v1711 = vpop.f32.mrb[0].mxu0
  %v1712 = vadd.f32 %v1594, %v1711
  %v1713 = vpop.f32.mrb[0].mxu0
  %1714 = vmatprep.mubr.f32.mxu0 0.0
  %1715 = vmatmul.mubr.f32.gmra.mrb[0].mxu0 %v1615
  %v1716 = vpop.f32.mrb[0].mxu0
  %v1717 = vadd.f32 %v1594, %v1716
  %v1718 = vpop.f32.mrb[0].mxu0
  %1719 = vmatprep.mubr.f32.mxu0 0.0
  %1720 = vmatmul.mubr.f32.gmra.mrb[0].mxu0 %v1618
  %v1721 = vpop.f32.mrb[0].mxu0
  %v1722 = vadd.f32 %v1594, %v1721
  %v1723 = vpop.f32.mrb[0].mxu0
  %1724 = vdwg.mxu0
  %v1725 = vxor.u32 %v1687, 2147483648
  %v1726 = vxor.u32 %v1692, 2147483648
  %v1727 = vxor.u32 %v1697, 2147483648
  %v1728 = vxor.u32 %v1702, 2147483648
  %v1729 = vxor.u32 %v1707, 2147483648
  %v1730 = vxor.u32 %v1712, 2147483648
  %v1731 = vxor.u32 %v1717, 2147483648
  %v1732 = vxor.u32 %v1722, 2147483648
  %v1733 = vmul.f32 %v1725, 1.442695
  %v1734 = vpow.pop %v1733
  %v1735 = vmul.f32 %v1726, 1.442695
  %v1736 = vpow.pop %v1735
  %v1737 = vmul.f32 %v1727, 1.442695
  %v1738 = vpow.pop %v1737
  %v1739 = vmul.f32 %v1728, 1.442695
  %v1740 = vpow.pop %v1739
  %v1741 = vmul.f32 %v1729, 1.442695
  %v1742 = vpow.pop %v1741
  %v1743 = vmul.f32 %v1730, 1.442695
  %v1744 = vpow.pop %v1743
  %v1745 = vmul.f32 %v1731, 1.442695
  %v1746 = vpow.pop %v1745
  %v1747 = vmul.f32 %v1732, 1.442695
  %v1748 = vpow.pop %v1747
  %v1749 = vadd.f32 %v1734, 1.0
  %v1750 = vadd.f32 %v1736, 1.0
  %v1751 = vadd.f32 %v1738, 1.0
  %v1752 = vadd.f32 %v1740, 1.0
  %v1753 = vadd.f32 %v1742, 1.0
  %v1754 = vadd.f32 %v1744, 1.0
  %v1755 = vadd.f32 %v1746, 1.0
  %v1756 = vadd.f32 %v1748, 1.0
  %v1757 = vrcp.pop %v1749
  %v1758 = vmul.f32 1.0, %v1757
  %v1759 = vrcp.pop %v1750
  %v1760 = vmul.f32 1.0, %v1759
  %v1761 = vrcp.pop %v1751
  %v1762 = vmul.f32 1.0, %v1761
  %v1763 = vrcp.pop %v1752
  %v1764 = vmul.f32 1.0, %v1763
  %v1765 = vrcp.pop %v1753
  %v1766 = vmul.f32 1.0, %v1765
  %v1767 = vrcp.pop %v1754
  %v1768 = vmul.f32 1.0, %v1767
  %v1769 = vrcp.pop %v1755
  %v1770 = vmul.f32 1.0, %v1769
  %v1771 = vrcp.pop %v1756
  %v1772 = vmul.f32 1.0, %v1771
  %v1773 = vmul.f32 %v1687, %v1758
  %v1774 = vmul.f32 %v1692, %v1760
  %v1775 = vmul.f32 %v1697, %v1762
  %v1776 = vmul.f32 %v1702, %v1764
  %v1777 = vmul.f32 %v1707, %v1766
  %v1778 = vmul.f32 %v1712, %v1768
  %v1779 = vmul.f32 %v1717, %v1770
  %v1780 = vmul.f32 %v1722, %v1772
  %s1781 = scalar_lea.vmem %s7, 640
  %v1782 = vld [vmem:[%s1781] sm:$0xff]
  %v1783 = vld [vmem:[%s1781 + $0x8] sm:$0xff]
  %v1784 = vld [vmem:[%s1781 + $0x10] sm:$0xff]
  %v1785 = vld [vmem:[%s1781 + $0x18] sm:$0xff]
  %s1786 = scalar_lea.vmem %s8, 15
  %v1787 = vld [vmem:[%s1786] sm:$0x1]
  %v1789 = vlaneseq
  %v1790 = vshrl.u32 %v1789, 7
  %v1791 = vsub.s32 0, %v1790
  %v1792 = vrot.slane %v1787, %v1791
  %1794 = vmatprep.subr.mxu0 0.0
  %1795 = vmatpush1.msra.mxu0 %v1782
  %1796 = vmatprep.subr.mxu0 0.0
  %1797 = vmatpush1.msra.mxu0 %v1783
  %1798 = vmatprep.subr.mxu0 0.0
  %1799 = vmatpush1.msra.mxu0 %v1784
  %1800 = vmatprep.subr.mxu0 0.0
  %1801 = vmatpush1.msra.mxu0 %v1785
  %1802 = vmatprep.subr.mxu0 0.0
  %1803 = vmatpush1.msra.mxu0 0.0
  %1804 = vmatprep.subr.mxu0 0.0
  %1805 = vmatpush1.msra.mxu0 0.0
  %1806 = vmatprep.subr.mxu0 0.0
  %1807 = vmatpush1.msra.mxu0 0.0
  %1808 = vmatprep.subr.mxu0 0.0
  %1809 = vmatpush1.msra.mxu0 0.0
  %1810 = vmatprep.subr.mxu0 0.0
  %1811 = vmatpush1.msra.mxu0 0.0
  %1812 = vmatprep.subr.mxu0 0.0
  %1813 = vmatpush1.msra.mxu0 0.0
  %1814 = vmatprep.subr.mxu0 0.0
  %1815 = vmatpush1.msra.mxu0 0.0
  %1816 = vmatprep.subr.mxu0 0.0
  %1817 = vmatpush1.msra.mxu0 0.0
  %1818 = vmatprep.subr.mxu0 0.0
  %1819 = vmatpush1.msra.mxu0 0.0
  %1820 = vmatprep.subr.mxu0 0.0
  %1821 = vmatpush1.msra.mxu0 0.0
  %1822 = vmatprep.subr.mxu0 0.0
  %1823 = vmatpush1.msra.mxu0 0.0
  %1824 = vmatprep.subr.mxu0 0.0
  %1825 = vmatpush1.msra.mxu0 0.0
  %1826 = vmatprep.subr.mxu0 0.0
  %1827 = vmatpush1.msra.mxu0 0.0
  %1828 = vmatprep.subr.mxu0 0.0
  %1829 = vmatpush1.msra.mxu0 0.0
  %1830 = vmatprep.subr.mxu0 0.0
  %1831 = vmatpush1.msra.mxu0 0.0
  %1832 = vmatprep.subr.mxu0 0.0
  %1833 = vmatpush1.msra.mxu0 0.0
  %1834 = vmatprep.subr.mxu0 0.0
  %1835 = vmatpush1.msra.mxu0 0.0
  %1836 = vmatprep.subr.mxu0 0.0
  %1837 = vmatpush1.msra.mxu0 0.0
  %1838 = vmatprep.subr.mxu0 0.0
  %1839 = vmatpush1.msra.mxu0 0.0
  %1840 = vmatprep.subr.mxu0 0.0
  %1841 = vmatpush1.msra.mxu0 0.0
  %1842 = vmatprep.subr.mxu0 0.0
  %1843 = vmatpush1.msra.mxu0 0.0
  %1844 = vmatprep.subr.mxu0 0.0
  %1845 = vmatpush1.msra.mxu0 0.0
  %1846 = vmatprep.subr.mxu0 0.0
  %1847 = vmatpush1.msra.mxu0 0.0
  %1848 = vmatprep.subr.mxu0 0.0
  %1849 = vmatpush1.msra.mxu0 0.0
  %1850 = vmatprep.subr.mxu0 0.0
  %1851 = vmatpush1.msra.mxu0 0.0
  %1852 = vmatprep.subr.mxu0 0.0
  %1853 = vmatpush1.msra.mxu0 0.0
  %1854 = vmatprep.subr.mxu0 0.0
  %1855 = vmatpush1.msra.mxu0 0.0
  %1856 = vmatprep.subr.mxu0 0.0
  %1857 = vmatpush1.msra.mxu0 0.0
  %1858 = vmatprep.mubr.f32.mxu0 0.0
  %1859 = vmatmul.mubr.f32.gmra.mrb[0].mxu0 %v1597
  %v1860 = vpop.f32.mrb[0].mxu0
  %v1861 = vadd.f32 %v1792, %v1860
  %v1862 = vpop.f32.mrb[0].mxu0
  %1863 = vmatprep.mubr.f32.mxu0 0.0
  %1864 = vmatmul.mubr.f32.gmra.mrb[0].mxu0 %v1600
  %v1865 = vpop.f32.mrb[0].mxu0
  %v1866 = vadd.f32 %v1792, %v1865
  %v1867 = vpop.f32.mrb[0].mxu0
  %1868 = vmatprep.mubr.f32.mxu0 0.0
  %1869 = vmatmul.mubr.f32.gmra.mrb[0].mxu0 %v1603
  %v1870 = vpop.f32.mrb[0].mxu0
  %v1871 = vadd.f32 %v1792, %v1870
  %v1872 = vpop.f32.mrb[0].mxu0
  %1873 = vmatprep.mubr.f32.mxu0 0.0
  %1874 = vmatmul.mubr.f32.gmra.mrb[0].mxu0 %v1606
  %v1875 = vpop.f32.mrb[0].mxu0
  %v1876 = vadd.f32 %v1792, %v1875
  %v1877 = vpop.f32.mrb[0].mxu0
  %1878 = vmatprep.mubr.f32.mxu0 0.0
  %1879 = vmatmul.mubr.f32.gmra.mrb[0].mxu0 %v1609
  %v1880 = vpop.f32.mrb[0].mxu0
  %v1881 = vadd.f32 %v1792, %v1880
  %v1882 = vpop.f32.mrb[0].mxu0
  %1883 = vmatprep.mubr.f32.mxu0 0.0
  %1884 = vmatmul.mubr.f32.gmra.mrb[0].mxu0 %v1612
  %v1885 = vpop.f32.mrb[0].mxu0
  %v1886 = vadd.f32 %v1792, %v1885
  %v1887 = vpop.f32.mrb[0].mxu0
  %1888 = vmatprep.mubr.f32.mxu0 0.0
  %1889 = vmatmul.mubr.f32.gmra.mrb[0].mxu0 %v1615
  %v1890 = vpop.f32.mrb[0].mxu0
  %v1891 = vadd.f32 %v1792, %v1890
  %v1892 = vpop.f32.mrb[0].mxu0
  %1893 = vmatprep.mubr.f32.mxu0 0.0
  %1894 = vmatmul.mubr.f32.gmra.mrb[0].mxu0 %v1618
  %v1895 = vpop.f32.mrb[0].mxu0
  %v1896 = vadd.f32 %v1792, %v1895
  %v1897 = vpop.f32.mrb[0].mxu0
  %1898 = vdwg.mxu0
  %v1899 = vxor.u32 %v1861, 2147483648
  %v1900 = vxor.u32 %v1866, 2147483648
  %v1901 = vxor.u32 %v1871, 2147483648
  %v1902 = vxor.u32 %v1876, 2147483648
  %v1903 = vxor.u32 %v1881, 2147483648
  %v1904 = vxor.u32 %v1886, 2147483648
  %v1905 = vxor.u32 %v1891, 2147483648
  %v1906 = vxor.u32 %v1896, 2147483648
  %v1907 = vmul.f32 %v1899, 1.442695
  %v1908 = vpow.pop %v1907
  %v1909 = vmul.f32 %v1900, 1.442695
  %v1910 = vpow.pop %v1909
  %v1911 = vmul.f32 %v1901, 1.442695
  %v1912 = vpow.pop %v1911
  %v1913 = vmul.f32 %v1902, 1.442695
  %v1914 = vpow.pop %v1913
  %v1915 = vmul.f32 %v1903, 1.442695
  %v1916 = vpow.pop %v1915
  %v1917 = vmul.f32 %v1904, 1.442695
  %v1918 = vpow.pop %v1917
  %v1919 = vmul.f32 %v1905, 1.442695
  %v1920 = vpow.pop %v1919
  %v1921 = vmul.f32 %v1906, 1.442695
  %v1922 = vpow.pop %v1921
  %v1923 = vadd.f32 %v1908, 1.0
  %v1924 = vadd.f32 %v1910, 1.0
  %v1925 = vadd.f32 %v1912, 1.0
  %v1926 = vadd.f32 %v1914, 1.0
  %v1927 = vadd.f32 %v1916, 1.0
  %v1928 = vadd.f32 %v1918, 1.0
  %v1929 = vadd.f32 %v1920, 1.0
  %v1930 = vadd.f32 %v1922, 1.0
  %v1931 = vrcp.pop %v1923
  %v1932 = vmul.f32 1.0, %v1931
  %v1933 = vrcp.pop %v1924
  %v1934 = vmul.f32 1.0, %v1933
  %v1935 = vrcp.pop %v1925
  %v1936 = vmul.f32 1.0, %v1935
  %v1937 = vrcp.pop %v1926
  %v1938 = vmul.f32 1.0, %v1937
  %v1939 = vrcp.pop %v1927
  %v1940 = vmul.f32 1.0, %v1939
  %v1941 = vrcp.pop %v1928
  %v1942 = vmul.f32 1.0, %v1941
  %v1943 = vrcp.pop %v1929
  %v1944 = vmul.f32 1.0, %v1943
  %v1945 = vrcp.pop %v1930
  %v1946 = vmul.f32 1.0, %v1945
  %v1947 = vmul.f32 %v1861, %v1932
  %v1948 = vmul.f32 %v1866, %v1934
  %v1949 = vmul.f32 %v1871, %v1936
  %v1950 = vmul.f32 %v1876, %v1938
  %v1951 = vmul.f32 %v1881, %v1940
  %v1952 = vmul.f32 %v1886, %v1942
  %v1953 = vmul.f32 %v1891, %v1944
  %v1954 = vmul.f32 %v1896, %v1946
  %v1955 = vmul.f32 %v1947, %v1545
  %v1956 = vmul.f32 %v1948, %v1550
  %v1957 = vmul.f32 %v1949, %v1555
  %v1958 = vmul.f32 %v1950, %v1560
  %v1959 = vmul.f32 %v1951, %v1565
  %v1960 = vmul.f32 %v1952, %v1570
  %v1961 = vmul.f32 %v1953, %v1575
  %v1962 = vmul.f32 %v1954, %v1580
  %s1963 = scalar_lea.vmem %s7, 672
  %v1964 = vld [vmem:[%s1963] sm:$0xff]
  %v1965 = vld [vmem:[%s1963 + $0x8] sm:$0xff]
  %v1966 = vld [vmem:[%s1963 + $0x10] sm:$0xff]
  %v1967 = vld [vmem:[%s1963 + $0x18] sm:$0xff]
  %v1969 = vsel %vm530, %v1955, 0
  %v1972 = vsel %vm530, %v1956, 0
  %v1975 = vsel %vm530, %v1957, 0
  %v1978 = vsel %vm530, %v1958, 0
  %v1981 = vsel %vm530, %v1959, 0
  %v1984 = vsel %vm530, %v1960, 0
  %v1987 = vsel %vm530, %v1961, 0
  %v1990 = vsel %vm530, %v1962, 0
  %1992 = vmatprep.subr.mxu0 0.0
  %1993 = vmatpush1.msra.mxu0 %v1964
  %1994 = vmatprep.subr.mxu0 0.0
  %1995 = vmatpush1.msra.mxu0 %v1965
  %1996 = vmatprep.subr.mxu0 0.0
  %1997 = vmatpush1.msra.mxu0 %v1966
  %1998 = vmatprep.subr.mxu0 0.0
  %1999 = vmatpush1.msra.mxu0 %v1967
  %2000 = vmatprep.subr.mxu0 0.0
  %2001 = vmatpush1.msra.mxu0 0.0
  %2002 = vmatprep.subr.mxu0 0.0
  %2003 = vmatpush1.msra.mxu0 0.0
  %2004 = vmatprep.subr.mxu0 0.0
  %2005 = vmatpush1.msra.mxu0 0.0
  %2006 = vmatprep.subr.mxu0 0.0
  %2007 = vmatpush1.msra.mxu0 0.0
  %2008 = vmatprep.subr.mxu0 0.0
  %2009 = vmatpush1.msra.mxu0 0.0
  %2010 = vmatprep.subr.mxu0 0.0
  %2011 = vmatpush1.msra.mxu0 0.0
  %2012 = vmatprep.subr.mxu0 0.0
  %2013 = vmatpush1.msra.mxu0 0.0
  %2014 = vmatprep.subr.mxu0 0.0
  %2015 = vmatpush1.msra.mxu0 0.0
  %2016 = vmatprep.subr.mxu0 0.0
  %2017 = vmatpush1.msra.mxu0 0.0
  %2018 = vmatprep.subr.mxu0 0.0
  %2019 = vmatpush1.msra.mxu0 0.0
  %2020 = vmatprep.subr.mxu0 0.0
  %2021 = vmatpush1.msra.mxu0 0.0
  %2022 = vmatprep.subr.mxu0 0.0
  %2023 = vmatpush1.msra.mxu0 0.0
  %2024 = vmatprep.subr.mxu0 0.0
  %2025 = vmatpush1.msra.mxu0 0.0
  %2026 = vmatprep.subr.mxu0 0.0
  %2027 = vmatpush1.msra.mxu0 0.0
  %2028 = vmatprep.subr.mxu0 0.0
  %2029 = vmatpush1.msra.mxu0 0.0
  %2030 = vmatprep.subr.mxu0 0.0
  %2031 = vmatpush1.msra.mxu0 0.0
  %2032 = vmatprep.subr.mxu0 0.0
  %2033 = vmatpush1.msra.mxu0 0.0
  %2034 = vmatprep.subr.mxu0 0.0
  %2035 = vmatpush1.msra.mxu0 0.0
  %2036 = vmatprep.subr.mxu0 0.0
  %2037 = vmatpush1.msra.mxu0 0.0
  %2038 = vmatprep.subr.mxu0 0.0
  %2039 = vmatpush1.msra.mxu0 0.0
  %2040 = vmatprep.subr.mxu0 0.0
  %2041 = vmatpush1.msra.mxu0 0.0
  %2042 = vmatprep.subr.mxu0 0.0
  %2043 = vmatpush1.msra.mxu0 0.0
  %2044 = vmatprep.subr.mxu0 0.0
  %2045 = vmatpush1.msra.mxu0 0.0
  %2046 = vmatprep.subr.mxu0 0.0
  %2047 = vmatpush1.msra.mxu0 0.0
  %2048 = vmatprep.subr.mxu0 0.0
  %2049 = vmatpush1.msra.mxu0 0.0
  %2050 = vmatprep.subr.mxu0 0.0
  %2051 = vmatpush1.msra.mxu0 0.0
  %2052 = vmatprep.subr.mxu0 0.0
  %2053 = vmatpush1.msra.mxu0 0.0
  %2054 = vmatprep.subr.mxu0 0.0
  %2055 = vmatpush1.msra.mxu0 0.0
  %2056 = vmatprep.mubr.f32.mxu0 0.0
  %2057 = vmatmul.mubr.f32.gmra.mrb[0].mxu0 %v1969
  %v2058 = vpop.f32.mrb[0].mxu0
  %v2059 = vadd.f32 0.0, %v2058
  %v2060 = vpop.f32.mrb[0].mxu0
  %2061 = vmatprep.mubr.f32.mxu0 0.0
  %2062 = vmatmul.mubr.f32.gmra.mrb[0].mxu0 %v1972
  %v2063 = vpop.f32.mrb[0].mxu0
  %v2064 = vadd.f32 0.0, %v2063
  %v2065 = vpop.f32.mrb[0].mxu0
  %2066 = vmatprep.mubr.f32.mxu0 0.0
  %2067 = vmatmul.mubr.f32.gmra.mrb[0].mxu0 %v1975
  %v2068 = vpop.f32.mrb[0].mxu0
  %v2069 = vadd.f32 0.0, %v2068
  %v2070 = vpop.f32.mrb[0].mxu0
  %2071 = vmatprep.mubr.f32.mxu0 0.0
  %2072 = vmatmul.mubr.f32.gmra.mrb[0].mxu0 %v1978
  %v2073 = vpop.f32.mrb[0].mxu0
  %v2074 = vadd.f32 0.0, %v2073
  %v2075 = vpop.f32.mrb[0].mxu0
  %2076 = vmatprep.mubr.f32.mxu0 0.0
  %2077 = vmatmul.mubr.f32.gmra.mrb[0].mxu0 %v1981
  %v2078 = vpop.f32.mrb[0].mxu0
  %v2079 = vadd.f32 0.0, %v2078
  %v2080 = vpop.f32.mrb[0].mxu0
  %2081 = vmatprep.mubr.f32.mxu0 0.0
  %2082 = vmatmul.mubr.f32.gmra.mrb[0].mxu0 %v1984
  %v2083 = vpop.f32.mrb[0].mxu0
  %v2084 = vadd.f32 0.0, %v2083
  %v2085 = vpop.f32.mrb[0].mxu0
  %2086 = vmatprep.mubr.f32.mxu0 0.0
  %2087 = vmatmul.mubr.f32.gmra.mrb[0].mxu0 %v1987
  %v2088 = vpop.f32.mrb[0].mxu0
  %v2089 = vadd.f32 0.0, %v2088
  %v2090 = vpop.f32.mrb[0].mxu0
  %2091 = vmatprep.mubr.f32.mxu0 0.0
  %2092 = vmatmul.mubr.f32.gmra.mrb[0].mxu0 %v1990
  %v2093 = vpop.f32.mrb[0].mxu0
  %v2094 = vadd.f32 0.0, %v2093
  %v2095 = vpop.f32.mrb[0].mxu0
  %2096 = vdwg.mxu0
  %v2097 = vld [vmem:[%s6] sm:$0xff]
  %v2098 = vld [vmem:[%s6 + $0x8] sm:$0xff]
  %v2099 = vld [vmem:[%s6 + $0x10] sm:$0xff]
  %v2100 = vld [vmem:[%s6 + $0x18] sm:$0xff]
  %v2101 = vld [vmem:[%s6 + $0x20] sm:$0xff]
  %v2102 = vld [vmem:[%s6 + $0x28] sm:$0xff]
  %v2103 = vld [vmem:[%s6 + $0x30] sm:$0xff]
  %v2104 = vld [vmem:[%s6 + $0x38] sm:$0xff]
  %v2106 = vsel %vm1118, %v2097, 0
  %v2109 = vsel %vm1118, %v2098, 0
  %v2112 = vsel %vm1118, %v2099, 0
  %v2115 = vsel %vm1118, %v2100, 0
  %v2118 = vsel %vm1118, %v2101, 0
  %v2121 = vsel %vm1118, %v2102, 0
  %v2124 = vsel %vm1118, %v2103, 0
  %v2127 = vsel %vm1118, %v2104, 0
  %2129 = vmatprep.subr.mxu0 0.0
  %2130 = vmatpush1.msra.mxu0 %v2059
  %2131 = vmatprep.subr.mxu0 0.0
  %2132 = vmatpush1.msra.mxu0 %v2064
  %2133 = vmatprep.subr.mxu0 0.0
  %2134 = vmatpush1.msra.mxu0 %v2069
  %2135 = vmatprep.subr.mxu0 0.0
  %2136 = vmatpush1.msra.mxu0 %v2074
  %2137 = vmatprep.subr.mxu0 0.0
  %2138 = vmatpush1.msra.mxu0 %v2079
  %2139 = vmatprep.subr.mxu0 0.0
  %2140 = vmatpush1.msra.mxu0 %v2084
  %2141 = vmatprep.subr.mxu0 0.0
  %2142 = vmatpush1.msra.mxu0 %v2089
  %2143 = vmatprep.subr.mxu0 0.0
  %2144 = vmatpush1.msra.mxu0 %v2094
  %2145 = vmatprep.subr.mxu0 0.0
  %2146 = vmatpush1.msra.mxu0 0.0
  %2147 = vmatprep.subr.mxu0 0.0
  %2148 = vmatpush1.msra.mxu0 0.0
  %2149 = vmatprep.subr.mxu0 0.0
  %2150 = vmatpush1.msra.mxu0 0.0
  %2151 = vmatprep.subr.mxu0 0.0
  %2152 = vmatpush1.msra.mxu0 0.0
  %2153 = vmatprep.subr.mxu0 0.0
  %2154 = vmatpush1.msra.mxu0 0.0
  %2155 = vmatprep.subr.mxu0 0.0
  %2156 = vmatpush1.msra.mxu0 0.0
  %2157 = vmatprep.subr.mxu0 0.0
  %2158 = vmatpush1.msra.mxu0 0.0
  %2159 = vmatprep.subr.mxu0 0.0
  %2160 = vmatpush1.msra.mxu0 0.0
  %2161 = vmatprep.subr.mxu0 0.0
  %2162 = vmatpush1.msra.mxu0 0.0
  %2163 = vmatprep.subr.mxu0 0.0
  %2164 = vmatpush1.msra.mxu0 0.0
  %2165 = vmatprep.subr.mxu0 0.0
  %2166 = vmatpush1.msra.mxu0 0.0
  %2167 = vmatprep.subr.mxu0 0.0
  %2168 = vmatpush1.msra.mxu0 0.0
  %2169 = vmatprep.subr.mxu0 0.0
  %2170 = vmatpush1.msra.mxu0 0.0
  %2171 = vmatprep.subr.mxu0 0.0
  %2172 = vmatpush1.msra.mxu0 0.0
  %2173 = vmatprep.subr.mxu0 0.0
  %2174 = vmatpush1.msra.mxu0 0.0
  %2175 = vmatprep.subr.mxu0 0.0
  %2176 = vmatpush1.msra.mxu0 0.0
  %2177 = vmatprep.subr.mxu0 0.0
  %2178 = vmatpush1.msra.mxu0 0.0
  %2179 = vmatprep.subr.mxu0 0.0
  %2180 = vmatpush1.msra.mxu0 0.0
  %2181 = vmatprep.subr.mxu0 0.0
  %2182 = vmatpush1.msra.mxu0 0.0
  %2183 = vmatprep.subr.mxu0 0.0
  %2184 = vmatpush1.msra.mxu0 0.0
  %2185 = vmatprep.subr.mxu0 0.0
  %2186 = vmatpush1.msra.mxu0 0.0
  %2187 = vmatprep.subr.mxu0 0.0
  %2188 = vmatpush1.msra.mxu0 0.0
  %2189 = vmatprep.subr.mxu0 0.0
  %2190 = vmatpush1.msra.mxu0 0.0
  %2191 = vmatprep.subr.mxu0 0.0
  %2192 = vmatpush1.msra.mxu0 0.0
  %2193 = vmatprep.mubr.f32.mxu0 0.0
  %2194 = vmatmul.mubr.f32.gmra.mrb[0].mxu0 %v2106
  %v2195 = vpop.f32.mrb[0].mxu0
  %v2196 = vadd.f32 0.0, %v2195
  %v2197 = vpop.f32.mrb[0].mxu0
  %2198 = vmatprep.mubr.f32.mxu0 0.0
  %2199 = vmatmul.mubr.f32.gmra.mrb[0].mxu0 %v2109
  %v2200 = vpop.f32.mrb[0].mxu0
  %v2201 = vadd.f32 0.0, %v2200
  %v2202 = vpop.f32.mrb[0].mxu0
  %2203 = vmatprep.mubr.f32.mxu0 0.0
  %2204 = vmatmul.mubr.f32.gmra.mrb[0].mxu0 %v2112
  %v2205 = vpop.f32.mrb[0].mxu0
  %v2206 = vadd.f32 0.0, %v2205
  %v2207 = vpop.f32.mrb[0].mxu0
  %2208 = vmatprep.mubr.f32.mxu0 0.0
  %2209 = vmatmul.mubr.f32.gmra.mrb[0].mxu0 %v2115
  %v2210 = vpop.f32.mrb[0].mxu0
  %v2211 = vadd.f32 0.0, %v2210
  %v2212 = vpop.f32.mrb[0].mxu0
  %2213 = vmatprep.mubr.f32.mxu0 0.0
  %2214 = vmatmul.mubr.f32.gmra.mrb[0].mxu0 %v2118
  %v2215 = vpop.f32.mrb[0].mxu0
  %v2216 = vadd.f32 0.0, %v2215
  %v2217 = vpop.f32.mrb[0].mxu0
  %2218 = vmatprep.mubr.f32.mxu0 0.0
  %2219 = vmatmul.mubr.f32.gmra.mrb[0].mxu0 %v2121
  %v2220 = vpop.f32.mrb[0].mxu0
  %v2221 = vadd.f32 0.0, %v2220
  %v2222 = vpop.f32.mrb[0].mxu0
  %2223 = vmatprep.mubr.f32.mxu0 0.0
  %2224 = vmatmul.mubr.f32.gmra.mrb[0].mxu0 %v2124
  %v2225 = vpop.f32.mrb[0].mxu0
  %v2226 = vadd.f32 0.0, %v2225
  %v2227 = vpop.f32.mrb[0].mxu0
  %2228 = vmatprep.mubr.f32.mxu0 0.0
  %2229 = vmatmul.mubr.f32.gmra.mrb[0].mxu0 %v2127
  %v2230 = vpop.f32.mrb[0].mxu0
  %v2231 = vadd.f32 0.0, %v2230
  %v2232 = vpop.f32.mrb[0].mxu0
  %2233 = vdwg.mxu0
  %v2234 = vadd.f32 %v1773, %v2196
  %v2235 = vadd.f32 %v1774, %v2201
  %v2236 = vadd.f32 %v1775, %v2206
  %v2237 = vadd.f32 %v1776, %v2211
  %v2238 = vadd.f32 %v1777, %v2216
  %v2239 = vadd.f32 %v1778, %v2221
  %v2240 = vadd.f32 %v1779, %v2226
  %v2241 = vadd.f32 %v1780, %v2231
  %s2242 = scalar_lea.vmem %s7, 704
  %v2243 = vld [vmem:[%s2242] sm:$0xff]
  %v2244 = vld [vmem:[%s2242 + $0x8] sm:$0xff]
  %v2245 = vld [vmem:[%s2242 + $0x10] sm:$0xff]
  %v2246 = vld [vmem:[%s2242 + $0x18] sm:$0xff]
  %s2247 = scalar_lea.vmem %s8, 16
  %v2248 = vld [vmem:[%s2247] sm:$0x1]
  %v2250 = vlaneseq
  %v2251 = vshrl.u32 %v2250, 7
  %v2252 = vsub.s32 0, %v2251
  %v2253 = vrot.slane %v2248, %v2252
  %v2256 = vsel %vm530, %v2234, 0
  %v2259 = vsel %vm530, %v2235, 0
  %v2262 = vsel %vm530, %v2236, 0
  %v2265 = vsel %vm530, %v2237, 0
  %v2268 = vsel %vm530, %v2238, 0
  %v2271 = vsel %vm530, %v2239, 0
  %v2274 = vsel %vm530, %v2240, 0
  %v2277 = vsel %vm530, %v2241, 0
  %2279 = vmatprep.subr.mxu0 0.0
  %2280 = vmatpush1.msra.mxu0 %v2243
  %2281 = vmatprep.subr.mxu0 0.0
  %2282 = vmatpush1.msra.mxu0 %v2244
  %2283 = vmatprep.subr.mxu0 0.0
  %2284 = vmatpush1.msra.mxu0 %v2245
  %2285 = vmatprep.subr.mxu0 0.0
  %2286 = vmatpush1.msra.mxu0 %v2246
  %2287 = vmatprep.subr.mxu0 0.0
  %2288 = vmatpush1.msra.mxu0 0.0
  %2289 = vmatprep.subr.mxu0 0.0
  %2290 = vmatpush1.msra.mxu0 0.0
  %2291 = vmatprep.subr.mxu0 0.0
  %2292 = vmatpush1.msra.mxu0 0.0
  %2293 = vmatprep.subr.mxu0 0.0
  %2294 = vmatpush1.msra.mxu0 0.0
  %2295 = vmatprep.subr.mxu0 0.0
  %2296 = vmatpush1.msra.mxu0 0.0
  %2297 = vmatprep.subr.mxu0 0.0
  %2298 = vmatpush1.msra.mxu0 0.0
  %2299 = vmatprep.subr.mxu0 0.0
  %2300 = vmatpush1.msra.mxu0 0.0
  %2301 = vmatprep.subr.mxu0 0.0
  %2302 = vmatpush1.msra.mxu0 0.0
  %2303 = vmatprep.subr.mxu0 0.0
  %2304 = vmatpush1.msra.mxu0 0.0
  %2305 = vmatprep.subr.mxu0 0.0
  %2306 = vmatpush1.msra.mxu0 0.0
  %2307 = vmatprep.subr.mxu0 0.0
  %2308 = vmatpush1.msra.mxu0 0.0
  %2309 = vmatprep.subr.mxu0 0.0
  %2310 = vmatpush1.msra.mxu0 0.0
  %2311 = vmatprep.subr.mxu0 0.0
  %2312 = vmatpush1.msra.mxu0 0.0
  %2313 = vmatprep.subr.mxu0 0.0
  %2314 = vmatpush1.msra.mxu0 0.0
  %2315 = vmatprep.subr.mxu0 0.0
  %2316 = vmatpush1.msra.mxu0 0.0
  %2317 = vmatprep.subr.mxu0 0.0
  %2318 = vmatpush1.msra.mxu0 0.0
  %2319 = vmatprep.subr.mxu0 0.0
  %2320 = vmatpush1.msra.mxu0 0.0
  %2321 = vmatprep.subr.mxu0 0.0
  %2322 = vmatpush1.msra.mxu0 0.0
  %2323 = vmatprep.subr.mxu0 0.0
  %2324 = vmatpush1.msra.mxu0 0.0
  %2325 = vmatprep.subr.mxu0 0.0
  %2326 = vmatpush1.msra.mxu0 0.0
  %2327 = vmatprep.subr.mxu0 0.0
  %2328 = vmatpush1.msra.mxu0 0.0
  %2329 = vmatprep.subr.mxu0 0.0
  %2330 = vmatpush1.msra.mxu0 0.0
  %2331 = vmatprep.subr.mxu0 0.0
  %2332 = vmatpush1.msra.mxu0 0.0
  %2333 = vmatprep.subr.mxu0 0.0
  %2334 = vmatpush1.msra.mxu0 0.0
  %2335 = vmatprep.subr.mxu0 0.0
  %2336 = vmatpush1.msra.mxu0 0.0
  %2337 = vmatprep.subr.mxu0 0.0
  %2338 = vmatpush1.msra.mxu0 0.0
  %2339 = vmatprep.subr.mxu0 0.0
  %2340 = vmatpush1.msra.mxu0 0.0
  %2341 = vmatprep.subr.mxu0 0.0
  %2342 = vmatpush1.msra.mxu0 0.0
  %2343 = vmatprep.mubr.f32.mxu0 0.0
  %2344 = vmatmul.mubr.f32.gmra.mrb[0].mxu0 %v2256
  %v2345 = vpop.f32.mrb[0].mxu0
  %v2346 = vadd.f32 %v2253, %v2345
  %v2347 = vpop.f32.mrb[0].mxu0
  %2348 = vmatprep.mubr.f32.mxu0 0.0
  %2349 = vmatmul.mubr.f32.gmra.mrb[0].mxu0 %v2259
  %v2350 = vpop.f32.mrb[0].mxu0
  %v2351 = vadd.f32 %v2253, %v2350
  %v2352 = vpop.f32.mrb[0].mxu0
  %2353 = vmatprep.mubr.f32.mxu0 0.0
  %2354 = vmatmul.mubr.f32.gmra.mrb[0].mxu0 %v2262
  %v2355 = vpop.f32.mrb[0].mxu0
  %v2356 = vadd.f32 %v2253, %v2355
  %v2357 = vpop.f32.mrb[0].mxu0
  %2358 = vmatprep.mubr.f32.mxu0 0.0
  %2359 = vmatmul.mubr.f32.gmra.mrb[0].mxu0 %v2265
  %v2360 = vpop.f32.mrb[0].mxu0
  %v2361 = vadd.f32 %v2253, %v2360
  %v2362 = vpop.f32.mrb[0].mxu0
  %2363 = vmatprep.mubr.f32.mxu0 0.0
  %2364 = vmatmul.mubr.f32.gmra.mrb[0].mxu0 %v2268
  %v2365 = vpop.f32.mrb[0].mxu0
  %v2366 = vadd.f32 %v2253, %v2365
  %v2367 = vpop.f32.mrb[0].mxu0
  %2368 = vmatprep.mubr.f32.mxu0 0.0
  %2369 = vmatmul.mubr.f32.gmra.mrb[0].mxu0 %v2271
  %v2370 = vpop.f32.mrb[0].mxu0
  %v2371 = vadd.f32 %v2253, %v2370
  %v2372 = vpop.f32.mrb[0].mxu0
  %2373 = vmatprep.mubr.f32.mxu0 0.0
  %2374 = vmatmul.mubr.f32.gmra.mrb[0].mxu0 %v2274
  %v2375 = vpop.f32.mrb[0].mxu0
  %v2376 = vadd.f32 %v2253, %v2375
  %v2377 = vpop.f32.mrb[0].mxu0
  %2378 = vmatprep.mubr.f32.mxu0 0.0
  %2379 = vmatmul.mubr.f32.gmra.mrb[0].mxu0 %v2277
  %v2380 = vpop.f32.mrb[0].mxu0
  %v2381 = vadd.f32 %v2253, %v2380
  %v2382 = vpop.f32.mrb[0].mxu0
  %2383 = vdwg.mxu0
  %v2384 = vxor.u32 %v2346, 2147483648
  %v2385 = vxor.u32 %v2351, 2147483648
  %v2386 = vxor.u32 %v2356, 2147483648
  %v2387 = vxor.u32 %v2361, 2147483648
  %v2388 = vxor.u32 %v2366, 2147483648
  %v2389 = vxor.u32 %v2371, 2147483648
  %v2390 = vxor.u32 %v2376, 2147483648
  %v2391 = vxor.u32 %v2381, 2147483648
  %v2392 = vmul.f32 %v2384, 1.442695
  %v2393 = vpow.pop %v2392
  %v2394 = vmul.f32 %v2385, 1.442695
  %v2395 = vpow.pop %v2394
  %v2396 = vmul.f32 %v2386, 1.442695
  %v2397 = vpow.pop %v2396
  %v2398 = vmul.f32 %v2387, 1.442695
  %v2399 = vpow.pop %v2398
  %v2400 = vmul.f32 %v2388, 1.442695
  %v2401 = vpow.pop %v2400
  %v2402 = vmul.f32 %v2389, 1.442695
  %v2403 = vpow.pop %v2402
  %v2404 = vmul.f32 %v2390, 1.442695
  %v2405 = vpow.pop %v2404
  %v2406 = vmul.f32 %v2391, 1.442695
  %v2407 = vpow.pop %v2406
  %v2408 = vadd.f32 %v2393, 1.0
  %v2409 = vadd.f32 %v2395, 1.0
  %v2410 = vadd.f32 %v2397, 1.0
  %v2411 = vadd.f32 %v2399, 1.0
  %v2412 = vadd.f32 %v2401, 1.0
  %v2413 = vadd.f32 %v2403, 1.0
  %v2414 = vadd.f32 %v2405, 1.0
  %v2415 = vadd.f32 %v2407, 1.0
  %v2416 = vrcp.pop %v2408
  %v2417 = vmul.f32 1.0, %v2416
  %v2418 = vrcp.pop %v2409
  %v2419 = vmul.f32 1.0, %v2418
  %v2420 = vrcp.pop %v2410
  %v2421 = vmul.f32 1.0, %v2420
  %v2422 = vrcp.pop %v2411
  %v2423 = vmul.f32 1.0, %v2422
  %v2424 = vrcp.pop %v2412
  %v2425 = vmul.f32 1.0, %v2424
  %v2426 = vrcp.pop %v2413
  %v2427 = vmul.f32 1.0, %v2426
  %v2428 = vrcp.pop %v2414
  %v2429 = vmul.f32 1.0, %v2428
  %v2430 = vrcp.pop %v2415
  %v2431 = vmul.f32 1.0, %v2430
  %v2432 = vmul.f32 %v2346, %v2417
  %v2433 = vmul.f32 %v2351, %v2419
  %v2434 = vmul.f32 %v2356, %v2421
  %v2435 = vmul.f32 %v2361, %v2423
  %v2436 = vmul.f32 %v2366, %v2425
  %v2437 = vmul.f32 %v2371, %v2427
  %v2438 = vmul.f32 %v2376, %v2429
  %v2439 = vmul.f32 %v2381, %v2431
  %s2440 = scalar_lea.vmem %s7, 736
  %v2441 = vld [vmem:[%s2440] sm:$0xff]
  %v2442 = vld [vmem:[%s2440 + $0x8] sm:$0xff]
  %v2443 = vld [vmem:[%s2440 + $0x10] sm:$0xff]
  %v2444 = vld [vmem:[%s2440 + $0x18] sm:$0xff]
  %s2445 = scalar_lea.vmem %s8, 17
  %v2446 = vld [vmem:[%s2445] sm:$0x1]
  %v2448 = vlaneseq
  %v2449 = vshrl.u32 %v2448, 7
  %v2450 = vsub.s32 0, %v2449
  %v2451 = vrot.slane %v2446, %v2450
  %v2454 = vsel %vm530, %v2432, 0
  %v2457 = vsel %vm530, %v2433, 0
  %v2460 = vsel %vm530, %v2434, 0
  %v2463 = vsel %vm530, %v2435, 0
  %v2466 = vsel %vm530, %v2436, 0
  %v2469 = vsel %vm530, %v2437, 0
  %v2472 = vsel %vm530, %v2438, 0
  %v2475 = vsel %vm530, %v2439, 0
  %2477 = vmatprep.subr.mxu0 0.0
  %2478 = vmatpush1.msra.mxu0 %v2441
  %2479 = vmatprep.subr.mxu0 0.0
  %2480 = vmatpush1.msra.mxu0 %v2442
  %2481 = vmatprep.subr.mxu0 0.0
  %2482 = vmatpush1.msra.mxu0 %v2443
  %2483 = vmatprep.subr.mxu0 0.0
  %2484 = vmatpush1.msra.mxu0 %v2444
  %2485 = vmatprep.subr.mxu0 0.0
  %2486 = vmatpush1.msra.mxu0 0.0
  %2487 = vmatprep.subr.mxu0 0.0
  %2488 = vmatpush1.msra.mxu0 0.0
  %2489 = vmatprep.subr.mxu0 0.0
  %2490 = vmatpush1.msra.mxu0 0.0
  %2491 = vmatprep.subr.mxu0 0.0
  %2492 = vmatpush1.msra.mxu0 0.0
  %2493 = vmatprep.subr.mxu0 0.0
  %2494 = vmatpush1.msra.mxu0 0.0
  %2495 = vmatprep.subr.mxu0 0.0
  %2496 = vmatpush1.msra.mxu0 0.0
  %2497 = vmatprep.subr.mxu0 0.0
  %2498 = vmatpush1.msra.mxu0 0.0
  %2499 = vmatprep.subr.mxu0 0.0
  %2500 = vmatpush1.msra.mxu0 0.0
  %2501 = vmatprep.subr.mxu0 0.0
  %2502 = vmatpush1.msra.mxu0 0.0
  %2503 = vmatprep.subr.mxu0 0.0
  %2504 = vmatpush1.msra.mxu0 0.0
  %2505 = vmatprep.subr.mxu0 0.0
  %2506 = vmatpush1.msra.mxu0 0.0
  %2507 = vmatprep.subr.mxu0 0.0
  %2508 = vmatpush1.msra.mxu0 0.0
  %2509 = vmatprep.subr.mxu0 0.0
  %2510 = vmatpush1.msra.mxu0 0.0
  %2511 = vmatprep.subr.mxu0 0.0
  %2512 = vmatpush1.msra.mxu0 0.0
  %2513 = vmatprep.subr.mxu0 0.0
  %2514 = vmatpush1.msra.mxu0 0.0
  %2515 = vmatprep.subr.mxu0 0.0
  %2516 = vmatpush1.msra.mxu0 0.0
  %2517 = vmatprep.subr.mxu0 0.0
  %2518 = vmatpush1.msra.mxu0 0.0
  %2519 = vmatprep.subr.mxu0 0.0
  %2520 = vmatpush1.msra.mxu0 0.0
  %2521 = vmatprep.subr.mxu0 0.0
  %2522 = vmatpush1.msra.mxu0 0.0
  %2523 = vmatprep.subr.mxu0 0.0
  %2524 = vmatpush1.msra.mxu0 0.0
  %2525 = vmatprep.subr.mxu0 0.0
  %2526 = vmatpush1.msra.mxu0 0.0
  %2527 = vmatprep.subr.mxu0 0.0
  %2528 = vmatpush1.msra.mxu0 0.0
  %2529 = vmatprep.subr.mxu0 0.0
  %2530 = vmatpush1.msra.mxu0 0.0
  %2531 = vmatprep.subr.mxu0 0.0
  %2532 = vmatpush1.msra.mxu0 0.0
  %2533 = vmatprep.subr.mxu0 0.0
  %2534 = vmatpush1.msra.mxu0 0.0
  %2535 = vmatprep.subr.mxu0 0.0
  %2536 = vmatpush1.msra.mxu0 0.0
  %2537 = vmatprep.subr.mxu0 0.0
  %2538 = vmatpush1.msra.mxu0 0.0
  %2539 = vmatprep.subr.mxu0 0.0
  %2540 = vmatpush1.msra.mxu0 0.0
  %2541 = vmatprep.mubr.f32.mxu0 0.0
  %2542 = vmatmul.mubr.f32.gmra.mrb[0].mxu0 %v2454
  %v2543 = vpop.f32.mrb[0].mxu0
  %v2544 = vadd.f32 %v2451, %v2543
  %v2545 = vpop.f32.mrb[0].mxu0
  %2546 = vmatprep.mubr.f32.mxu0 0.0
  %2547 = vmatmul.mubr.f32.gmra.mrb[0].mxu0 %v2457
  %v2548 = vpop.f32.mrb[0].mxu0
  %v2549 = vadd.f32 %v2451, %v2548
  %v2550 = vpop.f32.mrb[0].mxu0
  %2551 = vmatprep.mubr.f32.mxu0 0.0
  %2552 = vmatmul.mubr.f32.gmra.mrb[0].mxu0 %v2460
  %v2553 = vpop.f32.mrb[0].mxu0
  %v2554 = vadd.f32 %v2451, %v2553
  %v2555 = vpop.f32.mrb[0].mxu0
  %2556 = vmatprep.mubr.f32.mxu0 0.0
  %2557 = vmatmul.mubr.f32.gmra.mrb[0].mxu0 %v2463
  %v2558 = vpop.f32.mrb[0].mxu0
  %v2559 = vadd.f32 %v2451, %v2558
  %v2560 = vpop.f32.mrb[0].mxu0
  %2561 = vmatprep.mubr.f32.mxu0 0.0
  %2562 = vmatmul.mubr.f32.gmra.mrb[0].mxu0 %v2466
  %v2563 = vpop.f32.mrb[0].mxu0
  %v2564 = vadd.f32 %v2451, %v2563
  %v2565 = vpop.f32.mrb[0].mxu0
  %2566 = vmatprep.mubr.f32.mxu0 0.0
  %2567 = vmatmul.mubr.f32.gmra.mrb[0].mxu0 %v2469
  %v2568 = vpop.f32.mrb[0].mxu0
  %v2569 = vadd.f32 %v2451, %v2568
  %v2570 = vpop.f32.mrb[0].mxu0
  %2571 = vmatprep.mubr.f32.mxu0 0.0
  %2572 = vmatmul.mubr.f32.gmra.mrb[0].mxu0 %v2472
  %v2573 = vpop.f32.mrb[0].mxu0
  %v2574 = vadd.f32 %v2451, %v2573
  %v2575 = vpop.f32.mrb[0].mxu0
  %2576 = vmatprep.mubr.f32.mxu0 0.0
  %2577 = vmatmul.mubr.f32.gmra.mrb[0].mxu0 %v2475
  %v2578 = vpop.f32.mrb[0].mxu0
  %v2579 = vadd.f32 %v2451, %v2578
  %v2580 = vpop.f32.mrb[0].mxu0
  %2581 = vdwg.mxu0
  %v2582 = vxor.u32 %v2544, 2147483648
  %v2583 = vxor.u32 %v2549, 2147483648
  %v2584 = vxor.u32 %v2554, 2147483648
  %v2585 = vxor.u32 %v2559, 2147483648
  %v2586 = vxor.u32 %v2564, 2147483648
  %v2587 = vxor.u32 %v2569, 2147483648
  %v2588 = vxor.u32 %v2574, 2147483648
  %v2589 = vxor.u32 %v2579, 2147483648
  %v2590 = vmul.f32 %v2582, 1.442695
  %v2591 = vpow.pop %v2590
  %v2592 = vmul.f32 %v2583, 1.442695
  %v2593 = vpow.pop %v2592
  %v2594 = vmul.f32 %v2584, 1.442695
  %v2595 = vpow.pop %v2594
  %v2596 = vmul.f32 %v2585, 1.442695
  %v2597 = vpow.pop %v2596
  %v2598 = vmul.f32 %v2586, 1.442695
  %v2599 = vpow.pop %v2598
  %v2600 = vmul.f32 %v2587, 1.442695
  %v2601 = vpow.pop %v2600
  %v2602 = vmul.f32 %v2588, 1.442695
  %v2603 = vpow.pop %v2602
  %v2604 = vmul.f32 %v2589, 1.442695
  %v2605 = vpow.pop %v2604
  %v2606 = vadd.f32 %v2591, 1.0
  %v2607 = vadd.f32 %v2593, 1.0
  %v2608 = vadd.f32 %v2595, 1.0
  %v2609 = vadd.f32 %v2597, 1.0
  %v2610 = vadd.f32 %v2599, 1.0
  %v2611 = vadd.f32 %v2601, 1.0
  %v2612 = vadd.f32 %v2603, 1.0
  %v2613 = vadd.f32 %v2605, 1.0
  %v2614 = vrcp.pop %v2606
  %v2615 = vmul.f32 1.0, %v2614
  %v2616 = vrcp.pop %v2607
  %v2617 = vmul.f32 1.0, %v2616
  %v2618 = vrcp.pop %v2608
  %v2619 = vmul.f32 1.0, %v2618
  %v2620 = vrcp.pop %v2609
  %v2621 = vmul.f32 1.0, %v2620
  %v2622 = vrcp.pop %v2610
  %v2623 = vmul.f32 1.0, %v2622
  %v2624 = vrcp.pop %v2611
  %v2625 = vmul.f32 1.0, %v2624
  %v2626 = vrcp.pop %v2612
  %v2627 = vmul.f32 1.0, %v2626
  %v2628 = vrcp.pop %v2613
  %v2629 = vmul.f32 1.0, %v2628
  %v2630 = vmul.f32 %v2544, %v2615
  %v2631 = vmul.f32 %v2549, %v2617
  %v2632 = vmul.f32 %v2554, %v2619
  %v2633 = vmul.f32 %v2559, %v2621
  %v2634 = vmul.f32 %v2564, %v2623
  %v2635 = vmul.f32 %v2569, %v2625
  %v2636 = vmul.f32 %v2574, %v2627
  %v2637 = vmul.f32 %v2579, %v2629
  %v2638 = vadd.f32 %v2234, %v2630
  %v2639 = vadd.f32 %v2235, %v2631
  %v2640 = vadd.f32 %v2236, %v2632
  %v2641 = vadd.f32 %v2237, %v2633
  %v2642 = vadd.f32 %v2238, %v2634
  %v2643 = vadd.f32 %v2239, %v2635
  %v2644 = vadd.f32 %v2240, %v2636
  %v2645 = vadd.f32 %v2241, %v2637
  %s2646 = scalar_lea.vmem %s7, 768
  %v2647 = vld [vmem:[%s2646] sm:$0xff]
  %v2648 = vld [vmem:[%s2646 + $0x8] sm:$0xff]
  %v2649 = vld [vmem:[%s2646 + $0x10] sm:$0xff]
  %v2650 = vld [vmem:[%s2646 + $0x18] sm:$0xff]
  %s2651 = scalar_lea.vmem %s8, 18
  %v2652 = vld [vmem:[%s2651] sm:$0x1]
  %v2654 = vlaneseq
  %v2655 = vshrl.u32 %v2654, 7
  %v2656 = vsub.s32 0, %v2655
  %v2657 = vrot.slane %v2652, %v2656
  %v2660 = vsel %vm530, %v2638, 0
  %v2663 = vsel %vm530, %v2639, 0
  %v2666 = vsel %vm530, %v2640, 0
  %v2669 = vsel %vm530, %v2641, 0
  %v2672 = vsel %vm530, %v2642, 0
  %v2675 = vsel %vm530, %v2643, 0
  %v2678 = vsel %vm530, %v2644, 0
  %v2681 = vsel %vm530, %v2645, 0
  %2683 = vmatprep.subr.mxu0 0.0
  %2684 = vmatpush1.msra.mxu0 %v2647
  %2685 = vmatprep.subr.mxu0 0.0
  %2686 = vmatpush1.msra.mxu0 %v2648
  %2687 = vmatprep.subr.mxu0 0.0
  %2688 = vmatpush1.msra.mxu0 %v2649
  %2689 = vmatprep.subr.mxu0 0.0
  %2690 = vmatpush1.msra.mxu0 %v2650
  %2691 = vmatprep.subr.mxu0 0.0
  %2692 = vmatpush1.msra.mxu0 0.0
  %2693 = vmatprep.subr.mxu0 0.0
  %2694 = vmatpush1.msra.mxu0 0.0
  %2695 = vmatprep.subr.mxu0 0.0
  %2696 = vmatpush1.msra.mxu0 0.0
  %2697 = vmatprep.subr.mxu0 0.0
  %2698 = vmatpush1.msra.mxu0 0.0
  %2699 = vmatprep.subr.mxu0 0.0
  %2700 = vmatpush1.msra.mxu0 0.0
  %2701 = vmatprep.subr.mxu0 0.0
  %2702 = vmatpush1.msra.mxu0 0.0
  %2703 = vmatprep.subr.mxu0 0.0
  %2704 = vmatpush1.msra.mxu0 0.0
  %2705 = vmatprep.subr.mxu0 0.0
  %2706 = vmatpush1.msra.mxu0 0.0
  %2707 = vmatprep.subr.mxu0 0.0
  %2708 = vmatpush1.msra.mxu0 0.0
  %2709 = vmatprep.subr.mxu0 0.0
  %2710 = vmatpush1.msra.mxu0 0.0
  %2711 = vmatprep.subr.mxu0 0.0
  %2712 = vmatpush1.msra.mxu0 0.0
  %2713 = vmatprep.subr.mxu0 0.0
  %2714 = vmatpush1.msra.mxu0 0.0
  %2715 = vmatprep.subr.mxu0 0.0
  %2716 = vmatpush1.msra.mxu0 0.0
  %2717 = vmatprep.subr.mxu0 0.0
  %2718 = vmatpush1.msra.mxu0 0.0
  %2719 = vmatprep.subr.mxu0 0.0
  %2720 = vmatpush1.msra.mxu0 0.0
  %2721 = vmatprep.subr.mxu0 0.0
  %2722 = vmatpush1.msra.mxu0 0.0
  %2723 = vmatprep.subr.mxu0 0.0
  %2724 = vmatpush1.msra.mxu0 0.0
  %2725 = vmatprep.subr.mxu0 0.0
  %2726 = vmatpush1.msra.mxu0 0.0
  %2727 = vmatprep.subr.mxu0 0.0
  %2728 = vmatpush1.msra.mxu0 0.0
  %2729 = vmatprep.subr.mxu0 0.0
  %2730 = vmatpush1.msra.mxu0 0.0
  %2731 = vmatprep.subr.mxu0 0.0
  %2732 = vmatpush1.msra.mxu0 0.0
  %2733 = vmatprep.subr.mxu0 0.0
  %2734 = vmatpush1.msra.mxu0 0.0
  %2735 = vmatprep.subr.mxu0 0.0
  %2736 = vmatpush1.msra.mxu0 0.0
  %2737 = vmatprep.subr.mxu0 0.0
  %2738 = vmatpush1.msra.mxu0 0.0
  %2739 = vmatprep.subr.mxu0 0.0
  %2740 = vmatpush1.msra.mxu0 0.0
  %2741 = vmatprep.subr.mxu0 0.0
  %2742 = vmatpush1.msra.mxu0 0.0
  %2743 = vmatprep.subr.mxu0 0.0
  %2744 = vmatpush1.msra.mxu0 0.0
  %2745 = vmatprep.subr.mxu0 0.0
  %2746 = vmatpush1.msra.mxu0 0.0
  %2747 = vmatprep.mubr.f32.mxu0 0.0
  %2748 = vmatmul.mubr.f32.gmra.mrb[0].mxu0 %v2660
  %v2749 = vpop.f32.mrb[0].mxu0
  %v2750 = vadd.f32 %v2657, %v2749
  %v2751 = vpop.f32.mrb[0].mxu0
  %2752 = vmatprep.mubr.f32.mxu0 0.0
  %2753 = vmatmul.mubr.f32.gmra.mrb[0].mxu0 %v2663
  %v2754 = vpop.f32.mrb[0].mxu0
  %v2755 = vadd.f32 %v2657, %v2754
  %v2756 = vpop.f32.mrb[0].mxu0
  %2757 = vmatprep.mubr.f32.mxu0 0.0
  %2758 = vmatmul.mubr.f32.gmra.mrb[0].mxu0 %v2666
  %v2759 = vpop.f32.mrb[0].mxu0
  %v2760 = vadd.f32 %v2657, %v2759
  %v2761 = vpop.f32.mrb[0].mxu0
  %2762 = vmatprep.mubr.f32.mxu0 0.0
  %2763 = vmatmul.mubr.f32.gmra.mrb[0].mxu0 %v2669
  %v2764 = vpop.f32.mrb[0].mxu0
  %v2765 = vadd.f32 %v2657, %v2764
  %v2766 = vpop.f32.mrb[0].mxu0
  %2767 = vmatprep.mubr.f32.mxu0 0.0
  %2768 = vmatmul.mubr.f32.gmra.mrb[0].mxu0 %v2672
  %v2769 = vpop.f32.mrb[0].mxu0
  %v2770 = vadd.f32 %v2657, %v2769
  %v2771 = vpop.f32.mrb[0].mxu0
  %2772 = vmatprep.mubr.f32.mxu0 0.0
  %2773 = vmatmul.mubr.f32.gmra.mrb[0].mxu0 %v2675
  %v2774 = vpop.f32.mrb[0].mxu0
  %v2775 = vadd.f32 %v2657, %v2774
  %v2776 = vpop.f32.mrb[0].mxu0
  %2777 = vmatprep.mubr.f32.mxu0 0.0
  %2778 = vmatmul.mubr.f32.gmra.mrb[0].mxu0 %v2678
  %v2779 = vpop.f32.mrb[0].mxu0
  %v2780 = vadd.f32 %v2657, %v2779
  %v2781 = vpop.f32.mrb[0].mxu0
  %2782 = vmatprep.mubr.f32.mxu0 0.0
  %2783 = vmatmul.mubr.f32.gmra.mrb[0].mxu0 %v2681
  %v2784 = vpop.f32.mrb[0].mxu0
  %v2785 = vadd.f32 %v2657, %v2784
  %v2786 = vpop.f32.mrb[0].mxu0
  %2787 = vdwg.mxu0
  %v2788 = vxor.u32 %v2750, 2147483648
  %v2789 = vxor.u32 %v2755, 2147483648
  %v2790 = vxor.u32 %v2760, 2147483648
  %v2791 = vxor.u32 %v2765, 2147483648
  %v2792 = vxor.u32 %v2770, 2147483648
  %v2793 = vxor.u32 %v2775, 2147483648
  %v2794 = vxor.u32 %v2780, 2147483648
  %v2795 = vxor.u32 %v2785, 2147483648
  %v2796 = vmul.f32 %v2788, 1.442695
  %v2797 = vpow.pop %v2796
  %v2798 = vmul.f32 %v2789, 1.442695
  %v2799 = vpow.pop %v2798
  %v2800 = vmul.f32 %v2790, 1.442695
  %v2801 = vpow.pop %v2800
  %v2802 = vmul.f32 %v2791, 1.442695
  %v2803 = vpow.pop %v2802
  %v2804 = vmul.f32 %v2792, 1.442695
  %v2805 = vpow.pop %v2804
  %v2806 = vmul.f32 %v2793, 1.442695
  %v2807 = vpow.pop %v2806
  %v2808 = vmul.f32 %v2794, 1.442695
  %v2809 = vpow.pop %v2808
  %v2810 = vmul.f32 %v2795, 1.442695
  %v2811 = vpow.pop %v2810
  %v2812 = vadd.f32 %v2797, 1.0
  %v2813 = vadd.f32 %v2799, 1.0
  %v2814 = vadd.f32 %v2801, 1.0
  %v2815 = vadd.f32 %v2803, 1.0
  %v2816 = vadd.f32 %v2805, 1.0
  %v2817 = vadd.f32 %v2807, 1.0
  %v2818 = vadd.f32 %v2809, 1.0
  %v2819 = vadd.f32 %v2811, 1.0
  %v2820 = vrcp.pop %v2812
  %v2821 = vmul.f32 1.0, %v2820
  %v2822 = vrcp.pop %v2813
  %v2823 = vmul.f32 1.0, %v2822
  %v2824 = vrcp.pop %v2814
  %v2825 = vmul.f32 1.0, %v2824
  %v2826 = vrcp.pop %v2815
  %v2827 = vmul.f32 1.0, %v2826
  %v2828 = vrcp.pop %v2816
  %v2829 = vmul.f32 1.0, %v2828
  %v2830 = vrcp.pop %v2817
  %v2831 = vmul.f32 1.0, %v2830
  %v2832 = vrcp.pop %v2818
  %v2833 = vmul.f32 1.0, %v2832
  %v2834 = vrcp.pop %v2819
  %v2835 = vmul.f32 1.0, %v2834
  %v2836 = vmul.f32 %v2750, %v2821
  %v2837 = vmul.f32 %v2755, %v2823
  %v2838 = vmul.f32 %v2760, %v2825
  %v2839 = vmul.f32 %v2765, %v2827
  %v2840 = vmul.f32 %v2770, %v2829
  %v2841 = vmul.f32 %v2775, %v2831
  %v2842 = vmul.f32 %v2780, %v2833
  %v2843 = vmul.f32 %v2785, %v2835
  %v2844 = vadd.f32 %v2836, %v994
  %v2845 = vadd.f32 %v2837, %v995
  %v2846 = vadd.f32 %v2838, %v996
  %v2847 = vadd.f32 %v2839, %v997
  %v2848 = vadd.f32 %v2840, %v998
  %v2849 = vadd.f32 %v2841, %v999
  %v2850 = vadd.f32 %v2842, %v1000
  %v2851 = vadd.f32 %v2843, %v1001
  %s2852 = scalar_lea.vmem %s7, 800
  %v2853 = vld [vmem:[%s2852] sm:$0xff]
  %v2854 = vld [vmem:[%s2852 + $0x8] sm:$0xff]
  %v2855 = vld [vmem:[%s2852 + $0x10] sm:$0xff]
  %v2856 = vld [vmem:[%s2852 + $0x18] sm:$0xff]
  %s2857 = scalar_lea.vmem %s8, 19
  %v2858 = vld [vmem:[%s2857] sm:$0x1]
  %v2860 = vlaneseq
  %v2861 = vshrl.u32 %v2860, 7
  %v2862 = vsub.s32 0, %v2861
  %v2863 = vrot.slane %v2858, %v2862
  %v2866 = vsel %vm530, %v2844, 0
  %v2869 = vsel %vm530, %v2845, 0
  %v2872 = vsel %vm530, %v2846, 0
  %v2875 = vsel %vm530, %v2847, 0
  %v2878 = vsel %vm530, %v2848, 0
  %v2881 = vsel %vm530, %v2849, 0
  %v2884 = vsel %vm530, %v2850, 0
  %v2887 = vsel %vm530, %v2851, 0
  %2889 = vmatprep.subr.mxu0 0.0
  %2890 = vmatpush1.msra.mxu0 %v2853
  %2891 = vmatprep.subr.mxu0 0.0
  %2892 = vmatpush1.msra.mxu0 %v2854
  %2893 = vmatprep.subr.mxu0 0.0
  %2894 = vmatpush1.msra.mxu0 %v2855
  %2895 = vmatprep.subr.mxu0 0.0
  %2896 = vmatpush1.msra.mxu0 %v2856
  %2897 = vmatprep.subr.mxu0 0.0
  %2898 = vmatpush1.msra.mxu0 0.0
  %2899 = vmatprep.subr.mxu0 0.0
  %2900 = vmatpush1.msra.mxu0 0.0
  %2901 = vmatprep.subr.mxu0 0.0
  %2902 = vmatpush1.msra.mxu0 0.0
  %2903 = vmatprep.subr.mxu0 0.0
  %2904 = vmatpush1.msra.mxu0 0.0
  %2905 = vmatprep.subr.mxu0 0.0
  %2906 = vmatpush1.msra.mxu0 0.0
  %2907 = vmatprep.subr.mxu0 0.0
  %2908 = vmatpush1.msra.mxu0 0.0
  %2909 = vmatprep.subr.mxu0 0.0
  %2910 = vmatpush1.msra.mxu0 0.0
  %2911 = vmatprep.subr.mxu0 0.0
  %2912 = vmatpush1.msra.mxu0 0.0
  %2913 = vmatprep.subr.mxu0 0.0
  %2914 = vmatpush1.msra.mxu0 0.0
  %2915 = vmatprep.subr.mxu0 0.0
  %2916 = vmatpush1.msra.mxu0 0.0
  %2917 = vmatprep.subr.mxu0 0.0
  %2918 = vmatpush1.msra.mxu0 0.0
  %2919 = vmatprep.subr.mxu0 0.0
  %2920 = vmatpush1.msra.mxu0 0.0
  %2921 = vmatprep.subr.mxu0 0.0
  %2922 = vmatpush1.msra.mxu0 0.0
  %2923 = vmatprep.subr.mxu0 0.0
  %2924 = vmatpush1.msra.mxu0 0.0
  %2925 = vmatprep.subr.mxu0 0.0
  %2926 = vmatpush1.msra.mxu0 0.0
  %2927 = vmatprep.subr.mxu0 0.0
  %2928 = vmatpush1.msra.mxu0 0.0
  %2929 = vmatprep.subr.mxu0 0.0
  %2930 = vmatpush1.msra.mxu0 0.0
  %2931 = vmatprep.subr.mxu0 0.0
  %2932 = vmatpush1.msra.mxu0 0.0
  %2933 = vmatprep.subr.mxu0 0.0
  %2934 = vmatpush1.msra.mxu0 0.0
  %2935 = vmatprep.subr.mxu0 0.0
  %2936 = vmatpush1.msra.mxu0 0.0
  %2937 = vmatprep.subr.mxu0 0.0
  %2938 = vmatpush1.msra.mxu0 0.0
  %2939 = vmatprep.subr.mxu0 0.0
  %2940 = vmatpush1.msra.mxu0 0.0
  %2941 = vmatprep.subr.mxu0 0.0
  %2942 = vmatpush1.msra.mxu0 0.0
  %2943 = vmatprep.subr.mxu0 0.0
  %2944 = vmatpush1.msra.mxu0 0.0
  %2945 = vmatprep.subr.mxu0 0.0
  %2946 = vmatpush1.msra.mxu0 0.0
  %2947 = vmatprep.subr.mxu0 0.0
  %2948 = vmatpush1.msra.mxu0 0.0
  %2949 = vmatprep.subr.mxu0 0.0
  %2950 = vmatpush1.msra.mxu0 0.0
  %2951 = vmatprep.subr.mxu0 0.0
  %2952 = vmatpush1.msra.mxu0 0.0
  %2953 = vmatprep.mubr.f32.mxu0 0.0
  %2954 = vmatmul.mubr.f32.gmra.mrb[0].mxu0 %v2866
  %v2955 = vpop.f32.mrb[0].mxu0
  %v2956 = vadd.f32 %v2863, %v2955
  %v2957 = vpop.f32.mrb[0].mxu0
  %2958 = vmatprep.mubr.f32.mxu0 0.0
  %2959 = vmatmul.mubr.f32.gmra.mrb[0].mxu0 %v2869
  %v2960 = vpop.f32.mrb[0].mxu0
  %v2961 = vadd.f32 %v2863, %v2960
  %v2962 = vpop.f32.mrb[0].mxu0
  %2963 = vmatprep.mubr.f32.mxu0 0.0
  %2964 = vmatmul.mubr.f32.gmra.mrb[0].mxu0 %v2872
  %v2965 = vpop.f32.mrb[0].mxu0
  %v2966 = vadd.f32 %v2863, %v2965
  %v2967 = vpop.f32.mrb[0].mxu0
  %2968 = vmatprep.mubr.f32.mxu0 0.0
  %2969 = vmatmul.mubr.f32.gmra.mrb[0].mxu0 %v2875
  %v2970 = vpop.f32.mrb[0].mxu0
  %v2971 = vadd.f32 %v2863, %v2970
  %v2972 = vpop.f32.mrb[0].mxu0
  %2973 = vmatprep.mubr.f32.mxu0 0.0
  %2974 = vmatmul.mubr.f32.gmra.mrb[0].mxu0 %v2878
  %v2975 = vpop.f32.mrb[0].mxu0
  %v2976 = vadd.f32 %v2863, %v2975
  %v2977 = vpop.f32.mrb[0].mxu0
  %2978 = vmatprep.mubr.f32.mxu0 0.0
  %2979 = vmatmul.mubr.f32.gmra.mrb[0].mxu0 %v2881
  %v2980 = vpop.f32.mrb[0].mxu0
  %v2981 = vadd.f32 %v2863, %v2980
  %v2982 = vpop.f32.mrb[0].mxu0
  %2983 = vmatprep.mubr.f32.mxu0 0.0
  %2984 = vmatmul.mubr.f32.gmra.mrb[0].mxu0 %v2884
  %v2985 = vpop.f32.mrb[0].mxu0
  %v2986 = vadd.f32 %v2863, %v2985
  %v2987 = vpop.f32.mrb[0].mxu0
  %2988 = vmatprep.mubr.f32.mxu0 0.0
  %2989 = vmatmul.mubr.f32.gmra.mrb[0].mxu0 %v2887
  %v2990 = vpop.f32.mrb[0].mxu0
  %v2991 = vadd.f32 %v2863, %v2990
  %v2992 = vpop.f32.mrb[0].mxu0
  %2993 = vdwg.mxu0
  %v2994 = vxor.u32 %v2956, 2147483648
  %v2995 = vxor.u32 %v2961, 2147483648
  %v2996 = vxor.u32 %v2966, 2147483648
  %v2997 = vxor.u32 %v2971, 2147483648
  %v2998 = vxor.u32 %v2976, 2147483648
  %v2999 = vxor.u32 %v2981, 2147483648
  %v3000 = vxor.u32 %v2986, 2147483648
  %v3001 = vxor.u32 %v2991, 2147483648
  %v3002 = vmul.f32 %v2994, 1.442695
  %v3003 = vpow.pop %v3002
  %v3004 = vmul.f32 %v2995, 1.442695
  %v3005 = vpow.pop %v3004
  %v3006 = vmul.f32 %v2996, 1.442695
  %v3007 = vpow.pop %v3006
  %v3008 = vmul.f32 %v2997, 1.442695
  %v3009 = vpow.pop %v3008
  %v3010 = vmul.f32 %v2998, 1.442695
  %v3011 = vpow.pop %v3010
  %v3012 = vmul.f32 %v2999, 1.442695
  %v3013 = vpow.pop %v3012
  %v3014 = vmul.f32 %v3000, 1.442695
  %v3015 = vpow.pop %v3014
  %v3016 = vmul.f32 %v3001, 1.442695
  %v3017 = vpow.pop %v3016
  %v3018 = vadd.f32 %v3003, 1.0
  %v3019 = vadd.f32 %v3005, 1.0
  %v3020 = vadd.f32 %v3007, 1.0
  %v3021 = vadd.f32 %v3009, 1.0
  %v3022 = vadd.f32 %v3011, 1.0
  %v3023 = vadd.f32 %v3013, 1.0
  %v3024 = vadd.f32 %v3015, 1.0
  %v3025 = vadd.f32 %v3017, 1.0
  %v3026 = vrcp.pop %v3018
  %v3027 = vmul.f32 1.0, %v3026
  %v3028 = vrcp.pop %v3019
  %v3029 = vmul.f32 1.0, %v3028
  %v3030 = vrcp.pop %v3020
  %v3031 = vmul.f32 1.0, %v3030
  %v3032 = vrcp.pop %v3021
  %v3033 = vmul.f32 1.0, %v3032
  %v3034 = vrcp.pop %v3022
  %v3035 = vmul.f32 1.0, %v3034
  %v3036 = vrcp.pop %v3023
  %v3037 = vmul.f32 1.0, %v3036
  %v3038 = vrcp.pop %v3024
  %v3039 = vmul.f32 1.0, %v3038
  %v3040 = vrcp.pop %v3025
  %v3041 = vmul.f32 1.0, %v3040
  %v3042 = vmul.f32 %v2956, %v3027
  %v3043 = vmul.f32 %v2961, %v3029
  %v3044 = vmul.f32 %v2966, %v3031
  %v3045 = vmul.f32 %v2971, %v3033
  %v3046 = vmul.f32 %v2976, %v3035
  %v3047 = vmul.f32 %v2981, %v3037
  %v3048 = vmul.f32 %v2986, %v3039
  %v3049 = vmul.f32 %v2991, %v3041
  %s3050 = scalar_lea.vmem %s7, 832
  %v3051 = vld [vmem:[%s3050] sm:$0xff]
  %v3052 = vld [vmem:[%s3050 + $0x8] sm:$0xff]
  %v3053 = vld [vmem:[%s3050 + $0x10] sm:$0xff]
  %v3054 = vld [vmem:[%s3050 + $0x18] sm:$0xff]
  %s3055 = scalar_lea.vmem %s8, 20
  %v3056 = vld [vmem:[%s3055] sm:$0x1]
  %v3058 = vlaneseq
  %v3059 = vshrl.u32 %v3058, 7
  %v3060 = vsub.s32 0, %v3059
  %v3061 = vrot.slane %v3056, %v3060
  %v3064 = vsel %vm530, %v3042, 0
  %v3067 = vsel %vm530, %v3043, 0
  %v3070 = vsel %vm530, %v3044, 0
  %v3073 = vsel %vm530, %v3045, 0
  %v3076 = vsel %vm530, %v3046, 0
  %v3079 = vsel %vm530, %v3047, 0
  %v3082 = vsel %vm530, %v3048, 0
  %v3085 = vsel %vm530, %v3049, 0
  %3087 = vmatprep.subr.mxu0 0.0
  %3088 = vmatpush1.msra.mxu0 %v3051
  %3089 = vmatprep.subr.mxu0 0.0
  %3090 = vmatpush1.msra.mxu0 %v3052
  %3091 = vmatprep.subr.mxu0 0.0
  %3092 = vmatpush1.msra.mxu0 %v3053
  %3093 = vmatprep.subr.mxu0 0.0
  %3094 = vmatpush1.msra.mxu0 %v3054
  %3095 = vmatprep.subr.mxu0 0.0
  %3096 = vmatpush1.msra.mxu0 0.0
  %3097 = vmatprep.subr.mxu0 0.0
  %3098 = vmatpush1.msra.mxu0 0.0
  %3099 = vmatprep.subr.mxu0 0.0
  %3100 = vmatpush1.msra.mxu0 0.0
  %3101 = vmatprep.subr.mxu0 0.0
  %3102 = vmatpush1.msra.mxu0 0.0
  %3103 = vmatprep.subr.mxu0 0.0
  %3104 = vmatpush1.msra.mxu0 0.0
  %3105 = vmatprep.subr.mxu0 0.0
  %3106 = vmatpush1.msra.mxu0 0.0
  %3107 = vmatprep.subr.mxu0 0.0
  %3108 = vmatpush1.msra.mxu0 0.0
  %3109 = vmatprep.subr.mxu0 0.0
  %3110 = vmatpush1.msra.mxu0 0.0
  %3111 = vmatprep.subr.mxu0 0.0
  %3112 = vmatpush1.msra.mxu0 0.0
  %3113 = vmatprep.subr.mxu0 0.0
  %3114 = vmatpush1.msra.mxu0 0.0
  %3115 = vmatprep.subr.mxu0 0.0
  %3116 = vmatpush1.msra.mxu0 0.0
  %3117 = vmatprep.subr.mxu0 0.0
  %3118 = vmatpush1.msra.mxu0 0.0
  %3119 = vmatprep.subr.mxu0 0.0
  %3120 = vmatpush1.msra.mxu0 0.0
  %3121 = vmatprep.subr.mxu0 0.0
  %3122 = vmatpush1.msra.mxu0 0.0
  %3123 = vmatprep.subr.mxu0 0.0
  %3124 = vmatpush1.msra.mxu0 0.0
  %3125 = vmatprep.subr.mxu0 0.0
  %3126 = vmatpush1.msra.mxu0 0.0
  %3127 = vmatprep.subr.mxu0 0.0
  %3128 = vmatpush1.msra.mxu0 0.0
  %3129 = vmatprep.subr.mxu0 0.0
  %3130 = vmatpush1.msra.mxu0 0.0
  %3131 = vmatprep.subr.mxu0 0.0
  %3132 = vmatpush1.msra.mxu0 0.0
  %3133 = vmatprep.subr.mxu0 0.0
  %3134 = vmatpush1.msra.mxu0 0.0
  %3135 = vmatprep.subr.mxu0 0.0
  %3136 = vmatpush1.msra.mxu0 0.0
  %3137 = vmatprep.subr.mxu0 0.0
  %3138 = vmatpush1.msra.mxu0 0.0
  %3139 = vmatprep.subr.mxu0 0.0
  %3140 = vmatpush1.msra.mxu0 0.0
  %3141 = vmatprep.subr.mxu0 0.0
  %3142 = vmatpush1.msra.mxu0 0.0
  %3143 = vmatprep.subr.mxu0 0.0
  %3144 = vmatpush1.msra.mxu0 0.0
  %3145 = vmatprep.subr.mxu0 0.0
  %3146 = vmatpush1.msra.mxu0 0.0
  %3147 = vmatprep.subr.mxu0 0.0
  %3148 = vmatpush1.msra.mxu0 0.0
  %3149 = vmatprep.subr.mxu0 0.0
  %3150 = vmatpush1.msra.mxu0 0.0
  %3151 = vmatprep.mubr.f32.mxu0 0.0
  %3152 = vmatmul.mubr.f32.gmra.mrb[0].mxu0 %v3064
  %v3153 = vpop.f32.mrb[0].mxu0
  %v3154 = vadd.f32 %v3061, %v3153
  %v3155 = vpop.f32.mrb[0].mxu0
  %3156 = vmatprep.mubr.f32.mxu0 0.0
  %3157 = vmatmul.mubr.f32.gmra.mrb[0].mxu0 %v3067
  %v3158 = vpop.f32.mrb[0].mxu0
  %v3159 = vadd.f32 %v3061, %v3158
  %v3160 = vpop.f32.mrb[0].mxu0
  %3161 = vmatprep.mubr.f32.mxu0 0.0
  %3162 = vmatmul.mubr.f32.gmra.mrb[0].mxu0 %v3070
  %v3163 = vpop.f32.mrb[0].mxu0
  %v3164 = vadd.f32 %v3061, %v3163
  %v3165 = vpop.f32.mrb[0].mxu0
  %3166 = vmatprep.mubr.f32.mxu0 0.0
  %3167 = vmatmul.mubr.f32.gmra.mrb[0].mxu0 %v3073
  %v3168 = vpop.f32.mrb[0].mxu0
  %v3169 = vadd.f32 %v3061, %v3168
  %v3170 = vpop.f32.mrb[0].mxu0
  %3171 = vmatprep.mubr.f32.mxu0 0.0
  %3172 = vmatmul.mubr.f32.gmra.mrb[0].mxu0 %v3076
  %v3173 = vpop.f32.mrb[0].mxu0
  %v3174 = vadd.f32 %v3061, %v3173
  %v3175 = vpop.f32.mrb[0].mxu0
  %3176 = vmatprep.mubr.f32.mxu0 0.0
  %3177 = vmatmul.mubr.f32.gmra.mrb[0].mxu0 %v3079
  %v3178 = vpop.f32.mrb[0].mxu0
  %v3179 = vadd.f32 %v3061, %v3178
  %v3180 = vpop.f32.mrb[0].mxu0
  %3181 = vmatprep.mubr.f32.mxu0 0.0
  %3182 = vmatmul.mubr.f32.gmra.mrb[0].mxu0 %v3082
  %v3183 = vpop.f32.mrb[0].mxu0
  %v3184 = vadd.f32 %v3061, %v3183
  %v3185 = vpop.f32.mrb[0].mxu0
  %3186 = vmatprep.mubr.f32.mxu0 0.0
  %3187 = vmatmul.mubr.f32.gmra.mrb[0].mxu0 %v3085
  %v3188 = vpop.f32.mrb[0].mxu0
  %v3189 = vadd.f32 %v3061, %v3188
  %v3190 = vpop.f32.mrb[0].mxu0
  %3191 = vdwg.mxu0
  %v3192 = vxor.u32 %v3154, 2147483648
  %v3193 = vxor.u32 %v3159, 2147483648
  %v3194 = vxor.u32 %v3164, 2147483648
  %v3195 = vxor.u32 %v3169, 2147483648
  %v3196 = vxor.u32 %v3174, 2147483648
  %v3197 = vxor.u32 %v3179, 2147483648
  %v3198 = vxor.u32 %v3184, 2147483648
  %v3199 = vxor.u32 %v3189, 2147483648
  %v3200 = vmul.f32 %v3192, 1.442695
  %v3201 = vpow.pop %v3200
  %v3202 = vmul.f32 %v3193, 1.442695
  %v3203 = vpow.pop %v3202
  %v3204 = vmul.f32 %v3194, 1.442695
  %v3205 = vpow.pop %v3204
  %v3206 = vmul.f32 %v3195, 1.442695
  %v3207 = vpow.pop %v3206
  %v3208 = vmul.f32 %v3196, 1.442695
  %v3209 = vpow.pop %v3208
  %v3210 = vmul.f32 %v3197, 1.442695
  %v3211 = vpow.pop %v3210
  %v3212 = vmul.f32 %v3198, 1.442695
  %v3213 = vpow.pop %v3212
  %v3214 = vmul.f32 %v3199, 1.442695
  %v3215 = vpow.pop %v3214
  %v3216 = vadd.f32 %v3201, 1.0
  %v3217 = vadd.f32 %v3203, 1.0
  %v3218 = vadd.f32 %v3205, 1.0
  %v3219 = vadd.f32 %v3207, 1.0
  %v3220 = vadd.f32 %v3209, 1.0
  %v3221 = vadd.f32 %v3211, 1.0
  %v3222 = vadd.f32 %v3213, 1.0
  %v3223 = vadd.f32 %v3215, 1.0
  %v3224 = vrcp.pop %v3216
  %v3225 = vmul.f32 1.0, %v3224
  %v3226 = vrcp.pop %v3217
  %v3227 = vmul.f32 1.0, %v3226
  %v3228 = vrcp.pop %v3218
  %v3229 = vmul.f32 1.0, %v3228
  %v3230 = vrcp.pop %v3219
  %v3231 = vmul.f32 1.0, %v3230
  %v3232 = vrcp.pop %v3220
  %v3233 = vmul.f32 1.0, %v3232
  %v3234 = vrcp.pop %v3221
  %v3235 = vmul.f32 1.0, %v3234
  %v3236 = vrcp.pop %v3222
  %v3237 = vmul.f32 1.0, %v3236
  %v3238 = vrcp.pop %v3223
  %v3239 = vmul.f32 1.0, %v3238
  %v3240 = vmul.f32 %v3154, %v3225
  %v3241 = vmul.f32 %v3159, %v3227
  %v3242 = vmul.f32 %v3164, %v3229
  %v3243 = vmul.f32 %v3169, %v3231
  %v3244 = vmul.f32 %v3174, %v3233
  %v3245 = vmul.f32 %v3179, %v3235
  %v3246 = vmul.f32 %v3184, %v3237
  %v3247 = vmul.f32 %v3189, %v3239
  %v3248 = vadd.f32 %v2844, %v3240
  %v3249 = vadd.f32 %v2845, %v3241
  %v3250 = vadd.f32 %v2846, %v3242
  %v3251 = vadd.f32 %v2847, %v3243
  %v3252 = vadd.f32 %v2848, %v3244
  %v3253 = vadd.f32 %v2849, %v3245
  %v3254 = vadd.f32 %v2850, %v3246
  %v3255 = vadd.f32 %v2851, %v3247
  %s3256 = scalar_lea.vmem %s7, 864
  %v3257 = vld [vmem:[%s3256] sm:$0xff]
  %v3258 = vld [vmem:[%s3256 + $0x8] sm:$0xff]
  %v3259 = vld [vmem:[%s3256 + $0x10] sm:$0xff]
  %v3260 = vld [vmem:[%s3256 + $0x18] sm:$0xff]
  %s3261 = scalar_lea.vmem %s8, 21
  %v3262 = vld [vmem:[%s3261] sm:$0x1]
  %v3264 = vlaneseq
  %v3265 = vshrl.u32 %v3264, 7
  %v3266 = vsub.s32 0, %v3265
  %v3267 = vrot.slane %v3262, %v3266
  %v3270 = vsel %vm530, %v3248, 0
  %v3273 = vsel %vm530, %v3249, 0
  %v3276 = vsel %vm530, %v3250, 0
  %v3279 = vsel %vm530, %v3251, 0
  %v3282 = vsel %vm530, %v3252, 0
  %v3285 = vsel %vm530, %v3253, 0
  %v3288 = vsel %vm530, %v3254, 0
  %v3291 = vsel %vm530, %v3255, 0
  %3293 = vmatprep.subr.mxu0 0.0
  %3294 = vmatpush1.msra.mxu0 %v3257
  %3295 = vmatprep.subr.mxu0 0.0
  %3296 = vmatpush1.msra.mxu0 %v3258
  %3297 = vmatprep.subr.mxu0 0.0
  %3298 = vmatpush1.msra.mxu0 %v3259
  %3299 = vmatprep.subr.mxu0 0.0
  %3300 = vmatpush1.msra.mxu0 %v3260
  %3301 = vmatprep.subr.mxu0 0.0
  %3302 = vmatpush1.msra.mxu0 0.0
  %3303 = vmatprep.subr.mxu0 0.0
  %3304 = vmatpush1.msra.mxu0 0.0
  %3305 = vmatprep.subr.mxu0 0.0
  %3306 = vmatpush1.msra.mxu0 0.0
  %3307 = vmatprep.subr.mxu0 0.0
  %3308 = vmatpush1.msra.mxu0 0.0
  %3309 = vmatprep.subr.mxu0 0.0
  %3310 = vmatpush1.msra.mxu0 0.0
  %3311 = vmatprep.subr.mxu0 0.0
  %3312 = vmatpush1.msra.mxu0 0.0
  %3313 = vmatprep.subr.mxu0 0.0
  %3314 = vmatpush1.msra.mxu0 0.0
  %3315 = vmatprep.subr.mxu0 0.0
  %3316 = vmatpush1.msra.mxu0 0.0
  %3317 = vmatprep.subr.mxu0 0.0
  %3318 = vmatpush1.msra.mxu0 0.0
  %3319 = vmatprep.subr.mxu0 0.0
  %3320 = vmatpush1.msra.mxu0 0.0
  %3321 = vmatprep.subr.mxu0 0.0
  %3322 = vmatpush1.msra.mxu0 0.0
  %3323 = vmatprep.subr.mxu0 0.0
  %3324 = vmatpush1.msra.mxu0 0.0
  %3325 = vmatprep.subr.mxu0 0.0
  %3326 = vmatpush1.msra.mxu0 0.0
  %3327 = vmatprep.subr.mxu0 0.0
  %3328 = vmatpush1.msra.mxu0 0.0
  %3329 = vmatprep.subr.mxu0 0.0
  %3330 = vmatpush1.msra.mxu0 0.0
  %3331 = vmatprep.subr.mxu0 0.0
  %3332 = vmatpush1.msra.mxu0 0.0
  %3333 = vmatprep.subr.mxu0 0.0
  %3334 = vmatpush1.msra.mxu0 0.0
  %3335 = vmatprep.subr.mxu0 0.0
  %3336 = vmatpush1.msra.mxu0 0.0
  %3337 = vmatprep.subr.mxu0 0.0
  %3338 = vmatpush1.msra.mxu0 0.0
  %3339 = vmatprep.subr.mxu0 0.0
  %3340 = vmatpush1.msra.mxu0 0.0
  %3341 = vmatprep.subr.mxu0 0.0
  %3342 = vmatpush1.msra.mxu0 0.0
  %3343 = vmatprep.subr.mxu0 0.0
  %3344 = vmatpush1.msra.mxu0 0.0
  %3345 = vmatprep.subr.mxu0 0.0
  %3346 = vmatpush1.msra.mxu0 0.0
  %3347 = vmatprep.subr.mxu0 0.0
  %3348 = vmatpush1.msra.mxu0 0.0
  %3349 = vmatprep.subr.mxu0 0.0
  %3350 = vmatpush1.msra.mxu0 0.0
  %3351 = vmatprep.subr.mxu0 0.0
  %3352 = vmatpush1.msra.mxu0 0.0
  %3353 = vmatprep.subr.mxu0 0.0
  %3354 = vmatpush1.msra.mxu0 0.0
  %3355 = vmatprep.subr.mxu0 0.0
  %3356 = vmatpush1.msra.mxu0 0.0
  %3357 = vmatprep.mubr.f32.mxu0 0.0
  %3358 = vmatmul.mubr.f32.gmra.mrb[0].mxu0 %v3270
  %v3359 = vpop.f32.mrb[0].mxu0
  %v3360 = vadd.f32 %v3267, %v3359
  %v3361 = vpop.f32.mrb[0].mxu0
  %3362 = vmatprep.mubr.f32.mxu0 0.0
  %3363 = vmatmul.mubr.f32.gmra.mrb[0].mxu0 %v3273
  %v3364 = vpop.f32.mrb[0].mxu0
  %v3365 = vadd.f32 %v3267, %v3364
  %v3366 = vpop.f32.mrb[0].mxu0
  %3367 = vmatprep.mubr.f32.mxu0 0.0
  %3368 = vmatmul.mubr.f32.gmra.mrb[0].mxu0 %v3276
  %v3369 = vpop.f32.mrb[0].mxu0
  %v3370 = vadd.f32 %v3267, %v3369
  %v3371 = vpop.f32.mrb[0].mxu0
  %3372 = vmatprep.mubr.f32.mxu0 0.0
  %3373 = vmatmul.mubr.f32.gmra.mrb[0].mxu0 %v3279
  %v3374 = vpop.f32.mrb[0].mxu0
  %v3375 = vadd.f32 %v3267, %v3374
  %v3376 = vpop.f32.mrb[0].mxu0
  %3377 = vmatprep.mubr.f32.mxu0 0.0
  %3378 = vmatmul.mubr.f32.gmra.mrb[0].mxu0 %v3282
  %v3379 = vpop.f32.mrb[0].mxu0
  %v3380 = vadd.f32 %v3267, %v3379
  %v3381 = vpop.f32.mrb[0].mxu0
  %3382 = vmatprep.mubr.f32.mxu0 0.0
  %3383 = vmatmul.mubr.f32.gmra.mrb[0].mxu0 %v3285
  %v3384 = vpop.f32.mrb[0].mxu0
  %v3385 = vadd.f32 %v3267, %v3384
  %v3386 = vpop.f32.mrb[0].mxu0
  %3387 = vmatprep.mubr.f32.mxu0 0.0
  %3388 = vmatmul.mubr.f32.gmra.mrb[0].mxu0 %v3288
  %v3389 = vpop.f32.mrb[0].mxu0
  %v3390 = vadd.f32 %v3267, %v3389
  %v3391 = vpop.f32.mrb[0].mxu0
  %3392 = vmatprep.mubr.f32.mxu0 0.0
  %3393 = vmatmul.mubr.f32.gmra.mrb[0].mxu0 %v3291
  %v3394 = vpop.f32.mrb[0].mxu0
  %v3395 = vadd.f32 %v3267, %v3394
  %v3396 = vpop.f32.mrb[0].mxu0
  %3397 = vdwg.mxu0
  %v3398 = vxor.u32 %v3360, 2147483648
  %v3399 = vxor.u32 %v3365, 2147483648
  %v3400 = vxor.u32 %v3370, 2147483648
  %v3401 = vxor.u32 %v3375, 2147483648
  %v3402 = vxor.u32 %v3380, 2147483648
  %v3403 = vxor.u32 %v3385, 2147483648
  %v3404 = vxor.u32 %v3390, 2147483648
  %v3405 = vxor.u32 %v3395, 2147483648
  %v3406 = vmul.f32 %v3398, 1.442695
  %v3407 = vpow.pop %v3406
  %v3408 = vmul.f32 %v3399, 1.442695
  %v3409 = vpow.pop %v3408
  %v3410 = vmul.f32 %v3400, 1.442695
  %v3411 = vpow.pop %v3410
  %v3412 = vmul.f32 %v3401, 1.442695
  %v3413 = vpow.pop %v3412
  %v3414 = vmul.f32 %v3402, 1.442695
  %v3415 = vpow.pop %v3414
  %v3416 = vmul.f32 %v3403, 1.442695
  %v3417 = vpow.pop %v3416
  %v3418 = vmul.f32 %v3404, 1.442695
  %v3419 = vpow.pop %v3418
  %v3420 = vmul.f32 %v3405, 1.442695
  %v3421 = vpow.pop %v3420
  %v3422 = vadd.f32 %v3407, 1.0
  %v3423 = vadd.f32 %v3409, 1.0
  %v3424 = vadd.f32 %v3411, 1.0
  %v3425 = vadd.f32 %v3413, 1.0
  %v3426 = vadd.f32 %v3415, 1.0
  %v3427 = vadd.f32 %v3417, 1.0
  %v3428 = vadd.f32 %v3419, 1.0
  %v3429 = vadd.f32 %v3421, 1.0
  %v3430 = vrcp.pop %v3422
  %v3431 = vmul.f32 1.0, %v3430
  %v3432 = vrcp.pop %v3423
  %v3433 = vmul.f32 1.0, %v3432
  %v3434 = vrcp.pop %v3424
  %v3435 = vmul.f32 1.0, %v3434
  %v3436 = vrcp.pop %v3425
  %v3437 = vmul.f32 1.0, %v3436
  %v3438 = vrcp.pop %v3426
  %v3439 = vmul.f32 1.0, %v3438
  %v3440 = vrcp.pop %v3427
  %v3441 = vmul.f32 1.0, %v3440
  %v3442 = vrcp.pop %v3428
  %v3443 = vmul.f32 1.0, %v3442
  %v3444 = vrcp.pop %v3429
  %v3445 = vmul.f32 1.0, %v3444
  %v3446 = vmul.f32 %v3360, %v3431
  %v3447 = vmul.f32 %v3365, %v3433
  %v3448 = vmul.f32 %v3370, %v3435
  %v3449 = vmul.f32 %v3375, %v3437
  %v3450 = vmul.f32 %v3380, %v3439
  %v3451 = vmul.f32 %v3385, %v3441
  %v3452 = vmul.f32 %v3390, %v3443
  %v3453 = vmul.f32 %v3395, %v3445
  %s3454 = scalar_lea.vmem %s7, 896
  %v3455 = vld [vmem:[%s3454] sm:$0xff]
  %v3456 = vld [vmem:[%s3454 + $0x8] sm:$0xff]
  %v3457 = vld [vmem:[%s3454 + $0x10] sm:$0xff]
  %v3458 = vld [vmem:[%s3454 + $0x18] sm:$0xff]
  %s3459 = scalar_lea.vmem %s8, 22
  %v3460 = vld [vmem:[%s3459] sm:$0x1]
  %v3462 = vlaneseq
  %v3463 = vshrl.u32 %v3462, 7
  %v3464 = vsub.s32 0, %v3463
  %v3465 = vrot.slane %v3460, %v3464
  %v3468 = vsel %vm530, %v3446, 0
  %v3471 = vsel %vm530, %v3447, 0
  %v3474 = vsel %vm530, %v3448, 0
  %v3477 = vsel %vm530, %v3449, 0
  %v3480 = vsel %vm530, %v3450, 0
  %v3483 = vsel %vm530, %v3451, 0
  %v3486 = vsel %vm530, %v3452, 0
  %v3489 = vsel %vm530, %v3453, 0
  %3491 = vmatprep.subr.mxu0 0.0
  %3492 = vmatpush1.msra.mxu0 %v3455
  %3493 = vmatprep.subr.mxu0 0.0
  %3494 = vmatpush1.msra.mxu0 %v3456
  %3495 = vmatprep.subr.mxu0 0.0
  %3496 = vmatpush1.msra.mxu0 %v3457
  %3497 = vmatprep.subr.mxu0 0.0
  %3498 = vmatpush1.msra.mxu0 %v3458
  %3499 = vmatprep.subr.mxu0 0.0
  %3500 = vmatpush1.msra.mxu0 0.0
  %3501 = vmatprep.subr.mxu0 0.0
  %3502 = vmatpush1.msra.mxu0 0.0
  %3503 = vmatprep.subr.mxu0 0.0
  %3504 = vmatpush1.msra.mxu0 0.0
  %3505 = vmatprep.subr.mxu0 0.0
  %3506 = vmatpush1.msra.mxu0 0.0
  %3507 = vmatprep.subr.mxu0 0.0
  %3508 = vmatpush1.msra.mxu0 0.0
  %3509 = vmatprep.subr.mxu0 0.0
  %3510 = vmatpush1.msra.mxu0 0.0
  %3511 = vmatprep.subr.mxu0 0.0
  %3512 = vmatpush1.msra.mxu0 0.0
  %3513 = vmatprep.subr.mxu0 0.0
  %3514 = vmatpush1.msra.mxu0 0.0
  %3515 = vmatprep.subr.mxu0 0.0
  %3516 = vmatpush1.msra.mxu0 0.0
  %3517 = vmatprep.subr.mxu0 0.0
  %3518 = vmatpush1.msra.mxu0 0.0
  %3519 = vmatprep.subr.mxu0 0.0
  %3520 = vmatpush1.msra.mxu0 0.0
  %3521 = vmatprep.subr.mxu0 0.0
  %3522 = vmatpush1.msra.mxu0 0.0
  %3523 = vmatprep.subr.mxu0 0.0
  %3524 = vmatpush1.msra.mxu0 0.0
  %3525 = vmatprep.subr.mxu0 0.0
  %3526 = vmatpush1.msra.mxu0 0.0
  %3527 = vmatprep.subr.mxu0 0.0
  %3528 = vmatpush1.msra.mxu0 0.0
  %3529 = vmatprep.subr.mxu0 0.0
  %3530 = vmatpush1.msra.mxu0 0.0
  %3531 = vmatprep.subr.mxu0 0.0
  %3532 = vmatpush1.msra.mxu0 0.0
  %3533 = vmatprep.subr.mxu0 0.0
  %3534 = vmatpush1.msra.mxu0 0.0
  %3535 = vmatprep.subr.mxu0 0.0
  %3536 = vmatpush1.msra.mxu0 0.0
  %3537 = vmatprep.subr.mxu0 0.0
  %3538 = vmatpush1.msra.mxu0 0.0
  %3539 = vmatprep.subr.mxu0 0.0
  %3540 = vmatpush1.msra.mxu0 0.0
  %3541 = vmatprep.subr.mxu0 0.0
  %3542 = vmatpush1.msra.mxu0 0.0
  %3543 = vmatprep.subr.mxu0 0.0
  %3544 = vmatpush1.msra.mxu0 0.0
  %3545 = vmatprep.subr.mxu0 0.0
  %3546 = vmatpush1.msra.mxu0 0.0
  %3547 = vmatprep.subr.mxu0 0.0
  %3548 = vmatpush1.msra.mxu0 0.0
  %3549 = vmatprep.subr.mxu0 0.0
  %3550 = vmatpush1.msra.mxu0 0.0
  %3551 = vmatprep.subr.mxu0 0.0
  %3552 = vmatpush1.msra.mxu0 0.0
  %3553 = vmatprep.subr.mxu0 0.0
  %3554 = vmatpush1.msra.mxu0 0.0
  %3555 = vmatprep.mubr.f32.mxu0 0.0
  %3556 = vmatmul.mubr.f32.gmra.mrb[0].mxu0 %v3468
  %v3557 = vpop.f32.mrb[0].mxu0
  %v3558 = vadd.f32 %v3465, %v3557
  %v3559 = vpop.f32.mrb[0].mxu0
  %3560 = vmatprep.mubr.f32.mxu0 0.0
  %3561 = vmatmul.mubr.f32.gmra.mrb[0].mxu0 %v3471
  %v3562 = vpop.f32.mrb[0].mxu0
  %v3563 = vadd.f32 %v3465, %v3562
  %v3564 = vpop.f32.mrb[0].mxu0
  %3565 = vmatprep.mubr.f32.mxu0 0.0
  %3566 = vmatmul.mubr.f32.gmra.mrb[0].mxu0 %v3474
  %v3567 = vpop.f32.mrb[0].mxu0
  %v3568 = vadd.f32 %v3465, %v3567
  %v3569 = vpop.f32.mrb[0].mxu0
  %3570 = vmatprep.mubr.f32.mxu0 0.0
  %3571 = vmatmul.mubr.f32.gmra.mrb[0].mxu0 %v3477
  %v3572 = vpop.f32.mrb[0].mxu0
  %v3573 = vadd.f32 %v3465, %v3572
  %v3574 = vpop.f32.mrb[0].mxu0
  %3575 = vmatprep.mubr.f32.mxu0 0.0
  %3576 = vmatmul.mubr.f32.gmra.mrb[0].mxu0 %v3480
  %v3577 = vpop.f32.mrb[0].mxu0
  %v3578 = vadd.f32 %v3465, %v3577
  %v3579 = vpop.f32.mrb[0].mxu0
  %3580 = vmatprep.mubr.f32.mxu0 0.0
  %3581 = vmatmul.mubr.f32.gmra.mrb[0].mxu0 %v3483
  %v3582 = vpop.f32.mrb[0].mxu0
  %v3583 = vadd.f32 %v3465, %v3582
  %v3584 = vpop.f32.mrb[0].mxu0
  %3585 = vmatprep.mubr.f32.mxu0 0.0
  %3586 = vmatmul.mubr.f32.gmra.mrb[0].mxu0 %v3486
  %v3587 = vpop.f32.mrb[0].mxu0
  %v3588 = vadd.f32 %v3465, %v3587
  %v3589 = vpop.f32.mrb[0].mxu0
  %3590 = vmatprep.mubr.f32.mxu0 0.0
  %3591 = vmatmul.mubr.f32.gmra.mrb[0].mxu0 %v3489
  %v3592 = vpop.f32.mrb[0].mxu0
  %v3593 = vadd.f32 %v3465, %v3592
  %v3594 = vpop.f32.mrb[0].mxu0
  %3595 = vdwg.mxu0
  %v3596 = vxor.u32 %v3558, 2147483648
  %v3597 = vxor.u32 %v3563, 2147483648
  %v3598 = vxor.u32 %v3568, 2147483648
  %v3599 = vxor.u32 %v3573, 2147483648
  %v3600 = vxor.u32 %v3578, 2147483648
  %v3601 = vxor.u32 %v3583, 2147483648
  %v3602 = vxor.u32 %v3588, 2147483648
  %v3603 = vxor.u32 %v3593, 2147483648
  %v3604 = vmul.f32 %v3596, 1.442695
  %v3605 = vpow.pop %v3604
  %v3606 = vmul.f32 %v3597, 1.442695
  %v3607 = vpow.pop %v3606
  %v3608 = vmul.f32 %v3598, 1.442695
  %v3609 = vpow.pop %v3608
  %v3610 = vmul.f32 %v3599, 1.442695
  %v3611 = vpow.pop %v3610
  %v3612 = vmul.f32 %v3600, 1.442695
  %v3613 = vpow.pop %v3612
  %v3614 = vmul.f32 %v3601, 1.442695
  %v3615 = vpow.pop %v3614
  %v3616 = vmul.f32 %v3602, 1.442695
  %v3617 = vpow.pop %v3616
  %v3618 = vmul.f32 %v3603, 1.442695
  %v3619 = vpow.pop %v3618
  %v3620 = vadd.f32 %v3605, 1.0
  %v3621 = vadd.f32 %v3607, 1.0
  %v3622 = vadd.f32 %v3609, 1.0
  %v3623 = vadd.f32 %v3611, 1.0
  %v3624 = vadd.f32 %v3613, 1.0
  %v3625 = vadd.f32 %v3615, 1.0
  %v3626 = vadd.f32 %v3617, 1.0
  %v3627 = vadd.f32 %v3619, 1.0
  %v3628 = vrcp.pop %v3620
  %v3629 = vmul.f32 1.0, %v3628
  %v3630 = vrcp.pop %v3621
  %v3631 = vmul.f32 1.0, %v3630
  %v3632 = vrcp.pop %v3622
  %v3633 = vmul.f32 1.0, %v3632
  %v3634 = vrcp.pop %v3623
  %v3635 = vmul.f32 1.0, %v3634
  %v3636 = vrcp.pop %v3624
  %v3637 = vmul.f32 1.0, %v3636
  %v3638 = vrcp.pop %v3625
  %v3639 = vmul.f32 1.0, %v3638
  %v3640 = vrcp.pop %v3626
  %v3641 = vmul.f32 1.0, %v3640
  %v3642 = vrcp.pop %v3627
  %v3643 = vmul.f32 1.0, %v3642
  %v3644 = vmul.f32 %v3558, %v3629
  %v3645 = vmul.f32 %v3563, %v3631
  %v3646 = vmul.f32 %v3568, %v3633
  %v3647 = vmul.f32 %v3573, %v3635
  %v3648 = vmul.f32 %v3578, %v3637
  %v3649 = vmul.f32 %v3583, %v3639
  %v3650 = vmul.f32 %v3588, %v3641
  %v3651 = vmul.f32 %v3593, %v3643
  %v3652 = vadd.f32 %v3248, %v3644
  %v3653 = vadd.f32 %v3249, %v3645
  %v3654 = vadd.f32 %v3250, %v3646
  %v3655 = vadd.f32 %v3251, %v3647
  %v3656 = vadd.f32 %v3252, %v3648
  %v3657 = vadd.f32 %v3253, %v3649
  %v3658 = vadd.f32 %v3254, %v3650
  %v3659 = vadd.f32 %v3255, %v3651
  %s3660 = scalar_lea.vmem %s9, 16
  %v3661 = vld [vmem:[%s3660] sm:$0xff]
  %3662 = vmatprep.subr.mxu0 0.0
  %3663 = vmatpush1.msra.mxu0 %v3661
  %3664 = vmatprep.subr.mxu0 0.0
  %3665 = vmatpush1.msra.mxu0 0.0
  %3666 = vmatprep.subr.mxu0 0.0
  %3667 = vmatpush1.msra.mxu0 0.0
  %3668 = vmatprep.subr.mxu0 0.0
  %3669 = vmatpush1.msra.mxu0 0.0
  %3670 = vmatprep.subr.mxu0 0.0
  %3671 = vmatpush1.msra.mxu0 0.0
  %3672 = vmatprep.subr.mxu0 0.0
  %3673 = vmatpush1.msra.mxu0 0.0
  %3674 = vmatprep.subr.mxu0 0.0
  %3675 = vmatpush1.msra.mxu0 0.0
  %3676 = vmatprep.subr.mxu0 0.0
  %3677 = vmatpush1.msra.mxu0 0.0
  %3678 = vmatprep.subr.mxu0 0.0
  %3679 = vmatpush1.msra.mxu0 0.0
  %3680 = vmatprep.subr.mxu0 0.0
  %3681 = vmatpush1.msra.mxu0 0.0
  %3682 = vmatprep.subr.mxu0 0.0
  %3683 = vmatpush1.msra.mxu0 0.0
  %3684 = vmatprep.subr.mxu0 0.0
  %3685 = vmatpush1.msra.mxu0 0.0
  %3686 = vmatprep.subr.mxu0 0.0
  %3687 = vmatpush1.msra.mxu0 0.0
  %3688 = vmatprep.subr.mxu0 0.0
  %3689 = vmatpush1.msra.mxu0 0.0
  %3690 = vmatprep.subr.mxu0 0.0
  %3691 = vmatpush1.msra.mxu0 0.0
  %3692 = vmatprep.subr.mxu0 0.0
  %3693 = vmatpush1.msra.mxu0 0.0
  %3694 = vmatprep.subr.mxu0 0.0
  %3695 = vmatpush1.msra.mxu0 0.0
  %3696 = vmatprep.subr.mxu0 0.0
  %3697 = vmatpush1.msra.mxu0 0.0
  %3698 = vmatprep.subr.mxu0 0.0
  %3699 = vmatpush1.msra.mxu0 0.0
  %3700 = vmatprep.subr.mxu0 0.0
  %3701 = vmatpush1.msra.mxu0 0.0
  %3702 = vmatprep.subr.mxu0 0.0
  %3703 = vmatpush1.msra.mxu0 0.0
  %3704 = vmatprep.subr.mxu0 0.0
  %3705 = vmatpush1.msra.mxu0 0.0
  %3706 = vmatprep.subr.mxu0 0.0
  %3707 = vmatpush1.msra.mxu0 0.0
  %3708 = vmatprep.subr.mxu0 0.0
  %3709 = vmatpush1.msra.mxu0 0.0
  %3710 = vmatprep.subr.mxu0 0.0
  %3711 = vmatpush1.msra.mxu0 0.0
  %3712 = vmatprep.subr.mxu0 0.0
  %3713 = vmatpush1.msra.mxu0 0.0
  %3714 = vmatprep.subr.mxu0 0.0
  %3715 = vmatpush1.msra.mxu0 0.0
  %3716 = vmatprep.subr.mxu0 0.0
  %3717 = vmatpush1.msra.mxu0 0.0
  %3718 = vmatprep.subr.mxu0 0.0
  %3719 = vmatpush1.msra.mxu0 0.0
  %3720 = vmatprep.subr.mxu0 0.0
  %3721 = vmatpush1.msra.mxu0 0.0
  %3722 = vmatprep.subr.mxu0 0.0
  %3723 = vmatpush1.msra.mxu0 0.0
  %3724 = vmatprep.subr.mxu0 0.0
  %3725 = vmatpush1.msra.mxu0 0.0
  %3726 = vmatprep.mubr.f32.mxu0 0.0
  %3727 = vmatmul.mubr.f32.gmra.mrb[0].mxu0 %v63
  %v3728 = vpop.f32.mrb[0].mxu0
  %v3729 = vadd.f32 0.0, %v3728
  %v3730 = vpop.f32.mrb[0].mxu0
  %3731 = vmatprep.mubr.f32.mxu0 0.0
  %3732 = vmatmul.mubr.f32.gmra.mrb[0].mxu0 %v66
  %v3733 = vpop.f32.mrb[0].mxu0
  %v3734 = vadd.f32 0.0, %v3733
  %v3735 = vpop.f32.mrb[0].mxu0
  %3736 = vmatprep.mubr.f32.mxu0 0.0
  %3737 = vmatmul.mubr.f32.gmra.mrb[0].mxu0 %v69
  %v3738 = vpop.f32.mrb[0].mxu0
  %v3739 = vadd.f32 0.0, %v3738
  %v3740 = vpop.f32.mrb[0].mxu0
  %3741 = vmatprep.mubr.f32.mxu0 0.0
  %3742 = vmatmul.mubr.f32.gmra.mrb[0].mxu0 %v72
  %v3743 = vpop.f32.mrb[0].mxu0
  %v3744 = vadd.f32 0.0, %v3743
  %v3745 = vpop.f32.mrb[0].mxu0
  %3746 = vmatprep.mubr.f32.mxu0 0.0
  %3747 = vmatmul.mubr.f32.gmra.mrb[0].mxu0 %v75
  %v3748 = vpop.f32.mrb[0].mxu0
  %v3749 = vadd.f32 0.0, %v3748
  %v3750 = vpop.f32.mrb[0].mxu0
  %3751 = vmatprep.mubr.f32.mxu0 0.0
  %3752 = vmatmul.mubr.f32.gmra.mrb[0].mxu0 %v78
  %v3753 = vpop.f32.mrb[0].mxu0
  %v3754 = vadd.f32 0.0, %v3753
  %v3755 = vpop.f32.mrb[0].mxu0
  %3756 = vmatprep.mubr.f32.mxu0 0.0
  %3757 = vmatmul.mubr.f32.gmra.mrb[0].mxu0 %v81
  %v3758 = vpop.f32.mrb[0].mxu0
  %v3759 = vadd.f32 0.0, %v3758
  %v3760 = vpop.f32.mrb[0].mxu0
  %3761 = vmatprep.mubr.f32.mxu0 0.0
  %3762 = vmatmul.mubr.f32.gmra.mrb[0].mxu0 %v84
  %v3763 = vpop.f32.mrb[0].mxu0
  %v3764 = vadd.f32 0.0, %v3763
  %v3765 = vpop.f32.mrb[0].mxu0
  %3766 = vdwg.mxu0
  %v3767 = vmul.f32 %v3729, %v3652
  %v3768 = vmul.f32 %v3734, %v3653
  %v3769 = vmul.f32 %v3739, %v3654
  %v3770 = vmul.f32 %v3744, %v3655
  %v3771 = vmul.f32 %v3749, %v3656
  %v3772 = vmul.f32 %v3754, %v3657
  %v3773 = vmul.f32 %v3759, %v3658
  %v3774 = vmul.f32 %v3764, %v3659
  %3775 = vmatprep.subr.mxu0 0.0
  %3776 = vmatpush1.msra.mxu0 %v3767
  %3777 = vmatprep.subr.mxu0 0.0
  %3778 = vmatpush1.msra.mxu0 %v3768
  %3779 = vmatprep.subr.mxu0 0.0
  %3780 = vmatpush1.msra.mxu0 %v3769
  %3781 = vmatprep.subr.mxu0 0.0
  %3782 = vmatpush1.msra.mxu0 %v3770
  %3783 = vmatprep.subr.mxu0 0.0
  %3784 = vmatpush1.msra.mxu0 %v3771
  %3785 = vmatprep.subr.mxu0 0.0
  %3786 = vmatpush1.msra.mxu0 %v3772
  %3787 = vmatprep.subr.mxu0 0.0
  %3788 = vmatpush1.msra.mxu0 %v3773
  %3789 = vmatprep.subr.mxu0 0.0
  %3790 = vmatpush1.msra.mxu0 %v3774
  %3791 = vmatprep.subr.mxu0 0.0
  %3792 = vmatpush1.msra.mxu0 0.0
  %3793 = vmatprep.subr.mxu0 0.0
  %3794 = vmatpush1.msra.mxu0 0.0
  %3795 = vmatprep.subr.mxu0 0.0
  %3796 = vmatpush1.msra.mxu0 0.0
  %3797 = vmatprep.subr.mxu0 0.0
  %3798 = vmatpush1.msra.mxu0 0.0
  %3799 = vmatprep.subr.mxu0 0.0
  %3800 = vmatpush1.msra.mxu0 0.0
  %3801 = vmatprep.subr.mxu0 0.0
  %3802 = vmatpush1.msra.mxu0 0.0
  %3803 = vmatprep.subr.mxu0 0.0
  %3804 = vmatpush1.msra.mxu0 0.0
  %3805 = vmatprep.subr.mxu0 0.0
  %3806 = vmatpush1.msra.mxu0 0.0
  %3807 = vmatprep.subr.mxu0 0.0
  %3808 = vmatpush1.msra.mxu0 0.0
  %3809 = vmatprep.subr.mxu0 0.0
  %3810 = vmatpush1.msra.mxu0 0.0
  %3811 = vmatprep.subr.mxu0 0.0
  %3812 = vmatpush1.msra.mxu0 0.0
  %3813 = vmatprep.subr.mxu0 0.0
  %3814 = vmatpush1.msra.mxu0 0.0
  %3815 = vmatprep.subr.mxu0 0.0
  %3816 = vmatpush1.msra.mxu0 0.0
  %3817 = vmatprep.subr.mxu0 0.0
  %3818 = vmatpush1.msra.mxu0 0.0
  %3819 = vmatprep.subr.mxu0 0.0
  %3820 = vmatpush1.msra.mxu0 0.0
  %3821 = vmatprep.subr.mxu0 0.0
  %3822 = vmatpush1.msra.mxu0 0.0
  %3823 = vmatprep.subr.mxu0 0.0
  %3824 = vmatpush1.msra.mxu0 0.0
  %3825 = vmatprep.subr.mxu0 0.0
  %3826 = vmatpush1.msra.mxu0 0.0
  %3827 = vmatprep.subr.mxu0 0.0
  %3828 = vmatpush1.msra.mxu0 0.0
  %3829 = vmatprep.subr.mxu0 0.0
  %3830 = vmatpush1.msra.mxu0 0.0
  %3831 = vmatprep.subr.mxu0 0.0
  %3832 = vmatpush1.msra.mxu0 0.0
  %3833 = vmatprep.subr.mxu0 0.0
  %3834 = vmatpush1.msra.mxu0 0.0
  %3835 = vmatprep.subr.mxu0 0.0
  %3836 = vmatpush1.msra.mxu0 0.0
  %3837 = vmatprep.subr.mxu0 0.0
  %3838 = vmatpush1.msra.mxu0 0.0
  %3839 = vmatprep.mubr.f32.mxu0 0.0
  %3840 = vmatmul.mubr.f32.gmra.mrb[0].mxu0 %v1120
  %v3841 = vpop.f32.mrb[0].mxu0
  %v3842 = vadd.f32 0.0, %v3841
  %v3843 = vpop.f32.mrb[0].mxu0
  %3844 = vdwg.mxu0
  %s3845 = scalar_lea.vmem %s7, 224
  %v3846 = vld [vmem:[%s3845] sm:$0xff]
  %v3847 = vld [vmem:[%s3845 + $0x8] sm:$0xff]
  %v3848 = vld [vmem:[%s3845 + $0x10] sm:$0xff]
  %v3849 = vld [vmem:[%s3845 + $0x18] sm:$0xff]
  %s3850 = scalar_lea.vmem %s8, 5
  %v3851 = vld [vmem:[%s3850] sm:$0x1]
  %v3853 = vlaneseq
  %v3854 = vshrl.u32 %v3853, 7
  %v3855 = vsub.s32 0, %v3854
  %v3856 = vrot.slane %v3851, %v3855
  %v3859 = vsel %vm530, %v3842, 0
  %3861 = vmatprep.subr.mxu0 0.0
  %3862 = vmatpush1.msra.mxu0 %v3846
  %3863 = vmatprep.subr.mxu0 0.0
  %3864 = vmatpush1.msra.mxu0 %v3847
  %3865 = vmatprep.subr.mxu0 0.0
  %3866 = vmatpush1.msra.mxu0 %v3848
  %3867 = vmatprep.subr.mxu0 0.0
  %3868 = vmatpush1.msra.mxu0 %v3849
  %3869 = vmatprep.subr.mxu0 0.0
  %3870 = vmatpush1.msra.mxu0 0.0
  %3871 = vmatprep.subr.mxu0 0.0
  %3872 = vmatpush1.msra.mxu0 0.0
  %3873 = vmatprep.subr.mxu0 0.0
  %3874 = vmatpush1.msra.mxu0 0.0
  %3875 = vmatprep.subr.mxu0 0.0
  %3876 = vmatpush1.msra.mxu0 0.0
  %3877 = vmatprep.subr.mxu0 0.0
  %3878 = vmatpush1.msra.mxu0 0.0
  %3879 = vmatprep.subr.mxu0 0.0
  %3880 = vmatpush1.msra.mxu0 0.0
  %3881 = vmatprep.subr.mxu0 0.0
  %3882 = vmatpush1.msra.mxu0 0.0
  %3883 = vmatprep.subr.mxu0 0.0
  %3884 = vmatpush1.msra.mxu0 0.0
  %3885 = vmatprep.subr.mxu0 0.0
  %3886 = vmatpush1.msra.mxu0 0.0
  %3887 = vmatprep.subr.mxu0 0.0
  %3888 = vmatpush1.msra.mxu0 0.0
  %3889 = vmatprep.subr.mxu0 0.0
  %3890 = vmatpush1.msra.mxu0 0.0
  %3891 = vmatprep.subr.mxu0 0.0
  %3892 = vmatpush1.msra.mxu0 0.0
  %3893 = vmatprep.subr.mxu0 0.0
  %3894 = vmatpush1.msra.mxu0 0.0
  %3895 = vmatprep.subr.mxu0 0.0
  %3896 = vmatpush1.msra.mxu0 0.0
  %3897 = vmatprep.subr.mxu0 0.0
  %3898 = vmatpush1.msra.mxu0 0.0
  %3899 = vmatprep.subr.mxu0 0.0
  %3900 = vmatpush1.msra.mxu0 0.0
  %3901 = vmatprep.subr.mxu0 0.0
  %3902 = vmatpush1.msra.mxu0 0.0
  %3903 = vmatprep.subr.mxu0 0.0
  %3904 = vmatpush1.msra.mxu0 0.0
  %3905 = vmatprep.subr.mxu0 0.0
  %3906 = vmatpush1.msra.mxu0 0.0
  %3907 = vmatprep.subr.mxu0 0.0
  %3908 = vmatpush1.msra.mxu0 0.0
  %3909 = vmatprep.subr.mxu0 0.0
  %3910 = vmatpush1.msra.mxu0 0.0
  %3911 = vmatprep.subr.mxu0 0.0
  %3912 = vmatpush1.msra.mxu0 0.0
  %3913 = vmatprep.subr.mxu0 0.0
  %3914 = vmatpush1.msra.mxu0 0.0
  %3915 = vmatprep.subr.mxu0 0.0
  %3916 = vmatpush1.msra.mxu0 0.0
  %3917 = vmatprep.subr.mxu0 0.0
  %3918 = vmatpush1.msra.mxu0 0.0
  %3919 = vmatprep.subr.mxu0 0.0
  %3920 = vmatpush1.msra.mxu0 0.0
  %3921 = vmatprep.subr.mxu0 0.0
  %3922 = vmatpush1.msra.mxu0 0.0
  %3923 = vmatprep.subr.mxu0 0.0
  %3924 = vmatpush1.msra.mxu0 0.0
  %3925 = vmatprep.mubr.f32.mxu0 0.0
  %3926 = vmatmul.mubr.f32.gmra.mrb[0].mxu0 %v3859
  %v3927 = vpop.f32.mrb[0].mxu0
  %v3928 = vadd.f32 %v3856, %v3927
  %v3929 = vpop.f32.mrb[0].mxu0
  %3930 = vdwg.mxu0
  %v3931 = vxor.u32 %v3928, 2147483648
  %v3932 = vmul.f32 %v3931, 1.442695
  %v3933 = vpow.pop %v3932
  %v3934 = vadd.f32 %v3933, 1.0
  %v3935 = vrcp.pop %v3934
  %v3936 = vmul.f32 1.0, %v3935
  %v3937 = vmul.f32 %v3928, %v3936
  %s3938 = scalar_lea.vmem %s7, 256
  %v3939 = vld [vmem:[%s3938] sm:$0xff]
  %v3940 = vld [vmem:[%s3938 + $0x8] sm:$0xff]
  %v3941 = vld [vmem:[%s3938 + $0x10] sm:$0xff]
  %v3942 = vld [vmem:[%s3938 + $0x18] sm:$0xff]
  %s3943 = scalar_lea.vmem %s8, 6
  %v3944 = vld [vmem:[%s3943] sm:$0x1]
  %v3946 = vlaneseq
  %v3947 = vshrl.u32 %v3946, 7
  %v3948 = vsub.s32 0, %v3947
  %v3949 = vrot.slane %v3944, %v3948
  %v3952 = vsel %vm530, %v3937, 0
  %3954 = vmatprep.subr.mxu0 0.0
  %3955 = vmatpush1.msra.mxu0 %v3939
  %3956 = vmatprep.subr.mxu0 0.0
  %3957 = vmatpush1.msra.mxu0 %v3940
  %3958 = vmatprep.subr.mxu0 0.0
  %3959 = vmatpush1.msra.mxu0 %v3941
  %3960 = vmatprep.subr.mxu0 0.0
  %3961 = vmatpush1.msra.mxu0 %v3942
  %3962 = vmatprep.subr.mxu0 0.0
  %3963 = vmatpush1.msra.mxu0 0.0
  %3964 = vmatprep.subr.mxu0 0.0
  %3965 = vmatpush1.msra.mxu0 0.0
  %3966 = vmatprep.subr.mxu0 0.0
  %3967 = vmatpush1.msra.mxu0 0.0
  %3968 = vmatprep.subr.mxu0 0.0
  %3969 = vmatpush1.msra.mxu0 0.0
  %3970 = vmatprep.subr.mxu0 0.0
  %3971 = vmatpush1.msra.mxu0 0.0
  %3972 = vmatprep.subr.mxu0 0.0
  %3973 = vmatpush1.msra.mxu0 0.0
  %3974 = vmatprep.subr.mxu0 0.0
  %3975 = vmatpush1.msra.mxu0 0.0
  %3976 = vmatprep.subr.mxu0 0.0
  %3977 = vmatpush1.msra.mxu0 0.0
  %3978 = vmatprep.subr.mxu0 0.0
  %3979 = vmatpush1.msra.mxu0 0.0
  %3980 = vmatprep.subr.mxu0 0.0
  %3981 = vmatpush1.msra.mxu0 0.0
  %3982 = vmatprep.subr.mxu0 0.0
  %3983 = vmatpush1.msra.mxu0 0.0
  %3984 = vmatprep.subr.mxu0 0.0
  %3985 = vmatpush1.msra.mxu0 0.0
  %3986 = vmatprep.subr.mxu0 0.0
  %3987 = vmatpush1.msra.mxu0 0.0
  %3988 = vmatprep.subr.mxu0 0.0
  %3989 = vmatpush1.msra.mxu0 0.0
  %3990 = vmatprep.subr.mxu0 0.0
  %3991 = vmatpush1.msra.mxu0 0.0
  %3992 = vmatprep.subr.mxu0 0.0
  %3993 = vmatpush1.msra.mxu0 0.0
  %3994 = vmatprep.subr.mxu0 0.0
  %3995 = vmatpush1.msra.mxu0 0.0
  %3996 = vmatprep.subr.mxu0 0.0
  %3997 = vmatpush1.msra.mxu0 0.0
  %3998 = vmatprep.subr.mxu0 0.0
  %3999 = vmatpush1.msra.mxu0 0.0
  %4000 = vmatprep.subr.mxu0 0.0
  %4001 = vmatpush1.msra.mxu0 0.0
  %4002 = vmatprep.subr.mxu0 0.0
  %4003 = vmatpush1.msra.mxu0 0.0
  %4004 = vmatprep.subr.mxu0 0.0
  %4005 = vmatpush1.msra.mxu0 0.0
  %4006 = vmatprep.subr.mxu0 0.0
  %4007 = vmatpush1.msra.mxu0 0.0
  %4008 = vmatprep.subr.mxu0 0.0
  %4009 = vmatpush1.msra.mxu0 0.0
  %4010 = vmatprep.subr.mxu0 0.0
  %4011 = vmatpush1.msra.mxu0 0.0
  %4012 = vmatprep.subr.mxu0 0.0
  %4013 = vmatpush1.msra.mxu0 0.0
  %4014 = vmatprep.subr.mxu0 0.0
  %4015 = vmatpush1.msra.mxu0 0.0
  %4016 = vmatprep.subr.mxu0 0.0
  %4017 = vmatpush1.msra.mxu0 0.0
  %4018 = vmatprep.mubr.f32.mxu0 0.0
  %4019 = vmatmul.mubr.f32.gmra.mrb[0].mxu0 %v3952
  %v4020 = vpop.f32.mrb[0].mxu0
  %v4021 = vadd.f32 %v3949, %v4020
  %v4022 = vpop.f32.mrb[0].mxu0
  %4023 = vdwg.mxu0
  %v4024 = vxor.u32 %v4021, 2147483648
  %v4025 = vmul.f32 %v4024, 1.442695
  %v4026 = vpow.pop %v4025
  %v4027 = vadd.f32 %v4026, 1.0
  %v4028 = vrcp.pop %v4027
  %v4029 = vmul.f32 1.0, %v4028
  %v4030 = vmul.f32 %v4021, %v4029
  %s4031 = scalar_lea.vmem %s7, 288
  %v4032 = vld [vmem:[%s4031] sm:$0xff]
  %v4033 = vld [vmem:[%s4031 + $0x8] sm:$0xff]
  %v4034 = vld [vmem:[%s4031 + $0x10] sm:$0xff]
  %v4035 = vld [vmem:[%s4031 + $0x18] sm:$0xff]
  %s4036 = scalar_lea.vmem %s8, 7
  %v4037 = vld [vmem:[%s4036] sm:$0x1]
  %v4039 = vlaneseq
  %v4040 = vshrl.u32 %v4039, 7
  %v4041 = vsub.s32 0, %v4040
  %v4042 = vrot.slane %v4037, %v4041
  %v4045 = vsel %vm530, %v4030, 0
  %4047 = vmatprep.subr.mxu0 0.0
  %4048 = vmatpush1.msra.mxu0 %v4032
  %4049 = vmatprep.subr.mxu0 0.0
  %4050 = vmatpush1.msra.mxu0 %v4033
  %4051 = vmatprep.subr.mxu0 0.0
  %4052 = vmatpush1.msra.mxu0 %v4034
  %4053 = vmatprep.subr.mxu0 0.0
  %4054 = vmatpush1.msra.mxu0 %v4035
  %4055 = vmatprep.subr.mxu0 0.0
  %4056 = vmatpush1.msra.mxu0 0.0
  %4057 = vmatprep.subr.mxu0 0.0
  %4058 = vmatpush1.msra.mxu0 0.0
  %4059 = vmatprep.subr.mxu0 0.0
  %4060 = vmatpush1.msra.mxu0 0.0
  %4061 = vmatprep.subr.mxu0 0.0
  %4062 = vmatpush1.msra.mxu0 0.0
  %4063 = vmatprep.subr.mxu0 0.0
  %4064 = vmatpush1.msra.mxu0 0.0
  %4065 = vmatprep.subr.mxu0 0.0
  %4066 = vmatpush1.msra.mxu0 0.0
  %4067 = vmatprep.subr.mxu0 0.0
  %4068 = vmatpush1.msra.mxu0 0.0
  %4069 = vmatprep.subr.mxu0 0.0
  %4070 = vmatpush1.msra.mxu0 0.0
  %4071 = vmatprep.subr.mxu0 0.0
  %4072 = vmatpush1.msra.mxu0 0.0
  %4073 = vmatprep.subr.mxu0 0.0
  %4074 = vmatpush1.msra.mxu0 0.0
  %4075 = vmatprep.subr.mxu0 0.0
  %4076 = vmatpush1.msra.mxu0 0.0
  %4077 = vmatprep.subr.mxu0 0.0
  %4078 = vmatpush1.msra.mxu0 0.0
  %4079 = vmatprep.subr.mxu0 0.0
  %4080 = vmatpush1.msra.mxu0 0.0
  %4081 = vmatprep.subr.mxu0 0.0
  %4082 = vmatpush1.msra.mxu0 0.0
  %4083 = vmatprep.subr.mxu0 0.0
  %4084 = vmatpush1.msra.mxu0 0.0
  %4085 = vmatprep.subr.mxu0 0.0
  %4086 = vmatpush1.msra.mxu0 0.0
  %4087 = vmatprep.subr.mxu0 0.0
  %4088 = vmatpush1.msra.mxu0 0.0
  %4089 = vmatprep.subr.mxu0 0.0
  %4090 = vmatpush1.msra.mxu0 0.0
  %4091 = vmatprep.subr.mxu0 0.0
  %4092 = vmatpush1.msra.mxu0 0.0
  %4093 = vmatprep.subr.mxu0 0.0
  %4094 = vmatpush1.msra.mxu0 0.0
  %4095 = vmatprep.subr.mxu0 0.0
  %4096 = vmatpush1.msra.mxu0 0.0
  %4097 = vmatprep.subr.mxu0 0.0
  %4098 = vmatpush1.msra.mxu0 0.0
  %4099 = vmatprep.subr.mxu0 0.0
  %4100 = vmatpush1.msra.mxu0 0.0
  %4101 = vmatprep.subr.mxu0 0.0
  %4102 = vmatpush1.msra.mxu0 0.0
  %4103 = vmatprep.subr.mxu0 0.0
  %4104 = vmatpush1.msra.mxu0 0.0
  %4105 = vmatprep.subr.mxu0 0.0
  %4106 = vmatpush1.msra.mxu0 0.0
  %4107 = vmatprep.subr.mxu0 0.0
  %4108 = vmatpush1.msra.mxu0 0.0
  %4109 = vmatprep.subr.mxu0 0.0
  %4110 = vmatpush1.msra.mxu0 0.0
  %4111 = vmatprep.mubr.f32.mxu0 0.0
  %4112 = vmatmul.mubr.f32.gmra.mrb[0].mxu0 %v4045
  %v4113 = vpop.f32.mrb[0].mxu0
  %v4114 = vadd.f32 %v4042, %v4113
  %v4115 = vpop.f32.mrb[0].mxu0
  %4116 = vdwg.mxu0
  %v4117 = vxor.u32 %v4114, 2147483648
  %v4118 = vmul.f32 %v4117, 1.442695
  %v4119 = vpow.pop %v4118
  %v4120 = vadd.f32 %v4119, 1.0
  %v4121 = vrcp.pop %v4120
  %v4122 = vmul.f32 1.0, %v4121
  %v4123 = vmul.f32 %v4114, %v4122
  %s4124 = scalar_lea.vmem %s7, 320
  %v4125 = vld [vmem:[%s4124] sm:$0xff]
  %v4126 = vld [vmem:[%s4124 + $0x8] sm:$0xff]
  %v4127 = vld [vmem:[%s4124 + $0x10] sm:$0xff]
  %v4128 = vld [vmem:[%s4124 + $0x18] sm:$0xff]
  %v4130 = vsel %vm530, %v4123, 0
  %4132 = vmatprep.subr.mxu0 0.0
  %4133 = vmatpush1.msra.mxu0 %v4125
  %4134 = vmatprep.subr.mxu0 0.0
  %4135 = vmatpush1.msra.mxu0 %v4126
  %4136 = vmatprep.subr.mxu0 0.0
  %4137 = vmatpush1.msra.mxu0 %v4127
  %4138 = vmatprep.subr.mxu0 0.0
  %4139 = vmatpush1.msra.mxu0 %v4128
  %4140 = vmatprep.subr.mxu0 0.0
  %4141 = vmatpush1.msra.mxu0 0.0
  %4142 = vmatprep.subr.mxu0 0.0
  %4143 = vmatpush1.msra.mxu0 0.0
  %4144 = vmatprep.subr.mxu0 0.0
  %4145 = vmatpush1.msra.mxu0 0.0
  %4146 = vmatprep.subr.mxu0 0.0
  %4147 = vmatpush1.msra.mxu0 0.0
  %4148 = vmatprep.subr.mxu0 0.0
  %4149 = vmatpush1.msra.mxu0 0.0
  %4150 = vmatprep.subr.mxu0 0.0
  %4151 = vmatpush1.msra.mxu0 0.0
  %4152 = vmatprep.subr.mxu0 0.0
  %4153 = vmatpush1.msra.mxu0 0.0
  %4154 = vmatprep.subr.mxu0 0.0
  %4155 = vmatpush1.msra.mxu0 0.0
  %4156 = vmatprep.subr.mxu0 0.0
  %4157 = vmatpush1.msra.mxu0 0.0
  %4158 = vmatprep.subr.mxu0 0.0
  %4159 = vmatpush1.msra.mxu0 0.0
  %4160 = vmatprep.subr.mxu0 0.0
  %4161 = vmatpush1.msra.mxu0 0.0
  %4162 = vmatprep.subr.mxu0 0.0
  %4163 = vmatpush1.msra.mxu0 0.0
  %4164 = vmatprep.subr.mxu0 0.0
  %4165 = vmatpush1.msra.mxu0 0.0
  %4166 = vmatprep.subr.mxu0 0.0
  %4167 = vmatpush1.msra.mxu0 0.0
  %4168 = vmatprep.subr.mxu0 0.0
  %4169 = vmatpush1.msra.mxu0 0.0
  %4170 = vmatprep.subr.mxu0 0.0
  %4171 = vmatpush1.msra.mxu0 0.0
  %4172 = vmatprep.subr.mxu0 0.0
  %4173 = vmatpush1.msra.mxu0 0.0
  %4174 = vmatprep.subr.mxu0 0.0
  %4175 = vmatpush1.msra.mxu0 0.0
  %4176 = vmatprep.subr.mxu0 0.0
  %4177 = vmatpush1.msra.mxu0 0.0
  %4178 = vmatprep.subr.mxu0 0.0
  %4179 = vmatpush1.msra.mxu0 0.0
  %4180 = vmatprep.subr.mxu0 0.0
  %4181 = vmatpush1.msra.mxu0 0.0
  %4182 = vmatprep.subr.mxu0 0.0
  %4183 = vmatpush1.msra.mxu0 0.0
  %4184 = vmatprep.subr.mxu0 0.0
  %4185 = vmatpush1.msra.mxu0 0.0
  %4186 = vmatprep.subr.mxu0 0.0
  %4187 = vmatpush1.msra.mxu0 0.0
  %4188 = vmatprep.subr.mxu0 0.0
  %4189 = vmatpush1.msra.mxu0 0.0
  %4190 = vmatprep.subr.mxu0 0.0
  %4191 = vmatpush1.msra.mxu0 0.0
  %4192 = vmatprep.subr.mxu0 0.0
  %4193 = vmatpush1.msra.mxu0 0.0
  %4194 = vmatprep.subr.mxu0 0.0
  %4195 = vmatpush1.msra.mxu0 0.0
  %4196 = vmatprep.mubr.f32.mxu0 0.0
  %4197 = vmatmul.mubr.f32.gmra.mrb[0].mxu0 %v4130
  %v4198 = vpop.f32.mrb[0].mxu0
  %v4199 = vadd.f32 0.0, %v4198
  %v4200 = vpop.f32.mrb[0].mxu0
  %4201 = vdwg.mxu0
  %v4203 = vsel %vm530, %v1470, 0
  %4205 = vmatprep.subr.mxu0 0.0
  %4206 = vmatpush1.msra.mxu0 %v1472
  %4207 = vmatprep.subr.mxu0 0.0
  %4208 = vmatpush1.msra.mxu0 %v1473
  %4209 = vmatprep.subr.mxu0 0.0
  %4210 = vmatpush1.msra.mxu0 %v1474
  %4211 = vmatprep.subr.mxu0 0.0
  %4212 = vmatpush1.msra.mxu0 %v1475
  %4213 = vmatprep.subr.mxu0 0.0
  %4214 = vmatpush1.msra.mxu0 0.0
  %4215 = vmatprep.subr.mxu0 0.0
  %4216 = vmatpush1.msra.mxu0 0.0
  %4217 = vmatprep.subr.mxu0 0.0
  %4218 = vmatpush1.msra.mxu0 0.0
  %4219 = vmatprep.subr.mxu0 0.0
  %4220 = vmatpush1.msra.mxu0 0.0
  %4221 = vmatprep.subr.mxu0 0.0
  %4222 = vmatpush1.msra.mxu0 0.0
  %4223 = vmatprep.subr.mxu0 0.0
  %4224 = vmatpush1.msra.mxu0 0.0
  %4225 = vmatprep.subr.mxu0 0.0
  %4226 = vmatpush1.msra.mxu0 0.0
  %4227 = vmatprep.subr.mxu0 0.0
  %4228 = vmatpush1.msra.mxu0 0.0
  %4229 = vmatprep.subr.mxu0 0.0
  %4230 = vmatpush1.msra.mxu0 0.0
  %4231 = vmatprep.subr.mxu0 0.0
  %4232 = vmatpush1.msra.mxu0 0.0
  %4233 = vmatprep.subr.mxu0 0.0
  %4234 = vmatpush1.msra.mxu0 0.0
  %4235 = vmatprep.subr.mxu0 0.0
  %4236 = vmatpush1.msra.mxu0 0.0
  %4237 = vmatprep.subr.mxu0 0.0
  %4238 = vmatpush1.msra.mxu0 0.0
  %4239 = vmatprep.subr.mxu0 0.0
  %4240 = vmatpush1.msra.mxu0 0.0
  %4241 = vmatprep.subr.mxu0 0.0
  %4242 = vmatpush1.msra.mxu0 0.0
  %4243 = vmatprep.subr.mxu0 0.0
  %4244 = vmatpush1.msra.mxu0 0.0
  %4245 = vmatprep.subr.mxu0 0.0
  %4246 = vmatpush1.msra.mxu0 0.0
  %4247 = vmatprep.subr.mxu0 0.0
  %4248 = vmatpush1.msra.mxu0 0.0
  %4249 = vmatprep.subr.mxu0 0.0
  %4250 = vmatpush1.msra.mxu0 0.0
  %4251 = vmatprep.subr.mxu0 0.0
  %4252 = vmatpush1.msra.mxu0 0.0
  %4253 = vmatprep.subr.mxu0 0.0
  %4254 = vmatpush1.msra.mxu0 0.0
  %4255 = vmatprep.subr.mxu0 0.0
  %4256 = vmatpush1.msra.mxu0 0.0
  %4257 = vmatprep.subr.mxu0 0.0
  %4258 = vmatpush1.msra.mxu0 0.0
  %4259 = vmatprep.subr.mxu0 0.0
  %4260 = vmatpush1.msra.mxu0 0.0
  %4261 = vmatprep.subr.mxu0 0.0
  %4262 = vmatpush1.msra.mxu0 0.0
  %4263 = vmatprep.subr.mxu0 0.0
  %4264 = vmatpush1.msra.mxu0 0.0
  %4265 = vmatprep.subr.mxu0 0.0
  %4266 = vmatpush1.msra.mxu0 0.0
  %4267 = vmatprep.subr.mxu0 0.0
  %4268 = vmatpush1.msra.mxu0 0.0
  %4269 = vmatprep.mubr.f32.mxu0 0.0
  %4270 = vmatmul.mubr.f32.gmra.mrb[0].mxu0 %v4203
  %v4271 = vpop.f32.mrb[0].mxu0
  %v4272 = vadd.f32 %v4199, %v4271
  %v4273 = vpop.f32.mrb[0].mxu0
  %4274 = vdwg.mxu0
  %s4275 = scalar_lea.vmem %s9, 48
  %v4276 = vld [vmem:[%s4275] sm:$0xff]
  %4277 = vmatprep.subr.mxu0 0.0
  %4278 = vmatpush1.msra.mxu0 %v4276
  %4279 = vmatprep.subr.mxu0 0.0
  %4280 = vmatpush1.msra.mxu0 0.0
  %4281 = vmatprep.subr.mxu0 0.0
  %4282 = vmatpush1.msra.mxu0 0.0
  %4283 = vmatprep.subr.mxu0 0.0
  %4284 = vmatpush1.msra.mxu0 0.0
  %4285 = vmatprep.subr.mxu0 0.0
  %4286 = vmatpush1.msra.mxu0 0.0
  %4287 = vmatprep.subr.mxu0 0.0
  %4288 = vmatpush1.msra.mxu0 0.0
  %4289 = vmatprep.subr.mxu0 0.0
  %4290 = vmatpush1.msra.mxu0 0.0
  %4291 = vmatprep.subr.mxu0 0.0
  %4292 = vmatpush1.msra.mxu0 0.0
  %4293 = vmatprep.subr.mxu0 0.0
  %4294 = vmatpush1.msra.mxu0 0.0
  %4295 = vmatprep.subr.mxu0 0.0
  %4296 = vmatpush1.msra.mxu0 0.0
  %4297 = vmatprep.subr.mxu0 0.0
  %4298 = vmatpush1.msra.mxu0 0.0
  %4299 = vmatprep.subr.mxu0 0.0
  %4300 = vmatpush1.msra.mxu0 0.0
  %4301 = vmatprep.subr.mxu0 0.0
  %4302 = vmatpush1.msra.mxu0 0.0
  %4303 = vmatprep.subr.mxu0 0.0
  %4304 = vmatpush1.msra.mxu0 0.0
  %4305 = vmatprep.subr.mxu0 0.0
  %4306 = vmatpush1.msra.mxu0 0.0
  %4307 = vmatprep.subr.mxu0 0.0
  %4308 = vmatpush1.msra.mxu0 0.0
  %4309 = vmatprep.subr.mxu0 0.0
  %4310 = vmatpush1.msra.mxu0 0.0
  %4311 = vmatprep.subr.mxu0 0.0
  %4312 = vmatpush1.msra.mxu0 0.0
  %4313 = vmatprep.subr.mxu0 0.0
  %4314 = vmatpush1.msra.mxu0 0.0
  %4315 = vmatprep.subr.mxu0 0.0
  %4316 = vmatpush1.msra.mxu0 0.0
  %4317 = vmatprep.subr.mxu0 0.0
  %4318 = vmatpush1.msra.mxu0 0.0
  %4319 = vmatprep.subr.mxu0 0.0
  %4320 = vmatpush1.msra.mxu0 0.0
  %4321 = vmatprep.subr.mxu0 0.0
  %4322 = vmatpush1.msra.mxu0 0.0
  %4323 = vmatprep.subr.mxu0 0.0
  %4324 = vmatpush1.msra.mxu0 0.0
  %4325 = vmatprep.subr.mxu0 0.0
  %4326 = vmatpush1.msra.mxu0 0.0
  %4327 = vmatprep.subr.mxu0 0.0
  %4328 = vmatpush1.msra.mxu0 0.0
  %4329 = vmatprep.subr.mxu0 0.0
  %4330 = vmatpush1.msra.mxu0 0.0
  %4331 = vmatprep.subr.mxu0 0.0
  %4332 = vmatpush1.msra.mxu0 0.0
  %4333 = vmatprep.subr.mxu0 0.0
  %4334 = vmatpush1.msra.mxu0 0.0
  %4335 = vmatprep.subr.mxu0 0.0
  %4336 = vmatpush1.msra.mxu0 0.0
  %4337 = vmatprep.subr.mxu0 0.0
  %4338 = vmatpush1.msra.mxu0 0.0
  %4339 = vmatprep.subr.mxu0 0.0
  %4340 = vmatpush1.msra.mxu0 0.0
  %4341 = vmatprep.mubr.f32.mxu0 0.0
  %4342 = vmatmul.mubr.f32.gmra.mrb[0].mxu0 %v63
  %v4343 = vpop.f32.mrb[0].mxu0
  %v4344 = vadd.f32 0.0, %v4343
  %v4345 = vpop.f32.mrb[0].mxu0
  %4346 = vmatprep.mubr.f32.mxu0 0.0
  %4347 = vmatmul.mubr.f32.gmra.mrb[0].mxu0 %v66
  %v4348 = vpop.f32.mrb[0].mxu0
  %v4349 = vadd.f32 0.0, %v4348
  %v4350 = vpop.f32.mrb[0].mxu0
  %4351 = vmatprep.mubr.f32.mxu0 0.0
  %4352 = vmatmul.mubr.f32.gmra.mrb[0].mxu0 %v69
  %v4353 = vpop.f32.mrb[0].mxu0
  %v4354 = vadd.f32 0.0, %v4353
  %v4355 = vpop.f32.mrb[0].mxu0
  %4356 = vmatprep.mubr.f32.mxu0 0.0
  %4357 = vmatmul.mubr.f32.gmra.mrb[0].mxu0 %v72
  %v4358 = vpop.f32.mrb[0].mxu0
  %v4359 = vadd.f32 0.0, %v4358
  %v4360 = vpop.f32.mrb[0].mxu0
  %4361 = vmatprep.mubr.f32.mxu0 0.0
  %4362 = vmatmul.mubr.f32.gmra.mrb[0].mxu0 %v75
  %v4363 = vpop.f32.mrb[0].mxu0
  %v4364 = vadd.f32 0.0, %v4363
  %v4365 = vpop.f32.mrb[0].mxu0
  %4366 = vmatprep.mubr.f32.mxu0 0.0
  %4367 = vmatmul.mubr.f32.gmra.mrb[0].mxu0 %v78
  %v4368 = vpop.f32.mrb[0].mxu0
  %v4369 = vadd.f32 0.0, %v4368
  %v4370 = vpop.f32.mrb[0].mxu0
  %4371 = vmatprep.mubr.f32.mxu0 0.0
  %4372 = vmatmul.mubr.f32.gmra.mrb[0].mxu0 %v81
  %v4373 = vpop.f32.mrb[0].mxu0
  %v4374 = vadd.f32 0.0, %v4373
  %v4375 = vpop.f32.mrb[0].mxu0
  %4376 = vmatprep.mubr.f32.mxu0 0.0
  %4377 = vmatmul.mubr.f32.gmra.mrb[0].mxu0 %v84
  %v4378 = vpop.f32.mrb[0].mxu0
  %v4379 = vadd.f32 0.0, %v4378
  %v4380 = vpop.f32.mrb[0].mxu0
  %4381 = vdwg.mxu0
  %s4382 = scalar_lea.vmem %s7, 928
  %v4383 = vld [vmem:[%s4382] sm:$0xff]
  %v4384 = vld [vmem:[%s4382 + $0x8] sm:$0xff]
  %v4385 = vld [vmem:[%s4382 + $0x10] sm:$0xff]
  %v4386 = vld [vmem:[%s4382 + $0x18] sm:$0xff]
  %s4387 = scalar_lea.vmem %s8, 23
  %v4388 = vld [vmem:[%s4387] sm:$0x1]
  %v4390 = vlaneseq
  %v4391 = vshrl.u32 %v4390, 7
  %v4392 = vsub.s32 0, %v4391
  %v4393 = vrot.slane %v4388, %v4392
  %v4396 = vsel %vm530, %v3652, 0
  %v4399 = vsel %vm530, %v3653, 0
  %v4402 = vsel %vm530, %v3654, 0
  %v4405 = vsel %vm530, %v3655, 0
  %v4408 = vsel %vm530, %v3656, 0
  %v4411 = vsel %vm530, %v3657, 0
  %v4414 = vsel %vm530, %v3658, 0
  %v4417 = vsel %vm530, %v3659, 0
  %4419 = vmatprep.subr.mxu0 0.0
  %4420 = vmatpush1.msra.mxu0 %v4383
  %4421 = vmatprep.subr.mxu0 0.0
  %4422 = vmatpush1.msra.mxu0 %v4384
  %4423 = vmatprep.subr.mxu0 0.0
  %4424 = vmatpush1.msra.mxu0 %v4385
  %4425 = vmatprep.subr.mxu0 0.0
  %4426 = vmatpush1.msra.mxu0 %v4386
  %4427 = vmatprep.subr.mxu0 0.0
  %4428 = vmatpush1.msra.mxu0 0.0
  %4429 = vmatprep.subr.mxu0 0.0
  %4430 = vmatpush1.msra.mxu0 0.0
  %4431 = vmatprep.subr.mxu0 0.0
  %4432 = vmatpush1.msra.mxu0 0.0
  %4433 = vmatprep.subr.mxu0 0.0
  %4434 = vmatpush1.msra.mxu0 0.0
  %4435 = vmatprep.subr.mxu0 0.0
  %4436 = vmatpush1.msra.mxu0 0.0
  %4437 = vmatprep.subr.mxu0 0.0
  %4438 = vmatpush1.msra.mxu0 0.0
  %4439 = vmatprep.subr.mxu0 0.0
  %4440 = vmatpush1.msra.mxu0 0.0
  %4441 = vmatprep.subr.mxu0 0.0
  %4442 = vmatpush1.msra.mxu0 0.0
  %4443 = vmatprep.subr.mxu0 0.0
  %4444 = vmatpush1.msra.mxu0 0.0
  %4445 = vmatprep.subr.mxu0 0.0
  %4446 = vmatpush1.msra.mxu0 0.0
  %4447 = vmatprep.subr.mxu0 0.0
  %4448 = vmatpush1.msra.mxu0 0.0
  %4449 = vmatprep.subr.mxu0 0.0
  %4450 = vmatpush1.msra.mxu0 0.0
  %4451 = vmatprep.subr.mxu0 0.0
  %4452 = vmatpush1.msra.mxu0 0.0
  %4453 = vmatprep.subr.mxu0 0.0
  %4454 = vmatpush1.msra.mxu0 0.0
  %4455 = vmatprep.subr.mxu0 0.0
  %4456 = vmatpush1.msra.mxu0 0.0
  %4457 = vmatprep.subr.mxu0 0.0
  %4458 = vmatpush1.msra.mxu0 0.0
  %4459 = vmatprep.subr.mxu0 0.0
  %4460 = vmatpush1.msra.mxu0 0.0
  %4461 = vmatprep.subr.mxu0 0.0
  %4462 = vmatpush1.msra.mxu0 0.0
  %4463 = vmatprep.subr.mxu0 0.0
  %4464 = vmatpush1.msra.mxu0 0.0
  %4465 = vmatprep.subr.mxu0 0.0
  %4466 = vmatpush1.msra.mxu0 0.0
  %4467 = vmatprep.subr.mxu0 0.0
  %4468 = vmatpush1.msra.mxu0 0.0
  %4469 = vmatprep.subr.mxu0 0.0
  %4470 = vmatpush1.msra.mxu0 0.0
  %4471 = vmatprep.subr.mxu0 0.0
  %4472 = vmatpush1.msra.mxu0 0.0
  %4473 = vmatprep.subr.mxu0 0.0
  %4474 = vmatpush1.msra.mxu0 0.0
  %4475 = vmatprep.subr.mxu0 0.0
  %4476 = vmatpush1.msra.mxu0 0.0
  %4477 = vmatprep.subr.mxu0 0.0
  %4478 = vmatpush1.msra.mxu0 0.0
  %4479 = vmatprep.subr.mxu0 0.0
  %4480 = vmatpush1.msra.mxu0 0.0
  %4481 = vmatprep.subr.mxu0 0.0
  %4482 = vmatpush1.msra.mxu0 0.0
  %4483 = vmatprep.mubr.f32.mxu0 0.0
  %4484 = vmatmul.mubr.f32.gmra.mrb[0].mxu0 %v4396
  %v4485 = vpop.f32.mrb[0].mxu0
  %v4486 = vadd.f32 %v4393, %v4485
  %v4487 = vpop.f32.mrb[0].mxu0
  %4488 = vmatprep.mubr.f32.mxu0 0.0
  %4489 = vmatmul.mubr.f32.gmra.mrb[0].mxu0 %v4399
  %v4490 = vpop.f32.mrb[0].mxu0
  %v4491 = vadd.f32 %v4393, %v4490
  %v4492 = vpop.f32.mrb[0].mxu0
  %4493 = vmatprep.mubr.f32.mxu0 0.0
  %4494 = vmatmul.mubr.f32.gmra.mrb[0].mxu0 %v4402
  %v4495 = vpop.f32.mrb[0].mxu0
  %v4496 = vadd.f32 %v4393, %v4495
  %v4497 = vpop.f32.mrb[0].mxu0
  %4498 = vmatprep.mubr.f32.mxu0 0.0
  %4499 = vmatmul.mubr.f32.gmra.mrb[0].mxu0 %v4405
  %v4500 = vpop.f32.mrb[0].mxu0
  %v4501 = vadd.f32 %v4393, %v4500
  %v4502 = vpop.f32.mrb[0].mxu0
  %4503 = vmatprep.mubr.f32.mxu0 0.0
  %4504 = vmatmul.mubr.f32.gmra.mrb[0].mxu0 %v4408
  %v4505 = vpop.f32.mrb[0].mxu0
  %v4506 = vadd.f32 %v4393, %v4505
  %v4507 = vpop.f32.mrb[0].mxu0
  %4508 = vmatprep.mubr.f32.mxu0 0.0
  %4509 = vmatmul.mubr.f32.gmra.mrb[0].mxu0 %v4411
  %v4510 = vpop.f32.mrb[0].mxu0
  %v4511 = vadd.f32 %v4393, %v4510
  %v4512 = vpop.f32.mrb[0].mxu0
  %4513 = vmatprep.mubr.f32.mxu0 0.0
  %4514 = vmatmul.mubr.f32.gmra.mrb[0].mxu0 %v4414
  %v4515 = vpop.f32.mrb[0].mxu0
  %v4516 = vadd.f32 %v4393, %v4515
  %v4517 = vpop.f32.mrb[0].mxu0
  %4518 = vmatprep.mubr.f32.mxu0 0.0
  %4519 = vmatmul.mubr.f32.gmra.mrb[0].mxu0 %v4417
  %v4520 = vpop.f32.mrb[0].mxu0
  %v4521 = vadd.f32 %v4393, %v4520
  %v4522 = vpop.f32.mrb[0].mxu0
  %4523 = vdwg.mxu0
  %v4524 = vxor.u32 %v4486, 2147483648
  %v4525 = vxor.u32 %v4491, 2147483648
  %v4526 = vxor.u32 %v4496, 2147483648
  %v4527 = vxor.u32 %v4501, 2147483648
  %v4528 = vxor.u32 %v4506, 2147483648
  %v4529 = vxor.u32 %v4511, 2147483648
  %v4530 = vxor.u32 %v4516, 2147483648
  %v4531 = vxor.u32 %v4521, 2147483648
  %v4532 = vmul.f32 %v4524, 1.442695
  %v4533 = vpow.pop %v4532
  %v4534 = vmul.f32 %v4525, 1.442695
  %v4535 = vpow.pop %v4534
  %v4536 = vmul.f32 %v4526, 1.442695
  %v4537 = vpow.pop %v4536
  %v4538 = vmul.f32 %v4527, 1.442695
  %v4539 = vpow.pop %v4538
  %v4540 = vmul.f32 %v4528, 1.442695
  %v4541 = vpow.pop %v4540
  %v4542 = vmul.f32 %v4529, 1.442695
  %v4543 = vpow.pop %v4542
  %v4544 = vmul.f32 %v4530, 1.442695
  %v4545 = vpow.pop %v4544
  %v4546 = vmul.f32 %v4531, 1.442695
  %v4547 = vpow.pop %v4546
  %v4548 = vadd.f32 %v4533, 1.0
  %v4549 = vadd.f32 %v4535, 1.0
  %v4550 = vadd.f32 %v4537, 1.0
  %v4551 = vadd.f32 %v4539, 1.0
  %v4552 = vadd.f32 %v4541, 1.0
  %v4553 = vadd.f32 %v4543, 1.0
  %v4554 = vadd.f32 %v4545, 1.0
  %v4555 = vadd.f32 %v4547, 1.0
  %v4556 = vrcp.pop %v4548
  %v4557 = vmul.f32 1.0, %v4556
  %v4558 = vrcp.pop %v4549
  %v4559 = vmul.f32 1.0, %v4558
  %v4560 = vrcp.pop %v4550
  %v4561 = vmul.f32 1.0, %v4560
  %v4562 = vrcp.pop %v4551
  %v4563 = vmul.f32 1.0, %v4562
  %v4564 = vrcp.pop %v4552
  %v4565 = vmul.f32 1.0, %v4564
  %v4566 = vrcp.pop %v4553
  %v4567 = vmul.f32 1.0, %v4566
  %v4568 = vrcp.pop %v4554
  %v4569 = vmul.f32 1.0, %v4568
  %v4570 = vrcp.pop %v4555
  %v4571 = vmul.f32 1.0, %v4570
  %v4572 = vmul.f32 %v4486, %v4557
  %v4573 = vmul.f32 %v4491, %v4559
  %v4574 = vmul.f32 %v4496, %v4561
  %v4575 = vmul.f32 %v4501, %v4563
  %v4576 = vmul.f32 %v4506, %v4565
  %v4577 = vmul.f32 %v4511, %v4567
  %v4578 = vmul.f32 %v4516, %v4569
  %v4579 = vmul.f32 %v4521, %v4571
  %s4580 = scalar_lea.vmem %s7, 960
  %v4581 = vld [vmem:[%s4580] sm:$0xff]
  %v4582 = vld [vmem:[%s4580 + $0x8] sm:$0xff]
  %v4583 = vld [vmem:[%s4580 + $0x10] sm:$0xff]
  %v4584 = vld [vmem:[%s4580 + $0x18] sm:$0xff]
  %s4585 = scalar_lea.vmem %s8, 24
  %v4586 = vld [vmem:[%s4585] sm:$0x1]
  %v4588 = vlaneseq
  %v4589 = vshrl.u32 %v4588, 7
  %v4590 = vsub.s32 0, %v4589
  %v4591 = vrot.slane %v4586, %v4590
  %4593 = vmatprep.subr.mxu0 0.0
  %4594 = vmatpush1.msra.mxu0 %v4581
  %4595 = vmatprep.subr.mxu0 0.0
  %4596 = vmatpush1.msra.mxu0 %v4582
  %4597 = vmatprep.subr.mxu0 0.0
  %4598 = vmatpush1.msra.mxu0 %v4583
  %4599 = vmatprep.subr.mxu0 0.0
  %4600 = vmatpush1.msra.mxu0 %v4584
  %4601 = vmatprep.subr.mxu0 0.0
  %4602 = vmatpush1.msra.mxu0 0.0
  %4603 = vmatprep.subr.mxu0 0.0
  %4604 = vmatpush1.msra.mxu0 0.0
  %4605 = vmatprep.subr.mxu0 0.0
  %4606 = vmatpush1.msra.mxu0 0.0
  %4607 = vmatprep.subr.mxu0 0.0
  %4608 = vmatpush1.msra.mxu0 0.0
  %4609 = vmatprep.subr.mxu0 0.0
  %4610 = vmatpush1.msra.mxu0 0.0
  %4611 = vmatprep.subr.mxu0 0.0
  %4612 = vmatpush1.msra.mxu0 0.0
  %4613 = vmatprep.subr.mxu0 0.0
  %4614 = vmatpush1.msra.mxu0 0.0
  %4615 = vmatprep.subr.mxu0 0.0
  %4616 = vmatpush1.msra.mxu0 0.0
  %4617 = vmatprep.subr.mxu0 0.0
  %4618 = vmatpush1.msra.mxu0 0.0
  %4619 = vmatprep.subr.mxu0 0.0
  %4620 = vmatpush1.msra.mxu0 0.0
  %4621 = vmatprep.subr.mxu0 0.0
  %4622 = vmatpush1.msra.mxu0 0.0
  %4623 = vmatprep.subr.mxu0 0.0
  %4624 = vmatpush1.msra.mxu0 0.0
  %4625 = vmatprep.subr.mxu0 0.0
  %4626 = vmatpush1.msra.mxu0 0.0
  %4627 = vmatprep.subr.mxu0 0.0
  %4628 = vmatpush1.msra.mxu0 0.0
  %4629 = vmatprep.subr.mxu0 0.0
  %4630 = vmatpush1.msra.mxu0 0.0
  %4631 = vmatprep.subr.mxu0 0.0
  %4632 = vmatpush1.msra.mxu0 0.0
  %4633 = vmatprep.subr.mxu0 0.0
  %4634 = vmatpush1.msra.mxu0 0.0
  %4635 = vmatprep.subr.mxu0 0.0
  %4636 = vmatpush1.msra.mxu0 0.0
  %4637 = vmatprep.subr.mxu0 0.0
  %4638 = vmatpush1.msra.mxu0 0.0
  %4639 = vmatprep.subr.mxu0 0.0
  %4640 = vmatpush1.msra.mxu0 0.0
  %4641 = vmatprep.subr.mxu0 0.0
  %4642 = vmatpush1.msra.mxu0 0.0
  %4643 = vmatprep.subr.mxu0 0.0
  %4644 = vmatpush1.msra.mxu0 0.0
  %4645 = vmatprep.subr.mxu0 0.0
  %4646 = vmatpush1.msra.mxu0 0.0
  %4647 = vmatprep.subr.mxu0 0.0
  %4648 = vmatpush1.msra.mxu0 0.0
  %4649 = vmatprep.subr.mxu0 0.0
  %4650 = vmatpush1.msra.mxu0 0.0
  %4651 = vmatprep.subr.mxu0 0.0
  %4652 = vmatpush1.msra.mxu0 0.0
  %4653 = vmatprep.subr.mxu0 0.0
  %4654 = vmatpush1.msra.mxu0 0.0
  %4655 = vmatprep.subr.mxu0 0.0
  %4656 = vmatpush1.msra.mxu0 0.0
  %4657 = vmatprep.mubr.f32.mxu0 0.0
  %4658 = vmatmul.mubr.f32.gmra.mrb[0].mxu0 %v4396
  %v4659 = vpop.f32.mrb[0].mxu0
  %v4660 = vadd.f32 %v4591, %v4659
  %v4661 = vpop.f32.mrb[0].mxu0
  %4662 = vmatprep.mubr.f32.mxu0 0.0
  %4663 = vmatmul.mubr.f32.gmra.mrb[0].mxu0 %v4399
  %v4664 = vpop.f32.mrb[0].mxu0
  %v4665 = vadd.f32 %v4591, %v4664
  %v4666 = vpop.f32.mrb[0].mxu0
  %4667 = vmatprep.mubr.f32.mxu0 0.0
  %4668 = vmatmul.mubr.f32.gmra.mrb[0].mxu0 %v4402
  %v4669 = vpop.f32.mrb[0].mxu0
  %v4670 = vadd.f32 %v4591, %v4669
  %v4671 = vpop.f32.mrb[0].mxu0
  %4672 = vmatprep.mubr.f32.mxu0 0.0
  %4673 = vmatmul.mubr.f32.gmra.mrb[0].mxu0 %v4405
  %v4674 = vpop.f32.mrb[0].mxu0
  %v4675 = vadd.f32 %v4591, %v4674
  %v4676 = vpop.f32.mrb[0].mxu0
  %4677 = vmatprep.mubr.f32.mxu0 0.0
  %4678 = vmatmul.mubr.f32.gmra.mrb[0].mxu0 %v4408
  %v4679 = vpop.f32.mrb[0].mxu0
  %v4680 = vadd.f32 %v4591, %v4679
  %v4681 = vpop.f32.mrb[0].mxu0
  %4682 = vmatprep.mubr.f32.mxu0 0.0
  %4683 = vmatmul.mubr.f32.gmra.mrb[0].mxu0 %v4411
  %v4684 = vpop.f32.mrb[0].mxu0
  %v4685 = vadd.f32 %v4591, %v4684
  %v4686 = vpop.f32.mrb[0].mxu0
  %4687 = vmatprep.mubr.f32.mxu0 0.0
  %4688 = vmatmul.mubr.f32.gmra.mrb[0].mxu0 %v4414
  %v4689 = vpop.f32.mrb[0].mxu0
  %v4690 = vadd.f32 %v4591, %v4689
  %v4691 = vpop.f32.mrb[0].mxu0
  %4692 = vmatprep.mubr.f32.mxu0 0.0
  %4693 = vmatmul.mubr.f32.gmra.mrb[0].mxu0 %v4417
  %v4694 = vpop.f32.mrb[0].mxu0
  %v4695 = vadd.f32 %v4591, %v4694
  %v4696 = vpop.f32.mrb[0].mxu0
  %4697 = vdwg.mxu0
  %v4698 = vxor.u32 %v4660, 2147483648
  %v4699 = vxor.u32 %v4665, 2147483648
  %v4700 = vxor.u32 %v4670, 2147483648
  %v4701 = vxor.u32 %v4675, 2147483648
  %v4702 = vxor.u32 %v4680, 2147483648
  %v4703 = vxor.u32 %v4685, 2147483648
  %v4704 = vxor.u32 %v4690, 2147483648
  %v4705 = vxor.u32 %v4695, 2147483648
  %v4706 = vmul.f32 %v4698, 1.442695
  %v4707 = vpow.pop %v4706
  %v4708 = vmul.f32 %v4699, 1.442695
  %v4709 = vpow.pop %v4708
  %v4710 = vmul.f32 %v4700, 1.442695
  %v4711 = vpow.pop %v4710
  %v4712 = vmul.f32 %v4701, 1.442695
  %v4713 = vpow.pop %v4712
  %v4714 = vmul.f32 %v4702, 1.442695
  %v4715 = vpow.pop %v4714
  %v4716 = vmul.f32 %v4703, 1.442695
  %v4717 = vpow.pop %v4716
  %v4718 = vmul.f32 %v4704, 1.442695
  %v4719 = vpow.pop %v4718
  %v4720 = vmul.f32 %v4705, 1.442695
  %v4721 = vpow.pop %v4720
  %v4722 = vadd.f32 %v4707, 1.0
  %v4723 = vadd.f32 %v4709, 1.0
  %v4724 = vadd.f32 %v4711, 1.0
  %v4725 = vadd.f32 %v4713, 1.0
  %v4726 = vadd.f32 %v4715, 1.0
  %v4727 = vadd.f32 %v4717, 1.0
  %v4728 = vadd.f32 %v4719, 1.0
  %v4729 = vadd.f32 %v4721, 1.0
  %v4730 = vrcp.pop %v4722
  %v4731 = vmul.f32 1.0, %v4730
  %v4732 = vrcp.pop %v4723
  %v4733 = vmul.f32 1.0, %v4732
  %v4734 = vrcp.pop %v4724
  %v4735 = vmul.f32 1.0, %v4734
  %v4736 = vrcp.pop %v4725
  %v4737 = vmul.f32 1.0, %v4736
  %v4738 = vrcp.pop %v4726
  %v4739 = vmul.f32 1.0, %v4738
  %v4740 = vrcp.pop %v4727
  %v4741 = vmul.f32 1.0, %v4740
  %v4742 = vrcp.pop %v4728
  %v4743 = vmul.f32 1.0, %v4742
  %v4744 = vrcp.pop %v4729
  %v4745 = vmul.f32 1.0, %v4744
  %v4746 = vmul.f32 %v4660, %v4731
  %v4747 = vmul.f32 %v4665, %v4733
  %v4748 = vmul.f32 %v4670, %v4735
  %v4749 = vmul.f32 %v4675, %v4737
  %v4750 = vmul.f32 %v4680, %v4739
  %v4751 = vmul.f32 %v4685, %v4741
  %v4752 = vmul.f32 %v4690, %v4743
  %v4753 = vmul.f32 %v4695, %v4745
  %v4754 = vmul.f32 %v4746, %v4344
  %v4755 = vmul.f32 %v4747, %v4349
  %v4756 = vmul.f32 %v4748, %v4354
  %v4757 = vmul.f32 %v4749, %v4359
  %v4758 = vmul.f32 %v4750, %v4364
  %v4759 = vmul.f32 %v4751, %v4369
  %v4760 = vmul.f32 %v4752, %v4374
  %v4761 = vmul.f32 %v4753, %v4379
  %s4762 = scalar_lea.vmem %s7, 992
  %v4763 = vld [vmem:[%s4762] sm:$0xff]
  %v4764 = vld [vmem:[%s4762 + $0x8] sm:$0xff]
  %v4765 = vld [vmem:[%s4762 + $0x10] sm:$0xff]
  %v4766 = vld [vmem:[%s4762 + $0x18] sm:$0xff]
  %v4768 = vsel %vm530, %v4754, 0
  %v4771 = vsel %vm530, %v4755, 0
  %v4774 = vsel %vm530, %v4756, 0
  %v4777 = vsel %vm530, %v4757, 0
  %v4780 = vsel %vm530, %v4758, 0
  %v4783 = vsel %vm530, %v4759, 0
  %v4786 = vsel %vm530, %v4760, 0
  %v4789 = vsel %vm530, %v4761, 0
  %4791 = vmatprep.subr.mxu0 0.0
  %4792 = vmatpush1.msra.mxu0 %v4763
  %4793 = vmatprep.subr.mxu0 0.0
  %4794 = vmatpush1.msra.mxu0 %v4764
  %4795 = vmatprep.subr.mxu0 0.0
  %4796 = vmatpush1.msra.mxu0 %v4765
  %4797 = vmatprep.subr.mxu0 0.0
  %4798 = vmatpush1.msra.mxu0 %v4766
  %4799 = vmatprep.subr.mxu0 0.0
  %4800 = vmatpush1.msra.mxu0 0.0
  %4801 = vmatprep.subr.mxu0 0.0
  %4802 = vmatpush1.msra.mxu0 0.0
  %4803 = vmatprep.subr.mxu0 0.0
  %4804 = vmatpush1.msra.mxu0 0.0
  %4805 = vmatprep.subr.mxu0 0.0
  %4806 = vmatpush1.msra.mxu0 0.0
  %4807 = vmatprep.subr.mxu0 0.0
  %4808 = vmatpush1.msra.mxu0 0.0
  %4809 = vmatprep.subr.mxu0 0.0
  %4810 = vmatpush1.msra.mxu0 0.0
  %4811 = vmatprep.subr.mxu0 0.0
  %4812 = vmatpush1.msra.mxu0 0.0
  %4813 = vmatprep.subr.mxu0 0.0
  %4814 = vmatpush1.msra.mxu0 0.0
  %4815 = vmatprep.subr.mxu0 0.0
  %4816 = vmatpush1.msra.mxu0 0.0
  %4817 = vmatprep.subr.mxu0 0.0
  %4818 = vmatpush1.msra.mxu0 0.0
  %4819 = vmatprep.subr.mxu0 0.0
  %4820 = vmatpush1.msra.mxu0 0.0
  %4821 = vmatprep.subr.mxu0 0.0
  %4822 = vmatpush1.msra.mxu0 0.0
  %4823 = vmatprep.subr.mxu0 0.0
  %4824 = vmatpush1.msra.mxu0 0.0
  %4825 = vmatprep.subr.mxu0 0.0
  %4826 = vmatpush1.msra.mxu0 0.0
  %4827 = vmatprep.subr.mxu0 0.0
  %4828 = vmatpush1.msra.mxu0 0.0
  %4829 = vmatprep.subr.mxu0 0.0
  %4830 = vmatpush1.msra.mxu0 0.0
  %4831 = vmatprep.subr.mxu0 0.0
  %4832 = vmatpush1.msra.mxu0 0.0
  %4833 = vmatprep.subr.mxu0 0.0
  %4834 = vmatpush1.msra.mxu0 0.0
  %4835 = vmatprep.subr.mxu0 0.0
  %4836 = vmatpush1.msra.mxu0 0.0
  %4837 = vmatprep.subr.mxu0 0.0
  %4838 = vmatpush1.msra.mxu0 0.0
  %4839 = vmatprep.subr.mxu0 0.0
  %4840 = vmatpush1.msra.mxu0 0.0
  %4841 = vmatprep.subr.mxu0 0.0
  %4842 = vmatpush1.msra.mxu0 0.0
  %4843 = vmatprep.subr.mxu0 0.0
  %4844 = vmatpush1.msra.mxu0 0.0
  %4845 = vmatprep.subr.mxu0 0.0
  %4846 = vmatpush1.msra.mxu0 0.0
  %4847 = vmatprep.subr.mxu0 0.0
  %4848 = vmatpush1.msra.mxu0 0.0
  %4849 = vmatprep.subr.mxu0 0.0
  %4850 = vmatpush1.msra.mxu0 0.0
  %4851 = vmatprep.subr.mxu0 0.0
  %4852 = vmatpush1.msra.mxu0 0.0
  %4853 = vmatprep.subr.mxu0 0.0
  %4854 = vmatpush1.msra.mxu0 0.0
  %4855 = vmatprep.mubr.f32.mxu0 0.0
  %4856 = vmatmul.mubr.f32.gmra.mrb[0].mxu0 %v4768
  %v4857 = vpop.f32.mrb[0].mxu0
  %v4858 = vadd.f32 0.0, %v4857
  %v4859 = vpop.f32.mrb[0].mxu0
  %4860 = vmatprep.mubr.f32.mxu0 0.0
  %4861 = vmatmul.mubr.f32.gmra.mrb[0].mxu0 %v4771
  %v4862 = vpop.f32.mrb[0].mxu0
  %v4863 = vadd.f32 0.0, %v4862
  %v4864 = vpop.f32.mrb[0].mxu0
  %4865 = vmatprep.mubr.f32.mxu0 0.0
  %4866 = vmatmul.mubr.f32.gmra.mrb[0].mxu0 %v4774
  %v4867 = vpop.f32.mrb[0].mxu0
  %v4868 = vadd.f32 0.0, %v4867
  %v4869 = vpop.f32.mrb[0].mxu0
  %4870 = vmatprep.mubr.f32.mxu0 0.0
  %4871 = vmatmul.mubr.f32.gmra.mrb[0].mxu0 %v4777
  %v4872 = vpop.f32.mrb[0].mxu0
  %v4873 = vadd.f32 0.0, %v4872
  %v4874 = vpop.f32.mrb[0].mxu0
  %4875 = vmatprep.mubr.f32.mxu0 0.0
  %4876 = vmatmul.mubr.f32.gmra.mrb[0].mxu0 %v4780
  %v4877 = vpop.f32.mrb[0].mxu0
  %v4878 = vadd.f32 0.0, %v4877
  %v4879 = vpop.f32.mrb[0].mxu0
  %4880 = vmatprep.mubr.f32.mxu0 0.0
  %4881 = vmatmul.mubr.f32.gmra.mrb[0].mxu0 %v4783
  %v4882 = vpop.f32.mrb[0].mxu0
  %v4883 = vadd.f32 0.0, %v4882
  %v4884 = vpop.f32.mrb[0].mxu0
  %4885 = vmatprep.mubr.f32.mxu0 0.0
  %4886 = vmatmul.mubr.f32.gmra.mrb[0].mxu0 %v4786
  %v4887 = vpop.f32.mrb[0].mxu0
  %v4888 = vadd.f32 0.0, %v4887
  %v4889 = vpop.f32.mrb[0].mxu0
  %4890 = vmatprep.mubr.f32.mxu0 0.0
  %4891 = vmatmul.mubr.f32.gmra.mrb[0].mxu0 %v4789
  %v4892 = vpop.f32.mrb[0].mxu0
  %v4893 = vadd.f32 0.0, %v4892
  %v4894 = vpop.f32.mrb[0].mxu0
  %4895 = vdwg.mxu0
  %s4896 = scalar_lea.vmem %s6, 64
  %v4897 = vld [vmem:[%s4896] sm:$0xff]
  %v4898 = vld [vmem:[%s4896 + $0x8] sm:$0xff]
  %v4899 = vld [vmem:[%s4896 + $0x10] sm:$0xff]
  %v4900 = vld [vmem:[%s4896 + $0x18] sm:$0xff]
  %v4901 = vld [vmem:[%s4896 + $0x20] sm:$0xff]
  %v4902 = vld [vmem:[%s4896 + $0x28] sm:$0xff]
  %v4903 = vld [vmem:[%s4896 + $0x30] sm:$0xff]
  %v4904 = vld [vmem:[%s4896 + $0x38] sm:$0xff]
  %v4906 = vsel %vm1118, %v4897, 0
  %v4909 = vsel %vm1118, %v4898, 0
  %v4912 = vsel %vm1118, %v4899, 0
  %v4915 = vsel %vm1118, %v4900, 0
  %v4918 = vsel %vm1118, %v4901, 0
  %v4921 = vsel %vm1118, %v4902, 0
  %v4924 = vsel %vm1118, %v4903, 0
  %v4927 = vsel %vm1118, %v4904, 0
  %4929 = vmatprep.subr.mxu0 0.0
  %4930 = vmatpush1.msra.mxu0 %v4858
  %4931 = vmatprep.subr.mxu0 0.0
  %4932 = vmatpush1.msra.mxu0 %v4863
  %4933 = vmatprep.subr.mxu0 0.0
  %4934 = vmatpush1.msra.mxu0 %v4868
  %4935 = vmatprep.subr.mxu0 0.0
  %4936 = vmatpush1.msra.mxu0 %v4873
  %4937 = vmatprep.subr.mxu0 0.0
  %4938 = vmatpush1.msra.mxu0 %v4878
  %4939 = vmatprep.subr.mxu0 0.0
  %4940 = vmatpush1.msra.mxu0 %v4883
  %4941 = vmatprep.subr.mxu0 0.0
  %4942 = vmatpush1.msra.mxu0 %v4888
  %4943 = vmatprep.subr.mxu0 0.0
  %4944 = vmatpush1.msra.mxu0 %v4893
  %4945 = vmatprep.subr.mxu0 0.0
  %4946 = vmatpush1.msra.mxu0 0.0
  %4947 = vmatprep.subr.mxu0 0.0
  %4948 = vmatpush1.msra.mxu0 0.0
  %4949 = vmatprep.subr.mxu0 0.0
  %4950 = vmatpush1.msra.mxu0 0.0
  %4951 = vmatprep.subr.mxu0 0.0
  %4952 = vmatpush1.msra.mxu0 0.0
  %4953 = vmatprep.subr.mxu0 0.0
  %4954 = vmatpush1.msra.mxu0 0.0
  %4955 = vmatprep.subr.mxu0 0.0
  %4956 = vmatpush1.msra.mxu0 0.0
  %4957 = vmatprep.subr.mxu0 0.0
  %4958 = vmatpush1.msra.mxu0 0.0
  %4959 = vmatprep.subr.mxu0 0.0
  %4960 = vmatpush1.msra.mxu0 0.0
  %4961 = vmatprep.subr.mxu0 0.0
  %4962 = vmatpush1.msra.mxu0 0.0
  %4963 = vmatprep.subr.mxu0 0.0
  %4964 = vmatpush1.msra.mxu0 0.0
  %4965 = vmatprep.subr.mxu0 0.0
  %4966 = vmatpush1.msra.mxu0 0.0
  %4967 = vmatprep.subr.mxu0 0.0
  %4968 = vmatpush1.msra.mxu0 0.0
  %4969 = vmatprep.subr.mxu0 0.0
  %4970 = vmatpush1.msra.mxu0 0.0
  %4971 = vmatprep.subr.mxu0 0.0
  %4972 = vmatpush1.msra.mxu0 0.0
  %4973 = vmatprep.subr.mxu0 0.0
  %4974 = vmatpush1.msra.mxu0 0.0
  %4975 = vmatprep.subr.mxu0 0.0
  %4976 = vmatpush1.msra.mxu0 0.0
  %4977 = vmatprep.subr.mxu0 0.0
  %4978 = vmatpush1.msra.mxu0 0.0
  %4979 = vmatprep.subr.mxu0 0.0
  %4980 = vmatpush1.msra.mxu0 0.0
  %4981 = vmatprep.subr.mxu0 0.0
  %4982 = vmatpush1.msra.mxu0 0.0
  %4983 = vmatprep.subr.mxu0 0.0
  %4984 = vmatpush1.msra.mxu0 0.0
  %4985 = vmatprep.subr.mxu0 0.0
  %4986 = vmatpush1.msra.mxu0 0.0
  %4987 = vmatprep.subr.mxu0 0.0
  %4988 = vmatpush1.msra.mxu0 0.0
  %4989 = vmatprep.subr.mxu0 0.0
  %4990 = vmatpush1.msra.mxu0 0.0
  %4991 = vmatprep.subr.mxu0 0.0
  %4992 = vmatpush1.msra.mxu0 0.0
  %4993 = vmatprep.mubr.f32.mxu0 0.0
  %4994 = vmatmul.mubr.f32.gmra.mrb[0].mxu0 %v4906
  %v4995 = vpop.f32.mrb[0].mxu0
  %v4996 = vadd.f32 0.0, %v4995
  %v4997 = vpop.f32.mrb[0].mxu0
  %4998 = vmatprep.mubr.f32.mxu0 0.0
  %4999 = vmatmul.mubr.f32.gmra.mrb[0].mxu0 %v4909
  %v5000 = vpop.f32.mrb[0].mxu0
  %v5001 = vadd.f32 0.0, %v5000
  %v5002 = vpop.f32.mrb[0].mxu0
  %5003 = vmatprep.mubr.f32.mxu0 0.0
  %5004 = vmatmul.mubr.f32.gmra.mrb[0].mxu0 %v4912
  %v5005 = vpop.f32.mrb[0].mxu0
  %v5006 = vadd.f32 0.0, %v5005
  %v5007 = vpop.f32.mrb[0].mxu0
  %5008 = vmatprep.mubr.f32.mxu0 0.0
  %5009 = vmatmul.mubr.f32.gmra.mrb[0].mxu0 %v4915
  %v5010 = vpop.f32.mrb[0].mxu0
  %v5011 = vadd.f32 0.0, %v5010
  %v5012 = vpop.f32.mrb[0].mxu0
  %5013 = vmatprep.mubr.f32.mxu0 0.0
  %5014 = vmatmul.mubr.f32.gmra.mrb[0].mxu0 %v4918
  %v5015 = vpop.f32.mrb[0].mxu0
  %v5016 = vadd.f32 0.0, %v5015
  %v5017 = vpop.f32.mrb[0].mxu0
  %5018 = vmatprep.mubr.f32.mxu0 0.0
  %5019 = vmatmul.mubr.f32.gmra.mrb[0].mxu0 %v4921
  %v5020 = vpop.f32.mrb[0].mxu0
  %v5021 = vadd.f32 0.0, %v5020
  %v5022 = vpop.f32.mrb[0].mxu0
  %5023 = vmatprep.mubr.f32.mxu0 0.0
  %5024 = vmatmul.mubr.f32.gmra.mrb[0].mxu0 %v4924
  %v5025 = vpop.f32.mrb[0].mxu0
  %v5026 = vadd.f32 0.0, %v5025
  %v5027 = vpop.f32.mrb[0].mxu0
  %5028 = vmatprep.mubr.f32.mxu0 0.0
  %5029 = vmatmul.mubr.f32.gmra.mrb[0].mxu0 %v4927
  %v5030 = vpop.f32.mrb[0].mxu0
  %v5031 = vadd.f32 0.0, %v5030
  %v5032 = vpop.f32.mrb[0].mxu0
  %5033 = vdwg.mxu0
  %v5034 = vadd.f32 %v4572, %v4996
  %v5035 = vadd.f32 %v4573, %v5001
  %v5036 = vadd.f32 %v4574, %v5006
  %v5037 = vadd.f32 %v4575, %v5011
  %v5038 = vadd.f32 %v4576, %v5016
  %v5039 = vadd.f32 %v4577, %v5021
  %v5040 = vadd.f32 %v4578, %v5026
  %v5041 = vadd.f32 %v4579, %v5031
  %s5042 = scalar_lea.vmem %s7, 1024
  %v5043 = vld [vmem:[%s5042] sm:$0xff]
  %v5044 = vld [vmem:[%s5042 + $0x8] sm:$0xff]
  %v5045 = vld [vmem:[%s5042 + $0x10] sm:$0xff]
  %v5046 = vld [vmem:[%s5042 + $0x18] sm:$0xff]
  %s5047 = scalar_lea.vmem %s8, 25
  %v5048 = vld [vmem:[%s5047] sm:$0x1]
  %v5050 = vlaneseq
  %v5051 = vshrl.u32 %v5050, 7
  %v5052 = vsub.s32 0, %v5051
  %v5053 = vrot.slane %v5048, %v5052
  %v5056 = vsel %vm530, %v5034, 0
  %v5059 = vsel %vm530, %v5035, 0
  %v5062 = vsel %vm530, %v5036, 0
  %v5065 = vsel %vm530, %v5037, 0
  %v5068 = vsel %vm530, %v5038, 0
  %v5071 = vsel %vm530, %v5039, 0
  %v5074 = vsel %vm530, %v5040, 0
  %v5077 = vsel %vm530, %v5041, 0
  %5079 = vmatprep.subr.mxu0 0.0
  %5080 = vmatpush1.msra.mxu0 %v5043
  %5081 = vmatprep.subr.mxu0 0.0
  %5082 = vmatpush1.msra.mxu0 %v5044
  %5083 = vmatprep.subr.mxu0 0.0
  %5084 = vmatpush1.msra.mxu0 %v5045
  %5085 = vmatprep.subr.mxu0 0.0
  %5086 = vmatpush1.msra.mxu0 %v5046
  %5087 = vmatprep.subr.mxu0 0.0
  %5088 = vmatpush1.msra.mxu0 0.0
  %5089 = vmatprep.subr.mxu0 0.0
  %5090 = vmatpush1.msra.mxu0 0.0
  %5091 = vmatprep.subr.mxu0 0.0
  %5092 = vmatpush1.msra.mxu0 0.0
  %5093 = vmatprep.subr.mxu0 0.0
  %5094 = vmatpush1.msra.mxu0 0.0
  %5095 = vmatprep.subr.mxu0 0.0
  %5096 = vmatpush1.msra.mxu0 0.0
  %5097 = vmatprep.subr.mxu0 0.0
  %5098 = vmatpush1.msra.mxu0 0.0
  %5099 = vmatprep.subr.mxu0 0.0
  %5100 = vmatpush1.msra.mxu0 0.0
  %5101 = vmatprep.subr.mxu0 0.0
  %5102 = vmatpush1.msra.mxu0 0.0
  %5103 = vmatprep.subr.mxu0 0.0
  %5104 = vmatpush1.msra.mxu0 0.0
  %5105 = vmatprep.subr.mxu0 0.0
  %5106 = vmatpush1.msra.mxu0 0.0
  %5107 = vmatprep.subr.mxu0 0.0
  %5108 = vmatpush1.msra.mxu0 0.0
  %5109 = vmatprep.subr.mxu0 0.0
  %5110 = vmatpush1.msra.mxu0 0.0
  %5111 = vmatprep.subr.mxu0 0.0
  %5112 = vmatpush1.msra.mxu0 0.0
  %5113 = vmatprep.subr.mxu0 0.0
  %5114 = vmatpush1.msra.mxu0 0.0
  %5115 = vmatprep.subr.mxu0 0.0
  %5116 = vmatpush1.msra.mxu0 0.0
  %5117 = vmatprep.subr.mxu0 0.0
  %5118 = vmatpush1.msra.mxu0 0.0
  %5119 = vmatprep.subr.mxu0 0.0
  %5120 = vmatpush1.msra.mxu0 0.0
  %5121 = vmatprep.subr.mxu0 0.0
  %5122 = vmatpush1.msra.mxu0 0.0
  %5123 = vmatprep.subr.mxu0 0.0
  %5124 = vmatpush1.msra.mxu0 0.0
  %5125 = vmatprep.subr.mxu0 0.0
  %5126 = vmatpush1.msra.mxu0 0.0
  %5127 = vmatprep.subr.mxu0 0.0
  %5128 = vmatpush1.msra.mxu0 0.0
  %5129 = vmatprep.subr.mxu0 0.0
  %5130 = vmatpush1.msra.mxu0 0.0
  %5131 = vmatprep.subr.mxu0 0.0
  %5132 = vmatpush1.msra.mxu0 0.0
  %5133 = vmatprep.subr.mxu0 0.0
  %5134 = vmatpush1.msra.mxu0 0.0
  %5135 = vmatprep.subr.mxu0 0.0
  %5136 = vmatpush1.msra.mxu0 0.0
  %5137 = vmatprep.subr.mxu0 0.0
  %5138 = vmatpush1.msra.mxu0 0.0
  %5139 = vmatprep.subr.mxu0 0.0
  %5140 = vmatpush1.msra.mxu0 0.0
  %5141 = vmatprep.subr.mxu0 0.0
  %5142 = vmatpush1.msra.mxu0 0.0
  %5143 = vmatprep.mubr.f32.mxu0 0.0
  %5144 = vmatmul.mubr.f32.gmra.mrb[0].mxu0 %v5056
  %v5145 = vpop.f32.mrb[0].mxu0
  %v5146 = vadd.f32 %v5053, %v5145
  %v5147 = vpop.f32.mrb[0].mxu0
  %5148 = vmatprep.mubr.f32.mxu0 0.0
  %5149 = vmatmul.mubr.f32.gmra.mrb[0].mxu0 %v5059
  %v5150 = vpop.f32.mrb[0].mxu0
  %v5151 = vadd.f32 %v5053, %v5150
  %v5152 = vpop.f32.mrb[0].mxu0
  %5153 = vmatprep.mubr.f32.mxu0 0.0
  %5154 = vmatmul.mubr.f32.gmra.mrb[0].mxu0 %v5062
  %v5155 = vpop.f32.mrb[0].mxu0
  %v5156 = vadd.f32 %v5053, %v5155
  %v5157 = vpop.f32.mrb[0].mxu0
  %5158 = vmatprep.mubr.f32.mxu0 0.0
  %5159 = vmatmul.mubr.f32.gmra.mrb[0].mxu0 %v5065
  %v5160 = vpop.f32.mrb[0].mxu0
  %v5161 = vadd.f32 %v5053, %v5160
  %v5162 = vpop.f32.mrb[0].mxu0
  %5163 = vmatprep.mubr.f32.mxu0 0.0
  %5164 = vmatmul.mubr.f32.gmra.mrb[0].mxu0 %v5068
  %v5165 = vpop.f32.mrb[0].mxu0
  %v5166 = vadd.f32 %v5053, %v5165
  %v5167 = vpop.f32.mrb[0].mxu0
  %5168 = vmatprep.mubr.f32.mxu0 0.0
  %5169 = vmatmul.mubr.f32.gmra.mrb[0].mxu0 %v5071
  %v5170 = vpop.f32.mrb[0].mxu0
  %v5171 = vadd.f32 %v5053, %v5170
  %v5172 = vpop.f32.mrb[0].mxu0
  %5173 = vmatprep.mubr.f32.mxu0 0.0
  %5174 = vmatmul.mubr.f32.gmra.mrb[0].mxu0 %v5074
  %v5175 = vpop.f32.mrb[0].mxu0
  %v5176 = vadd.f32 %v5053, %v5175
  %v5177 = vpop.f32.mrb[0].mxu0
  %5178 = vmatprep.mubr.f32.mxu0 0.0
  %5179 = vmatmul.mubr.f32.gmra.mrb[0].mxu0 %v5077
  %v5180 = vpop.f32.mrb[0].mxu0
  %v5181 = vadd.f32 %v5053, %v5180
  %v5182 = vpop.f32.mrb[0].mxu0
  %5183 = vdwg.mxu0
  %v5184 = vxor.u32 %v5146, 2147483648
  %v5185 = vxor.u32 %v5151, 2147483648
  %v5186 = vxor.u32 %v5156, 2147483648
  %v5187 = vxor.u32 %v5161, 2147483648
  %v5188 = vxor.u32 %v5166, 2147483648
  %v5189 = vxor.u32 %v5171, 2147483648
  %v5190 = vxor.u32 %v5176, 2147483648
  %v5191 = vxor.u32 %v5181, 2147483648
  %v5192 = vmul.f32 %v5184, 1.442695
  %v5193 = vpow.pop %v5192
  %v5194 = vmul.f32 %v5185, 1.442695
  %v5195 = vpow.pop %v5194
  %v5196 = vmul.f32 %v5186, 1.442695
  %v5197 = vpow.pop %v5196
  %v5198 = vmul.f32 %v5187, 1.442695
  %v5199 = vpow.pop %v5198
  %v5200 = vmul.f32 %v5188, 1.442695
  %v5201 = vpow.pop %v5200
  %v5202 = vmul.f32 %v5189, 1.442695
  %v5203 = vpow.pop %v5202
  %v5204 = vmul.f32 %v5190, 1.442695
  %v5205 = vpow.pop %v5204
  %v5206 = vmul.f32 %v5191, 1.442695
  %v5207 = vpow.pop %v5206
  %v5208 = vadd.f32 %v5193, 1.0
  %v5209 = vadd.f32 %v5195, 1.0
  %v5210 = vadd.f32 %v5197, 1.0
  %v5211 = vadd.f32 %v5199, 1.0
  %v5212 = vadd.f32 %v5201, 1.0
  %v5213 = vadd.f32 %v5203, 1.0
  %v5214 = vadd.f32 %v5205, 1.0
  %v5215 = vadd.f32 %v5207, 1.0
  %v5216 = vrcp.pop %v5208
  %v5217 = vmul.f32 1.0, %v5216
  %v5218 = vrcp.pop %v5209
  %v5219 = vmul.f32 1.0, %v5218
  %v5220 = vrcp.pop %v5210
  %v5221 = vmul.f32 1.0, %v5220
  %v5222 = vrcp.pop %v5211
  %v5223 = vmul.f32 1.0, %v5222
  %v5224 = vrcp.pop %v5212
  %v5225 = vmul.f32 1.0, %v5224
  %v5226 = vrcp.pop %v5213
  %v5227 = vmul.f32 1.0, %v5226
  %v5228 = vrcp.pop %v5214
  %v5229 = vmul.f32 1.0, %v5228
  %v5230 = vrcp.pop %v5215
  %v5231 = vmul.f32 1.0, %v5230
  %v5232 = vmul.f32 %v5146, %v5217
  %v5233 = vmul.f32 %v5151, %v5219
  %v5234 = vmul.f32 %v5156, %v5221
  %v5235 = vmul.f32 %v5161, %v5223
  %v5236 = vmul.f32 %v5166, %v5225
  %v5237 = vmul.f32 %v5171, %v5227
  %v5238 = vmul.f32 %v5176, %v5229
  %v5239 = vmul.f32 %v5181, %v5231
  %s5240 = scalar_lea.vmem %s7, 1056
  %v5241 = vld [vmem:[%s5240] sm:$0xff]
  %v5242 = vld [vmem:[%s5240 + $0x8] sm:$0xff]
  %v5243 = vld [vmem:[%s5240 + $0x10] sm:$0xff]
  %v5244 = vld [vmem:[%s5240 + $0x18] sm:$0xff]
  %s5245 = scalar_lea.vmem %s8, 26
  %v5246 = vld [vmem:[%s5245] sm:$0x1]
  %v5248 = vlaneseq
  %v5249 = vshrl.u32 %v5248, 7
  %v5250 = vsub.s32 0, %v5249
  %v5251 = vrot.slane %v5246, %v5250
  %v5254 = vsel %vm530, %v5232, 0
  %v5257 = vsel %vm530, %v5233, 0
  %v5260 = vsel %vm530, %v5234, 0
  %v5263 = vsel %vm530, %v5235, 0
  %v5266 = vsel %vm530, %v5236, 0
  %v5269 = vsel %vm530, %v5237, 0
  %v5272 = vsel %vm530, %v5238, 0
  %v5275 = vsel %vm530, %v5239, 0
  %5277 = vmatprep.subr.mxu0 0.0
  %5278 = vmatpush1.msra.mxu0 %v5241
  %5279 = vmatprep.subr.mxu0 0.0
  %5280 = vmatpush1.msra.mxu0 %v5242
  %5281 = vmatprep.subr.mxu0 0.0
  %5282 = vmatpush1.msra.mxu0 %v5243
  %5283 = vmatprep.subr.mxu0 0.0
  %5284 = vmatpush1.msra.mxu0 %v5244
  %5285 = vmatprep.subr.mxu0 0.0
  %5286 = vmatpush1.msra.mxu0 0.0
  %5287 = vmatprep.subr.mxu0 0.0
  %5288 = vmatpush1.msra.mxu0 0.0
  %5289 = vmatprep.subr.mxu0 0.0
  %5290 = vmatpush1.msra.mxu0 0.0
  %5291 = vmatprep.subr.mxu0 0.0
  %5292 = vmatpush1.msra.mxu0 0.0
  %5293 = vmatprep.subr.mxu0 0.0
  %5294 = vmatpush1.msra.mxu0 0.0
  %5295 = vmatprep.subr.mxu0 0.0
  %5296 = vmatpush1.msra.mxu0 0.0
  %5297 = vmatprep.subr.mxu0 0.0
  %5298 = vmatpush1.msra.mxu0 0.0
  %5299 = vmatprep.subr.mxu0 0.0
  %5300 = vmatpush1.msra.mxu0 0.0
  %5301 = vmatprep.subr.mxu0 0.0
  %5302 = vmatpush1.msra.mxu0 0.0
  %5303 = vmatprep.subr.mxu0 0.0
  %5304 = vmatpush1.msra.mxu0 0.0
  %5305 = vmatprep.subr.mxu0 0.0
  %5306 = vmatpush1.msra.mxu0 0.0
  %5307 = vmatprep.subr.mxu0 0.0
  %5308 = vmatpush1.msra.mxu0 0.0
  %5309 = vmatprep.subr.mxu0 0.0
  %5310 = vmatpush1.msra.mxu0 0.0
  %5311 = vmatprep.subr.mxu0 0.0
  %5312 = vmatpush1.msra.mxu0 0.0
  %5313 = vmatprep.subr.mxu0 0.0
  %5314 = vmatpush1.msra.mxu0 0.0
  %5315 = vmatprep.subr.mxu0 0.0
  %5316 = vmatpush1.msra.mxu0 0.0
  %5317 = vmatprep.subr.mxu0 0.0
  %5318 = vmatpush1.msra.mxu0 0.0
  %5319 = vmatprep.subr.mxu0 0.0
  %5320 = vmatpush1.msra.mxu0 0.0
  %5321 = vmatprep.subr.mxu0 0.0
  %5322 = vmatpush1.msra.mxu0 0.0
  %5323 = vmatprep.subr.mxu0 0.0
  %5324 = vmatpush1.msra.mxu0 0.0
  %5325 = vmatprep.subr.mxu0 0.0
  %5326 = vmatpush1.msra.mxu0 0.0
  %5327 = vmatprep.subr.mxu0 0.0
  %5328 = vmatpush1.msra.mxu0 0.0
  %5329 = vmatprep.subr.mxu0 0.0
  %5330 = vmatpush1.msra.mxu0 0.0
  %5331 = vmatprep.subr.mxu0 0.0
  %5332 = vmatpush1.msra.mxu0 0.0
  %5333 = vmatprep.subr.mxu0 0.0
  %5334 = vmatpush1.msra.mxu0 0.0
  %5335 = vmatprep.subr.mxu0 0.0
  %5336 = vmatpush1.msra.mxu0 0.0
  %5337 = vmatprep.subr.mxu0 0.0
  %5338 = vmatpush1.msra.mxu0 0.0
  %5339 = vmatprep.subr.mxu0 0.0
  %5340 = vmatpush1.msra.mxu0 0.0
  %5341 = vmatprep.mubr.f32.mxu0 0.0
  %5342 = vmatmul.mubr.f32.gmra.mrb[0].mxu0 %v5254
  %v5343 = vpop.f32.mrb[0].mxu0
  %v5344 = vadd.f32 %v5251, %v5343
  %v5345 = vpop.f32.mrb[0].mxu0
  %5346 = vmatprep.mubr.f32.mxu0 0.0
  %5347 = vmatmul.mubr.f32.gmra.mrb[0].mxu0 %v5257
  %v5348 = vpop.f32.mrb[0].mxu0
  %v5349 = vadd.f32 %v5251, %v5348
  %v5350 = vpop.f32.mrb[0].mxu0
  %5351 = vmatprep.mubr.f32.mxu0 0.0
  %5352 = vmatmul.mubr.f32.gmra.mrb[0].mxu0 %v5260
  %v5353 = vpop.f32.mrb[0].mxu0
  %v5354 = vadd.f32 %v5251, %v5353
  %v5355 = vpop.f32.mrb[0].mxu0
  %5356 = vmatprep.mubr.f32.mxu0 0.0
  %5357 = vmatmul.mubr.f32.gmra.mrb[0].mxu0 %v5263
  %v5358 = vpop.f32.mrb[0].mxu0
  %v5359 = vadd.f32 %v5251, %v5358
  %v5360 = vpop.f32.mrb[0].mxu0
  %5361 = vmatprep.mubr.f32.mxu0 0.0
  %5362 = vmatmul.mubr.f32.gmra.mrb[0].mxu0 %v5266
  %v5363 = vpop.f32.mrb[0].mxu0
  %v5364 = vadd.f32 %v5251, %v5363
  %v5365 = vpop.f32.mrb[0].mxu0
  %5366 = vmatprep.mubr.f32.mxu0 0.0
  %5367 = vmatmul.mubr.f32.gmra.mrb[0].mxu0 %v5269
  %v5368 = vpop.f32.mrb[0].mxu0
  %v5369 = vadd.f32 %v5251, %v5368
  %v5370 = vpop.f32.mrb[0].mxu0
  %5371 = vmatprep.mubr.f32.mxu0 0.0
  %5372 = vmatmul.mubr.f32.gmra.mrb[0].mxu0 %v5272
  %v5373 = vpop.f32.mrb[0].mxu0
  %v5374 = vadd.f32 %v5251, %v5373
  %v5375 = vpop.f32.mrb[0].mxu0
  %5376 = vmatprep.mubr.f32.mxu0 0.0
  %5377 = vmatmul.mubr.f32.gmra.mrb[0].mxu0 %v5275
  %v5378 = vpop.f32.mrb[0].mxu0
  %v5379 = vadd.f32 %v5251, %v5378
  %v5380 = vpop.f32.mrb[0].mxu0
  %5381 = vdwg.mxu0
  %v5382 = vxor.u32 %v5344, 2147483648
  %v5383 = vxor.u32 %v5349, 2147483648
  %v5384 = vxor.u32 %v5354, 2147483648
  %v5385 = vxor.u32 %v5359, 2147483648
  %v5386 = vxor.u32 %v5364, 2147483648
  %v5387 = vxor.u32 %v5369, 2147483648
  %v5388 = vxor.u32 %v5374, 2147483648
  %v5389 = vxor.u32 %v5379, 2147483648
  %v5390 = vmul.f32 %v5382, 1.442695
  %v5391 = vpow.pop %v5390
  %v5392 = vmul.f32 %v5383, 1.442695
  %v5393 = vpow.pop %v5392
  %v5394 = vmul.f32 %v5384, 1.442695
  %v5395 = vpow.pop %v5394
  %v5396 = vmul.f32 %v5385, 1.442695
  %v5397 = vpow.pop %v5396
  %v5398 = vmul.f32 %v5386, 1.442695
  %v5399 = vpow.pop %v5398
  %v5400 = vmul.f32 %v5387, 1.442695
  %v5401 = vpow.pop %v5400
  %v5402 = vmul.f32 %v5388, 1.442695
  %v5403 = vpow.pop %v5402
  %v5404 = vmul.f32 %v5389, 1.442695
  %v5405 = vpow.pop %v5404
  %v5406 = vadd.f32 %v5391, 1.0
  %v5407 = vadd.f32 %v5393, 1.0
  %v5408 = vadd.f32 %v5395, 1.0
  %v5409 = vadd.f32 %v5397, 1.0
  %v5410 = vadd.f32 %v5399, 1.0
  %v5411 = vadd.f32 %v5401, 1.0
  %v5412 = vadd.f32 %v5403, 1.0
  %v5413 = vadd.f32 %v5405, 1.0
  %v5414 = vrcp.pop %v5406
  %v5415 = vmul.f32 1.0, %v5414
  %v5416 = vrcp.pop %v5407
  %v5417 = vmul.f32 1.0, %v5416
  %v5418 = vrcp.pop %v5408
  %v5419 = vmul.f32 1.0, %v5418
  %v5420 = vrcp.pop %v5409
  %v5421 = vmul.f32 1.0, %v5420
  %v5422 = vrcp.pop %v5410
  %v5423 = vmul.f32 1.0, %v5422
  %v5424 = vrcp.pop %v5411
  %v5425 = vmul.f32 1.0, %v5424
  %v5426 = vrcp.pop %v5412
  %v5427 = vmul.f32 1.0, %v5426
  %v5428 = vrcp.pop %v5413
  %v5429 = vmul.f32 1.0, %v5428
  %v5430 = vmul.f32 %v5344, %v5415
  %v5431 = vmul.f32 %v5349, %v5417
  %v5432 = vmul.f32 %v5354, %v5419
  %v5433 = vmul.f32 %v5359, %v5421
  %v5434 = vmul.f32 %v5364, %v5423
  %v5435 = vmul.f32 %v5369, %v5425
  %v5436 = vmul.f32 %v5374, %v5427
  %v5437 = vmul.f32 %v5379, %v5429
  %v5438 = vadd.f32 %v5034, %v5430
  %v5439 = vadd.f32 %v5035, %v5431
  %v5440 = vadd.f32 %v5036, %v5432
  %v5441 = vadd.f32 %v5037, %v5433
  %v5442 = vadd.f32 %v5038, %v5434
  %v5443 = vadd.f32 %v5039, %v5435
  %v5444 = vadd.f32 %v5040, %v5436
  %v5445 = vadd.f32 %v5041, %v5437
  %s5446 = scalar_lea.vmem %s7, 1088
  %v5447 = vld [vmem:[%s5446] sm:$0xff]
  %v5448 = vld [vmem:[%s5446 + $0x8] sm:$0xff]
  %v5449 = vld [vmem:[%s5446 + $0x10] sm:$0xff]
  %v5450 = vld [vmem:[%s5446 + $0x18] sm:$0xff]
  %s5451 = scalar_lea.vmem %s8, 27
  %v5452 = vld [vmem:[%s5451] sm:$0x1]
  %v5454 = vlaneseq
  %v5455 = vshrl.u32 %v5454, 7
  %v5456 = vsub.s32 0, %v5455
  %v5457 = vrot.slane %v5452, %v5456
  %v5460 = vsel %vm530, %v5438, 0
  %v5463 = vsel %vm530, %v5439, 0
  %v5466 = vsel %vm530, %v5440, 0
  %v5469 = vsel %vm530, %v5441, 0
  %v5472 = vsel %vm530, %v5442, 0
  %v5475 = vsel %vm530, %v5443, 0
  %v5478 = vsel %vm530, %v5444, 0
  %v5481 = vsel %vm530, %v5445, 0
  %5483 = vmatprep.subr.mxu0 0.0
  %5484 = vmatpush1.msra.mxu0 %v5447
  %5485 = vmatprep.subr.mxu0 0.0
  %5486 = vmatpush1.msra.mxu0 %v5448
  %5487 = vmatprep.subr.mxu0 0.0
  %5488 = vmatpush1.msra.mxu0 %v5449
  %5489 = vmatprep.subr.mxu0 0.0
  %5490 = vmatpush1.msra.mxu0 %v5450
  %5491 = vmatprep.subr.mxu0 0.0
  %5492 = vmatpush1.msra.mxu0 0.0
  %5493 = vmatprep.subr.mxu0 0.0
  %5494 = vmatpush1.msra.mxu0 0.0
  %5495 = vmatprep.subr.mxu0 0.0
  %5496 = vmatpush1.msra.mxu0 0.0
  %5497 = vmatprep.subr.mxu0 0.0
  %5498 = vmatpush1.msra.mxu0 0.0
  %5499 = vmatprep.subr.mxu0 0.0
  %5500 = vmatpush1.msra.mxu0 0.0
  %5501 = vmatprep.subr.mxu0 0.0
  %5502 = vmatpush1.msra.mxu0 0.0
  %5503 = vmatprep.subr.mxu0 0.0
  %5504 = vmatpush1.msra.mxu0 0.0
  %5505 = vmatprep.subr.mxu0 0.0
  %5506 = vmatpush1.msra.mxu0 0.0
  %5507 = vmatprep.subr.mxu0 0.0
  %5508 = vmatpush1.msra.mxu0 0.0
  %5509 = vmatprep.subr.mxu0 0.0
  %5510 = vmatpush1.msra.mxu0 0.0
  %5511 = vmatprep.subr.mxu0 0.0
  %5512 = vmatpush1.msra.mxu0 0.0
  %5513 = vmatprep.subr.mxu0 0.0
  %5514 = vmatpush1.msra.mxu0 0.0
  %5515 = vmatprep.subr.mxu0 0.0
  %5516 = vmatpush1.msra.mxu0 0.0
  %5517 = vmatprep.subr.mxu0 0.0
  %5518 = vmatpush1.msra.mxu0 0.0
  %5519 = vmatprep.subr.mxu0 0.0
  %5520 = vmatpush1.msra.mxu0 0.0
  %5521 = vmatprep.subr.mxu0 0.0
  %5522 = vmatpush1.msra.mxu0 0.0
  %5523 = vmatprep.subr.mxu0 0.0
  %5524 = vmatpush1.msra.mxu0 0.0
  %5525 = vmatprep.subr.mxu0 0.0
  %5526 = vmatpush1.msra.mxu0 0.0
  %5527 = vmatprep.subr.mxu0 0.0
  %5528 = vmatpush1.msra.mxu0 0.0
  %5529 = vmatprep.subr.mxu0 0.0
  %5530 = vmatpush1.msra.mxu0 0.0
  %5531 = vmatprep.subr.mxu0 0.0
  %5532 = vmatpush1.msra.mxu0 0.0
  %5533 = vmatprep.subr.mxu0 0.0
  %5534 = vmatpush1.msra.mxu0 0.0
  %5535 = vmatprep.subr.mxu0 0.0
  %5536 = vmatpush1.msra.mxu0 0.0
  %5537 = vmatprep.subr.mxu0 0.0
  %5538 = vmatpush1.msra.mxu0 0.0
  %5539 = vmatprep.subr.mxu0 0.0
  %5540 = vmatpush1.msra.mxu0 0.0
  %5541 = vmatprep.subr.mxu0 0.0
  %5542 = vmatpush1.msra.mxu0 0.0
  %5543 = vmatprep.subr.mxu0 0.0
  %5544 = vmatpush1.msra.mxu0 0.0
  %5545 = vmatprep.subr.mxu0 0.0
  %5546 = vmatpush1.msra.mxu0 0.0
  %5547 = vmatprep.mubr.f32.mxu0 0.0
  %5548 = vmatmul.mubr.f32.gmra.mrb[0].mxu0 %v5460
  %v5549 = vpop.f32.mrb[0].mxu0
  %v5550 = vadd.f32 %v5457, %v5549
  %v5551 = vpop.f32.mrb[0].mxu0
  %5552 = vmatprep.mubr.f32.mxu0 0.0
  %5553 = vmatmul.mubr.f32.gmra.mrb[0].mxu0 %v5463
  %v5554 = vpop.f32.mrb[0].mxu0
  %v5555 = vadd.f32 %v5457, %v5554
  %v5556 = vpop.f32.mrb[0].mxu0
  %5557 = vmatprep.mubr.f32.mxu0 0.0
  %5558 = vmatmul.mubr.f32.gmra.mrb[0].mxu0 %v5466
  %v5559 = vpop.f32.mrb[0].mxu0
  %v5560 = vadd.f32 %v5457, %v5559
  %v5561 = vpop.f32.mrb[0].mxu0
  %5562 = vmatprep.mubr.f32.mxu0 0.0
  %5563 = vmatmul.mubr.f32.gmra.mrb[0].mxu0 %v5469
  %v5564 = vpop.f32.mrb[0].mxu0
  %v5565 = vadd.f32 %v5457, %v5564
  %v5566 = vpop.f32.mrb[0].mxu0
  %5567 = vmatprep.mubr.f32.mxu0 0.0
  %5568 = vmatmul.mubr.f32.gmra.mrb[0].mxu0 %v5472
  %v5569 = vpop.f32.mrb[0].mxu0
  %v5570 = vadd.f32 %v5457, %v5569
  %v5571 = vpop.f32.mrb[0].mxu0
  %5572 = vmatprep.mubr.f32.mxu0 0.0
  %5573 = vmatmul.mubr.f32.gmra.mrb[0].mxu0 %v5475
  %v5574 = vpop.f32.mrb[0].mxu0
  %v5575 = vadd.f32 %v5457, %v5574
  %v5576 = vpop.f32.mrb[0].mxu0
  %5577 = vmatprep.mubr.f32.mxu0 0.0
  %5578 = vmatmul.mubr.f32.gmra.mrb[0].mxu0 %v5478
  %v5579 = vpop.f32.mrb[0].mxu0
  %v5580 = vadd.f32 %v5457, %v5579
  %v5581 = vpop.f32.mrb[0].mxu0
  %5582 = vmatprep.mubr.f32.mxu0 0.0
  %5583 = vmatmul.mubr.f32.gmra.mrb[0].mxu0 %v5481
  %v5584 = vpop.f32.mrb[0].mxu0
  %v5585 = vadd.f32 %v5457, %v5584
  %v5586 = vpop.f32.mrb[0].mxu0
  %5587 = vdwg.mxu0
  %v5588 = vxor.u32 %v5550, 2147483648
  %v5589 = vxor.u32 %v5555, 2147483648
  %v5590 = vxor.u32 %v5560, 2147483648
  %v5591 = vxor.u32 %v5565, 2147483648
  %v5592 = vxor.u32 %v5570, 2147483648
  %v5593 = vxor.u32 %v5575, 2147483648
  %v5594 = vxor.u32 %v5580, 2147483648
  %v5595 = vxor.u32 %v5585, 2147483648
  %v5596 = vmul.f32 %v5588, 1.442695
  %v5597 = vpow.pop %v5596
  %v5598 = vmul.f32 %v5589, 1.442695
  %v5599 = vpow.pop %v5598
  %v5600 = vmul.f32 %v5590, 1.442695
  %v5601 = vpow.pop %v5600
  %v5602 = vmul.f32 %v5591, 1.442695
  %v5603 = vpow.pop %v5602
  %v5604 = vmul.f32 %v5592, 1.442695
  %v5605 = vpow.pop %v5604
  %v5606 = vmul.f32 %v5593, 1.442695
  %v5607 = vpow.pop %v5606
  %v5608 = vmul.f32 %v5594, 1.442695
  %v5609 = vpow.pop %v5608
  %v5610 = vmul.f32 %v5595, 1.442695
  %v5611 = vpow.pop %v5610
  %v5612 = vadd.f32 %v5597, 1.0
  %v5613 = vadd.f32 %v5599, 1.0
  %v5614 = vadd.f32 %v5601, 1.0
  %v5615 = vadd.f32 %v5603, 1.0
  %v5616 = vadd.f32 %v5605, 1.0
  %v5617 = vadd.f32 %v5607, 1.0
  %v5618 = vadd.f32 %v5609, 1.0
  %v5619 = vadd.f32 %v5611, 1.0
  %v5620 = vrcp.pop %v5612
  %v5621 = vmul.f32 1.0, %v5620
  %v5622 = vrcp.pop %v5613
  %v5623 = vmul.f32 1.0, %v5622
  %v5624 = vrcp.pop %v5614
  %v5625 = vmul.f32 1.0, %v5624
  %v5626 = vrcp.pop %v5615
  %v5627 = vmul.f32 1.0, %v5626
  %v5628 = vrcp.pop %v5616
  %v5629 = vmul.f32 1.0, %v5628
  %v5630 = vrcp.pop %v5617
  %v5631 = vmul.f32 1.0, %v5630
  %v5632 = vrcp.pop %v5618
  %v5633 = vmul.f32 1.0, %v5632
  %v5634 = vrcp.pop %v5619
  %v5635 = vmul.f32 1.0, %v5634
  %v5636 = vmul.f32 %v5550, %v5621
  %v5637 = vmul.f32 %v5555, %v5623
  %v5638 = vmul.f32 %v5560, %v5625
  %v5639 = vmul.f32 %v5565, %v5627
  %v5640 = vmul.f32 %v5570, %v5629
  %v5641 = vmul.f32 %v5575, %v5631
  %v5642 = vmul.f32 %v5580, %v5633
  %v5643 = vmul.f32 %v5585, %v5635
  %v5644 = vadd.f32 %v5636, %v3652
  %v5645 = vadd.f32 %v5637, %v3653
  %v5646 = vadd.f32 %v5638, %v3654
  %v5647 = vadd.f32 %v5639, %v3655
  %v5648 = vadd.f32 %v5640, %v3656
  %v5649 = vadd.f32 %v5641, %v3657
  %v5650 = vadd.f32 %v5642, %v3658
  %v5651 = vadd.f32 %v5643, %v3659
  %s5652 = scalar_lea.vmem %s7, 1120
  %v5653 = vld [vmem:[%s5652] sm:$0xff]
  %v5654 = vld [vmem:[%s5652 + $0x8] sm:$0xff]
  %v5655 = vld [vmem:[%s5652 + $0x10] sm:$0xff]
  %v5656 = vld [vmem:[%s5652 + $0x18] sm:$0xff]
  %s5657 = scalar_lea.vmem %s8, 28
  %v5658 = vld [vmem:[%s5657] sm:$0x1]
  %v5660 = vlaneseq
  %v5661 = vshrl.u32 %v5660, 7
  %v5662 = vsub.s32 0, %v5661
  %v5663 = vrot.slane %v5658, %v5662
  %v5666 = vsel %vm530, %v5644, 0
  %v5669 = vsel %vm530, %v5645, 0
  %v5672 = vsel %vm530, %v5646, 0
  %v5675 = vsel %vm530, %v5647, 0
  %v5678 = vsel %vm530, %v5648, 0
  %v5681 = vsel %vm530, %v5649, 0
  %v5684 = vsel %vm530, %v5650, 0
  %v5687 = vsel %vm530, %v5651, 0
  %5689 = vmatprep.subr.mxu0 0.0
  %5690 = vmatpush1.msra.mxu0 %v5653
  %5691 = vmatprep.subr.mxu0 0.0
  %5692 = vmatpush1.msra.mxu0 %v5654
  %5693 = vmatprep.subr.mxu0 0.0
  %5694 = vmatpush1.msra.mxu0 %v5655
  %5695 = vmatprep.subr.mxu0 0.0
  %5696 = vmatpush1.msra.mxu0 %v5656
  %5697 = vmatprep.subr.mxu0 0.0
  %5698 = vmatpush1.msra.mxu0 0.0
  %5699 = vmatprep.subr.mxu0 0.0
  %5700 = vmatpush1.msra.mxu0 0.0
  %5701 = vmatprep.subr.mxu0 0.0
  %5702 = vmatpush1.msra.mxu0 0.0
  %5703 = vmatprep.subr.mxu0 0.0
  %5704 = vmatpush1.msra.mxu0 0.0
  %5705 = vmatprep.subr.mxu0 0.0
  %5706 = vmatpush1.msra.mxu0 0.0
  %5707 = vmatprep.subr.mxu0 0.0
  %5708 = vmatpush1.msra.mxu0 0.0
  %5709 = vmatprep.subr.mxu0 0.0
  %5710 = vmatpush1.msra.mxu0 0.0
  %5711 = vmatprep.subr.mxu0 0.0
  %5712 = vmatpush1.msra.mxu0 0.0
  %5713 = vmatprep.subr.mxu0 0.0
  %5714 = vmatpush1.msra.mxu0 0.0
  %5715 = vmatprep.subr.mxu0 0.0
  %5716 = vmatpush1.msra.mxu0 0.0
  %5717 = vmatprep.subr.mxu0 0.0
  %5718 = vmatpush1.msra.mxu0 0.0
  %5719 = vmatprep.subr.mxu0 0.0
  %5720 = vmatpush1.msra.mxu0 0.0
  %5721 = vmatprep.subr.mxu0 0.0
  %5722 = vmatpush1.msra.mxu0 0.0
  %5723 = vmatprep.subr.mxu0 0.0
  %5724 = vmatpush1.msra.mxu0 0.0
  %5725 = vmatprep.subr.mxu0 0.0
  %5726 = vmatpush1.msra.mxu0 0.0
  %5727 = vmatprep.subr.mxu0 0.0
  %5728 = vmatpush1.msra.mxu0 0.0
  %5729 = vmatprep.subr.mxu0 0.0
  %5730 = vmatpush1.msra.mxu0 0.0
  %5731 = vmatprep.subr.mxu0 0.0
  %5732 = vmatpush1.msra.mxu0 0.0
  %5733 = vmatprep.subr.mxu0 0.0
  %5734 = vmatpush1.msra.mxu0 0.0
  %5735 = vmatprep.subr.mxu0 0.0
  %5736 = vmatpush1.msra.mxu0 0.0
  %5737 = vmatprep.subr.mxu0 0.0
  %5738 = vmatpush1.msra.mxu0 0.0
  %5739 = vmatprep.subr.mxu0 0.0
  %5740 = vmatpush1.msra.mxu0 0.0
  %5741 = vmatprep.subr.mxu0 0.0
  %5742 = vmatpush1.msra.mxu0 0.0
  %5743 = vmatprep.subr.mxu0 0.0
  %5744 = vmatpush1.msra.mxu0 0.0
  %5745 = vmatprep.subr.mxu0 0.0
  %5746 = vmatpush1.msra.mxu0 0.0
  %5747 = vmatprep.subr.mxu0 0.0
  %5748 = vmatpush1.msra.mxu0 0.0
  %5749 = vmatprep.subr.mxu0 0.0
  %5750 = vmatpush1.msra.mxu0 0.0
  %5751 = vmatprep.subr.mxu0 0.0
  %5752 = vmatpush1.msra.mxu0 0.0
  %5753 = vmatprep.mubr.f32.mxu0 0.0
  %5754 = vmatmul.mubr.f32.gmra.mrb[0].mxu0 %v5666
  %v5755 = vpop.f32.mrb[0].mxu0
  %v5756 = vadd.f32 %v5663, %v5755
  %v5757 = vpop.f32.mrb[0].mxu0
  %5758 = vmatprep.mubr.f32.mxu0 0.0
  %5759 = vmatmul.mubr.f32.gmra.mrb[0].mxu0 %v5669
  %v5760 = vpop.f32.mrb[0].mxu0
  %v5761 = vadd.f32 %v5663, %v5760
  %v5762 = vpop.f32.mrb[0].mxu0
  %5763 = vmatprep.mubr.f32.mxu0 0.0
  %5764 = vmatmul.mubr.f32.gmra.mrb[0].mxu0 %v5672
  %v5765 = vpop.f32.mrb[0].mxu0
  %v5766 = vadd.f32 %v5663, %v5765
  %v5767 = vpop.f32.mrb[0].mxu0
  %5768 = vmatprep.mubr.f32.mxu0 0.0
  %5769 = vmatmul.mubr.f32.gmra.mrb[0].mxu0 %v5675
  %v5770 = vpop.f32.mrb[0].mxu0
  %v5771 = vadd.f32 %v5663, %v5770
  %v5772 = vpop.f32.mrb[0].mxu0
  %5773 = vmatprep.mubr.f32.mxu0 0.0
  %5774 = vmatmul.mubr.f32.gmra.mrb[0].mxu0 %v5678
  %v5775 = vpop.f32.mrb[0].mxu0
  %v5776 = vadd.f32 %v5663, %v5775
  %v5777 = vpop.f32.mrb[0].mxu0
  %5778 = vmatprep.mubr.f32.mxu0 0.0
  %5779 = vmatmul.mubr.f32.gmra.mrb[0].mxu0 %v5681
  %v5780 = vpop.f32.mrb[0].mxu0
  %v5781 = vadd.f32 %v5663, %v5780
  %v5782 = vpop.f32.mrb[0].mxu0
  %5783 = vmatprep.mubr.f32.mxu0 0.0
  %5784 = vmatmul.mubr.f32.gmra.mrb[0].mxu0 %v5684
  %v5785 = vpop.f32.mrb[0].mxu0
  %v5786 = vadd.f32 %v5663, %v5785
  %v5787 = vpop.f32.mrb[0].mxu0
  %5788 = vmatprep.mubr.f32.mxu0 0.0
  %5789 = vmatmul.mubr.f32.gmra.mrb[0].mxu0 %v5687
  %v5790 = vpop.f32.mrb[0].mxu0
  %v5791 = vadd.f32 %v5663, %v5790
  %v5792 = vpop.f32.mrb[0].mxu0
  %5793 = vdwg.mxu0
  %v5794 = vxor.u32 %v5756, 2147483648
  %v5795 = vxor.u32 %v5761, 2147483648
  %v5796 = vxor.u32 %v5766, 2147483648
  %v5797 = vxor.u32 %v5771, 2147483648
  %v5798 = vxor.u32 %v5776, 2147483648
  %v5799 = vxor.u32 %v5781, 2147483648
  %v5800 = vxor.u32 %v5786, 2147483648
  %v5801 = vxor.u32 %v5791, 2147483648
  %v5802 = vmul.f32 %v5794, 1.442695
  %v5803 = vpow.pop %v5802
  %v5804 = vmul.f32 %v5795, 1.442695
  %v5805 = vpow.pop %v5804
  %v5806 = vmul.f32 %v5796, 1.442695
  %v5807 = vpow.pop %v5806
  %v5808 = vmul.f32 %v5797, 1.442695
  %v5809 = vpow.pop %v5808
  %v5810 = vmul.f32 %v5798, 1.442695
  %v5811 = vpow.pop %v5810
  %v5812 = vmul.f32 %v5799, 1.442695
  %v5813 = vpow.pop %v5812
  %v5814 = vmul.f32 %v5800, 1.442695
  %v5815 = vpow.pop %v5814
  %v5816 = vmul.f32 %v5801, 1.442695
  %v5817 = vpow.pop %v5816
  %v5818 = vadd.f32 %v5803, 1.0
  %v5819 = vadd.f32 %v5805, 1.0
  %v5820 = vadd.f32 %v5807, 1.0
  %v5821 = vadd.f32 %v5809, 1.0
  %v5822 = vadd.f32 %v5811, 1.0
  %v5823 = vadd.f32 %v5813, 1.0
  %v5824 = vadd.f32 %v5815, 1.0
  %v5825 = vadd.f32 %v5817, 1.0
  %v5826 = vrcp.pop %v5818
  %v5827 = vmul.f32 1.0, %v5826
  %v5828 = vrcp.pop %v5819
  %v5829 = vmul.f32 1.0, %v5828
  %v5830 = vrcp.pop %v5820
  %v5831 = vmul.f32 1.0, %v5830
  %v5832 = vrcp.pop %v5821
  %v5833 = vmul.f32 1.0, %v5832
  %v5834 = vrcp.pop %v5822
  %v5835 = vmul.f32 1.0, %v5834
  %v5836 = vrcp.pop %v5823
  %v5837 = vmul.f32 1.0, %v5836
  %v5838 = vrcp.pop %v5824
  %v5839 = vmul.f32 1.0, %v5838
  %v5840 = vrcp.pop %v5825
  %v5841 = vmul.f32 1.0, %v5840
  %v5842 = vmul.f32 %v5756, %v5827
  %v5843 = vmul.f32 %v5761, %v5829
  %v5844 = vmul.f32 %v5766, %v5831
  %v5845 = vmul.f32 %v5771, %v5833
  %v5846 = vmul.f32 %v5776, %v5835
  %v5847 = vmul.f32 %v5781, %v5837
  %v5848 = vmul.f32 %v5786, %v5839
  %v5849 = vmul.f32 %v5791, %v5841
  %s5850 = scalar_lea.vmem %s7, 1152
  %v5851 = vld [vmem:[%s5850] sm:$0xff]
  %v5852 = vld [vmem:[%s5850 + $0x8] sm:$0xff]
  %v5853 = vld [vmem:[%s5850 + $0x10] sm:$0xff]
  %v5854 = vld [vmem:[%s5850 + $0x18] sm:$0xff]
  %s5855 = scalar_lea.vmem %s8, 29
  %v5856 = vld [vmem:[%s5855] sm:$0x1]
  %v5858 = vlaneseq
  %v5859 = vshrl.u32 %v5858, 7
  %v5860 = vsub.s32 0, %v5859
  %v5861 = vrot.slane %v5856, %v5860
  %v5864 = vsel %vm530, %v5842, 0
  %v5867 = vsel %vm530, %v5843, 0
  %v5870 = vsel %vm530, %v5844, 0
  %v5873 = vsel %vm530, %v5845, 0
  %v5876 = vsel %vm530, %v5846, 0
  %v5879 = vsel %vm530, %v5847, 0
  %v5882 = vsel %vm530, %v5848, 0
  %v5885 = vsel %vm530, %v5849, 0
  %5887 = vmatprep.subr.mxu0 0.0
  %5888 = vmatpush1.msra.mxu0 %v5851
  %5889 = vmatprep.subr.mxu0 0.0
  %5890 = vmatpush1.msra.mxu0 %v5852
  %5891 = vmatprep.subr.mxu0 0.0
  %5892 = vmatpush1.msra.mxu0 %v5853
  %5893 = vmatprep.subr.mxu0 0.0
  %5894 = vmatpush1.msra.mxu0 %v5854
  %5895 = vmatprep.subr.mxu0 0.0
  %5896 = vmatpush1.msra.mxu0 0.0
  %5897 = vmatprep.subr.mxu0 0.0
  %5898 = vmatpush1.msra.mxu0 0.0
  %5899 = vmatprep.subr.mxu0 0.0
  %5900 = vmatpush1.msra.mxu0 0.0
  %5901 = vmatprep.subr.mxu0 0.0
  %5902 = vmatpush1.msra.mxu0 0.0
  %5903 = vmatprep.subr.mxu0 0.0
  %5904 = vmatpush1.msra.mxu0 0.0
  %5905 = vmatprep.subr.mxu0 0.0
  %5906 = vmatpush1.msra.mxu0 0.0
  %5907 = vmatprep.subr.mxu0 0.0
  %5908 = vmatpush1.msra.mxu0 0.0
  %5909 = vmatprep.subr.mxu0 0.0
  %5910 = vmatpush1.msra.mxu0 0.0
  %5911 = vmatprep.subr.mxu0 0.0
  %5912 = vmatpush1.msra.mxu0 0.0
  %5913 = vmatprep.subr.mxu0 0.0
  %5914 = vmatpush1.msra.mxu0 0.0
  %5915 = vmatprep.subr.mxu0 0.0
  %5916 = vmatpush1.msra.mxu0 0.0
  %5917 = vmatprep.subr.mxu0 0.0
  %5918 = vmatpush1.msra.mxu0 0.0
  %5919 = vmatprep.subr.mxu0 0.0
  %5920 = vmatpush1.msra.mxu0 0.0
  %5921 = vmatprep.subr.mxu0 0.0
  %5922 = vmatpush1.msra.mxu0 0.0
  %5923 = vmatprep.subr.mxu0 0.0
  %5924 = vmatpush1.msra.mxu0 0.0
  %5925 = vmatprep.subr.mxu0 0.0
  %5926 = vmatpush1.msra.mxu0 0.0
  %5927 = vmatprep.subr.mxu0 0.0
  %5928 = vmatpush1.msra.mxu0 0.0
  %5929 = vmatprep.subr.mxu0 0.0
  %5930 = vmatpush1.msra.mxu0 0.0
  %5931 = vmatprep.subr.mxu0 0.0
  %5932 = vmatpush1.msra.mxu0 0.0
  %5933 = vmatprep.subr.mxu0 0.0
  %5934 = vmatpush1.msra.mxu0 0.0
  %5935 = vmatprep.subr.mxu0 0.0
  %5936 = vmatpush1.msra.mxu0 0.0
  %5937 = vmatprep.subr.mxu0 0.0
  %5938 = vmatpush1.msra.mxu0 0.0
  %5939 = vmatprep.subr.mxu0 0.0
  %5940 = vmatpush1.msra.mxu0 0.0
  %5941 = vmatprep.subr.mxu0 0.0
  %5942 = vmatpush1.msra.mxu0 0.0
  %5943 = vmatprep.subr.mxu0 0.0
  %5944 = vmatpush1.msra.mxu0 0.0
  %5945 = vmatprep.subr.mxu0 0.0
  %5946 = vmatpush1.msra.mxu0 0.0
  %5947 = vmatprep.subr.mxu0 0.0
  %5948 = vmatpush1.msra.mxu0 0.0
  %5949 = vmatprep.subr.mxu0 0.0
  %5950 = vmatpush1.msra.mxu0 0.0
  %5951 = vmatprep.mubr.f32.mxu0 0.0
  %5952 = vmatmul.mubr.f32.gmra.mrb[0].mxu0 %v5864
  %v5953 = vpop.f32.mrb[0].mxu0
  %v5954 = vadd.f32 %v5861, %v5953
  %v5955 = vpop.f32.mrb[0].mxu0
  %5956 = vmatprep.mubr.f32.mxu0 0.0
  %5957 = vmatmul.mubr.f32.gmra.mrb[0].mxu0 %v5867
  %v5958 = vpop.f32.mrb[0].mxu0
  %v5959 = vadd.f32 %v5861, %v5958
  %v5960 = vpop.f32.mrb[0].mxu0
  %5961 = vmatprep.mubr.f32.mxu0 0.0
  %5962 = vmatmul.mubr.f32.gmra.mrb[0].mxu0 %v5870
  %v5963 = vpop.f32.mrb[0].mxu0
  %v5964 = vadd.f32 %v5861, %v5963
  %v5965 = vpop.f32.mrb[0].mxu0
  %5966 = vmatprep.mubr.f32.mxu0 0.0
  %5967 = vmatmul.mubr.f32.gmra.mrb[0].mxu0 %v5873
  %v5968 = vpop.f32.mrb[0].mxu0
  %v5969 = vadd.f32 %v5861, %v5968
  %v5970 = vpop.f32.mrb[0].mxu0
  %5971 = vmatprep.mubr.f32.mxu0 0.0
  %5972 = vmatmul.mubr.f32.gmra.mrb[0].mxu0 %v5876
  %v5973 = vpop.f32.mrb[0].mxu0
  %v5974 = vadd.f32 %v5861, %v5973
  %v5975 = vpop.f32.mrb[0].mxu0
  %5976 = vmatprep.mubr.f32.mxu0 0.0
  %5977 = vmatmul.mubr.f32.gmra.mrb[0].mxu0 %v5879
  %v5978 = vpop.f32.mrb[0].mxu0
  %v5979 = vadd.f32 %v5861, %v5978
  %v5980 = vpop.f32.mrb[0].mxu0
  %5981 = vmatprep.mubr.f32.mxu0 0.0
  %5982 = vmatmul.mubr.f32.gmra.mrb[0].mxu0 %v5882
  %v5983 = vpop.f32.mrb[0].mxu0
  %v5984 = vadd.f32 %v5861, %v5983
  %v5985 = vpop.f32.mrb[0].mxu0
  %5986 = vmatprep.mubr.f32.mxu0 0.0
  %5987 = vmatmul.mubr.f32.gmra.mrb[0].mxu0 %v5885
  %v5988 = vpop.f32.mrb[0].mxu0
  %v5989 = vadd.f32 %v5861, %v5988
  %v5990 = vpop.f32.mrb[0].mxu0
  %5991 = vdwg.mxu0
  %v5992 = vxor.u32 %v5954, 2147483648
  %v5993 = vxor.u32 %v5959, 2147483648
  %v5994 = vxor.u32 %v5964, 2147483648
  %v5995 = vxor.u32 %v5969, 2147483648
  %v5996 = vxor.u32 %v5974, 2147483648
  %v5997 = vxor.u32 %v5979, 2147483648
  %v5998 = vxor.u32 %v5984, 2147483648
  %v5999 = vxor.u32 %v5989, 2147483648
  %v6000 = vmul.f32 %v5992, 1.442695
  %v6001 = vpow.pop %v6000
  %v6002 = vmul.f32 %v5993, 1.442695
  %v6003 = vpow.pop %v6002
  %v6004 = vmul.f32 %v5994, 1.442695
  %v6005 = vpow.pop %v6004
  %v6006 = vmul.f32 %v5995, 1.442695
  %v6007 = vpow.pop %v6006
  %v6008 = vmul.f32 %v5996, 1.442695
  %v6009 = vpow.pop %v6008
  %v6010 = vmul.f32 %v5997, 1.442695
  %v6011 = vpow.pop %v6010
  %v6012 = vmul.f32 %v5998, 1.442695
  %v6013 = vpow.pop %v6012
  %v6014 = vmul.f32 %v5999, 1.442695
  %v6015 = vpow.pop %v6014
  %v6016 = vadd.f32 %v6001, 1.0
  %v6017 = vadd.f32 %v6003, 1.0
  %v6018 = vadd.f32 %v6005, 1.0
  %v6019 = vadd.f32 %v6007, 1.0
  %v6020 = vadd.f32 %v6009, 1.0
  %v6021 = vadd.f32 %v6011, 1.0
  %v6022 = vadd.f32 %v6013, 1.0
  %v6023 = vadd.f32 %v6015, 1.0
  %v6024 = vrcp.pop %v6016
  %v6025 = vmul.f32 1.0, %v6024
  %v6026 = vrcp.pop %v6017
  %v6027 = vmul.f32 1.0, %v6026
  %v6028 = vrcp.pop %v6018
  %v6029 = vmul.f32 1.0, %v6028
  %v6030 = vrcp.pop %v6019
  %v6031 = vmul.f32 1.0, %v6030
  %v6032 = vrcp.pop %v6020
  %v6033 = vmul.f32 1.0, %v6032
  %v6034 = vrcp.pop %v6021
  %v6035 = vmul.f32 1.0, %v6034
  %v6036 = vrcp.pop %v6022
  %v6037 = vmul.f32 1.0, %v6036
  %v6038 = vrcp.pop %v6023
  %v6039 = vmul.f32 1.0, %v6038
  %v6040 = vmul.f32 %v5954, %v6025
  %v6041 = vmul.f32 %v5959, %v6027
  %v6042 = vmul.f32 %v5964, %v6029
  %v6043 = vmul.f32 %v5969, %v6031
  %v6044 = vmul.f32 %v5974, %v6033
  %v6045 = vmul.f32 %v5979, %v6035
  %v6046 = vmul.f32 %v5984, %v6037
  %v6047 = vmul.f32 %v5989, %v6039
  %v6048 = vadd.f32 %v5644, %v6040
  %v6049 = vadd.f32 %v5645, %v6041
  %v6050 = vadd.f32 %v5646, %v6042
  %v6051 = vadd.f32 %v5647, %v6043
  %v6052 = vadd.f32 %v5648, %v6044
  %v6053 = vadd.f32 %v5649, %v6045
  %v6054 = vadd.f32 %v5650, %v6046
  %v6055 = vadd.f32 %v5651, %v6047
  %s6056 = scalar_lea.vmem %s7, 1184
  %v6057 = vld [vmem:[%s6056] sm:$0xff]
  %v6058 = vld [vmem:[%s6056 + $0x8] sm:$0xff]
  %v6059 = vld [vmem:[%s6056 + $0x10] sm:$0xff]
  %v6060 = vld [vmem:[%s6056 + $0x18] sm:$0xff]
  %s6061 = scalar_lea.vmem %s8, 30
  %v6062 = vld [vmem:[%s6061] sm:$0x1]
  %v6064 = vlaneseq
  %v6065 = vshrl.u32 %v6064, 7
  %v6066 = vsub.s32 0, %v6065
  %v6067 = vrot.slane %v6062, %v6066
  %v6070 = vsel %vm530, %v6048, 0
  %v6073 = vsel %vm530, %v6049, 0
  %v6076 = vsel %vm530, %v6050, 0
  %v6079 = vsel %vm530, %v6051, 0
  %v6082 = vsel %vm530, %v6052, 0
  %v6085 = vsel %vm530, %v6053, 0
  %v6088 = vsel %vm530, %v6054, 0
  %v6091 = vsel %vm530, %v6055, 0
  %6093 = vmatprep.subr.mxu0 0.0
  %6094 = vmatpush1.msra.mxu0 %v6057
  %6095 = vmatprep.subr.mxu0 0.0
  %6096 = vmatpush1.msra.mxu0 %v6058
  %6097 = vmatprep.subr.mxu0 0.0
  %6098 = vmatpush1.msra.mxu0 %v6059
  %6099 = vmatprep.subr.mxu0 0.0
  %6100 = vmatpush1.msra.mxu0 %v6060
  %6101 = vmatprep.subr.mxu0 0.0
  %6102 = vmatpush1.msra.mxu0 0.0
  %6103 = vmatprep.subr.mxu0 0.0
  %6104 = vmatpush1.msra.mxu0 0.0
  %6105 = vmatprep.subr.mxu0 0.0
  %6106 = vmatpush1.msra.mxu0 0.0
  %6107 = vmatprep.subr.mxu0 0.0
  %6108 = vmatpush1.msra.mxu0 0.0
  %6109 = vmatprep.subr.mxu0 0.0
  %6110 = vmatpush1.msra.mxu0 0.0
  %6111 = vmatprep.subr.mxu0 0.0
  %6112 = vmatpush1.msra.mxu0 0.0
  %6113 = vmatprep.subr.mxu0 0.0
  %6114 = vmatpush1.msra.mxu0 0.0
  %6115 = vmatprep.subr.mxu0 0.0
  %6116 = vmatpush1.msra.mxu0 0.0
  %6117 = vmatprep.subr.mxu0 0.0
  %6118 = vmatpush1.msra.mxu0 0.0
  %6119 = vmatprep.subr.mxu0 0.0
  %6120 = vmatpush1.msra.mxu0 0.0
  %6121 = vmatprep.subr.mxu0 0.0
  %6122 = vmatpush1.msra.mxu0 0.0
  %6123 = vmatprep.subr.mxu0 0.0
  %6124 = vmatpush1.msra.mxu0 0.0
  %6125 = vmatprep.subr.mxu0 0.0
  %6126 = vmatpush1.msra.mxu0 0.0
  %6127 = vmatprep.subr.mxu0 0.0
  %6128 = vmatpush1.msra.mxu0 0.0
  %6129 = vmatprep.subr.mxu0 0.0
  %6130 = vmatpush1.msra.mxu0 0.0
  %6131 = vmatprep.subr.mxu0 0.0
  %6132 = vmatpush1.msra.mxu0 0.0
  %6133 = vmatprep.subr.mxu0 0.0
  %6134 = vmatpush1.msra.mxu0 0.0
  %6135 = vmatprep.subr.mxu0 0.0
  %6136 = vmatpush1.msra.mxu0 0.0
  %6137 = vmatprep.subr.mxu0 0.0
  %6138 = vmatpush1.msra.mxu0 0.0
  %6139 = vmatprep.subr.mxu0 0.0
  %6140 = vmatpush1.msra.mxu0 0.0
  %6141 = vmatprep.subr.mxu0 0.0
  %6142 = vmatpush1.msra.mxu0 0.0
  %6143 = vmatprep.subr.mxu0 0.0
  %6144 = vmatpush1.msra.mxu0 0.0
  %6145 = vmatprep.subr.mxu0 0.0
  %6146 = vmatpush1.msra.mxu0 0.0
  %6147 = vmatprep.subr.mxu0 0.0
  %6148 = vmatpush1.msra.mxu0 0.0
  %6149 = vmatprep.subr.mxu0 0.0
  %6150 = vmatpush1.msra.mxu0 0.0
  %6151 = vmatprep.subr.mxu0 0.0
  %6152 = vmatpush1.msra.mxu0 0.0
  %6153 = vmatprep.subr.mxu0 0.0
  %6154 = vmatpush1.msra.mxu0 0.0
  %6155 = vmatprep.subr.mxu0 0.0
  %6156 = vmatpush1.msra.mxu0 0.0
  %6157 = vmatprep.mubr.f32.mxu0 0.0
  %6158 = vmatmul.mubr.f32.gmra.mrb[0].mxu0 %v6070
  %v6159 = vpop.f32.mrb[0].mxu0
  %v6160 = vadd.f32 %v6067, %v6159
  %v6161 = vpop.f32.mrb[0].mxu0
  %6162 = vmatprep.mubr.f32.mxu0 0.0
  %6163 = vmatmul.mubr.f32.gmra.mrb[0].mxu0 %v6073
  %v6164 = vpop.f32.mrb[0].mxu0
  %v6165 = vadd.f32 %v6067, %v6164
  %v6166 = vpop.f32.mrb[0].mxu0
  %6167 = vmatprep.mubr.f32.mxu0 0.0
  %6168 = vmatmul.mubr.f32.gmra.mrb[0].mxu0 %v6076
  %v6169 = vpop.f32.mrb[0].mxu0
  %v6170 = vadd.f32 %v6067, %v6169
  %v6171 = vpop.f32.mrb[0].mxu0
  %6172 = vmatprep.mubr.f32.mxu0 0.0
  %6173 = vmatmul.mubr.f32.gmra.mrb[0].mxu0 %v6079
  %v6174 = vpop.f32.mrb[0].mxu0
  %v6175 = vadd.f32 %v6067, %v6174
  %v6176 = vpop.f32.mrb[0].mxu0
  %6177 = vmatprep.mubr.f32.mxu0 0.0
  %6178 = vmatmul.mubr.f32.gmra.mrb[0].mxu0 %v6082
  %v6179 = vpop.f32.mrb[0].mxu0
  %v6180 = vadd.f32 %v6067, %v6179
  %v6181 = vpop.f32.mrb[0].mxu0
  %6182 = vmatprep.mubr.f32.mxu0 0.0
  %6183 = vmatmul.mubr.f32.gmra.mrb[0].mxu0 %v6085
  %v6184 = vpop.f32.mrb[0].mxu0
  %v6185 = vadd.f32 %v6067, %v6184
  %v6186 = vpop.f32.mrb[0].mxu0
  %6187 = vmatprep.mubr.f32.mxu0 0.0
  %6188 = vmatmul.mubr.f32.gmra.mrb[0].mxu0 %v6088
  %v6189 = vpop.f32.mrb[0].mxu0
  %v6190 = vadd.f32 %v6067, %v6189
  %v6191 = vpop.f32.mrb[0].mxu0
  %6192 = vmatprep.mubr.f32.mxu0 0.0
  %6193 = vmatmul.mubr.f32.gmra.mrb[0].mxu0 %v6091
  %v6194 = vpop.f32.mrb[0].mxu0
  %v6195 = vadd.f32 %v6067, %v6194
  %v6196 = vpop.f32.mrb[0].mxu0
  %6197 = vdwg.mxu0
  %v6198 = vxor.u32 %v6160, 2147483648
  %v6199 = vxor.u32 %v6165, 2147483648
  %v6200 = vxor.u32 %v6170, 2147483648
  %v6201 = vxor.u32 %v6175, 2147483648
  %v6202 = vxor.u32 %v6180, 2147483648
  %v6203 = vxor.u32 %v6185, 2147483648
  %v6204 = vxor.u32 %v6190, 2147483648
  %v6205 = vxor.u32 %v6195, 2147483648
  %v6206 = vmul.f32 %v6198, 1.442695
  %v6207 = vpow.pop %v6206
  %v6208 = vmul.f32 %v6199, 1.442695
  %v6209 = vpow.pop %v6208
  %v6210 = vmul.f32 %v6200, 1.442695
  %v6211 = vpow.pop %v6210
  %v6212 = vmul.f32 %v6201, 1.442695
  %v6213 = vpow.pop %v6212
  %v6214 = vmul.f32 %v6202, 1.442695
  %v6215 = vpow.pop %v6214
  %v6216 = vmul.f32 %v6203, 1.442695
  %v6217 = vpow.pop %v6216
  %v6218 = vmul.f32 %v6204, 1.442695
  %v6219 = vpow.pop %v6218
  %v6220 = vmul.f32 %v6205, 1.442695
  %v6221 = vpow.pop %v6220
  %v6222 = vadd.f32 %v6207, 1.0
  %v6223 = vadd.f32 %v6209, 1.0
  %v6224 = vadd.f32 %v6211, 1.0
  %v6225 = vadd.f32 %v6213, 1.0
  %v6226 = vadd.f32 %v6215, 1.0
  %v6227 = vadd.f32 %v6217, 1.0
  %v6228 = vadd.f32 %v6219, 1.0
  %v6229 = vadd.f32 %v6221, 1.0
  %v6230 = vrcp.pop %v6222
  %v6231 = vmul.f32 1.0, %v6230
  %v6232 = vrcp.pop %v6223
  %v6233 = vmul.f32 1.0, %v6232
  %v6234 = vrcp.pop %v6224
  %v6235 = vmul.f32 1.0, %v6234
  %v6236 = vrcp.pop %v6225
  %v6237 = vmul.f32 1.0, %v6236
  %v6238 = vrcp.pop %v6226
  %v6239 = vmul.f32 1.0, %v6238
  %v6240 = vrcp.pop %v6227
  %v6241 = vmul.f32 1.0, %v6240
  %v6242 = vrcp.pop %v6228
  %v6243 = vmul.f32 1.0, %v6242
  %v6244 = vrcp.pop %v6229
  %v6245 = vmul.f32 1.0, %v6244
  %v6246 = vmul.f32 %v6160, %v6231
  %v6247 = vmul.f32 %v6165, %v6233
  %v6248 = vmul.f32 %v6170, %v6235
  %v6249 = vmul.f32 %v6175, %v6237
  %v6250 = vmul.f32 %v6180, %v6239
  %v6251 = vmul.f32 %v6185, %v6241
  %v6252 = vmul.f32 %v6190, %v6243
  %v6253 = vmul.f32 %v6195, %v6245
  %s6254 = scalar_lea.vmem %s7, 1216
  %v6255 = vld [vmem:[%s6254] sm:$0xff]
  %v6256 = vld [vmem:[%s6254 + $0x8] sm:$0xff]
  %v6257 = vld [vmem:[%s6254 + $0x10] sm:$0xff]
  %v6258 = vld [vmem:[%s6254 + $0x18] sm:$0xff]
  %s6259 = scalar_lea.vmem %s8, 31
  %v6260 = vld [vmem:[%s6259] sm:$0x1]
  %v6262 = vlaneseq
  %v6263 = vshrl.u32 %v6262, 7
  %v6264 = vsub.s32 0, %v6263
  %v6265 = vrot.slane %v6260, %v6264
  %v6268 = vsel %vm530, %v6246, 0
  %v6271 = vsel %vm530, %v6247, 0
  %v6274 = vsel %vm530, %v6248, 0
  %v6277 = vsel %vm530, %v6249, 0
  %v6280 = vsel %vm530, %v6250, 0
  %v6283 = vsel %vm530, %v6251, 0
  %v6286 = vsel %vm530, %v6252, 0
  %v6289 = vsel %vm530, %v6253, 0
  %6291 = vmatprep.subr.mxu0 0.0
  %6292 = vmatpush1.msra.mxu0 %v6255
  %6293 = vmatprep.subr.mxu0 0.0
  %6294 = vmatpush1.msra.mxu0 %v6256
  %6295 = vmatprep.subr.mxu0 0.0
  %6296 = vmatpush1.msra.mxu0 %v6257
  %6297 = vmatprep.subr.mxu0 0.0
  %6298 = vmatpush1.msra.mxu0 %v6258
  %6299 = vmatprep.subr.mxu0 0.0
  %6300 = vmatpush1.msra.mxu0 0.0
  %6301 = vmatprep.subr.mxu0 0.0
  %6302 = vmatpush1.msra.mxu0 0.0
  %6303 = vmatprep.subr.mxu0 0.0
  %6304 = vmatpush1.msra.mxu0 0.0
  %6305 = vmatprep.subr.mxu0 0.0
  %6306 = vmatpush1.msra.mxu0 0.0
  %6307 = vmatprep.subr.mxu0 0.0
  %6308 = vmatpush1.msra.mxu0 0.0
  %6309 = vmatprep.subr.mxu0 0.0
  %6310 = vmatpush1.msra.mxu0 0.0
  %6311 = vmatprep.subr.mxu0 0.0
  %6312 = vmatpush1.msra.mxu0 0.0
  %6313 = vmatprep.subr.mxu0 0.0
  %6314 = vmatpush1.msra.mxu0 0.0
  %6315 = vmatprep.subr.mxu0 0.0
  %6316 = vmatpush1.msra.mxu0 0.0
  %6317 = vmatprep.subr.mxu0 0.0
  %6318 = vmatpush1.msra.mxu0 0.0
  %6319 = vmatprep.subr.mxu0 0.0
  %6320 = vmatpush1.msra.mxu0 0.0
  %6321 = vmatprep.subr.mxu0 0.0
  %6322 = vmatpush1.msra.mxu0 0.0
  %6323 = vmatprep.subr.mxu0 0.0
  %6324 = vmatpush1.msra.mxu0 0.0
  %6325 = vmatprep.subr.mxu0 0.0
  %6326 = vmatpush1.msra.mxu0 0.0
  %6327 = vmatprep.subr.mxu0 0.0
  %6328 = vmatpush1.msra.mxu0 0.0
  %6329 = vmatprep.subr.mxu0 0.0
  %6330 = vmatpush1.msra.mxu0 0.0
  %6331 = vmatprep.subr.mxu0 0.0
  %6332 = vmatpush1.msra.mxu0 0.0
  %6333 = vmatprep.subr.mxu0 0.0
  %6334 = vmatpush1.msra.mxu0 0.0
  %6335 = vmatprep.subr.mxu0 0.0
  %6336 = vmatpush1.msra.mxu0 0.0
  %6337 = vmatprep.subr.mxu0 0.0
  %6338 = vmatpush1.msra.mxu0 0.0
  %6339 = vmatprep.subr.mxu0 0.0
  %6340 = vmatpush1.msra.mxu0 0.0
  %6341 = vmatprep.subr.mxu0 0.0
  %6342 = vmatpush1.msra.mxu0 0.0
  %6343 = vmatprep.subr.mxu0 0.0
  %6344 = vmatpush1.msra.mxu0 0.0
  %6345 = vmatprep.subr.mxu0 0.0
  %6346 = vmatpush1.msra.mxu0 0.0
  %6347 = vmatprep.subr.mxu0 0.0
  %6348 = vmatpush1.msra.mxu0 0.0
  %6349 = vmatprep.subr.mxu0 0.0
  %6350 = vmatpush1.msra.mxu0 0.0
  %6351 = vmatprep.subr.mxu0 0.0
  %6352 = vmatpush1.msra.mxu0 0.0
  %6353 = vmatprep.subr.mxu0 0.0
  %6354 = vmatpush1.msra.mxu0 0.0
  %6355 = vmatprep.mubr.f32.mxu0 0.0
  %6356 = vmatmul.mubr.f32.gmra.mrb[0].mxu0 %v6268
  %v6357 = vpop.f32.mrb[0].mxu0
  %v6358 = vadd.f32 %v6265, %v6357
  %v6359 = vpop.f32.mrb[0].mxu0
  %6360 = vmatprep.mubr.f32.mxu0 0.0
  %6361 = vmatmul.mubr.f32.gmra.mrb[0].mxu0 %v6271
  %v6362 = vpop.f32.mrb[0].mxu0
  %v6363 = vadd.f32 %v6265, %v6362
  %v6364 = vpop.f32.mrb[0].mxu0
  %6365 = vmatprep.mubr.f32.mxu0 0.0
  %6366 = vmatmul.mubr.f32.gmra.mrb[0].mxu0 %v6274
  %v6367 = vpop.f32.mrb[0].mxu0
  %v6368 = vadd.f32 %v6265, %v6367
  %v6369 = vpop.f32.mrb[0].mxu0
  %6370 = vmatprep.mubr.f32.mxu0 0.0
  %6371 = vmatmul.mubr.f32.gmra.mrb[0].mxu0 %v6277
  %v6372 = vpop.f32.mrb[0].mxu0
  %v6373 = vadd.f32 %v6265, %v6372
  %v6374 = vpop.f32.mrb[0].mxu0
  %6375 = vmatprep.mubr.f32.mxu0 0.0
  %6376 = vmatmul.mubr.f32.gmra.mrb[0].mxu0 %v6280
  %v6377 = vpop.f32.mrb[0].mxu0
  %v6378 = vadd.f32 %v6265, %v6377
  %v6379 = vpop.f32.mrb[0].mxu0
  %6380 = vmatprep.mubr.f32.mxu0 0.0
  %6381 = vmatmul.mubr.f32.gmra.mrb[0].mxu0 %v6283
  %v6382 = vpop.f32.mrb[0].mxu0
  %v6383 = vadd.f32 %v6265, %v6382
  %v6384 = vpop.f32.mrb[0].mxu0
  %6385 = vmatprep.mubr.f32.mxu0 0.0
  %6386 = vmatmul.mubr.f32.gmra.mrb[0].mxu0 %v6286
  %v6387 = vpop.f32.mrb[0].mxu0
  %v6388 = vadd.f32 %v6265, %v6387
  %v6389 = vpop.f32.mrb[0].mxu0
  %6390 = vmatprep.mubr.f32.mxu0 0.0
  %6391 = vmatmul.mubr.f32.gmra.mrb[0].mxu0 %v6289
  %v6392 = vpop.f32.mrb[0].mxu0
  %v6393 = vadd.f32 %v6265, %v6392
  %v6394 = vpop.f32.mrb[0].mxu0
  %6395 = vdwg.mxu0
  %v6396 = vxor.u32 %v6358, 2147483648
  %v6397 = vxor.u32 %v6363, 2147483648
  %v6398 = vxor.u32 %v6368, 2147483648
  %v6399 = vxor.u32 %v6373, 2147483648
  %v6400 = vxor.u32 %v6378, 2147483648
  %v6401 = vxor.u32 %v6383, 2147483648
  %v6402 = vxor.u32 %v6388, 2147483648
  %v6403 = vxor.u32 %v6393, 2147483648
  %v6404 = vmul.f32 %v6396, 1.442695
  %v6405 = vpow.pop %v6404
  %v6406 = vmul.f32 %v6397, 1.442695
  %v6407 = vpow.pop %v6406
  %v6408 = vmul.f32 %v6398, 1.442695
  %v6409 = vpow.pop %v6408
  %v6410 = vmul.f32 %v6399, 1.442695
  %v6411 = vpow.pop %v6410
  %v6412 = vmul.f32 %v6400, 1.442695
  %v6413 = vpow.pop %v6412
  %v6414 = vmul.f32 %v6401, 1.442695
  %v6415 = vpow.pop %v6414
  %v6416 = vmul.f32 %v6402, 1.442695
  %v6417 = vpow.pop %v6416
  %v6418 = vmul.f32 %v6403, 1.442695
  %v6419 = vpow.pop %v6418
  %v6420 = vadd.f32 %v6405, 1.0
  %v6421 = vadd.f32 %v6407, 1.0
  %v6422 = vadd.f32 %v6409, 1.0
  %v6423 = vadd.f32 %v6411, 1.0
  %v6424 = vadd.f32 %v6413, 1.0
  %v6425 = vadd.f32 %v6415, 1.0
  %v6426 = vadd.f32 %v6417, 1.0
  %v6427 = vadd.f32 %v6419, 1.0
  %v6428 = vrcp.pop %v6420
  %v6429 = vmul.f32 1.0, %v6428
  %v6430 = vrcp.pop %v6421
  %v6431 = vmul.f32 1.0, %v6430
  %v6432 = vrcp.pop %v6422
  %v6433 = vmul.f32 1.0, %v6432
  %v6434 = vrcp.pop %v6423
  %v6435 = vmul.f32 1.0, %v6434
  %v6436 = vrcp.pop %v6424
  %v6437 = vmul.f32 1.0, %v6436
  %v6438 = vrcp.pop %v6425
  %v6439 = vmul.f32 1.0, %v6438
  %v6440 = vrcp.pop %v6426
  %v6441 = vmul.f32 1.0, %v6440
  %v6442 = vrcp.pop %v6427
  %v6443 = vmul.f32 1.0, %v6442
  %v6444 = vmul.f32 %v6358, %v6429
  %v6445 = vmul.f32 %v6363, %v6431
  %v6446 = vmul.f32 %v6368, %v6433
  %v6447 = vmul.f32 %v6373, %v6435
  %v6448 = vmul.f32 %v6378, %v6437
  %v6449 = vmul.f32 %v6383, %v6439
  %v6450 = vmul.f32 %v6388, %v6441
  %v6451 = vmul.f32 %v6393, %v6443
  %v6452 = vadd.f32 %v6048, %v6444
  %v6453 = vadd.f32 %v6049, %v6445
  %v6454 = vadd.f32 %v6050, %v6446
  %v6455 = vadd.f32 %v6051, %v6447
  %v6456 = vadd.f32 %v6052, %v6448
  %v6457 = vadd.f32 %v6053, %v6449
  %v6458 = vadd.f32 %v6054, %v6450
  %v6459 = vadd.f32 %v6055, %v6451
  %s6460 = scalar_lea.vmem %s9, 24
  %v6461 = vld [vmem:[%s6460] sm:$0xff]
  %6462 = vmatprep.subr.mxu0 0.0
  %6463 = vmatpush1.msra.mxu0 %v6461
  %6464 = vmatprep.subr.mxu0 0.0
  %6465 = vmatpush1.msra.mxu0 0.0
  %6466 = vmatprep.subr.mxu0 0.0
  %6467 = vmatpush1.msra.mxu0 0.0
  %6468 = vmatprep.subr.mxu0 0.0
  %6469 = vmatpush1.msra.mxu0 0.0
  %6470 = vmatprep.subr.mxu0 0.0
  %6471 = vmatpush1.msra.mxu0 0.0
  %6472 = vmatprep.subr.mxu0 0.0
  %6473 = vmatpush1.msra.mxu0 0.0
  %6474 = vmatprep.subr.mxu0 0.0
  %6475 = vmatpush1.msra.mxu0 0.0
  %6476 = vmatprep.subr.mxu0 0.0
  %6477 = vmatpush1.msra.mxu0 0.0
  %6478 = vmatprep.subr.mxu0 0.0
  %6479 = vmatpush1.msra.mxu0 0.0
  %6480 = vmatprep.subr.mxu0 0.0
  %6481 = vmatpush1.msra.mxu0 0.0
  %6482 = vmatprep.subr.mxu0 0.0
  %6483 = vmatpush1.msra.mxu0 0.0
  %6484 = vmatprep.subr.mxu0 0.0
  %6485 = vmatpush1.msra.mxu0 0.0
  %6486 = vmatprep.subr.mxu0 0.0
  %6487 = vmatpush1.msra.mxu0 0.0
  %6488 = vmatprep.subr.mxu0 0.0
  %6489 = vmatpush1.msra.mxu0 0.0
  %6490 = vmatprep.subr.mxu0 0.0
  %6491 = vmatpush1.msra.mxu0 0.0
  %6492 = vmatprep.subr.mxu0 0.0
  %6493 = vmatpush1.msra.mxu0 0.0
  %6494 = vmatprep.subr.mxu0 0.0
  %6495 = vmatpush1.msra.mxu0 0.0
  %6496 = vmatprep.subr.mxu0 0.0
  %6497 = vmatpush1.msra.mxu0 0.0
  %6498 = vmatprep.subr.mxu0 0.0
  %6499 = vmatpush1.msra.mxu0 0.0
  %6500 = vmatprep.subr.mxu0 0.0
  %6501 = vmatpush1.msra.mxu0 0.0
  %6502 = vmatprep.subr.mxu0 0.0
  %6503 = vmatpush1.msra.mxu0 0.0
  %6504 = vmatprep.subr.mxu0 0.0
  %6505 = vmatpush1.msra.mxu0 0.0
  %6506 = vmatprep.subr.mxu0 0.0
  %6507 = vmatpush1.msra.mxu0 0.0
  %6508 = vmatprep.subr.mxu0 0.0
  %6509 = vmatpush1.msra.mxu0 0.0
  %6510 = vmatprep.subr.mxu0 0.0
  %6511 = vmatpush1.msra.mxu0 0.0
  %6512 = vmatprep.subr.mxu0 0.0
  %6513 = vmatpush1.msra.mxu0 0.0
  %6514 = vmatprep.subr.mxu0 0.0
  %6515 = vmatpush1.msra.mxu0 0.0
  %6516 = vmatprep.subr.mxu0 0.0
  %6517 = vmatpush1.msra.mxu0 0.0
  %6518 = vmatprep.subr.mxu0 0.0
  %6519 = vmatpush1.msra.mxu0 0.0
  %6520 = vmatprep.subr.mxu0 0.0
  %6521 = vmatpush1.msra.mxu0 0.0
  %6522 = vmatprep.subr.mxu0 0.0
  %6523 = vmatpush1.msra.mxu0 0.0
  %6524 = vmatprep.subr.mxu0 0.0
  %6525 = vmatpush1.msra.mxu0 0.0
  %6526 = vmatprep.mubr.f32.mxu0 0.0
  %6527 = vmatmul.mubr.f32.gmra.mrb[0].mxu0 %v63
  %v6528 = vpop.f32.mrb[0].mxu0
  %v6529 = vadd.f32 0.0, %v6528
  %v6530 = vpop.f32.mrb[0].mxu0
  %6531 = vmatprep.mubr.f32.mxu0 0.0
  %6532 = vmatmul.mubr.f32.gmra.mrb[0].mxu0 %v66
  %v6533 = vpop.f32.mrb[0].mxu0
  %v6534 = vadd.f32 0.0, %v6533
  %v6535 = vpop.f32.mrb[0].mxu0
  %6536 = vmatprep.mubr.f32.mxu0 0.0
  %6537 = vmatmul.mubr.f32.gmra.mrb[0].mxu0 %v69
  %v6538 = vpop.f32.mrb[0].mxu0
  %v6539 = vadd.f32 0.0, %v6538
  %v6540 = vpop.f32.mrb[0].mxu0
  %6541 = vmatprep.mubr.f32.mxu0 0.0
  %6542 = vmatmul.mubr.f32.gmra.mrb[0].mxu0 %v72
  %v6543 = vpop.f32.mrb[0].mxu0
  %v6544 = vadd.f32 0.0, %v6543
  %v6545 = vpop.f32.mrb[0].mxu0
  %6546 = vmatprep.mubr.f32.mxu0 0.0
  %6547 = vmatmul.mubr.f32.gmra.mrb[0].mxu0 %v75
  %v6548 = vpop.f32.mrb[0].mxu0
  %v6549 = vadd.f32 0.0, %v6548
  %v6550 = vpop.f32.mrb[0].mxu0
  %6551 = vmatprep.mubr.f32.mxu0 0.0
  %6552 = vmatmul.mubr.f32.gmra.mrb[0].mxu0 %v78
  %v6553 = vpop.f32.mrb[0].mxu0
  %v6554 = vadd.f32 0.0, %v6553
  %v6555 = vpop.f32.mrb[0].mxu0
  %6556 = vmatprep.mubr.f32.mxu0 0.0
  %6557 = vmatmul.mubr.f32.gmra.mrb[0].mxu0 %v81
  %v6558 = vpop.f32.mrb[0].mxu0
  %v6559 = vadd.f32 0.0, %v6558
  %v6560 = vpop.f32.mrb[0].mxu0
  %6561 = vmatprep.mubr.f32.mxu0 0.0
  %6562 = vmatmul.mubr.f32.gmra.mrb[0].mxu0 %v84
  %v6563 = vpop.f32.mrb[0].mxu0
  %v6564 = vadd.f32 0.0, %v6563
  %v6565 = vpop.f32.mrb[0].mxu0
  %6566 = vdwg.mxu0
  %v6567 = vmul.f32 %v6529, %v6452
  %v6568 = vmul.f32 %v6534, %v6453
  %v6569 = vmul.f32 %v6539, %v6454
  %v6570 = vmul.f32 %v6544, %v6455
  %v6571 = vmul.f32 %v6549, %v6456
  %v6572 = vmul.f32 %v6554, %v6457
  %v6573 = vmul.f32 %v6559, %v6458
  %v6574 = vmul.f32 %v6564, %v6459
  %6575 = vmatprep.subr.mxu0 0.0
  %6576 = vmatpush1.msra.mxu0 %v6567
  %6577 = vmatprep.subr.mxu0 0.0
  %6578 = vmatpush1.msra.mxu0 %v6568
  %6579 = vmatprep.subr.mxu0 0.0
  %6580 = vmatpush1.msra.mxu0 %v6569
  %6581 = vmatprep.subr.mxu0 0.0
  %6582 = vmatpush1.msra.mxu0 %v6570
  %6583 = vmatprep.subr.mxu0 0.0
  %6584 = vmatpush1.msra.mxu0 %v6571
  %6585 = vmatprep.subr.mxu0 0.0
  %6586 = vmatpush1.msra.mxu0 %v6572
  %6587 = vmatprep.subr.mxu0 0.0
  %6588 = vmatpush1.msra.mxu0 %v6573
  %6589 = vmatprep.subr.mxu0 0.0
  %6590 = vmatpush1.msra.mxu0 %v6574
  %6591 = vmatprep.subr.mxu0 0.0
  %6592 = vmatpush1.msra.mxu0 0.0
  %6593 = vmatprep.subr.mxu0 0.0
  %6594 = vmatpush1.msra.mxu0 0.0
  %6595 = vmatprep.subr.mxu0 0.0
  %6596 = vmatpush1.msra.mxu0 0.0
  %6597 = vmatprep.subr.mxu0 0.0
  %6598 = vmatpush1.msra.mxu0 0.0
  %6599 = vmatprep.subr.mxu0 0.0
  %6600 = vmatpush1.msra.mxu0 0.0
  %6601 = vmatprep.subr.mxu0 0.0
  %6602 = vmatpush1.msra.mxu0 0.0
  %6603 = vmatprep.subr.mxu0 0.0
  %6604 = vmatpush1.msra.mxu0 0.0
  %6605 = vmatprep.subr.mxu0 0.0
  %6606 = vmatpush1.msra.mxu0 0.0
  %6607 = vmatprep.subr.mxu0 0.0
  %6608 = vmatpush1.msra.mxu0 0.0
  %6609 = vmatprep.subr.mxu0 0.0
  %6610 = vmatpush1.msra.mxu0 0.0
  %6611 = vmatprep.subr.mxu0 0.0
  %6612 = vmatpush1.msra.mxu0 0.0
  %6613 = vmatprep.subr.mxu0 0.0
  %6614 = vmatpush1.msra.mxu0 0.0
  %6615 = vmatprep.subr.mxu0 0.0
  %6616 = vmatpush1.msra.mxu0 0.0
  %6617 = vmatprep.subr.mxu0 0.0
  %6618 = vmatpush1.msra.mxu0 0.0
  %6619 = vmatprep.subr.mxu0 0.0
  %6620 = vmatpush1.msra.mxu0 0.0
  %6621 = vmatprep.subr.mxu0 0.0
  %6622 = vmatpush1.msra.mxu0 0.0
  %6623 = vmatprep.subr.mxu0 0.0
  %6624 = vmatpush1.msra.mxu0 0.0
  %6625 = vmatprep.subr.mxu0 0.0
  %6626 = vmatpush1.msra.mxu0 0.0
  %6627 = vmatprep.subr.mxu0 0.0
  %6628 = vmatpush1.msra.mxu0 0.0
  %6629 = vmatprep.subr.mxu0 0.0
  %6630 = vmatpush1.msra.mxu0 0.0
  %6631 = vmatprep.subr.mxu0 0.0
  %6632 = vmatpush1.msra.mxu0 0.0
  %6633 = vmatprep.subr.mxu0 0.0
  %6634 = vmatpush1.msra.mxu0 0.0
  %6635 = vmatprep.subr.mxu0 0.0
  %6636 = vmatpush1.msra.mxu0 0.0
  %6637 = vmatprep.subr.mxu0 0.0
  %6638 = vmatpush1.msra.mxu0 0.0
  %6639 = vmatprep.mubr.f32.mxu0 0.0
  %6640 = vmatmul.mubr.f32.gmra.mrb[0].mxu0 %v1120
  %v6641 = vpop.f32.mrb[0].mxu0
  %v6642 = vadd.f32 0.0, %v6641
  %v6643 = vpop.f32.mrb[0].mxu0
  %6644 = vdwg.mxu0
  %s6645 = scalar_lea.vmem %s7, 352
  %v6646 = vld [vmem:[%s6645] sm:$0xff]
  %v6647 = vld [vmem:[%s6645 + $0x8] sm:$0xff]
  %v6648 = vld [vmem:[%s6645 + $0x10] sm:$0xff]
  %v6649 = vld [vmem:[%s6645 + $0x18] sm:$0xff]
  %s6650 = scalar_lea.vmem %s8, 8
  %v6651 = vld [vmem:[%s6650] sm:$0x1]
  %v6653 = vlaneseq
  %v6654 = vshrl.u32 %v6653, 7
  %v6655 = vsub.s32 0, %v6654
  %v6656 = vrot.slane %v6651, %v6655
  %v6659 = vsel %vm530, %v6642, 0
  %6661 = vmatprep.subr.mxu0 0.0
  %6662 = vmatpush1.msra.mxu0 %v6646
  %6663 = vmatprep.subr.mxu0 0.0
  %6664 = vmatpush1.msra.mxu0 %v6647
  %6665 = vmatprep.subr.mxu0 0.0
  %6666 = vmatpush1.msra.mxu0 %v6648
  %6667 = vmatprep.subr.mxu0 0.0
  %6668 = vmatpush1.msra.mxu0 %v6649
  %6669 = vmatprep.subr.mxu0 0.0
  %6670 = vmatpush1.msra.mxu0 0.0
  %6671 = vmatprep.subr.mxu0 0.0
  %6672 = vmatpush1.msra.mxu0 0.0
  %6673 = vmatprep.subr.mxu0 0.0
  %6674 = vmatpush1.msra.mxu0 0.0
  %6675 = vmatprep.subr.mxu0 0.0
  %6676 = vmatpush1.msra.mxu0 0.0
  %6677 = vmatprep.subr.mxu0 0.0
  %6678 = vmatpush1.msra.mxu0 0.0
  %6679 = vmatprep.subr.mxu0 0.0
  %6680 = vmatpush1.msra.mxu0 0.0
  %6681 = vmatprep.subr.mxu0 0.0
  %6682 = vmatpush1.msra.mxu0 0.0
  %6683 = vmatprep.subr.mxu0 0.0
  %6684 = vmatpush1.msra.mxu0 0.0
  %6685 = vmatprep.subr.mxu0 0.0
  %6686 = vmatpush1.msra.mxu0 0.0
  %6687 = vmatprep.subr.mxu0 0.0
  %6688 = vmatpush1.msra.mxu0 0.0
  %6689 = vmatprep.subr.mxu0 0.0
  %6690 = vmatpush1.msra.mxu0 0.0
  %6691 = vmatprep.subr.mxu0 0.0
  %6692 = vmatpush1.msra.mxu0 0.0
  %6693 = vmatprep.subr.mxu0 0.0
  %6694 = vmatpush1.msra.mxu0 0.0
  %6695 = vmatprep.subr.mxu0 0.0
  %6696 = vmatpush1.msra.mxu0 0.0
  %6697 = vmatprep.subr.mxu0 0.0
  %6698 = vmatpush1.msra.mxu0 0.0
  %6699 = vmatprep.subr.mxu0 0.0
  %6700 = vmatpush1.msra.mxu0 0.0
  %6701 = vmatprep.subr.mxu0 0.0
  %6702 = vmatpush1.msra.mxu0 0.0
  %6703 = vmatprep.subr.mxu0 0.0
  %6704 = vmatpush1.msra.mxu0 0.0
  %6705 = vmatprep.subr.mxu0 0.0
  %6706 = vmatpush1.msra.mxu0 0.0
  %6707 = vmatprep.subr.mxu0 0.0
  %6708 = vmatpush1.msra.mxu0 0.0
  %6709 = vmatprep.subr.mxu0 0.0
  %6710 = vmatpush1.msra.mxu0 0.0
  %6711 = vmatprep.subr.mxu0 0.0
  %6712 = vmatpush1.msra.mxu0 0.0
  %6713 = vmatprep.subr.mxu0 0.0
  %6714 = vmatpush1.msra.mxu0 0.0
  %6715 = vmatprep.subr.mxu0 0.0
  %6716 = vmatpush1.msra.mxu0 0.0
  %6717 = vmatprep.subr.mxu0 0.0
  %6718 = vmatpush1.msra.mxu0 0.0
  %6719 = vmatprep.subr.mxu0 0.0
  %6720 = vmatpush1.msra.mxu0 0.0
  %6721 = vmatprep.subr.mxu0 0.0
  %6722 = vmatpush1.msra.mxu0 0.0
  %6723 = vmatprep.subr.mxu0 0.0
  %6724 = vmatpush1.msra.mxu0 0.0
  %6725 = vmatprep.mubr.f32.mxu0 0.0
  %6726 = vmatmul.mubr.f32.gmra.mrb[0].mxu0 %v6659
  %v6727 = vpop.f32.mrb[0].mxu0
  %v6728 = vadd.f32 %v6656, %v6727
  %v6729 = vpop.f32.mrb[0].mxu0
  %6730 = vdwg.mxu0
  %v6731 = vxor.u32 %v6728, 2147483648
  %v6732 = vmul.f32 %v6731, 1.442695
  %v6733 = vpow.pop %v6732
  %v6734 = vadd.f32 %v6733, 1.0
  %v6735 = vrcp.pop %v6734
  %v6736 = vmul.f32 1.0, %v6735
  %v6737 = vmul.f32 %v6728, %v6736
  %s6738 = scalar_lea.vmem %s7, 384
  %v6739 = vld [vmem:[%s6738] sm:$0xff]
  %v6740 = vld [vmem:[%s6738 + $0x8] sm:$0xff]
  %v6741 = vld [vmem:[%s6738 + $0x10] sm:$0xff]
  %v6742 = vld [vmem:[%s6738 + $0x18] sm:$0xff]
  %s6743 = scalar_lea.vmem %s8, 9
  %v6744 = vld [vmem:[%s6743] sm:$0x1]
  %v6746 = vlaneseq
  %v6747 = vshrl.u32 %v6746, 7
  %v6748 = vsub.s32 0, %v6747
  %v6749 = vrot.slane %v6744, %v6748
  %v6752 = vsel %vm530, %v6737, 0
  %6754 = vmatprep.subr.mxu0 0.0
  %6755 = vmatpush1.msra.mxu0 %v6739
  %6756 = vmatprep.subr.mxu0 0.0
  %6757 = vmatpush1.msra.mxu0 %v6740
  %6758 = vmatprep.subr.mxu0 0.0
  %6759 = vmatpush1.msra.mxu0 %v6741
  %6760 = vmatprep.subr.mxu0 0.0
  %6761 = vmatpush1.msra.mxu0 %v6742
  %6762 = vmatprep.subr.mxu0 0.0
  %6763 = vmatpush1.msra.mxu0 0.0
  %6764 = vmatprep.subr.mxu0 0.0
  %6765 = vmatpush1.msra.mxu0 0.0
  %6766 = vmatprep.subr.mxu0 0.0
  %6767 = vmatpush1.msra.mxu0 0.0
  %6768 = vmatprep.subr.mxu0 0.0
  %6769 = vmatpush1.msra.mxu0 0.0
  %6770 = vmatprep.subr.mxu0 0.0
  %6771 = vmatpush1.msra.mxu0 0.0
  %6772 = vmatprep.subr.mxu0 0.0
  %6773 = vmatpush1.msra.mxu0 0.0
  %6774 = vmatprep.subr.mxu0 0.0
  %6775 = vmatpush1.msra.mxu0 0.0
  %6776 = vmatprep.subr.mxu0 0.0
  %6777 = vmatpush1.msra.mxu0 0.0
  %6778 = vmatprep.subr.mxu0 0.0
  %6779 = vmatpush1.msra.mxu0 0.0
  %6780 = vmatprep.subr.mxu0 0.0
  %6781 = vmatpush1.msra.mxu0 0.0
  %6782 = vmatprep.subr.mxu0 0.0
  %6783 = vmatpush1.msra.mxu0 0.0
  %6784 = vmatprep.subr.mxu0 0.0
  %6785 = vmatpush1.msra.mxu0 0.0
  %6786 = vmatprep.subr.mxu0 0.0
  %6787 = vmatpush1.msra.mxu0 0.0
  %6788 = vmatprep.subr.mxu0 0.0
  %6789 = vmatpush1.msra.mxu0 0.0
  %6790 = vmatprep.subr.mxu0 0.0
  %6791 = vmatpush1.msra.mxu0 0.0
  %6792 = vmatprep.subr.mxu0 0.0
  %6793 = vmatpush1.msra.mxu0 0.0
  %6794 = vmatprep.subr.mxu0 0.0
  %6795 = vmatpush1.msra.mxu0 0.0
  %6796 = vmatprep.subr.mxu0 0.0
  %6797 = vmatpush1.msra.mxu0 0.0
  %6798 = vmatprep.subr.mxu0 0.0
  %6799 = vmatpush1.msra.mxu0 0.0
  %6800 = vmatprep.subr.mxu0 0.0
  %6801 = vmatpush1.msra.mxu0 0.0
  %6802 = vmatprep.subr.mxu0 0.0
  %6803 = vmatpush1.msra.mxu0 0.0
  %6804 = vmatprep.subr.mxu0 0.0
  %6805 = vmatpush1.msra.mxu0 0.0
  %6806 = vmatprep.subr.mxu0 0.0
  %6807 = vmatpush1.msra.mxu0 0.0
  %6808 = vmatprep.subr.mxu0 0.0
  %6809 = vmatpush1.msra.mxu0 0.0
  %6810 = vmatprep.subr.mxu0 0.0
  %6811 = vmatpush1.msra.mxu0 0.0
  %6812 = vmatprep.subr.mxu0 0.0
  %6813 = vmatpush1.msra.mxu0 0.0
  %6814 = vmatprep.subr.mxu0 0.0
  %6815 = vmatpush1.msra.mxu0 0.0
  %6816 = vmatprep.subr.mxu0 0.0
  %6817 = vmatpush1.msra.mxu0 0.0
  %6818 = vmatprep.mubr.f32.mxu0 0.0
  %6819 = vmatmul.mubr.f32.gmra.mrb[0].mxu0 %v6752
  %v6820 = vpop.f32.mrb[0].mxu0
  %v6821 = vadd.f32 %v6749, %v6820
  %v6822 = vpop.f32.mrb[0].mxu0
  %6823 = vdwg.mxu0
  %v6824 = vxor.u32 %v6821, 2147483648
  %v6825 = vmul.f32 %v6824, 1.442695
  %v6826 = vpow.pop %v6825
  %v6827 = vadd.f32 %v6826, 1.0
  %v6828 = vrcp.pop %v6827
  %v6829 = vmul.f32 1.0, %v6828
  %v6830 = vmul.f32 %v6821, %v6829
  %s6831 = scalar_lea.vmem %s7, 416
  %v6832 = vld [vmem:[%s6831] sm:$0xff]
  %v6833 = vld [vmem:[%s6831 + $0x8] sm:$0xff]
  %v6834 = vld [vmem:[%s6831 + $0x10] sm:$0xff]
  %v6835 = vld [vmem:[%s6831 + $0x18] sm:$0xff]
  %s6836 = scalar_lea.vmem %s8, 10
  %v6837 = vld [vmem:[%s6836] sm:$0x1]
  %v6839 = vlaneseq
  %v6840 = vshrl.u32 %v6839, 7
  %v6841 = vsub.s32 0, %v6840
  %v6842 = vrot.slane %v6837, %v6841
  %v6845 = vsel %vm530, %v6830, 0
  %6847 = vmatprep.subr.mxu0 0.0
  %6848 = vmatpush1.msra.mxu0 %v6832
  %6849 = vmatprep.subr.mxu0 0.0
  %6850 = vmatpush1.msra.mxu0 %v6833
  %6851 = vmatprep.subr.mxu0 0.0
  %6852 = vmatpush1.msra.mxu0 %v6834
  %6853 = vmatprep.subr.mxu0 0.0
  %6854 = vmatpush1.msra.mxu0 %v6835
  %6855 = vmatprep.subr.mxu0 0.0
  %6856 = vmatpush1.msra.mxu0 0.0
  %6857 = vmatprep.subr.mxu0 0.0
  %6858 = vmatpush1.msra.mxu0 0.0
  %6859 = vmatprep.subr.mxu0 0.0
  %6860 = vmatpush1.msra.mxu0 0.0
  %6861 = vmatprep.subr.mxu0 0.0
  %6862 = vmatpush1.msra.mxu0 0.0
  %6863 = vmatprep.subr.mxu0 0.0
  %6864 = vmatpush1.msra.mxu0 0.0
  %6865 = vmatprep.subr.mxu0 0.0
  %6866 = vmatpush1.msra.mxu0 0.0
  %6867 = vmatprep.subr.mxu0 0.0
  %6868 = vmatpush1.msra.mxu0 0.0
  %6869 = vmatprep.subr.mxu0 0.0
  %6870 = vmatpush1.msra.mxu0 0.0
  %6871 = vmatprep.subr.mxu0 0.0
  %6872 = vmatpush1.msra.mxu0 0.0
  %6873 = vmatprep.subr.mxu0 0.0
  %6874 = vmatpush1.msra.mxu0 0.0
  %6875 = vmatprep.subr.mxu0 0.0
  %6876 = vmatpush1.msra.mxu0 0.0
  %6877 = vmatprep.subr.mxu0 0.0
  %6878 = vmatpush1.msra.mxu0 0.0
  %6879 = vmatprep.subr.mxu0 0.0
  %6880 = vmatpush1.msra.mxu0 0.0
  %6881 = vmatprep.subr.mxu0 0.0
  %6882 = vmatpush1.msra.mxu0 0.0
  %6883 = vmatprep.subr.mxu0 0.0
  %6884 = vmatpush1.msra.mxu0 0.0
  %6885 = vmatprep.subr.mxu0 0.0
  %6886 = vmatpush1.msra.mxu0 0.0
  %6887 = vmatprep.subr.mxu0 0.0
  %6888 = vmatpush1.msra.mxu0 0.0
  %6889 = vmatprep.subr.mxu0 0.0
  %6890 = vmatpush1.msra.mxu0 0.0
  %6891 = vmatprep.subr.mxu0 0.0
  %6892 = vmatpush1.msra.mxu0 0.0
  %6893 = vmatprep.subr.mxu0 0.0
  %6894 = vmatpush1.msra.mxu0 0.0
  %6895 = vmatprep.subr.mxu0 0.0
  %6896 = vmatpush1.msra.mxu0 0.0
  %6897 = vmatprep.subr.mxu0 0.0
  %6898 = vmatpush1.msra.mxu0 0.0
  %6899 = vmatprep.subr.mxu0 0.0
  %6900 = vmatpush1.msra.mxu0 0.0
  %6901 = vmatprep.subr.mxu0 0.0
  %6902 = vmatpush1.msra.mxu0 0.0
  %6903 = vmatprep.subr.mxu0 0.0
  %6904 = vmatpush1.msra.mxu0 0.0
  %6905 = vmatprep.subr.mxu0 0.0
  %6906 = vmatpush1.msra.mxu0 0.0
  %6907 = vmatprep.subr.mxu0 0.0
  %6908 = vmatpush1.msra.mxu0 0.0
  %6909 = vmatprep.subr.mxu0 0.0
  %6910 = vmatpush1.msra.mxu0 0.0
  %6911 = vmatprep.mubr.f32.mxu0 0.0
  %6912 = vmatmul.mubr.f32.gmra.mrb[0].mxu0 %v6845
  %v6913 = vpop.f32.mrb[0].mxu0
  %v6914 = vadd.f32 %v6842, %v6913
  %v6915 = vpop.f32.mrb[0].mxu0
  %6916 = vdwg.mxu0
  %v6917 = vxor.u32 %v6914, 2147483648
  %v6918 = vmul.f32 %v6917, 1.442695
  %v6919 = vpow.pop %v6918
  %v6920 = vadd.f32 %v6919, 1.0
  %v6921 = vrcp.pop %v6920
  %v6922 = vmul.f32 1.0, %v6921
  %v6923 = vmul.f32 %v6914, %v6922
  %s6924 = scalar_lea.vmem %s7, 448
  %v6925 = vld [vmem:[%s6924] sm:$0xff]
  %v6926 = vld [vmem:[%s6924 + $0x8] sm:$0xff]
  %v6927 = vld [vmem:[%s6924 + $0x10] sm:$0xff]
  %v6928 = vld [vmem:[%s6924 + $0x18] sm:$0xff]
  %v6930 = vsel %vm530, %v6923, 0
  %6932 = vmatprep.subr.mxu0 0.0
  %6933 = vmatpush1.msra.mxu0 %v6925
  %6934 = vmatprep.subr.mxu0 0.0
  %6935 = vmatpush1.msra.mxu0 %v6926
  %6936 = vmatprep.subr.mxu0 0.0
  %6937 = vmatpush1.msra.mxu0 %v6927
  %6938 = vmatprep.subr.mxu0 0.0
  %6939 = vmatpush1.msra.mxu0 %v6928
  %6940 = vmatprep.subr.mxu0 0.0
  %6941 = vmatpush1.msra.mxu0 0.0
  %6942 = vmatprep.subr.mxu0 0.0
  %6943 = vmatpush1.msra.mxu0 0.0
  %6944 = vmatprep.subr.mxu0 0.0
  %6945 = vmatpush1.msra.mxu0 0.0
  %6946 = vmatprep.subr.mxu0 0.0
  %6947 = vmatpush1.msra.mxu0 0.0
  %6948 = vmatprep.subr.mxu0 0.0
  %6949 = vmatpush1.msra.mxu0 0.0
  %6950 = vmatprep.subr.mxu0 0.0
  %6951 = vmatpush1.msra.mxu0 0.0
  %6952 = vmatprep.subr.mxu0 0.0
  %6953 = vmatpush1.msra.mxu0 0.0
  %6954 = vmatprep.subr.mxu0 0.0
  %6955 = vmatpush1.msra.mxu0 0.0
  %6956 = vmatprep.subr.mxu0 0.0
  %6957 = vmatpush1.msra.mxu0 0.0
  %6958 = vmatprep.subr.mxu0 0.0
  %6959 = vmatpush1.msra.mxu0 0.0
  %6960 = vmatprep.subr.mxu0 0.0
  %6961 = vmatpush1.msra.mxu0 0.0
  %6962 = vmatprep.subr.mxu0 0.0
  %6963 = vmatpush1.msra.mxu0 0.0
  %6964 = vmatprep.subr.mxu0 0.0
  %6965 = vmatpush1.msra.mxu0 0.0
  %6966 = vmatprep.subr.mxu0 0.0
  %6967 = vmatpush1.msra.mxu0 0.0
  %6968 = vmatprep.subr.mxu0 0.0
  %6969 = vmatpush1.msra.mxu0 0.0
  %6970 = vmatprep.subr.mxu0 0.0
  %6971 = vmatpush1.msra.mxu0 0.0
  %6972 = vmatprep.subr.mxu0 0.0
  %6973 = vmatpush1.msra.mxu0 0.0
  %6974 = vmatprep.subr.mxu0 0.0
  %6975 = vmatpush1.msra.mxu0 0.0
  %6976 = vmatprep.subr.mxu0 0.0
  %6977 = vmatpush1.msra.mxu0 0.0
  %6978 = vmatprep.subr.mxu0 0.0
  %6979 = vmatpush1.msra.mxu0 0.0
  %6980 = vmatprep.subr.mxu0 0.0
  %6981 = vmatpush1.msra.mxu0 0.0
  %6982 = vmatprep.subr.mxu0 0.0
  %6983 = vmatpush1.msra.mxu0 0.0
  %6984 = vmatprep.subr.mxu0 0.0
  %6985 = vmatpush1.msra.mxu0 0.0
  %6986 = vmatprep.subr.mxu0 0.0
  %6987 = vmatpush1.msra.mxu0 0.0
  %6988 = vmatprep.subr.mxu0 0.0
  %6989 = vmatpush1.msra.mxu0 0.0
  %6990 = vmatprep.subr.mxu0 0.0
  %6991 = vmatpush1.msra.mxu0 0.0
  %6992 = vmatprep.subr.mxu0 0.0
  %6993 = vmatpush1.msra.mxu0 0.0
  %6994 = vmatprep.subr.mxu0 0.0
  %6995 = vmatpush1.msra.mxu0 0.0
  %6996 = vmatprep.mubr.f32.mxu0 0.0
  %6997 = vmatmul.mubr.f32.gmra.mrb[0].mxu0 %v6930
  %v6998 = vpop.f32.mrb[0].mxu0
  %v6999 = vadd.f32 0.0, %v6998
  %v7000 = vpop.f32.mrb[0].mxu0
  %7001 = vdwg.mxu0
  %v7002 = vadd.f32 %v4272, %v6999
  %s7003 = scalar_lea.vmem %s9, 56
  %v7004 = vld [vmem:[%s7003] sm:$0xff]
  %7005 = vmatprep.subr.mxu0 0.0
  %7006 = vmatpush1.msra.mxu0 %v7004
  %7007 = vmatprep.subr.mxu0 0.0
  %7008 = vmatpush1.msra.mxu0 0.0
  %7009 = vmatprep.subr.mxu0 0.0
  %7010 = vmatpush1.msra.mxu0 0.0
  %7011 = vmatprep.subr.mxu0 0.0
  %7012 = vmatpush1.msra.mxu0 0.0
  %7013 = vmatprep.subr.mxu0 0.0
  %7014 = vmatpush1.msra.mxu0 0.0
  %7015 = vmatprep.subr.mxu0 0.0
  %7016 = vmatpush1.msra.mxu0 0.0
  %7017 = vmatprep.subr.mxu0 0.0
  %7018 = vmatpush1.msra.mxu0 0.0
  %7019 = vmatprep.subr.mxu0 0.0
  %7020 = vmatpush1.msra.mxu0 0.0
  %7021 = vmatprep.subr.mxu0 0.0
  %7022 = vmatpush1.msra.mxu0 0.0
  %7023 = vmatprep.subr.mxu0 0.0
  %7024 = vmatpush1.msra.mxu0 0.0
  %7025 = vmatprep.subr.mxu0 0.0
  %7026 = vmatpush1.msra.mxu0 0.0
  %7027 = vmatprep.subr.mxu0 0.0
  %7028 = vmatpush1.msra.mxu0 0.0
  %7029 = vmatprep.subr.mxu0 0.0
  %7030 = vmatpush1.msra.mxu0 0.0
  %7031 = vmatprep.subr.mxu0 0.0
  %7032 = vmatpush1.msra.mxu0 0.0
  %7033 = vmatprep.subr.mxu0 0.0
  %7034 = vmatpush1.msra.mxu0 0.0
  %7035 = vmatprep.subr.mxu0 0.0
  %7036 = vmatpush1.msra.mxu0 0.0
  %7037 = vmatprep.subr.mxu0 0.0
  %7038 = vmatpush1.msra.mxu0 0.0
  %7039 = vmatprep.subr.mxu0 0.0
  %7040 = vmatpush1.msra.mxu0 0.0
  %7041 = vmatprep.subr.mxu0 0.0
  %7042 = vmatpush1.msra.mxu0 0.0
  %7043 = vmatprep.subr.mxu0 0.0
  %7044 = vmatpush1.msra.mxu0 0.0
  %7045 = vmatprep.subr.mxu0 0.0
  %7046 = vmatpush1.msra.mxu0 0.0
  %7047 = vmatprep.subr.mxu0 0.0
  %7048 = vmatpush1.msra.mxu0 0.0
  %7049 = vmatprep.subr.mxu0 0.0
  %7050 = vmatpush1.msra.mxu0 0.0
  %7051 = vmatprep.subr.mxu0 0.0
  %7052 = vmatpush1.msra.mxu0 0.0
  %7053 = vmatprep.subr.mxu0 0.0
  %7054 = vmatpush1.msra.mxu0 0.0
  %7055 = vmatprep.subr.mxu0 0.0
  %7056 = vmatpush1.msra.mxu0 0.0
  %7057 = vmatprep.subr.mxu0 0.0
  %7058 = vmatpush1.msra.mxu0 0.0
  %7059 = vmatprep.subr.mxu0 0.0
  %7060 = vmatpush1.msra.mxu0 0.0
  %7061 = vmatprep.subr.mxu0 0.0
  %7062 = vmatpush1.msra.mxu0 0.0
  %7063 = vmatprep.subr.mxu0 0.0
  %7064 = vmatpush1.msra.mxu0 0.0
  %7065 = vmatprep.subr.mxu0 0.0
  %7066 = vmatpush1.msra.mxu0 0.0
  %7067 = vmatprep.subr.mxu0 0.0
  %7068 = vmatpush1.msra.mxu0 0.0
  %7069 = vmatprep.mubr.f32.mxu0 0.0
  %7070 = vmatmul.mubr.f32.gmra.mrb[0].mxu0 %v63
  %v7071 = vpop.f32.mrb[0].mxu0
  %v7072 = vadd.f32 0.0, %v7071
  %v7073 = vpop.f32.mrb[0].mxu0
  %7074 = vmatprep.mubr.f32.mxu0 0.0
  %7075 = vmatmul.mubr.f32.gmra.mrb[0].mxu0 %v66
  %v7076 = vpop.f32.mrb[0].mxu0
  %v7077 = vadd.f32 0.0, %v7076
  %v7078 = vpop.f32.mrb[0].mxu0
  %7079 = vmatprep.mubr.f32.mxu0 0.0
  %7080 = vmatmul.mubr.f32.gmra.mrb[0].mxu0 %v69
  %v7081 = vpop.f32.mrb[0].mxu0
  %v7082 = vadd.f32 0.0, %v7081
  %v7083 = vpop.f32.mrb[0].mxu0
  %7084 = vmatprep.mubr.f32.mxu0 0.0
  %7085 = vmatmul.mubr.f32.gmra.mrb[0].mxu0 %v72
  %v7086 = vpop.f32.mrb[0].mxu0
  %v7087 = vadd.f32 0.0, %v7086
  %v7088 = vpop.f32.mrb[0].mxu0
  %7089 = vmatprep.mubr.f32.mxu0 0.0
  %7090 = vmatmul.mubr.f32.gmra.mrb[0].mxu0 %v75
  %v7091 = vpop.f32.mrb[0].mxu0
  %v7092 = vadd.f32 0.0, %v7091
  %v7093 = vpop.f32.mrb[0].mxu0
  %7094 = vmatprep.mubr.f32.mxu0 0.0
  %7095 = vmatmul.mubr.f32.gmra.mrb[0].mxu0 %v78
  %v7096 = vpop.f32.mrb[0].mxu0
  %v7097 = vadd.f32 0.0, %v7096
  %v7098 = vpop.f32.mrb[0].mxu0
  %7099 = vmatprep.mubr.f32.mxu0 0.0
  %7100 = vmatmul.mubr.f32.gmra.mrb[0].mxu0 %v81
  %v7101 = vpop.f32.mrb[0].mxu0
  %v7102 = vadd.f32 0.0, %v7101
  %v7103 = vpop.f32.mrb[0].mxu0
  %7104 = vmatprep.mubr.f32.mxu0 0.0
  %7105 = vmatmul.mubr.f32.gmra.mrb[0].mxu0 %v84
  %v7106 = vpop.f32.mrb[0].mxu0
  %v7107 = vadd.f32 0.0, %v7106
  %v7108 = vpop.f32.mrb[0].mxu0
  %7109 = vdwg.mxu0
  %s7110 = scalar_lea.vmem %s7, 1248
  %v7111 = vld [vmem:[%s7110] sm:$0xff]
  %v7112 = vld [vmem:[%s7110 + $0x8] sm:$0xff]
  %v7113 = vld [vmem:[%s7110 + $0x10] sm:$0xff]
  %v7114 = vld [vmem:[%s7110 + $0x18] sm:$0xff]
  %s7115 = scalar_lea.vmem %s8, 32
  %v7116 = vld [vmem:[%s7115] sm:$0x1]
  %v7118 = vlaneseq
  %v7119 = vshrl.u32 %v7118, 7
  %v7120 = vsub.s32 0, %v7119
  %v7121 = vrot.slane %v7116, %v7120
  %v7124 = vsel %vm530, %v6452, 0
  %v7127 = vsel %vm530, %v6453, 0
  %v7130 = vsel %vm530, %v6454, 0
  %v7133 = vsel %vm530, %v6455, 0
  %v7136 = vsel %vm530, %v6456, 0
  %v7139 = vsel %vm530, %v6457, 0
  %v7142 = vsel %vm530, %v6458, 0
  %v7145 = vsel %vm530, %v6459, 0
  %7147 = vmatprep.subr.mxu0 0.0
  %7148 = vmatpush1.msra.mxu0 %v7111
  %7149 = vmatprep.subr.mxu0 0.0
  %7150 = vmatpush1.msra.mxu0 %v7112
  %7151 = vmatprep.subr.mxu0 0.0
  %7152 = vmatpush1.msra.mxu0 %v7113
  %7153 = vmatprep.subr.mxu0 0.0
  %7154 = vmatpush1.msra.mxu0 %v7114
  %7155 = vmatprep.subr.mxu0 0.0
  %7156 = vmatpush1.msra.mxu0 0.0
  %7157 = vmatprep.subr.mxu0 0.0
  %7158 = vmatpush1.msra.mxu0 0.0
  %7159 = vmatprep.subr.mxu0 0.0
  %7160 = vmatpush1.msra.mxu0 0.0
  %7161 = vmatprep.subr.mxu0 0.0
  %7162 = vmatpush1.msra.mxu0 0.0
  %7163 = vmatprep.subr.mxu0 0.0
  %7164 = vmatpush1.msra.mxu0 0.0
  %7165 = vmatprep.subr.mxu0 0.0
  %7166 = vmatpush1.msra.mxu0 0.0
  %7167 = vmatprep.subr.mxu0 0.0
  %7168 = vmatpush1.msra.mxu0 0.0
  %7169 = vmatprep.subr.mxu0 0.0
  %7170 = vmatpush1.msra.mxu0 0.0
  %7171 = vmatprep.subr.mxu0 0.0
  %7172 = vmatpush1.msra.mxu0 0.0
  %7173 = vmatprep.subr.mxu0 0.0
  %7174 = vmatpush1.msra.mxu0 0.0
  %7175 = vmatprep.subr.mxu0 0.0
  %7176 = vmatpush1.msra.mxu0 0.0
  %7177 = vmatprep.subr.mxu0 0.0
  %7178 = vmatpush1.msra.mxu0 0.0
  %7179 = vmatprep.subr.mxu0 0.0
  %7180 = vmatpush1.msra.mxu0 0.0
  %7181 = vmatprep.subr.mxu0 0.0
  %7182 = vmatpush1.msra.mxu0 0.0
  %7183 = vmatprep.subr.mxu0 0.0
  %7184 = vmatpush1.msra.mxu0 0.0
  %7185 = vmatprep.subr.mxu0 0.0
  %7186 = vmatpush1.msra.mxu0 0.0
  %7187 = vmatprep.subr.mxu0 0.0
  %7188 = vmatpush1.msra.mxu0 0.0
  %7189 = vmatprep.subr.mxu0 0.0
  %7190 = vmatpush1.msra.mxu0 0.0
  %7191 = vmatprep.subr.mxu0 0.0
  %7192 = vmatpush1.msra.mxu0 0.0
  %7193 = vmatprep.subr.mxu0 0.0
  %7194 = vmatpush1.msra.mxu0 0.0
  %7195 = vmatprep.subr.mxu0 0.0
  %7196 = vmatpush1.msra.mxu0 0.0
  %7197 = vmatprep.subr.mxu0 0.0
  %7198 = vmatpush1.msra.mxu0 0.0
  %7199 = vmatprep.subr.mxu0 0.0
  %7200 = vmatpush1.msra.mxu0 0.0
  %7201 = vmatprep.subr.mxu0 0.0
  %7202 = vmatpush1.msra.mxu0 0.0
  %7203 = vmatprep.subr.mxu0 0.0
  %7204 = vmatpush1.msra.mxu0 0.0
  %7205 = vmatprep.subr.mxu0 0.0
  %7206 = vmatpush1.msra.mxu0 0.0
  %7207 = vmatprep.subr.mxu0 0.0
  %7208 = vmatpush1.msra.mxu0 0.0
  %7209 = vmatprep.subr.mxu0 0.0
  %7210 = vmatpush1.msra.mxu0 0.0
  %7211 = vmatprep.mubr.f32.mxu0 0.0
  %7212 = vmatmul.mubr.f32.gmra.mrb[0].mxu0 %v7124
  %v7213 = vpop.f32.mrb[0].mxu0
  %v7214 = vadd.f32 %v7121, %v7213
  %v7215 = vpop.f32.mrb[0].mxu0
  %7216 = vmatprep.mubr.f32.mxu0 0.0
  %7217 = vmatmul.mubr.f32.gmra.mrb[0].mxu0 %v7127
  %v7218 = vpop.f32.mrb[0].mxu0
  %v7219 = vadd.f32 %v7121, %v7218
  %v7220 = vpop.f32.mrb[0].mxu0
  %7221 = vmatprep.mubr.f32.mxu0 0.0
  %7222 = vmatmul.mubr.f32.gmra.mrb[0].mxu0 %v7130
  %v7223 = vpop.f32.mrb[0].mxu0
  %v7224 = vadd.f32 %v7121, %v7223
  %v7225 = vpop.f32.mrb[0].mxu0
  %7226 = vmatprep.mubr.f32.mxu0 0.0
  %7227 = vmatmul.mubr.f32.gmra.mrb[0].mxu0 %v7133
  %v7228 = vpop.f32.mrb[0].mxu0
  %v7229 = vadd.f32 %v7121, %v7228
  %v7230 = vpop.f32.mrb[0].mxu0
  %7231 = vmatprep.mubr.f32.mxu0 0.0
  %7232 = vmatmul.mubr.f32.gmra.mrb[0].mxu0 %v7136
  %v7233 = vpop.f32.mrb[0].mxu0
  %v7234 = vadd.f32 %v7121, %v7233
  %v7235 = vpop.f32.mrb[0].mxu0
  %7236 = vmatprep.mubr.f32.mxu0 0.0
  %7237 = vmatmul.mubr.f32.gmra.mrb[0].mxu0 %v7139
  %v7238 = vpop.f32.mrb[0].mxu0
  %v7239 = vadd.f32 %v7121, %v7238
  %v7240 = vpop.f32.mrb[0].mxu0
  %7241 = vmatprep.mubr.f32.mxu0 0.0
  %7242 = vmatmul.mubr.f32.gmra.mrb[0].mxu0 %v7142
  %v7243 = vpop.f32.mrb[0].mxu0
  %v7244 = vadd.f32 %v7121, %v7243
  %v7245 = vpop.f32.mrb[0].mxu0
  %7246 = vmatprep.mubr.f32.mxu0 0.0
  %7247 = vmatmul.mubr.f32.gmra.mrb[0].mxu0 %v7145
  %v7248 = vpop.f32.mrb[0].mxu0
  %v7249 = vadd.f32 %v7121, %v7248
  %v7250 = vpop.f32.mrb[0].mxu0
  %7251 = vdwg.mxu0
  %v7252 = vxor.u32 %v7214, 2147483648
  %v7253 = vxor.u32 %v7219, 2147483648
  %v7254 = vxor.u32 %v7224, 2147483648
  %v7255 = vxor.u32 %v7229, 2147483648
  %v7256 = vxor.u32 %v7234, 2147483648
  %v7257 = vxor.u32 %v7239, 2147483648
  %v7258 = vxor.u32 %v7244, 2147483648
  %v7259 = vxor.u32 %v7249, 2147483648
  %v7260 = vmul.f32 %v7252, 1.442695
  %v7261 = vpow.pop %v7260
  %v7262 = vmul.f32 %v7253, 1.442695
  %v7263 = vpow.pop %v7262
  %v7264 = vmul.f32 %v7254, 1.442695
  %v7265 = vpow.pop %v7264
  %v7266 = vmul.f32 %v7255, 1.442695
  %v7267 = vpow.pop %v7266
  %v7268 = vmul.f32 %v7256, 1.442695
  %v7269 = vpow.pop %v7268
  %v7270 = vmul.f32 %v7257, 1.442695
  %v7271 = vpow.pop %v7270
  %v7272 = vmul.f32 %v7258, 1.442695
  %v7273 = vpow.pop %v7272
  %v7274 = vmul.f32 %v7259, 1.442695
  %v7275 = vpow.pop %v7274
  %v7276 = vadd.f32 %v7261, 1.0
  %v7277 = vadd.f32 %v7263, 1.0
  %v7278 = vadd.f32 %v7265, 1.0
  %v7279 = vadd.f32 %v7267, 1.0
  %v7280 = vadd.f32 %v7269, 1.0
  %v7281 = vadd.f32 %v7271, 1.0
  %v7282 = vadd.f32 %v7273, 1.0
  %v7283 = vadd.f32 %v7275, 1.0
  %v7284 = vrcp.pop %v7276
  %v7285 = vmul.f32 1.0, %v7284
  %v7286 = vrcp.pop %v7277
  %v7287 = vmul.f32 1.0, %v7286
  %v7288 = vrcp.pop %v7278
  %v7289 = vmul.f32 1.0, %v7288
  %v7290 = vrcp.pop %v7279
  %v7291 = vmul.f32 1.0, %v7290
  %v7292 = vrcp.pop %v7280
  %v7293 = vmul.f32 1.0, %v7292
  %v7294 = vrcp.pop %v7281
  %v7295 = vmul.f32 1.0, %v7294
  %v7296 = vrcp.pop %v7282
  %v7297 = vmul.f32 1.0, %v7296
  %v7298 = vrcp.pop %v7283
  %v7299 = vmul.f32 1.0, %v7298
  %v7300 = vmul.f32 %v7214, %v7285
  %v7301 = vmul.f32 %v7219, %v7287
  %v7302 = vmul.f32 %v7224, %v7289
  %v7303 = vmul.f32 %v7229, %v7291
  %v7304 = vmul.f32 %v7234, %v7293
  %v7305 = vmul.f32 %v7239, %v7295
  %v7306 = vmul.f32 %v7244, %v7297
  %v7307 = vmul.f32 %v7249, %v7299
  %s7308 = scalar_lea.vmem %s7, 1280
  %v7309 = vld [vmem:[%s7308] sm:$0xff]
  %v7310 = vld [vmem:[%s7308 + $0x8] sm:$0xff]
  %v7311 = vld [vmem:[%s7308 + $0x10] sm:$0xff]
  %v7312 = vld [vmem:[%s7308 + $0x18] sm:$0xff]
  %s7313 = scalar_lea.vmem %s8, 33
  %v7314 = vld [vmem:[%s7313] sm:$0x1]
  %v7316 = vlaneseq
  %v7317 = vshrl.u32 %v7316, 7
  %v7318 = vsub.s32 0, %v7317
  %v7319 = vrot.slane %v7314, %v7318
  %7321 = vmatprep.subr.mxu0 0.0
  %7322 = vmatpush1.msra.mxu0 %v7309
  %7323 = vmatprep.subr.mxu0 0.0
  %7324 = vmatpush1.msra.mxu0 %v7310
  %7325 = vmatprep.subr.mxu0 0.0
  %7326 = vmatpush1.msra.mxu0 %v7311
  %7327 = vmatprep.subr.mxu0 0.0
  %7328 = vmatpush1.msra.mxu0 %v7312
  %7329 = vmatprep.subr.mxu0 0.0
  %7330 = vmatpush1.msra.mxu0 0.0
  %7331 = vmatprep.subr.mxu0 0.0
  %7332 = vmatpush1.msra.mxu0 0.0
  %7333 = vmatprep.subr.mxu0 0.0
  %7334 = vmatpush1.msra.mxu0 0.0
  %7335 = vmatprep.subr.mxu0 0.0
  %7336 = vmatpush1.msra.mxu0 0.0
  %7337 = vmatprep.subr.mxu0 0.0
  %7338 = vmatpush1.msra.mxu0 0.0
  %7339 = vmatprep.subr.mxu0 0.0
  %7340 = vmatpush1.msra.mxu0 0.0
  %7341 = vmatprep.subr.mxu0 0.0
  %7342 = vmatpush1.msra.mxu0 0.0
  %7343 = vmatprep.subr.mxu0 0.0
  %7344 = vmatpush1.msra.mxu0 0.0
  %7345 = vmatprep.subr.mxu0 0.0
  %7346 = vmatpush1.msra.mxu0 0.0
  %7347 = vmatprep.subr.mxu0 0.0
  %7348 = vmatpush1.msra.mxu0 0.0
  %7349 = vmatprep.subr.mxu0 0.0
  %7350 = vmatpush1.msra.mxu0 0.0
  %7351 = vmatprep.subr.mxu0 0.0
  %7352 = vmatpush1.msra.mxu0 0.0
  %7353 = vmatprep.subr.mxu0 0.0
  %7354 = vmatpush1.msra.mxu0 0.0
  %7355 = vmatprep.subr.mxu0 0.0
  %7356 = vmatpush1.msra.mxu0 0.0
  %7357 = vmatprep.subr.mxu0 0.0
  %7358 = vmatpush1.msra.mxu0 0.0
  %7359 = vmatprep.subr.mxu0 0.0
  %7360 = vmatpush1.msra.mxu0 0.0
  %7361 = vmatprep.subr.mxu0 0.0
  %7362 = vmatpush1.msra.mxu0 0.0
  %7363 = vmatprep.subr.mxu0 0.0
  %7364 = vmatpush1.msra.mxu0 0.0
  %7365 = vmatprep.subr.mxu0 0.0
  %7366 = vmatpush1.msra.mxu0 0.0
  %7367 = vmatprep.subr.mxu0 0.0
  %7368 = vmatpush1.msra.mxu0 0.0
  %7369 = vmatprep.subr.mxu0 0.0
  %7370 = vmatpush1.msra.mxu0 0.0
  %7371 = vmatprep.subr.mxu0 0.0
  %7372 = vmatpush1.msra.mxu0 0.0
  %7373 = vmatprep.subr.mxu0 0.0
  %7374 = vmatpush1.msra.mxu0 0.0
  %7375 = vmatprep.subr.mxu0 0.0
  %7376 = vmatpush1.msra.mxu0 0.0
  %7377 = vmatprep.subr.mxu0 0.0
  %7378 = vmatpush1.msra.mxu0 0.0
  %7379 = vmatprep.subr.mxu0 0.0
  %7380 = vmatpush1.msra.mxu0 0.0
  %7381 = vmatprep.subr.mxu0 0.0
  %7382 = vmatpush1.msra.mxu0 0.0
  %7383 = vmatprep.subr.mxu0 0.0
  %7384 = vmatpush1.msra.mxu0 0.0
  %7385 = vmatprep.mubr.f32.mxu0 0.0
  %7386 = vmatmul.mubr.f32.gmra.mrb[0].mxu0 %v7124
  %v7387 = vpop.f32.mrb[0].mxu0
  %v7388 = vadd.f32 %v7319, %v7387
  %v7389 = vpop.f32.mrb[0].mxu0
  %7390 = vmatprep.mubr.f32.mxu0 0.0
  %7391 = vmatmul.mubr.f32.gmra.mrb[0].mxu0 %v7127
  %v7392 = vpop.f32.mrb[0].mxu0
  %v7393 = vadd.f32 %v7319, %v7392
  %v7394 = vpop.f32.mrb[0].mxu0
  %7395 = vmatprep.mubr.f32.mxu0 0.0
  %7396 = vmatmul.mubr.f32.gmra.mrb[0].mxu0 %v7130
  %v7397 = vpop.f32.mrb[0].mxu0
  %v7398 = vadd.f32 %v7319, %v7397
  %v7399 = vpop.f32.mrb[0].mxu0
  %7400 = vmatprep.mubr.f32.mxu0 0.0
  %7401 = vmatmul.mubr.f32.gmra.mrb[0].mxu0 %v7133
  %v7402 = vpop.f32.mrb[0].mxu0
  %v7403 = vadd.f32 %v7319, %v7402
  %v7404 = vpop.f32.mrb[0].mxu0
  %7405 = vmatprep.mubr.f32.mxu0 0.0
  %7406 = vmatmul.mubr.f32.gmra.mrb[0].mxu0 %v7136
  %v7407 = vpop.f32.mrb[0].mxu0
  %v7408 = vadd.f32 %v7319, %v7407
  %v7409 = vpop.f32.mrb[0].mxu0
  %7410 = vmatprep.mubr.f32.mxu0 0.0
  %7411 = vmatmul.mubr.f32.gmra.mrb[0].mxu0 %v7139
  %v7412 = vpop.f32.mrb[0].mxu0
  %v7413 = vadd.f32 %v7319, %v7412
  %v7414 = vpop.f32.mrb[0].mxu0
  %7415 = vmatprep.mubr.f32.mxu0 0.0
  %7416 = vmatmul.mubr.f32.gmra.mrb[0].mxu0 %v7142
  %v7417 = vpop.f32.mrb[0].mxu0
  %v7418 = vadd.f32 %v7319, %v7417
  %v7419 = vpop.f32.mrb[0].mxu0
  %7420 = vmatprep.mubr.f32.mxu0 0.0
  %7421 = vmatmul.mubr.f32.gmra.mrb[0].mxu0 %v7145
  %v7422 = vpop.f32.mrb[0].mxu0
  %v7423 = vadd.f32 %v7319, %v7422
  %v7424 = vpop.f32.mrb[0].mxu0
  %7425 = vdwg.mxu0
  %v7426 = vxor.u32 %v7388, 2147483648
  %v7427 = vxor.u32 %v7393, 2147483648
  %v7428 = vxor.u32 %v7398, 2147483648
  %v7429 = vxor.u32 %v7403, 2147483648
  %v7430 = vxor.u32 %v7408, 2147483648
  %v7431 = vxor.u32 %v7413, 2147483648
  %v7432 = vxor.u32 %v7418, 2147483648
  %v7433 = vxor.u32 %v7423, 2147483648
  %v7434 = vmul.f32 %v7426, 1.442695
  %v7435 = vpow.pop %v7434
  %v7436 = vmul.f32 %v7427, 1.442695
  %v7437 = vpow.pop %v7436
  %v7438 = vmul.f32 %v7428, 1.442695
  %v7439 = vpow.pop %v7438
  %v7440 = vmul.f32 %v7429, 1.442695
  %v7441 = vpow.pop %v7440
  %v7442 = vmul.f32 %v7430, 1.442695
  %v7443 = vpow.pop %v7442
  %v7444 = vmul.f32 %v7431, 1.442695
  %v7445 = vpow.pop %v7444
  %v7446 = vmul.f32 %v7432, 1.442695
  %v7447 = vpow.pop %v7446
  %v7448 = vmul.f32 %v7433, 1.442695
  %v7449 = vpow.pop %v7448
  %v7450 = vadd.f32 %v7435, 1.0
  %v7451 = vadd.f32 %v7437, 1.0
  %v7452 = vadd.f32 %v7439, 1.0
  %v7453 = vadd.f32 %v7441, 1.0
  %v7454 = vadd.f32 %v7443, 1.0
  %v7455 = vadd.f32 %v7445, 1.0
  %v7456 = vadd.f32 %v7447, 1.0
  %v7457 = vadd.f32 %v7449, 1.0
  %v7458 = vrcp.pop %v7450
  %v7459 = vmul.f32 1.0, %v7458
  %v7460 = vrcp.pop %v7451
  %v7461 = vmul.f32 1.0, %v7460
  %v7462 = vrcp.pop %v7452
  %v7463 = vmul.f32 1.0, %v7462
  %v7464 = vrcp.pop %v7453
  %v7465 = vmul.f32 1.0, %v7464
  %v7466 = vrcp.pop %v7454
  %v7467 = vmul.f32 1.0, %v7466
  %v7468 = vrcp.pop %v7455
  %v7469 = vmul.f32 1.0, %v7468
  %v7470 = vrcp.pop %v7456
  %v7471 = vmul.f32 1.0, %v7470
  %v7472 = vrcp.pop %v7457
  %v7473 = vmul.f32 1.0, %v7472
  %v7474 = vmul.f32 %v7388, %v7459
  %v7475 = vmul.f32 %v7393, %v7461
  %v7476 = vmul.f32 %v7398, %v7463
  %v7477 = vmul.f32 %v7403, %v7465
  %v7478 = vmul.f32 %v7408, %v7467
  %v7479 = vmul.f32 %v7413, %v7469
  %v7480 = vmul.f32 %v7418, %v7471
  %v7481 = vmul.f32 %v7423, %v7473
  %v7482 = vmul.f32 %v7474, %v7072
  %v7483 = vmul.f32 %v7475, %v7077
  %v7484 = vmul.f32 %v7476, %v7082
  %v7485 = vmul.f32 %v7477, %v7087
  %v7486 = vmul.f32 %v7478, %v7092
  %v7487 = vmul.f32 %v7479, %v7097
  %v7488 = vmul.f32 %v7480, %v7102
  %v7489 = vmul.f32 %v7481, %v7107
  %s7490 = scalar_lea.vmem %s7, 1312
  %v7491 = vld [vmem:[%s7490] sm:$0xff]
  %v7492 = vld [vmem:[%s7490 + $0x8] sm:$0xff]
  %v7493 = vld [vmem:[%s7490 + $0x10] sm:$0xff]
  %v7494 = vld [vmem:[%s7490 + $0x18] sm:$0xff]
  %v7496 = vsel %vm530, %v7482, 0
  %v7499 = vsel %vm530, %v7483, 0
  %v7502 = vsel %vm530, %v7484, 0
  %v7505 = vsel %vm530, %v7485, 0
  %v7508 = vsel %vm530, %v7486, 0
  %v7511 = vsel %vm530, %v7487, 0
  %v7514 = vsel %vm530, %v7488, 0
  %v7517 = vsel %vm530, %v7489, 0
  %7519 = vmatprep.subr.mxu0 0.0
  %7520 = vmatpush1.msra.mxu0 %v7491
  %7521 = vmatprep.subr.mxu0 0.0
  %7522 = vmatpush1.msra.mxu0 %v7492
  %7523 = vmatprep.subr.mxu0 0.0
  %7524 = vmatpush1.msra.mxu0 %v7493
  %7525 = vmatprep.subr.mxu0 0.0
  %7526 = vmatpush1.msra.mxu0 %v7494
  %7527 = vmatprep.subr.mxu0 0.0
  %7528 = vmatpush1.msra.mxu0 0.0
  %7529 = vmatprep.subr.mxu0 0.0
  %7530 = vmatpush1.msra.mxu0 0.0
  %7531 = vmatprep.subr.mxu0 0.0
  %7532 = vmatpush1.msra.mxu0 0.0
  %7533 = vmatprep.subr.mxu0 0.0
  %7534 = vmatpush1.msra.mxu0 0.0
  %7535 = vmatprep.subr.mxu0 0.0
  %7536 = vmatpush1.msra.mxu0 0.0
  %7537 = vmatprep.subr.mxu0 0.0
  %7538 = vmatpush1.msra.mxu0 0.0
  %7539 = vmatprep.subr.mxu0 0.0
  %7540 = vmatpush1.msra.mxu0 0.0
  %7541 = vmatprep.subr.mxu0 0.0
  %7542 = vmatpush1.msra.mxu0 0.0
  %7543 = vmatprep.subr.mxu0 0.0
  %7544 = vmatpush1.msra.mxu0 0.0
  %7545 = vmatprep.subr.mxu0 0.0
  %7546 = vmatpush1.msra.mxu0 0.0
  %7547 = vmatprep.subr.mxu0 0.0
  %7548 = vmatpush1.msra.mxu0 0.0
  %7549 = vmatprep.subr.mxu0 0.0
  %7550 = vmatpush1.msra.mxu0 0.0
  %7551 = vmatprep.subr.mxu0 0.0
  %7552 = vmatpush1.msra.mxu0 0.0
  %7553 = vmatprep.subr.mxu0 0.0
  %7554 = vmatpush1.msra.mxu0 0.0
  %7555 = vmatprep.subr.mxu0 0.0
  %7556 = vmatpush1.msra.mxu0 0.0
  %7557 = vmatprep.subr.mxu0 0.0
  %7558 = vmatpush1.msra.mxu0 0.0
  %7559 = vmatprep.subr.mxu0 0.0
  %7560 = vmatpush1.msra.mxu0 0.0
  %7561 = vmatprep.subr.mxu0 0.0
  %7562 = vmatpush1.msra.mxu0 0.0
  %7563 = vmatprep.subr.mxu0 0.0
  %7564 = vmatpush1.msra.mxu0 0.0
  %7565 = vmatprep.subr.mxu0 0.0
  %7566 = vmatpush1.msra.mxu0 0.0
  %7567 = vmatprep.subr.mxu0 0.0
  %7568 = vmatpush1.msra.mxu0 0.0
  %7569 = vmatprep.subr.mxu0 0.0
  %7570 = vmatpush1.msra.mxu0 0.0
  %7571 = vmatprep.subr.mxu0 0.0
  %7572 = vmatpush1.msra.mxu0 0.0
  %7573 = vmatprep.subr.mxu0 0.0
  %7574 = vmatpush1.msra.mxu0 0.0
  %7575 = vmatprep.subr.mxu0 0.0
  %7576 = vmatpush1.msra.mxu0 0.0
  %7577 = vmatprep.subr.mxu0 0.0
  %7578 = vmatpush1.msra.mxu0 0.0
  %7579 = vmatprep.subr.mxu0 0.0
  %7580 = vmatpush1.msra.mxu0 0.0
  %7581 = vmatprep.subr.mxu0 0.0
  %7582 = vmatpush1.msra.mxu0 0.0
  %7583 = vmatprep.mubr.f32.mxu0 0.0
  %7584 = vmatmul.mubr.f32.gmra.mrb[0].mxu0 %v7496
  %v7585 = vpop.f32.mrb[0].mxu0
  %v7586 = vadd.f32 0.0, %v7585
  %v7587 = vpop.f32.mrb[0].mxu0
  %7588 = vmatprep.mubr.f32.mxu0 0.0
  %7589 = vmatmul.mubr.f32.gmra.mrb[0].mxu0 %v7499
  %v7590 = vpop.f32.mrb[0].mxu0
  %v7591 = vadd.f32 0.0, %v7590
  %v7592 = vpop.f32.mrb[0].mxu0
  %7593 = vmatprep.mubr.f32.mxu0 0.0
  %7594 = vmatmul.mubr.f32.gmra.mrb[0].mxu0 %v7502
  %v7595 = vpop.f32.mrb[0].mxu0
  %v7596 = vadd.f32 0.0, %v7595
  %v7597 = vpop.f32.mrb[0].mxu0
  %7598 = vmatprep.mubr.f32.mxu0 0.0
  %7599 = vmatmul.mubr.f32.gmra.mrb[0].mxu0 %v7505
  %v7600 = vpop.f32.mrb[0].mxu0
  %v7601 = vadd.f32 0.0, %v7600
  %v7602 = vpop.f32.mrb[0].mxu0
  %7603 = vmatprep.mubr.f32.mxu0 0.0
  %7604 = vmatmul.mubr.f32.gmra.mrb[0].mxu0 %v7508
  %v7605 = vpop.f32.mrb[0].mxu0
  %v7606 = vadd.f32 0.0, %v7605
  %v7607 = vpop.f32.mrb[0].mxu0
  %7608 = vmatprep.mubr.f32.mxu0 0.0
  %7609 = vmatmul.mubr.f32.gmra.mrb[0].mxu0 %v7511
  %v7610 = vpop.f32.mrb[0].mxu0
  %v7611 = vadd.f32 0.0, %v7610
  %v7612 = vpop.f32.mrb[0].mxu0
  %7613 = vmatprep.mubr.f32.mxu0 0.0
  %7614 = vmatmul.mubr.f32.gmra.mrb[0].mxu0 %v7514
  %v7615 = vpop.f32.mrb[0].mxu0
  %v7616 = vadd.f32 0.0, %v7615
  %v7617 = vpop.f32.mrb[0].mxu0
  %7618 = vmatprep.mubr.f32.mxu0 0.0
  %7619 = vmatmul.mubr.f32.gmra.mrb[0].mxu0 %v7517
  %v7620 = vpop.f32.mrb[0].mxu0
  %v7621 = vadd.f32 0.0, %v7620
  %v7622 = vpop.f32.mrb[0].mxu0
  %7623 = vdwg.mxu0
  %s7624 = scalar_lea.vmem %s6, 128
  %v7625 = vld [vmem:[%s7624] sm:$0xff]
  %v7626 = vld [vmem:[%s7624 + $0x8] sm:$0xff]
  %v7627 = vld [vmem:[%s7624 + $0x10] sm:$0xff]
  %v7628 = vld [vmem:[%s7624 + $0x18] sm:$0xff]
  %v7629 = vld [vmem:[%s7624 + $0x20] sm:$0xff]
  %v7630 = vld [vmem:[%s7624 + $0x28] sm:$0xff]
  %v7631 = vld [vmem:[%s7624 + $0x30] sm:$0xff]
  %v7632 = vld [vmem:[%s7624 + $0x38] sm:$0xff]
  %v7634 = vsel %vm1118, %v7625, 0
  %v7637 = vsel %vm1118, %v7626, 0
  %v7640 = vsel %vm1118, %v7627, 0
  %v7643 = vsel %vm1118, %v7628, 0
  %v7646 = vsel %vm1118, %v7629, 0
  %v7649 = vsel %vm1118, %v7630, 0
  %v7652 = vsel %vm1118, %v7631, 0
  %v7655 = vsel %vm1118, %v7632, 0
  %7657 = vmatprep.subr.mxu0 0.0
  %7658 = vmatpush1.msra.mxu0 %v7586
  %7659 = vmatprep.subr.mxu0 0.0
  %7660 = vmatpush1.msra.mxu0 %v7591
  %7661 = vmatprep.subr.mxu0 0.0
  %7662 = vmatpush1.msra.mxu0 %v7596
  %7663 = vmatprep.subr.mxu0 0.0
  %7664 = vmatpush1.msra.mxu0 %v7601
  %7665 = vmatprep.subr.mxu0 0.0
  %7666 = vmatpush1.msra.mxu0 %v7606
  %7667 = vmatprep.subr.mxu0 0.0
  %7668 = vmatpush1.msra.mxu0 %v7611
  %7669 = vmatprep.subr.mxu0 0.0
  %7670 = vmatpush1.msra.mxu0 %v7616
  %7671 = vmatprep.subr.mxu0 0.0
  %7672 = vmatpush1.msra.mxu0 %v7621
  %7673 = vmatprep.subr.mxu0 0.0
  %7674 = vmatpush1.msra.mxu0 0.0
  %7675 = vmatprep.subr.mxu0 0.0
  %7676 = vmatpush1.msra.mxu0 0.0
  %7677 = vmatprep.subr.mxu0 0.0
  %7678 = vmatpush1.msra.mxu0 0.0
  %7679 = vmatprep.subr.mxu0 0.0
  %7680 = vmatpush1.msra.mxu0 0.0
  %7681 = vmatprep.subr.mxu0 0.0
  %7682 = vmatpush1.msra.mxu0 0.0
  %7683 = vmatprep.subr.mxu0 0.0
  %7684 = vmatpush1.msra.mxu0 0.0
  %7685 = vmatprep.subr.mxu0 0.0
  %7686 = vmatpush1.msra.mxu0 0.0
  %7687 = vmatprep.subr.mxu0 0.0
  %7688 = vmatpush1.msra.mxu0 0.0
  %7689 = vmatprep.subr.mxu0 0.0
  %7690 = vmatpush1.msra.mxu0 0.0
  %7691 = vmatprep.subr.mxu0 0.0
  %7692 = vmatpush1.msra.mxu0 0.0
  %7693 = vmatprep.subr.mxu0 0.0
  %7694 = vmatpush1.msra.mxu0 0.0
  %7695 = vmatprep.subr.mxu0 0.0
  %7696 = vmatpush1.msra.mxu0 0.0
  %7697 = vmatprep.subr.mxu0 0.0
  %7698 = vmatpush1.msra.mxu0 0.0
  %7699 = vmatprep.subr.mxu0 0.0
  %7700 = vmatpush1.msra.mxu0 0.0
  %7701 = vmatprep.subr.mxu0 0.0
  %7702 = vmatpush1.msra.mxu0 0.0
  %7703 = vmatprep.subr.mxu0 0.0
  %7704 = vmatpush1.msra.mxu0 0.0
  %7705 = vmatprep.subr.mxu0 0.0
  %7706 = vmatpush1.msra.mxu0 0.0
  %7707 = vmatprep.subr.mxu0 0.0
  %7708 = vmatpush1.msra.mxu0 0.0
  %7709 = vmatprep.subr.mxu0 0.0
  %7710 = vmatpush1.msra.mxu0 0.0
  %7711 = vmatprep.subr.mxu0 0.0
  %7712 = vmatpush1.msra.mxu0 0.0
  %7713 = vmatprep.subr.mxu0 0.0
  %7714 = vmatpush1.msra.mxu0 0.0
  %7715 = vmatprep.subr.mxu0 0.0
  %7716 = vmatpush1.msra.mxu0 0.0
  %7717 = vmatprep.subr.mxu0 0.0
  %7718 = vmatpush1.msra.mxu0 0.0
  %7719 = vmatprep.subr.mxu0 0.0
  %7720 = vmatpush1.msra.mxu0 0.0
  %7721 = vmatprep.mubr.f32.mxu0 0.0
  %7722 = vmatmul.mubr.f32.gmra.mrb[0].mxu0 %v7634
  %v7723 = vpop.f32.mrb[0].mxu0
  %v7724 = vadd.f32 0.0, %v7723
  %v7725 = vpop.f32.mrb[0].mxu0
  %7726 = vmatprep.mubr.f32.mxu0 0.0
  %7727 = vmatmul.mubr.f32.gmra.mrb[0].mxu0 %v7637
  %v7728 = vpop.f32.mrb[0].mxu0
  %v7729 = vadd.f32 0.0, %v7728
  %v7730 = vpop.f32.mrb[0].mxu0
  %7731 = vmatprep.mubr.f32.mxu0 0.0
  %7732 = vmatmul.mubr.f32.gmra.mrb[0].mxu0 %v7640
  %v7733 = vpop.f32.mrb[0].mxu0
  %v7734 = vadd.f32 0.0, %v7733
  %v7735 = vpop.f32.mrb[0].mxu0
  %7736 = vmatprep.mubr.f32.mxu0 0.0
  %7737 = vmatmul.mubr.f32.gmra.mrb[0].mxu0 %v7643
  %v7738 = vpop.f32.mrb[0].mxu0
  %v7739 = vadd.f32 0.0, %v7738
  %v7740 = vpop.f32.mrb[0].mxu0
  %7741 = vmatprep.mubr.f32.mxu0 0.0
  %7742 = vmatmul.mubr.f32.gmra.mrb[0].mxu0 %v7646
  %v7743 = vpop.f32.mrb[0].mxu0
  %v7744 = vadd.f32 0.0, %v7743
  %v7745 = vpop.f32.mrb[0].mxu0
  %7746 = vmatprep.mubr.f32.mxu0 0.0
  %7747 = vmatmul.mubr.f32.gmra.mrb[0].mxu0 %v7649
  %v7748 = vpop.f32.mrb[0].mxu0
  %v7749 = vadd.f32 0.0, %v7748
  %v7750 = vpop.f32.mrb[0].mxu0
  %7751 = vmatprep.mubr.f32.mxu0 0.0
  %7752 = vmatmul.mubr.f32.gmra.mrb[0].mxu0 %v7652
  %v7753 = vpop.f32.mrb[0].mxu0
  %v7754 = vadd.f32 0.0, %v7753
  %v7755 = vpop.f32.mrb[0].mxu0
  %7756 = vmatprep.mubr.f32.mxu0 0.0
  %7757 = vmatmul.mubr.f32.gmra.mrb[0].mxu0 %v7655
  %v7758 = vpop.f32.mrb[0].mxu0
  %v7759 = vadd.f32 0.0, %v7758
  %v7760 = vpop.f32.mrb[0].mxu0
  %7761 = vdwg.mxu0
  %v7762 = vadd.f32 %v7300, %v7724
  %v7763 = vadd.f32 %v7301, %v7729
  %v7764 = vadd.f32 %v7302, %v7734
  %v7765 = vadd.f32 %v7303, %v7739
  %v7766 = vadd.f32 %v7304, %v7744
  %v7767 = vadd.f32 %v7305, %v7749
  %v7768 = vadd.f32 %v7306, %v7754
  %v7769 = vadd.f32 %v7307, %v7759
  %s7770 = scalar_lea.vmem %s7, 1344
  %v7771 = vld [vmem:[%s7770] sm:$0xff]
  %v7772 = vld [vmem:[%s7770 + $0x8] sm:$0xff]
  %v7773 = vld [vmem:[%s7770 + $0x10] sm:$0xff]
  %v7774 = vld [vmem:[%s7770 + $0x18] sm:$0xff]
  %s7775 = scalar_lea.vmem %s8, 34
  %v7776 = vld [vmem:[%s7775] sm:$0x1]
  %v7778 = vlaneseq
  %v7779 = vshrl.u32 %v7778, 7
  %v7780 = vsub.s32 0, %v7779
  %v7781 = vrot.slane %v7776, %v7780
  %v7784 = vsel %vm530, %v7762, 0
  %v7787 = vsel %vm530, %v7763, 0
  %v7790 = vsel %vm530, %v7764, 0
  %v7793 = vsel %vm530, %v7765, 0
  %v7796 = vsel %vm530, %v7766, 0
  %v7799 = vsel %vm530, %v7767, 0
  %v7802 = vsel %vm530, %v7768, 0
  %v7805 = vsel %vm530, %v7769, 0
  %7807 = vmatprep.subr.mxu0 0.0
  %7808 = vmatpush1.msra.mxu0 %v7771
  %7809 = vmatprep.subr.mxu0 0.0
  %7810 = vmatpush1.msra.mxu0 %v7772
  %7811 = vmatprep.subr.mxu0 0.0
  %7812 = vmatpush1.msra.mxu0 %v7773
  %7813 = vmatprep.subr.mxu0 0.0
  %7814 = vmatpush1.msra.mxu0 %v7774
  %7815 = vmatprep.subr.mxu0 0.0
  %7816 = vmatpush1.msra.mxu0 0.0
  %7817 = vmatprep.subr.mxu0 0.0
  %7818 = vmatpush1.msra.mxu0 0.0
  %7819 = vmatprep.subr.mxu0 0.0
  %7820 = vmatpush1.msra.mxu0 0.0
  %7821 = vmatprep.subr.mxu0 0.0
  %7822 = vmatpush1.msra.mxu0 0.0
  %7823 = vmatprep.subr.mxu0 0.0
  %7824 = vmatpush1.msra.mxu0 0.0
  %7825 = vmatprep.subr.mxu0 0.0
  %7826 = vmatpush1.msra.mxu0 0.0
  %7827 = vmatprep.subr.mxu0 0.0
  %7828 = vmatpush1.msra.mxu0 0.0
  %7829 = vmatprep.subr.mxu0 0.0
  %7830 = vmatpush1.msra.mxu0 0.0
  %7831 = vmatprep.subr.mxu0 0.0
  %7832 = vmatpush1.msra.mxu0 0.0
  %7833 = vmatprep.subr.mxu0 0.0
  %7834 = vmatpush1.msra.mxu0 0.0
  %7835 = vmatprep.subr.mxu0 0.0
  %7836 = vmatpush1.msra.mxu0 0.0
  %7837 = vmatprep.subr.mxu0 0.0
  %7838 = vmatpush1.msra.mxu0 0.0
  %7839 = vmatprep.subr.mxu0 0.0
  %7840 = vmatpush1.msra.mxu0 0.0
  %7841 = vmatprep.subr.mxu0 0.0
  %7842 = vmatpush1.msra.mxu0 0.0
  %7843 = vmatprep.subr.mxu0 0.0
  %7844 = vmatpush1.msra.mxu0 0.0
  %7845 = vmatprep.subr.mxu0 0.0
  %7846 = vmatpush1.msra.mxu0 0.0
  %7847 = vmatprep.subr.mxu0 0.0
  %7848 = vmatpush1.msra.mxu0 0.0
  %7849 = vmatprep.subr.mxu0 0.0
  %7850 = vmatpush1.msra.mxu0 0.0
  %7851 = vmatprep.subr.mxu0 0.0
  %7852 = vmatpush1.msra.mxu0 0.0
  %7853 = vmatprep.subr.mxu0 0.0
  %7854 = vmatpush1.msra.mxu0 0.0
  %7855 = vmatprep.subr.mxu0 0.0
  %7856 = vmatpush1.msra.mxu0 0.0
  %7857 = vmatprep.subr.mxu0 0.0
  %7858 = vmatpush1.msra.mxu0 0.0
  %7859 = vmatprep.subr.mxu0 0.0
  %7860 = vmatpush1.msra.mxu0 0.0
  %7861 = vmatprep.subr.mxu0 0.0
  %7862 = vmatpush1.msra.mxu0 0.0
  %7863 = vmatprep.subr.mxu0 0.0
  %7864 = vmatpush1.msra.mxu0 0.0
  %7865 = vmatprep.subr.mxu0 0.0
  %7866 = vmatpush1.msra.mxu0 0.0
  %7867 = vmatprep.subr.mxu0 0.0
  %7868 = vmatpush1.msra.mxu0 0.0
  %7869 = vmatprep.subr.mxu0 0.0
  %7870 = vmatpush1.msra.mxu0 0.0
  %7871 = vmatprep.mubr.f32.mxu0 0.0
  %7872 = vmatmul.mubr.f32.gmra.mrb[0].mxu0 %v7784
  %v7873 = vpop.f32.mrb[0].mxu0
  %v7874 = vadd.f32 %v7781, %v7873
  %v7875 = vpop.f32.mrb[0].mxu0
  %7876 = vmatprep.mubr.f32.mxu0 0.0
  %7877 = vmatmul.mubr.f32.gmra.mrb[0].mxu0 %v7787
  %v7878 = vpop.f32.mrb[0].mxu0
  %v7879 = vadd.f32 %v7781, %v7878
  %v7880 = vpop.f32.mrb[0].mxu0
  %7881 = vmatprep.mubr.f32.mxu0 0.0
  %7882 = vmatmul.mubr.f32.gmra.mrb[0].mxu0 %v7790
  %v7883 = vpop.f32.mrb[0].mxu0
  %v7884 = vadd.f32 %v7781, %v7883
  %v7885 = vpop.f32.mrb[0].mxu0
  %7886 = vmatprep.mubr.f32.mxu0 0.0
  %7887 = vmatmul.mubr.f32.gmra.mrb[0].mxu0 %v7793
  %v7888 = vpop.f32.mrb[0].mxu0
  %v7889 = vadd.f32 %v7781, %v7888
  %v7890 = vpop.f32.mrb[0].mxu0
  %7891 = vmatprep.mubr.f32.mxu0 0.0
  %7892 = vmatmul.mubr.f32.gmra.mrb[0].mxu0 %v7796
  %v7893 = vpop.f32.mrb[0].mxu0
  %v7894 = vadd.f32 %v7781, %v7893
  %v7895 = vpop.f32.mrb[0].mxu0
  %7896 = vmatprep.mubr.f32.mxu0 0.0
  %7897 = vmatmul.mubr.f32.gmra.mrb[0].mxu0 %v7799
  %v7898 = vpop.f32.mrb[0].mxu0
  %v7899 = vadd.f32 %v7781, %v7898
  %v7900 = vpop.f32.mrb[0].mxu0
  %7901 = vmatprep.mubr.f32.mxu0 0.0
  %7902 = vmatmul.mubr.f32.gmra.mrb[0].mxu0 %v7802
  %v7903 = vpop.f32.mrb[0].mxu0
  %v7904 = vadd.f32 %v7781, %v7903
  %v7905 = vpop.f32.mrb[0].mxu0
  %7906 = vmatprep.mubr.f32.mxu0 0.0
  %7907 = vmatmul.mubr.f32.gmra.mrb[0].mxu0 %v7805
  %v7908 = vpop.f32.mrb[0].mxu0
  %v7909 = vadd.f32 %v7781, %v7908
  %v7910 = vpop.f32.mrb[0].mxu0
  %7911 = vdwg.mxu0
  %v7912 = vxor.u32 %v7874, 2147483648
  %v7913 = vxor.u32 %v7879, 2147483648
  %v7914 = vxor.u32 %v7884, 2147483648
  %v7915 = vxor.u32 %v7889, 2147483648
  %v7916 = vxor.u32 %v7894, 2147483648
  %v7917 = vxor.u32 %v7899, 2147483648
  %v7918 = vxor.u32 %v7904, 2147483648
  %v7919 = vxor.u32 %v7909, 2147483648
  %v7920 = vmul.f32 %v7912, 1.442695
  %v7921 = vpow.pop %v7920
  %v7922 = vmul.f32 %v7913, 1.442695
  %v7923 = vpow.pop %v7922
  %v7924 = vmul.f32 %v7914, 1.442695
  %v7925 = vpow.pop %v7924
  %v7926 = vmul.f32 %v7915, 1.442695
  %v7927 = vpow.pop %v7926
  %v7928 = vmul.f32 %v7916, 1.442695
  %v7929 = vpow.pop %v7928
  %v7930 = vmul.f32 %v7917, 1.442695
  %v7931 = vpow.pop %v7930
  %v7932 = vmul.f32 %v7918, 1.442695
  %v7933 = vpow.pop %v7932
  %v7934 = vmul.f32 %v7919, 1.442695
  %v7935 = vpow.pop %v7934
  %v7936 = vadd.f32 %v7921, 1.0
  %v7937 = vadd.f32 %v7923, 1.0
  %v7938 = vadd.f32 %v7925, 1.0
  %v7939 = vadd.f32 %v7927, 1.0
  %v7940 = vadd.f32 %v7929, 1.0
  %v7941 = vadd.f32 %v7931, 1.0
  %v7942 = vadd.f32 %v7933, 1.0
  %v7943 = vadd.f32 %v7935, 1.0
  %v7944 = vrcp.pop %v7936
  %v7945 = vmul.f32 1.0, %v7944
  %v7946 = vrcp.pop %v7937
  %v7947 = vmul.f32 1.0, %v7946
  %v7948 = vrcp.pop %v7938
  %v7949 = vmul.f32 1.0, %v7948
  %v7950 = vrcp.pop %v7939
  %v7951 = vmul.f32 1.0, %v7950
  %v7952 = vrcp.pop %v7940
  %v7953 = vmul.f32 1.0, %v7952
  %v7954 = vrcp.pop %v7941
  %v7955 = vmul.f32 1.0, %v7954
  %v7956 = vrcp.pop %v7942
  %v7957 = vmul.f32 1.0, %v7956
  %v7958 = vrcp.pop %v7943
  %v7959 = vmul.f32 1.0, %v7958
  %v7960 = vmul.f32 %v7874, %v7945
  %v7961 = vmul.f32 %v7879, %v7947
  %v7962 = vmul.f32 %v7884, %v7949
  %v7963 = vmul.f32 %v7889, %v7951
  %v7964 = vmul.f32 %v7894, %v7953
  %v7965 = vmul.f32 %v7899, %v7955
  %v7966 = vmul.f32 %v7904, %v7957
  %v7967 = vmul.f32 %v7909, %v7959
  %s7968 = scalar_lea.vmem %s7, 1376
  %v7969 = vld [vmem:[%s7968] sm:$0xff]
  %v7970 = vld [vmem:[%s7968 + $0x8] sm:$0xff]
  %v7971 = vld [vmem:[%s7968 + $0x10] sm:$0xff]
  %v7972 = vld [vmem:[%s7968 + $0x18] sm:$0xff]
  %s7973 = scalar_lea.vmem %s8, 35
  %v7974 = vld [vmem:[%s7973] sm:$0x1]
  %v7976 = vlaneseq
  %v7977 = vshrl.u32 %v7976, 7
  %v7978 = vsub.s32 0, %v7977
  %v7979 = vrot.slane %v7974, %v7978
  %v7982 = vsel %vm530, %v7960, 0
  %v7985 = vsel %vm530, %v7961, 0
  %v7988 = vsel %vm530, %v7962, 0
  %v7991 = vsel %vm530, %v7963, 0
  %v7994 = vsel %vm530, %v7964, 0
  %v7997 = vsel %vm530, %v7965, 0
  %v8000 = vsel %vm530, %v7966, 0
  %v8003 = vsel %vm530, %v7967, 0
  %8005 = vmatprep.subr.mxu0 0.0
  %8006 = vmatpush1.msra.mxu0 %v7969
  %8007 = vmatprep.subr.mxu0 0.0
  %8008 = vmatpush1.msra.mxu0 %v7970
  %8009 = vmatprep.subr.mxu0 0.0
  %8010 = vmatpush1.msra.mxu0 %v7971
  %8011 = vmatprep.subr.mxu0 0.0
  %8012 = vmatpush1.msra.mxu0 %v7972
  %8013 = vmatprep.subr.mxu0 0.0
  %8014 = vmatpush1.msra.mxu0 0.0
  %8015 = vmatprep.subr.mxu0 0.0
  %8016 = vmatpush1.msra.mxu0 0.0
  %8017 = vmatprep.subr.mxu0 0.0
  %8018 = vmatpush1.msra.mxu0 0.0
  %8019 = vmatprep.subr.mxu0 0.0
  %8020 = vmatpush1.msra.mxu0 0.0
  %8021 = vmatprep.subr.mxu0 0.0
  %8022 = vmatpush1.msra.mxu0 0.0
  %8023 = vmatprep.subr.mxu0 0.0
  %8024 = vmatpush1.msra.mxu0 0.0
  %8025 = vmatprep.subr.mxu0 0.0
  %8026 = vmatpush1.msra.mxu0 0.0
  %8027 = vmatprep.subr.mxu0 0.0
  %8028 = vmatpush1.msra.mxu0 0.0
  %8029 = vmatprep.subr.mxu0 0.0
  %8030 = vmatpush1.msra.mxu0 0.0
  %8031 = vmatprep.subr.mxu0 0.0
  %8032 = vmatpush1.msra.mxu0 0.0
  %8033 = vmatprep.subr.mxu0 0.0
  %8034 = vmatpush1.msra.mxu0 0.0
  %8035 = vmatprep.subr.mxu0 0.0
  %8036 = vmatpush1.msra.mxu0 0.0
  %8037 = vmatprep.subr.mxu0 0.0
  %8038 = vmatpush1.msra.mxu0 0.0
  %8039 = vmatprep.subr.mxu0 0.0
  %8040 = vmatpush1.msra.mxu0 0.0
  %8041 = vmatprep.subr.mxu0 0.0
  %8042 = vmatpush1.msra.mxu0 0.0
  %8043 = vmatprep.subr.mxu0 0.0
  %8044 = vmatpush1.msra.mxu0 0.0
  %8045 = vmatprep.subr.mxu0 0.0
  %8046 = vmatpush1.msra.mxu0 0.0
  %8047 = vmatprep.subr.mxu0 0.0
  %8048 = vmatpush1.msra.mxu0 0.0
  %8049 = vmatprep.subr.mxu0 0.0
  %8050 = vmatpush1.msra.mxu0 0.0
  %8051 = vmatprep.subr.mxu0 0.0
  %8052 = vmatpush1.msra.mxu0 0.0
  %8053 = vmatprep.subr.mxu0 0.0
  %8054 = vmatpush1.msra.mxu0 0.0
  %8055 = vmatprep.subr.mxu0 0.0
  %8056 = vmatpush1.msra.mxu0 0.0
  %8057 = vmatprep.subr.mxu0 0.0
  %8058 = vmatpush1.msra.mxu0 0.0
  %8059 = vmatprep.subr.mxu0 0.0
  %8060 = vmatpush1.msra.mxu0 0.0
  %8061 = vmatprep.subr.mxu0 0.0
  %8062 = vmatpush1.msra.mxu0 0.0
  %8063 = vmatprep.subr.mxu0 0.0
  %8064 = vmatpush1.msra.mxu0 0.0
  %8065 = vmatprep.subr.mxu0 0.0
  %8066 = vmatpush1.msra.mxu0 0.0
  %8067 = vmatprep.subr.mxu0 0.0
  %8068 = vmatpush1.msra.mxu0 0.0
  %8069 = vmatprep.mubr.f32.mxu0 0.0
  %8070 = vmatmul.mubr.f32.gmra.mrb[0].mxu0 %v7982
  %v8071 = vpop.f32.mrb[0].mxu0
  %v8072 = vadd.f32 %v7979, %v8071
  %v8073 = vpop.f32.mrb[0].mxu0
  %8074 = vmatprep.mubr.f32.mxu0 0.0
  %8075 = vmatmul.mubr.f32.gmra.mrb[0].mxu0 %v7985
  %v8076 = vpop.f32.mrb[0].mxu0
  %v8077 = vadd.f32 %v7979, %v8076
  %v8078 = vpop.f32.mrb[0].mxu0
  %8079 = vmatprep.mubr.f32.mxu0 0.0
  %8080 = vmatmul.mubr.f32.gmra.mrb[0].mxu0 %v7988
  %v8081 = vpop.f32.mrb[0].mxu0
  %v8082 = vadd.f32 %v7979, %v8081
  %v8083 = vpop.f32.mrb[0].mxu0
  %8084 = vmatprep.mubr.f32.mxu0 0.0
  %8085 = vmatmul.mubr.f32.gmra.mrb[0].mxu0 %v7991
  %v8086 = vpop.f32.mrb[0].mxu0
  %v8087 = vadd.f32 %v7979, %v8086
  %v8088 = vpop.f32.mrb[0].mxu0
  %8089 = vmatprep.mubr.f32.mxu0 0.0
  %8090 = vmatmul.mubr.f32.gmra.mrb[0].mxu0 %v7994
  %v8091 = vpop.f32.mrb[0].mxu0
  %v8092 = vadd.f32 %v7979, %v8091
  %v8093 = vpop.f32.mrb[0].mxu0
  %8094 = vmatprep.mubr.f32.mxu0 0.0
  %8095 = vmatmul.mubr.f32.gmra.mrb[0].mxu0 %v7997
  %v8096 = vpop.f32.mrb[0].mxu0
  %v8097 = vadd.f32 %v7979, %v8096
  %v8098 = vpop.f32.mrb[0].mxu0
  %8099 = vmatprep.mubr.f32.mxu0 0.0
  %8100 = vmatmul.mubr.f32.gmra.mrb[0].mxu0 %v8000
  %v8101 = vpop.f32.mrb[0].mxu0
  %v8102 = vadd.f32 %v7979, %v8101
  %v8103 = vpop.f32.mrb[0].mxu0
  %8104 = vmatprep.mubr.f32.mxu0 0.0
  %8105 = vmatmul.mubr.f32.gmra.mrb[0].mxu0 %v8003
  %v8106 = vpop.f32.mrb[0].mxu0
  %v8107 = vadd.f32 %v7979, %v8106
  %v8108 = vpop.f32.mrb[0].mxu0
  %8109 = vdwg.mxu0
  %v8110 = vxor.u32 %v8072, 2147483648
  %v8111 = vxor.u32 %v8077, 2147483648
  %v8112 = vxor.u32 %v8082, 2147483648
  %v8113 = vxor.u32 %v8087, 2147483648
  %v8114 = vxor.u32 %v8092, 2147483648
  %v8115 = vxor.u32 %v8097, 2147483648
  %v8116 = vxor.u32 %v8102, 2147483648
  %v8117 = vxor.u32 %v8107, 2147483648
  %v8118 = vmul.f32 %v8110, 1.442695
  %v8119 = vpow.pop %v8118
  %v8120 = vmul.f32 %v8111, 1.442695
  %v8121 = vpow.pop %v8120
  %v8122 = vmul.f32 %v8112, 1.442695
  %v8123 = vpow.pop %v8122
  %v8124 = vmul.f32 %v8113, 1.442695
  %v8125 = vpow.pop %v8124
  %v8126 = vmul.f32 %v8114, 1.442695
  %v8127 = vpow.pop %v8126
  %v8128 = vmul.f32 %v8115, 1.442695
  %v8129 = vpow.pop %v8128
  %v8130 = vmul.f32 %v8116, 1.442695
  %v8131 = vpow.pop %v8130
  %v8132 = vmul.f32 %v8117, 1.442695
  %v8133 = vpow.pop %v8132
  %v8134 = vadd.f32 %v8119, 1.0
  %v8135 = vadd.f32 %v8121, 1.0
  %v8136 = vadd.f32 %v8123, 1.0
  %v8137 = vadd.f32 %v8125, 1.0
  %v8138 = vadd.f32 %v8127, 1.0
  %v8139 = vadd.f32 %v8129, 1.0
  %v8140 = vadd.f32 %v8131, 1.0
  %v8141 = vadd.f32 %v8133, 1.0
  %v8142 = vrcp.pop %v8134
  %v8143 = vmul.f32 1.0, %v8142
  %v8144 = vrcp.pop %v8135
  %v8145 = vmul.f32 1.0, %v8144
  %v8146 = vrcp.pop %v8136
  %v8147 = vmul.f32 1.0, %v8146
  %v8148 = vrcp.pop %v8137
  %v8149 = vmul.f32 1.0, %v8148
  %v8150 = vrcp.pop %v8138
  %v8151 = vmul.f32 1.0, %v8150
  %v8152 = vrcp.pop %v8139
  %v8153 = vmul.f32 1.0, %v8152
  %v8154 = vrcp.pop %v8140
  %v8155 = vmul.f32 1.0, %v8154
  %v8156 = vrcp.pop %v8141
  %v8157 = vmul.f32 1.0, %v8156
  %v8158 = vmul.f32 %v8072, %v8143
  %v8159 = vmul.f32 %v8077, %v8145
  %v8160 = vmul.f32 %v8082, %v8147
  %v8161 = vmul.f32 %v8087, %v8149
  %v8162 = vmul.f32 %v8092, %v8151
  %v8163 = vmul.f32 %v8097, %v8153
  %v8164 = vmul.f32 %v8102, %v8155
  %v8165 = vmul.f32 %v8107, %v8157
  %v8166 = vadd.f32 %v7762, %v8158
  %v8167 = vadd.f32 %v7763, %v8159
  %v8168 = vadd.f32 %v7764, %v8160
  %v8169 = vadd.f32 %v7765, %v8161
  %v8170 = vadd.f32 %v7766, %v8162
  %v8171 = vadd.f32 %v7767, %v8163
  %v8172 = vadd.f32 %v7768, %v8164
  %v8173 = vadd.f32 %v7769, %v8165
  %s8174 = scalar_lea.vmem %s7, 1408
  %v8175 = vld [vmem:[%s8174] sm:$0xff]
  %v8176 = vld [vmem:[%s8174 + $0x8] sm:$0xff]
  %v8177 = vld [vmem:[%s8174 + $0x10] sm:$0xff]
  %v8178 = vld [vmem:[%s8174 + $0x18] sm:$0xff]
  %s8179 = scalar_lea.vmem %s8, 36
  %v8180 = vld [vmem:[%s8179] sm:$0x1]
  %v8182 = vlaneseq
  %v8183 = vshrl.u32 %v8182, 7
  %v8184 = vsub.s32 0, %v8183
  %v8185 = vrot.slane %v8180, %v8184
  %v8188 = vsel %vm530, %v8166, 0
  %v8191 = vsel %vm530, %v8167, 0
  %v8194 = vsel %vm530, %v8168, 0
  %v8197 = vsel %vm530, %v8169, 0
  %v8200 = vsel %vm530, %v8170, 0
  %v8203 = vsel %vm530, %v8171, 0
  %v8206 = vsel %vm530, %v8172, 0
  %v8209 = vsel %vm530, %v8173, 0
  %8211 = vmatprep.subr.mxu0 0.0
  %8212 = vmatpush1.msra.mxu0 %v8175
  %8213 = vmatprep.subr.mxu0 0.0
  %8214 = vmatpush1.msra.mxu0 %v8176
  %8215 = vmatprep.subr.mxu0 0.0
  %8216 = vmatpush1.msra.mxu0 %v8177
  %8217 = vmatprep.subr.mxu0 0.0
  %8218 = vmatpush1.msra.mxu0 %v8178
  %8219 = vmatprep.subr.mxu0 0.0
  %8220 = vmatpush1.msra.mxu0 0.0
  %8221 = vmatprep.subr.mxu0 0.0
  %8222 = vmatpush1.msra.mxu0 0.0
  %8223 = vmatprep.subr.mxu0 0.0
  %8224 = vmatpush1.msra.mxu0 0.0
  %8225 = vmatprep.subr.mxu0 0.0
  %8226 = vmatpush1.msra.mxu0 0.0
  %8227 = vmatprep.subr.mxu0 0.0
  %8228 = vmatpush1.msra.mxu0 0.0
  %8229 = vmatprep.subr.mxu0 0.0
  %8230 = vmatpush1.msra.mxu0 0.0
  %8231 = vmatprep.subr.mxu0 0.0
  %8232 = vmatpush1.msra.mxu0 0.0
  %8233 = vmatprep.subr.mxu0 0.0
  %8234 = vmatpush1.msra.mxu0 0.0
  %8235 = vmatprep.subr.mxu0 0.0
  %8236 = vmatpush1.msra.mxu0 0.0
  %8237 = vmatprep.subr.mxu0 0.0
  %8238 = vmatpush1.msra.mxu0 0.0
  %8239 = vmatprep.subr.mxu0 0.0
  %8240 = vmatpush1.msra.mxu0 0.0
  %8241 = vmatprep.subr.mxu0 0.0
  %8242 = vmatpush1.msra.mxu0 0.0
  %8243 = vmatprep.subr.mxu0 0.0
  %8244 = vmatpush1.msra.mxu0 0.0
  %8245 = vmatprep.subr.mxu0 0.0
  %8246 = vmatpush1.msra.mxu0 0.0
  %8247 = vmatprep.subr.mxu0 0.0
  %8248 = vmatpush1.msra.mxu0 0.0
  %8249 = vmatprep.subr.mxu0 0.0
  %8250 = vmatpush1.msra.mxu0 0.0
  %8251 = vmatprep.subr.mxu0 0.0
  %8252 = vmatpush1.msra.mxu0 0.0
  %8253 = vmatprep.subr.mxu0 0.0
  %8254 = vmatpush1.msra.mxu0 0.0
  %8255 = vmatprep.subr.mxu0 0.0
  %8256 = vmatpush1.msra.mxu0 0.0
  %8257 = vmatprep.subr.mxu0 0.0
  %8258 = vmatpush1.msra.mxu0 0.0
  %8259 = vmatprep.subr.mxu0 0.0
  %8260 = vmatpush1.msra.mxu0 0.0
  %8261 = vmatprep.subr.mxu0 0.0
  %8262 = vmatpush1.msra.mxu0 0.0
  %8263 = vmatprep.subr.mxu0 0.0
  %8264 = vmatpush1.msra.mxu0 0.0
  %8265 = vmatprep.subr.mxu0 0.0
  %8266 = vmatpush1.msra.mxu0 0.0
  %8267 = vmatprep.subr.mxu0 0.0
  %8268 = vmatpush1.msra.mxu0 0.0
  %8269 = vmatprep.subr.mxu0 0.0
  %8270 = vmatpush1.msra.mxu0 0.0
  %8271 = vmatprep.subr.mxu0 0.0
  %8272 = vmatpush1.msra.mxu0 0.0
  %8273 = vmatprep.subr.mxu0 0.0
  %8274 = vmatpush1.msra.mxu0 0.0
  %8275 = vmatprep.mubr.f32.mxu0 0.0
  %8276 = vmatmul.mubr.f32.gmra.mrb[0].mxu0 %v8188
  %v8277 = vpop.f32.mrb[0].mxu0
  %v8278 = vadd.f32 %v8185, %v8277
  %v8279 = vpop.f32.mrb[0].mxu0
  %8280 = vmatprep.mubr.f32.mxu0 0.0
  %8281 = vmatmul.mubr.f32.gmra.mrb[0].mxu0 %v8191
  %v8282 = vpop.f32.mrb[0].mxu0
  %v8283 = vadd.f32 %v8185, %v8282
  %v8284 = vpop.f32.mrb[0].mxu0
  %8285 = vmatprep.mubr.f32.mxu0 0.0
  %8286 = vmatmul.mubr.f32.gmra.mrb[0].mxu0 %v8194
  %v8287 = vpop.f32.mrb[0].mxu0
  %v8288 = vadd.f32 %v8185, %v8287
  %v8289 = vpop.f32.mrb[0].mxu0
  %8290 = vmatprep.mubr.f32.mxu0 0.0
  %8291 = vmatmul.mubr.f32.gmra.mrb[0].mxu0 %v8197
  %v8292 = vpop.f32.mrb[0].mxu0
  %v8293 = vadd.f32 %v8185, %v8292
  %v8294 = vpop.f32.mrb[0].mxu0
  %8295 = vmatprep.mubr.f32.mxu0 0.0
  %8296 = vmatmul.mubr.f32.gmra.mrb[0].mxu0 %v8200
  %v8297 = vpop.f32.mrb[0].mxu0
  %v8298 = vadd.f32 %v8185, %v8297
  %v8299 = vpop.f32.mrb[0].mxu0
  %8300 = vmatprep.mubr.f32.mxu0 0.0
  %8301 = vmatmul.mubr.f32.gmra.mrb[0].mxu0 %v8203
  %v8302 = vpop.f32.mrb[0].mxu0
  %v8303 = vadd.f32 %v8185, %v8302
  %v8304 = vpop.f32.mrb[0].mxu0
  %8305 = vmatprep.mubr.f32.mxu0 0.0
  %8306 = vmatmul.mubr.f32.gmra.mrb[0].mxu0 %v8206
  %v8307 = vpop.f32.mrb[0].mxu0
  %v8308 = vadd.f32 %v8185, %v8307
  %v8309 = vpop.f32.mrb[0].mxu0
  %8310 = vmatprep.mubr.f32.mxu0 0.0
  %8311 = vmatmul.mubr.f32.gmra.mrb[0].mxu0 %v8209
  %v8312 = vpop.f32.mrb[0].mxu0
  %v8313 = vadd.f32 %v8185, %v8312
  %v8314 = vpop.f32.mrb[0].mxu0
  %8315 = vdwg.mxu0
  %v8316 = vxor.u32 %v8278, 2147483648
  %v8317 = vxor.u32 %v8283, 2147483648
  %v8318 = vxor.u32 %v8288, 2147483648
  %v8319 = vxor.u32 %v8293, 2147483648
  %v8320 = vxor.u32 %v8298, 2147483648
  %v8321 = vxor.u32 %v8303, 2147483648
  %v8322 = vxor.u32 %v8308, 2147483648
  %v8323 = vxor.u32 %v8313, 2147483648
  %v8324 = vmul.f32 %v8316, 1.442695
  %v8325 = vpow.pop %v8324
  %v8326 = vmul.f32 %v8317, 1.442695
  %v8327 = vpow.pop %v8326
  %v8328 = vmul.f32 %v8318, 1.442695
  %v8329 = vpow.pop %v8328
  %v8330 = vmul.f32 %v8319, 1.442695
  %v8331 = vpow.pop %v8330
  %v8332 = vmul.f32 %v8320, 1.442695
  %v8333 = vpow.pop %v8332
  %v8334 = vmul.f32 %v8321, 1.442695
  %v8335 = vpow.pop %v8334
  %v8336 = vmul.f32 %v8322, 1.442695
  %v8337 = vpow.pop %v8336
  %v8338 = vmul.f32 %v8323, 1.442695
  %v8339 = vpow.pop %v8338
  %v8340 = vadd.f32 %v8325, 1.0
  %v8341 = vadd.f32 %v8327, 1.0
  %v8342 = vadd.f32 %v8329, 1.0
  %v8343 = vadd.f32 %v8331, 1.0
  %v8344 = vadd.f32 %v8333, 1.0
  %v8345 = vadd.f32 %v8335, 1.0
  %v8346 = vadd.f32 %v8337, 1.0
  %v8347 = vadd.f32 %v8339, 1.0
  %v8348 = vrcp.pop %v8340
  %v8349 = vmul.f32 1.0, %v8348
  %v8350 = vrcp.pop %v8341
  %v8351 = vmul.f32 1.0, %v8350
  %v8352 = vrcp.pop %v8342
  %v8353 = vmul.f32 1.0, %v8352
  %v8354 = vrcp.pop %v8343
  %v8355 = vmul.f32 1.0, %v8354
  %v8356 = vrcp.pop %v8344
  %v8357 = vmul.f32 1.0, %v8356
  %v8358 = vrcp.pop %v8345
  %v8359 = vmul.f32 1.0, %v8358
  %v8360 = vrcp.pop %v8346
  %v8361 = vmul.f32 1.0, %v8360
  %v8362 = vrcp.pop %v8347
  %v8363 = vmul.f32 1.0, %v8362
  %v8364 = vmul.f32 %v8278, %v8349
  %v8365 = vmul.f32 %v8283, %v8351
  %v8366 = vmul.f32 %v8288, %v8353
  %v8367 = vmul.f32 %v8293, %v8355
  %v8368 = vmul.f32 %v8298, %v8357
  %v8369 = vmul.f32 %v8303, %v8359
  %v8370 = vmul.f32 %v8308, %v8361
  %v8371 = vmul.f32 %v8313, %v8363
  %v8372 = vadd.f32 %v8364, %v6452
  %v8373 = vadd.f32 %v8365, %v6453
  %v8374 = vadd.f32 %v8366, %v6454
  %v8375 = vadd.f32 %v8367, %v6455
  %v8376 = vadd.f32 %v8368, %v6456
  %v8377 = vadd.f32 %v8369, %v6457
  %v8378 = vadd.f32 %v8370, %v6458
  %v8379 = vadd.f32 %v8371, %v6459
  %s8380 = scalar_lea.vmem %s7, 1440
  %v8381 = vld [vmem:[%s8380] sm:$0xff]
  %v8382 = vld [vmem:[%s8380 + $0x8] sm:$0xff]
  %v8383 = vld [vmem:[%s8380 + $0x10] sm:$0xff]
  %v8384 = vld [vmem:[%s8380 + $0x18] sm:$0xff]
  %s8385 = scalar_lea.vmem %s8, 37
  %v8386 = vld [vmem:[%s8385] sm:$0x1]
  %v8388 = vlaneseq
  %v8389 = vshrl.u32 %v8388, 7
  %v8390 = vsub.s32 0, %v8389
  %v8391 = vrot.slane %v8386, %v8390
  %v8394 = vsel %vm530, %v8372, 0
  %v8397 = vsel %vm530, %v8373, 0
  %v8400 = vsel %vm530, %v8374, 0
  %v8403 = vsel %vm530, %v8375, 0
  %v8406 = vsel %vm530, %v8376, 0
  %v8409 = vsel %vm530, %v8377, 0
  %v8412 = vsel %vm530, %v8378, 0
  %v8415 = vsel %vm530, %v8379, 0
  %8417 = vmatprep.subr.mxu0 0.0
  %8418 = vmatpush1.msra.mxu0 %v8381
  %8419 = vmatprep.subr.mxu0 0.0
  %8420 = vmatpush1.msra.mxu0 %v8382
  %8421 = vmatprep.subr.mxu0 0.0
  %8422 = vmatpush1.msra.mxu0 %v8383
  %8423 = vmatprep.subr.mxu0 0.0
  %8424 = vmatpush1.msra.mxu0 %v8384
  %8425 = vmatprep.subr.mxu0 0.0
  %8426 = vmatpush1.msra.mxu0 0.0
  %8427 = vmatprep.subr.mxu0 0.0
  %8428 = vmatpush1.msra.mxu0 0.0
  %8429 = vmatprep.subr.mxu0 0.0
  %8430 = vmatpush1.msra.mxu0 0.0
  %8431 = vmatprep.subr.mxu0 0.0
  %8432 = vmatpush1.msra.mxu0 0.0
  %8433 = vmatprep.subr.mxu0 0.0
  %8434 = vmatpush1.msra.mxu0 0.0
  %8435 = vmatprep.subr.mxu0 0.0
  %8436 = vmatpush1.msra.mxu0 0.0
  %8437 = vmatprep.subr.mxu0 0.0
  %8438 = vmatpush1.msra.mxu0 0.0
  %8439 = vmatprep.subr.mxu0 0.0
  %8440 = vmatpush1.msra.mxu0 0.0
  %8441 = vmatprep.subr.mxu0 0.0
  %8442 = vmatpush1.msra.mxu0 0.0
  %8443 = vmatprep.subr.mxu0 0.0
  %8444 = vmatpush1.msra.mxu0 0.0
  %8445 = vmatprep.subr.mxu0 0.0
  %8446 = vmatpush1.msra.mxu0 0.0
  %8447 = vmatprep.subr.mxu0 0.0
  %8448 = vmatpush1.msra.mxu0 0.0
  %8449 = vmatprep.subr.mxu0 0.0
  %8450 = vmatpush1.msra.mxu0 0.0
  %8451 = vmatprep.subr.mxu0 0.0
  %8452 = vmatpush1.msra.mxu0 0.0
  %8453 = vmatprep.subr.mxu0 0.0
  %8454 = vmatpush1.msra.mxu0 0.0
  %8455 = vmatprep.subr.mxu0 0.0
  %8456 = vmatpush1.msra.mxu0 0.0
  %8457 = vmatprep.subr.mxu0 0.0
  %8458 = vmatpush1.msra.mxu0 0.0
  %8459 = vmatprep.subr.mxu0 0.0
  %8460 = vmatpush1.msra.mxu0 0.0
  %8461 = vmatprep.subr.mxu0 0.0
  %8462 = vmatpush1.msra.mxu0 0.0
  %8463 = vmatprep.subr.mxu0 0.0
  %8464 = vmatpush1.msra.mxu0 0.0
  %8465 = vmatprep.subr.mxu0 0.0
  %8466 = vmatpush1.msra.mxu0 0.0
  %8467 = vmatprep.subr.mxu0 0.0
  %8468 = vmatpush1.msra.mxu0 0.0
  %8469 = vmatprep.subr.mxu0 0.0
  %8470 = vmatpush1.msra.mxu0 0.0
  %8471 = vmatprep.subr.mxu0 0.0
  %8472 = vmatpush1.msra.mxu0 0.0
  %8473 = vmatprep.subr.mxu0 0.0
  %8474 = vmatpush1.msra.mxu0 0.0
  %8475 = vmatprep.subr.mxu0 0.0
  %8476 = vmatpush1.msra.mxu0 0.0
  %8477 = vmatprep.subr.mxu0 0.0
  %8478 = vmatpush1.msra.mxu0 0.0
  %8479 = vmatprep.subr.mxu0 0.0
  %8480 = vmatpush1.msra.mxu0 0.0
  %8481 = vmatprep.mubr.f32.mxu0 0.0
  %8482 = vmatmul.mubr.f32.gmra.mrb[0].mxu0 %v8394
  %v8483 = vpop.f32.mrb[0].mxu0
  %v8484 = vadd.f32 %v8391, %v8483
  %v8485 = vpop.f32.mrb[0].mxu0
  %8486 = vmatprep.mubr.f32.mxu0 0.0
  %8487 = vmatmul.mubr.f32.gmra.mrb[0].mxu0 %v8397
  %v8488 = vpop.f32.mrb[0].mxu0
  %v8489 = vadd.f32 %v8391, %v8488
  %v8490 = vpop.f32.mrb[0].mxu0
  %8491 = vmatprep.mubr.f32.mxu0 0.0
  %8492 = vmatmul.mubr.f32.gmra.mrb[0].mxu0 %v8400
  %v8493 = vpop.f32.mrb[0].mxu0
  %v8494 = vadd.f32 %v8391, %v8493
  %v8495 = vpop.f32.mrb[0].mxu0
  %8496 = vmatprep.mubr.f32.mxu0 0.0
  %8497 = vmatmul.mubr.f32.gmra.mrb[0].mxu0 %v8403
  %v8498 = vpop.f32.mrb[0].mxu0
  %v8499 = vadd.f32 %v8391, %v8498
  %v8500 = vpop.f32.mrb[0].mxu0
  %8501 = vmatprep.mubr.f32.mxu0 0.0
  %8502 = vmatmul.mubr.f32.gmra.mrb[0].mxu0 %v8406
  %v8503 = vpop.f32.mrb[0].mxu0
  %v8504 = vadd.f32 %v8391, %v8503
  %v8505 = vpop.f32.mrb[0].mxu0
  %8506 = vmatprep.mubr.f32.mxu0 0.0
  %8507 = vmatmul.mubr.f32.gmra.mrb[0].mxu0 %v8409
  %v8508 = vpop.f32.mrb[0].mxu0
  %v8509 = vadd.f32 %v8391, %v8508
  %v8510 = vpop.f32.mrb[0].mxu0
  %8511 = vmatprep.mubr.f32.mxu0 0.0
  %8512 = vmatmul.mubr.f32.gmra.mrb[0].mxu0 %v8412
  %v8513 = vpop.f32.mrb[0].mxu0
  %v8514 = vadd.f32 %v8391, %v8513
  %v8515 = vpop.f32.mrb[0].mxu0
  %8516 = vmatprep.mubr.f32.mxu0 0.0
  %8517 = vmatmul.mubr.f32.gmra.mrb[0].mxu0 %v8415
  %v8518 = vpop.f32.mrb[0].mxu0
  %v8519 = vadd.f32 %v8391, %v8518
  %v8520 = vpop.f32.mrb[0].mxu0
  %8521 = vdwg.mxu0
  %v8522 = vxor.u32 %v8484, 2147483648
  %v8523 = vxor.u32 %v8489, 2147483648
  %v8524 = vxor.u32 %v8494, 2147483648
  %v8525 = vxor.u32 %v8499, 2147483648
  %v8526 = vxor.u32 %v8504, 2147483648
  %v8527 = vxor.u32 %v8509, 2147483648
  %v8528 = vxor.u32 %v8514, 2147483648
  %v8529 = vxor.u32 %v8519, 2147483648
  %v8530 = vmul.f32 %v8522, 1.442695
  %v8531 = vpow.pop %v8530
  %v8532 = vmul.f32 %v8523, 1.442695
  %v8533 = vpow.pop %v8532
  %v8534 = vmul.f32 %v8524, 1.442695
  %v8535 = vpow.pop %v8534
  %v8536 = vmul.f32 %v8525, 1.442695
  %v8537 = vpow.pop %v8536
  %v8538 = vmul.f32 %v8526, 1.442695
  %v8539 = vpow.pop %v8538
  %v8540 = vmul.f32 %v8527, 1.442695
  %v8541 = vpow.pop %v8540
  %v8542 = vmul.f32 %v8528, 1.442695
  %v8543 = vpow.pop %v8542
  %v8544 = vmul.f32 %v8529, 1.442695
  %v8545 = vpow.pop %v8544
  %v8546 = vadd.f32 %v8531, 1.0
  %v8547 = vadd.f32 %v8533, 1.0
  %v8548 = vadd.f32 %v8535, 1.0
  %v8549 = vadd.f32 %v8537, 1.0
  %v8550 = vadd.f32 %v8539, 1.0
  %v8551 = vadd.f32 %v8541, 1.0
  %v8552 = vadd.f32 %v8543, 1.0
  %v8553 = vadd.f32 %v8545, 1.0
  %v8554 = vrcp.pop %v8546
  %v8555 = vmul.f32 1.0, %v8554
  %v8556 = vrcp.pop %v8547
  %v8557 = vmul.f32 1.0, %v8556
  %v8558 = vrcp.pop %v8548
  %v8559 = vmul.f32 1.0, %v8558
  %v8560 = vrcp.pop %v8549
  %v8561 = vmul.f32 1.0, %v8560
  %v8562 = vrcp.pop %v8550
  %v8563 = vmul.f32 1.0, %v8562
  %v8564 = vrcp.pop %v8551
  %v8565 = vmul.f32 1.0, %v8564
  %v8566 = vrcp.pop %v8552
  %v8567 = vmul.f32 1.0, %v8566
  %v8568 = vrcp.pop %v8553
  %v8569 = vmul.f32 1.0, %v8568
  %v8570 = vmul.f32 %v8484, %v8555
  %v8571 = vmul.f32 %v8489, %v8557
  %v8572 = vmul.f32 %v8494, %v8559
  %v8573 = vmul.f32 %v8499, %v8561
  %v8574 = vmul.f32 %v8504, %v8563
  %v8575 = vmul.f32 %v8509, %v8565
  %v8576 = vmul.f32 %v8514, %v8567
  %v8577 = vmul.f32 %v8519, %v8569
  %s8578 = scalar_lea.vmem %s7, 1472
  %v8579 = vld [vmem:[%s8578] sm:$0xff]
  %v8580 = vld [vmem:[%s8578 + $0x8] sm:$0xff]
  %v8581 = vld [vmem:[%s8578 + $0x10] sm:$0xff]
  %v8582 = vld [vmem:[%s8578 + $0x18] sm:$0xff]
  %s8583 = scalar_lea.vmem %s8, 38
  %v8584 = vld [vmem:[%s8583] sm:$0x1]
  %v8586 = vlaneseq
  %v8587 = vshrl.u32 %v8586, 7
  %v8588 = vsub.s32 0, %v8587
  %v8589 = vrot.slane %v8584, %v8588
  %v8592 = vsel %vm530, %v8570, 0
  %v8595 = vsel %vm530, %v8571, 0
  %v8598 = vsel %vm530, %v8572, 0
  %v8601 = vsel %vm530, %v8573, 0
  %v8604 = vsel %vm530, %v8574, 0
  %v8607 = vsel %vm530, %v8575, 0
  %v8610 = vsel %vm530, %v8576, 0
  %v8613 = vsel %vm530, %v8577, 0
  %8615 = vmatprep.subr.mxu0 0.0
  %8616 = vmatpush1.msra.mxu0 %v8579
  %8617 = vmatprep.subr.mxu0 0.0
  %8618 = vmatpush1.msra.mxu0 %v8580
  %8619 = vmatprep.subr.mxu0 0.0
  %8620 = vmatpush1.msra.mxu0 %v8581
  %8621 = vmatprep.subr.mxu0 0.0
  %8622 = vmatpush1.msra.mxu0 %v8582
  %8623 = vmatprep.subr.mxu0 0.0
  %8624 = vmatpush1.msra.mxu0 0.0
  %8625 = vmatprep.subr.mxu0 0.0
  %8626 = vmatpush1.msra.mxu0 0.0
  %8627 = vmatprep.subr.mxu0 0.0
  %8628 = vmatpush1.msra.mxu0 0.0
  %8629 = vmatprep.subr.mxu0 0.0
  %8630 = vmatpush1.msra.mxu0 0.0
  %8631 = vmatprep.subr.mxu0 0.0
  %8632 = vmatpush1.msra.mxu0 0.0
  %8633 = vmatprep.subr.mxu0 0.0
  %8634 = vmatpush1.msra.mxu0 0.0
  %8635 = vmatprep.subr.mxu0 0.0
  %8636 = vmatpush1.msra.mxu0 0.0
  %8637 = vmatprep.subr.mxu0 0.0
  %8638 = vmatpush1.msra.mxu0 0.0
  %8639 = vmatprep.subr.mxu0 0.0
  %8640 = vmatpush1.msra.mxu0 0.0
  %8641 = vmatprep.subr.mxu0 0.0
  %8642 = vmatpush1.msra.mxu0 0.0
  %8643 = vmatprep.subr.mxu0 0.0
  %8644 = vmatpush1.msra.mxu0 0.0
  %8645 = vmatprep.subr.mxu0 0.0
  %8646 = vmatpush1.msra.mxu0 0.0
  %8647 = vmatprep.subr.mxu0 0.0
  %8648 = vmatpush1.msra.mxu0 0.0
  %8649 = vmatprep.subr.mxu0 0.0
  %8650 = vmatpush1.msra.mxu0 0.0
  %8651 = vmatprep.subr.mxu0 0.0
  %8652 = vmatpush1.msra.mxu0 0.0
  %8653 = vmatprep.subr.mxu0 0.0
  %8654 = vmatpush1.msra.mxu0 0.0
  %8655 = vmatprep.subr.mxu0 0.0
  %8656 = vmatpush1.msra.mxu0 0.0
  %8657 = vmatprep.subr.mxu0 0.0
  %8658 = vmatpush1.msra.mxu0 0.0
  %8659 = vmatprep.subr.mxu0 0.0
  %8660 = vmatpush1.msra.mxu0 0.0
  %8661 = vmatprep.subr.mxu0 0.0
  %8662 = vmatpush1.msra.mxu0 0.0
  %8663 = vmatprep.subr.mxu0 0.0
  %8664 = vmatpush1.msra.mxu0 0.0
  %8665 = vmatprep.subr.mxu0 0.0
  %8666 = vmatpush1.msra.mxu0 0.0
  %8667 = vmatprep.subr.mxu0 0.0
  %8668 = vmatpush1.msra.mxu0 0.0
  %8669 = vmatprep.subr.mxu0 0.0
  %8670 = vmatpush1.msra.mxu0 0.0
  %8671 = vmatprep.subr.mxu0 0.0
  %8672 = vmatpush1.msra.mxu0 0.0
  %8673 = vmatprep.subr.mxu0 0.0
  %8674 = vmatpush1.msra.mxu0 0.0
  %8675 = vmatprep.subr.mxu0 0.0
  %8676 = vmatpush1.msra.mxu0 0.0
  %8677 = vmatprep.subr.mxu0 0.0
  %8678 = vmatpush1.msra.mxu0 0.0
  %8679 = vmatprep.mubr.f32.mxu0 0.0
  %8680 = vmatmul.mubr.f32.gmra.mrb[0].mxu0 %v8592
  %v8681 = vpop.f32.mrb[0].mxu0
  %v8682 = vadd.f32 %v8589, %v8681
  %v8683 = vpop.f32.mrb[0].mxu0
  %8684 = vmatprep.mubr.f32.mxu0 0.0
  %8685 = vmatmul.mubr.f32.gmra.mrb[0].mxu0 %v8595
  %v8686 = vpop.f32.mrb[0].mxu0
  %v8687 = vadd.f32 %v8589, %v8686
  %v8688 = vpop.f32.mrb[0].mxu0
  %8689 = vmatprep.mubr.f32.mxu0 0.0
  %8690 = vmatmul.mubr.f32.gmra.mrb[0].mxu0 %v8598
  %v8691 = vpop.f32.mrb[0].mxu0
  %v8692 = vadd.f32 %v8589, %v8691
  %v8693 = vpop.f32.mrb[0].mxu0
  %8694 = vmatprep.mubr.f32.mxu0 0.0
  %8695 = vmatmul.mubr.f32.gmra.mrb[0].mxu0 %v8601
  %v8696 = vpop.f32.mrb[0].mxu0
  %v8697 = vadd.f32 %v8589, %v8696
  %v8698 = vpop.f32.mrb[0].mxu0
  %8699 = vmatprep.mubr.f32.mxu0 0.0
  %8700 = vmatmul.mubr.f32.gmra.mrb[0].mxu0 %v8604
  %v8701 = vpop.f32.mrb[0].mxu0
  %v8702 = vadd.f32 %v8589, %v8701
  %v8703 = vpop.f32.mrb[0].mxu0
  %8704 = vmatprep.mubr.f32.mxu0 0.0
  %8705 = vmatmul.mubr.f32.gmra.mrb[0].mxu0 %v8607
  %v8706 = vpop.f32.mrb[0].mxu0
  %v8707 = vadd.f32 %v8589, %v8706
  %v8708 = vpop.f32.mrb[0].mxu0
  %8709 = vmatprep.mubr.f32.mxu0 0.0
  %8710 = vmatmul.mubr.f32.gmra.mrb[0].mxu0 %v8610
  %v8711 = vpop.f32.mrb[0].mxu0
  %v8712 = vadd.f32 %v8589, %v8711
  %v8713 = vpop.f32.mrb[0].mxu0
  %8714 = vmatprep.mubr.f32.mxu0 0.0
  %8715 = vmatmul.mubr.f32.gmra.mrb[0].mxu0 %v8613
  %v8716 = vpop.f32.mrb[0].mxu0
  %v8717 = vadd.f32 %v8589, %v8716
  %v8718 = vpop.f32.mrb[0].mxu0
  %8719 = vdwg.mxu0
  %v8720 = vxor.u32 %v8682, 2147483648
  %v8721 = vxor.u32 %v8687, 2147483648
  %v8722 = vxor.u32 %v8692, 2147483648
  %v8723 = vxor.u32 %v8697, 2147483648
  %v8724 = vxor.u32 %v8702, 2147483648
  %v8725 = vxor.u32 %v8707, 2147483648
  %v8726 = vxor.u32 %v8712, 2147483648
  %v8727 = vxor.u32 %v8717, 2147483648
  %v8728 = vmul.f32 %v8720, 1.442695
  %v8729 = vpow.pop %v8728
  %v8730 = vmul.f32 %v8721, 1.442695
  %v8731 = vpow.pop %v8730
  %v8732 = vmul.f32 %v8722, 1.442695
  %v8733 = vpow.pop %v8732
  %v8734 = vmul.f32 %v8723, 1.442695
  %v8735 = vpow.pop %v8734
  %v8736 = vmul.f32 %v8724, 1.442695
  %v8737 = vpow.pop %v8736
  %v8738 = vmul.f32 %v8725, 1.442695
  %v8739 = vpow.pop %v8738
  %v8740 = vmul.f32 %v8726, 1.442695
  %v8741 = vpow.pop %v8740
  %v8742 = vmul.f32 %v8727, 1.442695
  %v8743 = vpow.pop %v8742
  %v8744 = vadd.f32 %v8729, 1.0
  %v8745 = vadd.f32 %v8731, 1.0
  %v8746 = vadd.f32 %v8733, 1.0
  %v8747 = vadd.f32 %v8735, 1.0
  %v8748 = vadd.f32 %v8737, 1.0
  %v8749 = vadd.f32 %v8739, 1.0
  %v8750 = vadd.f32 %v8741, 1.0
  %v8751 = vadd.f32 %v8743, 1.0
  %v8752 = vrcp.pop %v8744
  %v8753 = vmul.f32 1.0, %v8752
  %v8754 = vrcp.pop %v8745
  %v8755 = vmul.f32 1.0, %v8754
  %v8756 = vrcp.pop %v8746
  %v8757 = vmul.f32 1.0, %v8756
  %v8758 = vrcp.pop %v8747
  %v8759 = vmul.f32 1.0, %v8758
  %v8760 = vrcp.pop %v8748
  %v8761 = vmul.f32 1.0, %v8760
  %v8762 = vrcp.pop %v8749
  %v8763 = vmul.f32 1.0, %v8762
  %v8764 = vrcp.pop %v8750
  %v8765 = vmul.f32 1.0, %v8764
  %v8766 = vrcp.pop %v8751
  %v8767 = vmul.f32 1.0, %v8766
  %v8768 = vmul.f32 %v8682, %v8753
  %v8769 = vmul.f32 %v8687, %v8755
  %v8770 = vmul.f32 %v8692, %v8757
  %v8771 = vmul.f32 %v8697, %v8759
  %v8772 = vmul.f32 %v8702, %v8761
  %v8773 = vmul.f32 %v8707, %v8763
  %v8774 = vmul.f32 %v8712, %v8765
  %v8775 = vmul.f32 %v8717, %v8767
  %v8776 = vadd.f32 %v8372, %v8768
  %v8777 = vadd.f32 %v8373, %v8769
  %v8778 = vadd.f32 %v8374, %v8770
  %v8779 = vadd.f32 %v8375, %v8771
  %v8780 = vadd.f32 %v8376, %v8772
  %v8781 = vadd.f32 %v8377, %v8773
  %v8782 = vadd.f32 %v8378, %v8774
  %v8783 = vadd.f32 %v8379, %v8775
  %s8784 = scalar_lea.vmem %s7, 1504
  %v8785 = vld [vmem:[%s8784] sm:$0xff]
  %v8786 = vld [vmem:[%s8784 + $0x8] sm:$0xff]
  %v8787 = vld [vmem:[%s8784 + $0x10] sm:$0xff]
  %v8788 = vld [vmem:[%s8784 + $0x18] sm:$0xff]
  %s8789 = scalar_lea.vmem %s8, 39
  %v8790 = vld [vmem:[%s8789] sm:$0x1]
  %v8792 = vlaneseq
  %v8793 = vshrl.u32 %v8792, 7
  %v8794 = vsub.s32 0, %v8793
  %v8795 = vrot.slane %v8790, %v8794
  %v8798 = vsel %vm530, %v8776, 0
  %v8801 = vsel %vm530, %v8777, 0
  %v8804 = vsel %vm530, %v8778, 0
  %v8807 = vsel %vm530, %v8779, 0
  %v8810 = vsel %vm530, %v8780, 0
  %v8813 = vsel %vm530, %v8781, 0
  %v8816 = vsel %vm530, %v8782, 0
  %v8819 = vsel %vm530, %v8783, 0
  %8821 = vmatprep.subr.mxu0 0.0
  %8822 = vmatpush1.msra.mxu0 %v8785
  %8823 = vmatprep.subr.mxu0 0.0
  %8824 = vmatpush1.msra.mxu0 %v8786
  %8825 = vmatprep.subr.mxu0 0.0
  %8826 = vmatpush1.msra.mxu0 %v8787
  %8827 = vmatprep.subr.mxu0 0.0
  %8828 = vmatpush1.msra.mxu0 %v8788
  %8829 = vmatprep.subr.mxu0 0.0
  %8830 = vmatpush1.msra.mxu0 0.0
  %8831 = vmatprep.subr.mxu0 0.0
  %8832 = vmatpush1.msra.mxu0 0.0
  %8833 = vmatprep.subr.mxu0 0.0
  %8834 = vmatpush1.msra.mxu0 0.0
  %8835 = vmatprep.subr.mxu0 0.0
  %8836 = vmatpush1.msra.mxu0 0.0
  %8837 = vmatprep.subr.mxu0 0.0
  %8838 = vmatpush1.msra.mxu0 0.0
  %8839 = vmatprep.subr.mxu0 0.0
  %8840 = vmatpush1.msra.mxu0 0.0
  %8841 = vmatprep.subr.mxu0 0.0
  %8842 = vmatpush1.msra.mxu0 0.0
  %8843 = vmatprep.subr.mxu0 0.0
  %8844 = vmatpush1.msra.mxu0 0.0
  %8845 = vmatprep.subr.mxu0 0.0
  %8846 = vmatpush1.msra.mxu0 0.0
  %8847 = vmatprep.subr.mxu0 0.0
  %8848 = vmatpush1.msra.mxu0 0.0
  %8849 = vmatprep.subr.mxu0 0.0
  %8850 = vmatpush1.msra.mxu0 0.0
  %8851 = vmatprep.subr.mxu0 0.0
  %8852 = vmatpush1.msra.mxu0 0.0
  %8853 = vmatprep.subr.mxu0 0.0
  %8854 = vmatpush1.msra.mxu0 0.0
  %8855 = vmatprep.subr.mxu0 0.0
  %8856 = vmatpush1.msra.mxu0 0.0
  %8857 = vmatprep.subr.mxu0 0.0
  %8858 = vmatpush1.msra.mxu0 0.0
  %8859 = vmatprep.subr.mxu0 0.0
  %8860 = vmatpush1.msra.mxu0 0.0
  %8861 = vmatprep.subr.mxu0 0.0
  %8862 = vmatpush1.msra.mxu0 0.0
  %8863 = vmatprep.subr.mxu0 0.0
  %8864 = vmatpush1.msra.mxu0 0.0
  %8865 = vmatprep.subr.mxu0 0.0
  %8866 = vmatpush1.msra.mxu0 0.0
  %8867 = vmatprep.subr.mxu0 0.0
  %8868 = vmatpush1.msra.mxu0 0.0
  %8869 = vmatprep.subr.mxu0 0.0
  %8870 = vmatpush1.msra.mxu0 0.0
  %8871 = vmatprep.subr.mxu0 0.0
  %8872 = vmatpush1.msra.mxu0 0.0
  %8873 = vmatprep.subr.mxu0 0.0
  %8874 = vmatpush1.msra.mxu0 0.0
  %8875 = vmatprep.subr.mxu0 0.0
  %8876 = vmatpush1.msra.mxu0 0.0
  %8877 = vmatprep.subr.mxu0 0.0
  %8878 = vmatpush1.msra.mxu0 0.0
  %8879 = vmatprep.subr.mxu0 0.0
  %8880 = vmatpush1.msra.mxu0 0.0
  %8881 = vmatprep.subr.mxu0 0.0
  %8882 = vmatpush1.msra.mxu0 0.0
  %8883 = vmatprep.subr.mxu0 0.0
  %8884 = vmatpush1.msra.mxu0 0.0
  %8885 = vmatprep.mubr.f32.mxu0 0.0
  %8886 = vmatmul.mubr.f32.gmra.mrb[0].mxu0 %v8798
  %v8887 = vpop.f32.mrb[0].mxu0
  %v8888 = vadd.f32 %v8795, %v8887
  %v8889 = vpop.f32.mrb[0].mxu0
  %8890 = vmatprep.mubr.f32.mxu0 0.0
  %8891 = vmatmul.mubr.f32.gmra.mrb[0].mxu0 %v8801
  %v8892 = vpop.f32.mrb[0].mxu0
  %v8893 = vadd.f32 %v8795, %v8892
  %v8894 = vpop.f32.mrb[0].mxu0
  %8895 = vmatprep.mubr.f32.mxu0 0.0
  %8896 = vmatmul.mubr.f32.gmra.mrb[0].mxu0 %v8804
  %v8897 = vpop.f32.mrb[0].mxu0
  %v8898 = vadd.f32 %v8795, %v8897
  %v8899 = vpop.f32.mrb[0].mxu0
  %8900 = vmatprep.mubr.f32.mxu0 0.0
  %8901 = vmatmul.mubr.f32.gmra.mrb[0].mxu0 %v8807
  %v8902 = vpop.f32.mrb[0].mxu0
  %v8903 = vadd.f32 %v8795, %v8902
  %v8904 = vpop.f32.mrb[0].mxu0
  %8905 = vmatprep.mubr.f32.mxu0 0.0
  %8906 = vmatmul.mubr.f32.gmra.mrb[0].mxu0 %v8810
  %v8907 = vpop.f32.mrb[0].mxu0
  %v8908 = vadd.f32 %v8795, %v8907
  %v8909 = vpop.f32.mrb[0].mxu0
  %8910 = vmatprep.mubr.f32.mxu0 0.0
  %8911 = vmatmul.mubr.f32.gmra.mrb[0].mxu0 %v8813
  %v8912 = vpop.f32.mrb[0].mxu0
  %v8913 = vadd.f32 %v8795, %v8912
  %v8914 = vpop.f32.mrb[0].mxu0
  %8915 = vmatprep.mubr.f32.mxu0 0.0
  %8916 = vmatmul.mubr.f32.gmra.mrb[0].mxu0 %v8816
  %v8917 = vpop.f32.mrb[0].mxu0
  %v8918 = vadd.f32 %v8795, %v8917
  %v8919 = vpop.f32.mrb[0].mxu0
  %8920 = vmatprep.mubr.f32.mxu0 0.0
  %8921 = vmatmul.mubr.f32.gmra.mrb[0].mxu0 %v8819
  %v8922 = vpop.f32.mrb[0].mxu0
  %v8923 = vadd.f32 %v8795, %v8922
  %v8924 = vpop.f32.mrb[0].mxu0
  %8925 = vdwg.mxu0
  %v8926 = vxor.u32 %v8888, 2147483648
  %v8927 = vxor.u32 %v8893, 2147483648
  %v8928 = vxor.u32 %v8898, 2147483648
  %v8929 = vxor.u32 %v8903, 2147483648
  %v8930 = vxor.u32 %v8908, 2147483648
  %v8931 = vxor.u32 %v8913, 2147483648
  %v8932 = vxor.u32 %v8918, 2147483648
  %v8933 = vxor.u32 %v8923, 2147483648
  %v8934 = vmul.f32 %v8926, 1.442695
  %v8935 = vpow.pop %v8934
  %v8936 = vmul.f32 %v8927, 1.442695
  %v8937 = vpow.pop %v8936
  %v8938 = vmul.f32 %v8928, 1.442695
  %v8939 = vpow.pop %v8938
  %v8940 = vmul.f32 %v8929, 1.442695
  %v8941 = vpow.pop %v8940
  %v8942 = vmul.f32 %v8930, 1.442695
  %v8943 = vpow.pop %v8942
  %v8944 = vmul.f32 %v8931, 1.442695
  %v8945 = vpow.pop %v8944
  %v8946 = vmul.f32 %v8932, 1.442695
  %v8947 = vpow.pop %v8946
  %v8948 = vmul.f32 %v8933, 1.442695
  %v8949 = vpow.pop %v8948
  %v8950 = vadd.f32 %v8935, 1.0
  %v8951 = vadd.f32 %v8937, 1.0
  %v8952 = vadd.f32 %v8939, 1.0
  %v8953 = vadd.f32 %v8941, 1.0
  %v8954 = vadd.f32 %v8943, 1.0
  %v8955 = vadd.f32 %v8945, 1.0
  %v8956 = vadd.f32 %v8947, 1.0
  %v8957 = vadd.f32 %v8949, 1.0
  %v8958 = vrcp.pop %v8950
  %v8959 = vmul.f32 1.0, %v8958
  %v8960 = vrcp.pop %v8951
  %v8961 = vmul.f32 1.0, %v8960
  %v8962 = vrcp.pop %v8952
  %v8963 = vmul.f32 1.0, %v8962
  %v8964 = vrcp.pop %v8953
  %v8965 = vmul.f32 1.0, %v8964
  %v8966 = vrcp.pop %v8954
  %v8967 = vmul.f32 1.0, %v8966
  %v8968 = vrcp.pop %v8955
  %v8969 = vmul.f32 1.0, %v8968
  %v8970 = vrcp.pop %v8956
  %v8971 = vmul.f32 1.0, %v8970
  %v8972 = vrcp.pop %v8957
  %v8973 = vmul.f32 1.0, %v8972
  %v8974 = vmul.f32 %v8888, %v8959
  %v8975 = vmul.f32 %v8893, %v8961
  %v8976 = vmul.f32 %v8898, %v8963
  %v8977 = vmul.f32 %v8903, %v8965
  %v8978 = vmul.f32 %v8908, %v8967
  %v8979 = vmul.f32 %v8913, %v8969
  %v8980 = vmul.f32 %v8918, %v8971
  %v8981 = vmul.f32 %v8923, %v8973
  %s8982 = scalar_lea.vmem %s7, 1536
  %v8983 = vld [vmem:[%s8982] sm:$0xff]
  %v8984 = vld [vmem:[%s8982 + $0x8] sm:$0xff]
  %v8985 = vld [vmem:[%s8982 + $0x10] sm:$0xff]
  %v8986 = vld [vmem:[%s8982 + $0x18] sm:$0xff]
  %s8987 = scalar_lea.vmem %s8, 40
  %v8988 = vld [vmem:[%s8987] sm:$0x1]
  %v8990 = vlaneseq
  %v8991 = vshrl.u32 %v8990, 7
  %v8992 = vsub.s32 0, %v8991
  %v8993 = vrot.slane %v8988, %v8992
  %v8996 = vsel %vm530, %v8974, 0
  %v8999 = vsel %vm530, %v8975, 0
  %v9002 = vsel %vm530, %v8976, 0
  %v9005 = vsel %vm530, %v8977, 0
  %v9008 = vsel %vm530, %v8978, 0
  %v9011 = vsel %vm530, %v8979, 0
  %v9014 = vsel %vm530, %v8980, 0
  %v9017 = vsel %vm530, %v8981, 0
  %9019 = vmatprep.subr.mxu0 0.0
  %9020 = vmatpush1.msra.mxu0 %v8983
  %9021 = vmatprep.subr.mxu0 0.0
  %9022 = vmatpush1.msra.mxu0 %v8984
  %9023 = vmatprep.subr.mxu0 0.0
  %9024 = vmatpush1.msra.mxu0 %v8985
  %9025 = vmatprep.subr.mxu0 0.0
  %9026 = vmatpush1.msra.mxu0 %v8986
  %9027 = vmatprep.subr.mxu0 0.0
  %9028 = vmatpush1.msra.mxu0 0.0
  %9029 = vmatprep.subr.mxu0 0.0
  %9030 = vmatpush1.msra.mxu0 0.0
  %9031 = vmatprep.subr.mxu0 0.0
  %9032 = vmatpush1.msra.mxu0 0.0
  %9033 = vmatprep.subr.mxu0 0.0
  %9034 = vmatpush1.msra.mxu0 0.0
  %9035 = vmatprep.subr.mxu0 0.0
  %9036 = vmatpush1.msra.mxu0 0.0
  %9037 = vmatprep.subr.mxu0 0.0
  %9038 = vmatpush1.msra.mxu0 0.0
  %9039 = vmatprep.subr.mxu0 0.0
  %9040 = vmatpush1.msra.mxu0 0.0
  %9041 = vmatprep.subr.mxu0 0.0
  %9042 = vmatpush1.msra.mxu0 0.0
  %9043 = vmatprep.subr.mxu0 0.0
  %9044 = vmatpush1.msra.mxu0 0.0
  %9045 = vmatprep.subr.mxu0 0.0
  %9046 = vmatpush1.msra.mxu0 0.0
  %9047 = vmatprep.subr.mxu0 0.0
  %9048 = vmatpush1.msra.mxu0 0.0
  %9049 = vmatprep.subr.mxu0 0.0
  %9050 = vmatpush1.msra.mxu0 0.0
  %9051 = vmatprep.subr.mxu0 0.0
  %9052 = vmatpush1.msra.mxu0 0.0
  %9053 = vmatprep.subr.mxu0 0.0
  %9054 = vmatpush1.msra.mxu0 0.0
  %9055 = vmatprep.subr.mxu0 0.0
  %9056 = vmatpush1.msra.mxu0 0.0
  %9057 = vmatprep.subr.mxu0 0.0
  %9058 = vmatpush1.msra.mxu0 0.0
  %9059 = vmatprep.subr.mxu0 0.0
  %9060 = vmatpush1.msra.mxu0 0.0
  %9061 = vmatprep.subr.mxu0 0.0
  %9062 = vmatpush1.msra.mxu0 0.0
  %9063 = vmatprep.subr.mxu0 0.0
  %9064 = vmatpush1.msra.mxu0 0.0
  %9065 = vmatprep.subr.mxu0 0.0
  %9066 = vmatpush1.msra.mxu0 0.0
  %9067 = vmatprep.subr.mxu0 0.0
  %9068 = vmatpush1.msra.mxu0 0.0
  %9069 = vmatprep.subr.mxu0 0.0
  %9070 = vmatpush1.msra.mxu0 0.0
  %9071 = vmatprep.subr.mxu0 0.0
  %9072 = vmatpush1.msra.mxu0 0.0
  %9073 = vmatprep.subr.mxu0 0.0
  %9074 = vmatpush1.msra.mxu0 0.0
  %9075 = vmatprep.subr.mxu0 0.0
  %9076 = vmatpush1.msra.mxu0 0.0
  %9077 = vmatprep.subr.mxu0 0.0
  %9078 = vmatpush1.msra.mxu0 0.0
  %9079 = vmatprep.subr.mxu0 0.0
  %9080 = vmatpush1.msra.mxu0 0.0
  %9081 = vmatprep.subr.mxu0 0.0
  %9082 = vmatpush1.msra.mxu0 0.0
  %9083 = vmatprep.mubr.f32.mxu0 0.0
  %9084 = vmatmul.mubr.f32.gmra.mrb[0].mxu0 %v8996
  %v9085 = vpop.f32.mrb[0].mxu0
  %v9086 = vadd.f32 %v8993, %v9085
  %v9087 = vpop.f32.mrb[0].mxu0
  %9088 = vmatprep.mubr.f32.mxu0 0.0
  %9089 = vmatmul.mubr.f32.gmra.mrb[0].mxu0 %v8999
  %v9090 = vpop.f32.mrb[0].mxu0
  %v9091 = vadd.f32 %v8993, %v9090
  %v9092 = vpop.f32.mrb[0].mxu0
  %9093 = vmatprep.mubr.f32.mxu0 0.0
  %9094 = vmatmul.mubr.f32.gmra.mrb[0].mxu0 %v9002
  %v9095 = vpop.f32.mrb[0].mxu0
  %v9096 = vadd.f32 %v8993, %v9095
  %v9097 = vpop.f32.mrb[0].mxu0
  %9098 = vmatprep.mubr.f32.mxu0 0.0
  %9099 = vmatmul.mubr.f32.gmra.mrb[0].mxu0 %v9005
  %v9100 = vpop.f32.mrb[0].mxu0
  %v9101 = vadd.f32 %v8993, %v9100
  %v9102 = vpop.f32.mrb[0].mxu0
  %9103 = vmatprep.mubr.f32.mxu0 0.0
  %9104 = vmatmul.mubr.f32.gmra.mrb[0].mxu0 %v9008
  %v9105 = vpop.f32.mrb[0].mxu0
  %v9106 = vadd.f32 %v8993, %v9105
  %v9107 = vpop.f32.mrb[0].mxu0
  %9108 = vmatprep.mubr.f32.mxu0 0.0
  %9109 = vmatmul.mubr.f32.gmra.mrb[0].mxu0 %v9011
  %v9110 = vpop.f32.mrb[0].mxu0
  %v9111 = vadd.f32 %v8993, %v9110
  %v9112 = vpop.f32.mrb[0].mxu0
  %9113 = vmatprep.mubr.f32.mxu0 0.0
  %9114 = vmatmul.mubr.f32.gmra.mrb[0].mxu0 %v9014
  %v9115 = vpop.f32.mrb[0].mxu0
  %v9116 = vadd.f32 %v8993, %v9115
  %v9117 = vpop.f32.mrb[0].mxu0
  %9118 = vmatprep.mubr.f32.mxu0 0.0
  %9119 = vmatmul.mubr.f32.gmra.mrb[0].mxu0 %v9017
  %v9120 = vpop.f32.mrb[0].mxu0
  %v9121 = vadd.f32 %v8993, %v9120
  %v9122 = vpop.f32.mrb[0].mxu0
  %9123 = vdwg.mxu0
  %v9124 = vxor.u32 %v9086, 2147483648
  %v9125 = vxor.u32 %v9091, 2147483648
  %v9126 = vxor.u32 %v9096, 2147483648
  %v9127 = vxor.u32 %v9101, 2147483648
  %v9128 = vxor.u32 %v9106, 2147483648
  %v9129 = vxor.u32 %v9111, 2147483648
  %v9130 = vxor.u32 %v9116, 2147483648
  %v9131 = vxor.u32 %v9121, 2147483648
  %v9132 = vmul.f32 %v9124, 1.442695
  %v9133 = vpow.pop %v9132
  %v9134 = vmul.f32 %v9125, 1.442695
  %v9135 = vpow.pop %v9134
  %v9136 = vmul.f32 %v9126, 1.442695
  %v9137 = vpow.pop %v9136
  %v9138 = vmul.f32 %v9127, 1.442695
  %v9139 = vpow.pop %v9138
  %v9140 = vmul.f32 %v9128, 1.442695
  %v9141 = vpow.pop %v9140
  %v9142 = vmul.f32 %v9129, 1.442695
  %v9143 = vpow.pop %v9142
  %v9144 = vmul.f32 %v9130, 1.442695
  %v9145 = vpow.pop %v9144
  %v9146 = vmul.f32 %v9131, 1.442695
  %v9147 = vpow.pop %v9146
  %v9148 = vadd.f32 %v9133, 1.0
  %v9149 = vadd.f32 %v9135, 1.0
  %v9150 = vadd.f32 %v9137, 1.0
  %v9151 = vadd.f32 %v9139, 1.0
  %v9152 = vadd.f32 %v9141, 1.0
  %v9153 = vadd.f32 %v9143, 1.0
  %v9154 = vadd.f32 %v9145, 1.0
  %v9155 = vadd.f32 %v9147, 1.0
  %v9156 = vrcp.pop %v9148
  %v9157 = vmul.f32 1.0, %v9156
  %v9158 = vrcp.pop %v9149
  %v9159 = vmul.f32 1.0, %v9158
  %v9160 = vrcp.pop %v9150
  %v9161 = vmul.f32 1.0, %v9160
  %v9162 = vrcp.pop %v9151
  %v9163 = vmul.f32 1.0, %v9162
  %v9164 = vrcp.pop %v9152
  %v9165 = vmul.f32 1.0, %v9164
  %v9166 = vrcp.pop %v9153
  %v9167 = vmul.f32 1.0, %v9166
  %v9168 = vrcp.pop %v9154
  %v9169 = vmul.f32 1.0, %v9168
  %v9170 = vrcp.pop %v9155
  %v9171 = vmul.f32 1.0, %v9170
  %v9172 = vmul.f32 %v9086, %v9157
  %v9173 = vmul.f32 %v9091, %v9159
  %v9174 = vmul.f32 %v9096, %v9161
  %v9175 = vmul.f32 %v9101, %v9163
  %v9176 = vmul.f32 %v9106, %v9165
  %v9177 = vmul.f32 %v9111, %v9167
  %v9178 = vmul.f32 %v9116, %v9169
  %v9179 = vmul.f32 %v9121, %v9171
  %v9180 = vadd.f32 %v8776, %v9172
  %v9181 = vadd.f32 %v8777, %v9173
  %v9182 = vadd.f32 %v8778, %v9174
  %v9183 = vadd.f32 %v8779, %v9175
  %v9184 = vadd.f32 %v8780, %v9176
  %v9185 = vadd.f32 %v8781, %v9177
  %v9186 = vadd.f32 %v8782, %v9178
  %v9187 = vadd.f32 %v8783, %v9179
  %s9188 = scalar_lea.vmem %s9, 32
  %v9189 = vld [vmem:[%s9188] sm:$0xff]
  %9190 = vmatprep.subr.mxu0 0.0
  %9191 = vmatpush1.msra.mxu0 %v9189
  %9192 = vmatprep.subr.mxu0 0.0
  %9193 = vmatpush1.msra.mxu0 0.0
  %9194 = vmatprep.subr.mxu0 0.0
  %9195 = vmatpush1.msra.mxu0 0.0
  %9196 = vmatprep.subr.mxu0 0.0
  %9197 = vmatpush1.msra.mxu0 0.0
  %9198 = vmatprep.subr.mxu0 0.0
  %9199 = vmatpush1.msra.mxu0 0.0
  %9200 = vmatprep.subr.mxu0 0.0
  %9201 = vmatpush1.msra.mxu0 0.0
  %9202 = vmatprep.subr.mxu0 0.0
  %9203 = vmatpush1.msra.mxu0 0.0
  %9204 = vmatprep.subr.mxu0 0.0
  %9205 = vmatpush1.msra.mxu0 0.0
  %9206 = vmatprep.subr.mxu0 0.0
  %9207 = vmatpush1.msra.mxu0 0.0
  %9208 = vmatprep.subr.mxu0 0.0
  %9209 = vmatpush1.msra.mxu0 0.0
  %9210 = vmatprep.subr.mxu0 0.0
  %9211 = vmatpush1.msra.mxu0 0.0
  %9212 = vmatprep.subr.mxu0 0.0
  %9213 = vmatpush1.msra.mxu0 0.0
  %9214 = vmatprep.subr.mxu0 0.0
  %9215 = vmatpush1.msra.mxu0 0.0
  %9216 = vmatprep.subr.mxu0 0.0
  %9217 = vmatpush1.msra.mxu0 0.0
  %9218 = vmatprep.subr.mxu0 0.0
  %9219 = vmatpush1.msra.mxu0 0.0
  %9220 = vmatprep.subr.mxu0 0.0
  %9221 = vmatpush1.msra.mxu0 0.0
  %9222 = vmatprep.subr.mxu0 0.0
  %9223 = vmatpush1.msra.mxu0 0.0
  %9224 = vmatprep.subr.mxu0 0.0
  %9225 = vmatpush1.msra.mxu0 0.0
  %9226 = vmatprep.subr.mxu0 0.0
  %9227 = vmatpush1.msra.mxu0 0.0
  %9228 = vmatprep.subr.mxu0 0.0
  %9229 = vmatpush1.msra.mxu0 0.0
  %9230 = vmatprep.subr.mxu0 0.0
  %9231 = vmatpush1.msra.mxu0 0.0
  %9232 = vmatprep.subr.mxu0 0.0
  %9233 = vmatpush1.msra.mxu0 0.0
  %9234 = vmatprep.subr.mxu0 0.0
  %9235 = vmatpush1.msra.mxu0 0.0
  %9236 = vmatprep.subr.mxu0 0.0
  %9237 = vmatpush1.msra.mxu0 0.0
  %9238 = vmatprep.subr.mxu0 0.0
  %9239 = vmatpush1.msra.mxu0 0.0
  %9240 = vmatprep.subr.mxu0 0.0
  %9241 = vmatpush1.msra.mxu0 0.0
  %9242 = vmatprep.subr.mxu0 0.0
  %9243 = vmatpush1.msra.mxu0 0.0
  %9244 = vmatprep.subr.mxu0 0.0
  %9245 = vmatpush1.msra.mxu0 0.0
  %9246 = vmatprep.subr.mxu0 0.0
  %9247 = vmatpush1.msra.mxu0 0.0
  %9248 = vmatprep.subr.mxu0 0.0
  %9249 = vmatpush1.msra.mxu0 0.0
  %9250 = vmatprep.subr.mxu0 0.0
  %9251 = vmatpush1.msra.mxu0 0.0
  %9252 = vmatprep.subr.mxu0 0.0
  %9253 = vmatpush1.msra.mxu0 0.0
  %9254 = vmatprep.mubr.f32.mxu0 0.0
  %9255 = vmatmul.mubr.f32.gmra.mrb[0].mxu0 %v63
  %v9256 = vpop.f32.mrb[0].mxu0
  %v9257 = vadd.f32 0.0, %v9256
  %v9258 = vpop.f32.mrb[0].mxu0
  %9259 = vmatprep.mubr.f32.mxu0 0.0
  %9260 = vmatmul.mubr.f32.gmra.mrb[0].mxu0 %v66
  %v9261 = vpop.f32.mrb[0].mxu0
  %v9262 = vadd.f32 0.0, %v9261
  %v9263 = vpop.f32.mrb[0].mxu0
  %9264 = vmatprep.mubr.f32.mxu0 0.0
  %9265 = vmatmul.mubr.f32.gmra.mrb[0].mxu0 %v69
  %v9266 = vpop.f32.mrb[0].mxu0
  %v9267 = vadd.f32 0.0, %v9266
  %v9268 = vpop.f32.mrb[0].mxu0
  %9269 = vmatprep.mubr.f32.mxu0 0.0
  %9270 = vmatmul.mubr.f32.gmra.mrb[0].mxu0 %v72
  %v9271 = vpop.f32.mrb[0].mxu0
  %v9272 = vadd.f32 0.0, %v9271
  %v9273 = vpop.f32.mrb[0].mxu0
  %9274 = vmatprep.mubr.f32.mxu0 0.0
  %9275 = vmatmul.mubr.f32.gmra.mrb[0].mxu0 %v75
  %v9276 = vpop.f32.mrb[0].mxu0
  %v9277 = vadd.f32 0.0, %v9276
  %v9278 = vpop.f32.mrb[0].mxu0
  %9279 = vmatprep.mubr.f32.mxu0 0.0
  %9280 = vmatmul.mubr.f32.gmra.mrb[0].mxu0 %v78
  %v9281 = vpop.f32.mrb[0].mxu0
  %v9282 = vadd.f32 0.0, %v9281
  %v9283 = vpop.f32.mrb[0].mxu0
  %9284 = vmatprep.mubr.f32.mxu0 0.0
  %9285 = vmatmul.mubr.f32.gmra.mrb[0].mxu0 %v81
  %v9286 = vpop.f32.mrb[0].mxu0
  %v9287 = vadd.f32 0.0, %v9286
  %v9288 = vpop.f32.mrb[0].mxu0
  %9289 = vmatprep.mubr.f32.mxu0 0.0
  %9290 = vmatmul.mubr.f32.gmra.mrb[0].mxu0 %v84
  %v9291 = vpop.f32.mrb[0].mxu0
  %v9292 = vadd.f32 0.0, %v9291
  %v9293 = vpop.f32.mrb[0].mxu0
  %9294 = vdwg.mxu0
  %v9295 = vmul.f32 %v9257, %v9180
  %v9296 = vmul.f32 %v9262, %v9181
  %v9297 = vmul.f32 %v9267, %v9182
  %v9298 = vmul.f32 %v9272, %v9183
  %v9299 = vmul.f32 %v9277, %v9184
  %v9300 = vmul.f32 %v9282, %v9185
  %v9301 = vmul.f32 %v9287, %v9186
  %v9302 = vmul.f32 %v9292, %v9187
  %9303 = vmatprep.subr.mxu0 0.0
  %9304 = vmatpush1.msra.mxu0 %v9295
  %9305 = vmatprep.subr.mxu0 0.0
  %9306 = vmatpush1.msra.mxu0 %v9296
  %9307 = vmatprep.subr.mxu0 0.0
  %9308 = vmatpush1.msra.mxu0 %v9297
  %9309 = vmatprep.subr.mxu0 0.0
  %9310 = vmatpush1.msra.mxu0 %v9298
  %9311 = vmatprep.subr.mxu0 0.0
  %9312 = vmatpush1.msra.mxu0 %v9299
  %9313 = vmatprep.subr.mxu0 0.0
  %9314 = vmatpush1.msra.mxu0 %v9300
  %9315 = vmatprep.subr.mxu0 0.0
  %9316 = vmatpush1.msra.mxu0 %v9301
  %9317 = vmatprep.subr.mxu0 0.0
  %9318 = vmatpush1.msra.mxu0 %v9302
  %9319 = vmatprep.subr.mxu0 0.0
  %9320 = vmatpush1.msra.mxu0 0.0
  %9321 = vmatprep.subr.mxu0 0.0
  %9322 = vmatpush1.msra.mxu0 0.0
  %9323 = vmatprep.subr.mxu0 0.0
  %9324 = vmatpush1.msra.mxu0 0.0
  %9325 = vmatprep.subr.mxu0 0.0
  %9326 = vmatpush1.msra.mxu0 0.0
  %9327 = vmatprep.subr.mxu0 0.0
  %9328 = vmatpush1.msra.mxu0 0.0
  %9329 = vmatprep.subr.mxu0 0.0
  %9330 = vmatpush1.msra.mxu0 0.0
  %9331 = vmatprep.subr.mxu0 0.0
  %9332 = vmatpush1.msra.mxu0 0.0
  %9333 = vmatprep.subr.mxu0 0.0
  %9334 = vmatpush1.msra.mxu0 0.0
  %9335 = vmatprep.subr.mxu0 0.0
  %9336 = vmatpush1.msra.mxu0 0.0
  %9337 = vmatprep.subr.mxu0 0.0
  %9338 = vmatpush1.msra.mxu0 0.0
  %9339 = vmatprep.subr.mxu0 0.0
  %9340 = vmatpush1.msra.mxu0 0.0
  %9341 = vmatprep.subr.mxu0 0.0
  %9342 = vmatpush1.msra.mxu0 0.0
  %9343 = vmatprep.subr.mxu0 0.0
  %9344 = vmatpush1.msra.mxu0 0.0
  %9345 = vmatprep.subr.mxu0 0.0
  %9346 = vmatpush1.msra.mxu0 0.0
  %9347 = vmatprep.subr.mxu0 0.0
  %9348 = vmatpush1.msra.mxu0 0.0
  %9349 = vmatprep.subr.mxu0 0.0
  %9350 = vmatpush1.msra.mxu0 0.0
  %9351 = vmatprep.subr.mxu0 0.0
  %9352 = vmatpush1.msra.mxu0 0.0
  %9353 = vmatprep.subr.mxu0 0.0
  %9354 = vmatpush1.msra.mxu0 0.0
  %9355 = vmatprep.subr.mxu0 0.0
  %9356 = vmatpush1.msra.mxu0 0.0
  %9357 = vmatprep.subr.mxu0 0.0
  %9358 = vmatpush1.msra.mxu0 0.0
  %9359 = vmatprep.subr.mxu0 0.0
  %9360 = vmatpush1.msra.mxu0 0.0
  %9361 = vmatprep.subr.mxu0 0.0
  %9362 = vmatpush1.msra.mxu0 0.0
  %9363 = vmatprep.subr.mxu0 0.0
  %9364 = vmatpush1.msra.mxu0 0.0
  %9365 = vmatprep.subr.mxu0 0.0
  %9366 = vmatpush1.msra.mxu0 0.0
  %9367 = vmatprep.mubr.f32.mxu0 0.0
  %9368 = vmatmul.mubr.f32.gmra.mrb[0].mxu0 %v1120
  %v9369 = vpop.f32.mrb[0].mxu0
  %v9370 = vadd.f32 0.0, %v9369
  %v9371 = vpop.f32.mrb[0].mxu0
  %9372 = vdwg.mxu0
  %s9373 = scalar_lea.vmem %s7, 480
  %v9374 = vld [vmem:[%s9373] sm:$0xff]
  %v9375 = vld [vmem:[%s9373 + $0x8] sm:$0xff]
  %v9376 = vld [vmem:[%s9373 + $0x10] sm:$0xff]
  %v9377 = vld [vmem:[%s9373 + $0x18] sm:$0xff]
  %s9378 = scalar_lea.vmem %s8, 11
  %v9379 = vld [vmem:[%s9378] sm:$0x1]
  %v9381 = vlaneseq
  %v9382 = vshrl.u32 %v9381, 7
  %v9383 = vsub.s32 0, %v9382
  %v9384 = vrot.slane %v9379, %v9383
  %v9387 = vsel %vm530, %v9370, 0
  %9389 = vmatprep.subr.mxu0 0.0
  %9390 = vmatpush1.msra.mxu0 %v9374
  %9391 = vmatprep.subr.mxu0 0.0
  %9392 = vmatpush1.msra.mxu0 %v9375
  %9393 = vmatprep.subr.mxu0 0.0
  %9394 = vmatpush1.msra.mxu0 %v9376
  %9395 = vmatprep.subr.mxu0 0.0
  %9396 = vmatpush1.msra.mxu0 %v9377
  %9397 = vmatprep.subr.mxu0 0.0
  %9398 = vmatpush1.msra.mxu0 0.0
  %9399 = vmatprep.subr.mxu0 0.0
  %9400 = vmatpush1.msra.mxu0 0.0
  %9401 = vmatprep.subr.mxu0 0.0
  %9402 = vmatpush1.msra.mxu0 0.0
  %9403 = vmatprep.subr.mxu0 0.0
  %9404 = vmatpush1.msra.mxu0 0.0
  %9405 = vmatprep.subr.mxu0 0.0
  %9406 = vmatpush1.msra.mxu0 0.0
  %9407 = vmatprep.subr.mxu0 0.0
  %9408 = vmatpush1.msra.mxu0 0.0
  %9409 = vmatprep.subr.mxu0 0.0
  %9410 = vmatpush1.msra.mxu0 0.0
  %9411 = vmatprep.subr.mxu0 0.0
  %9412 = vmatpush1.msra.mxu0 0.0
  %9413 = vmatprep.subr.mxu0 0.0
  %9414 = vmatpush1.msra.mxu0 0.0
  %9415 = vmatprep.subr.mxu0 0.0
  %9416 = vmatpush1.msra.mxu0 0.0
  %9417 = vmatprep.subr.mxu0 0.0
  %9418 = vmatpush1.msra.mxu0 0.0
  %9419 = vmatprep.subr.mxu0 0.0
  %9420 = vmatpush1.msra.mxu0 0.0
  %9421 = vmatprep.subr.mxu0 0.0
  %9422 = vmatpush1.msra.mxu0 0.0
  %9423 = vmatprep.subr.mxu0 0.0
  %9424 = vmatpush1.msra.mxu0 0.0
  %9425 = vmatprep.subr.mxu0 0.0
  %9426 = vmatpush1.msra.mxu0 0.0
  %9427 = vmatprep.subr.mxu0 0.0
  %9428 = vmatpush1.msra.mxu0 0.0
  %9429 = vmatprep.subr.mxu0 0.0
  %9430 = vmatpush1.msra.mxu0 0.0
  %9431 = vmatprep.subr.mxu0 0.0
  %9432 = vmatpush1.msra.mxu0 0.0
  %9433 = vmatprep.subr.mxu0 0.0
  %9434 = vmatpush1.msra.mxu0 0.0
  %9435 = vmatprep.subr.mxu0 0.0
  %9436 = vmatpush1.msra.mxu0 0.0
  %9437 = vmatprep.subr.mxu0 0.0
  %9438 = vmatpush1.msra.mxu0 0.0
  %9439 = vmatprep.subr.mxu0 0.0
  %9440 = vmatpush1.msra.mxu0 0.0
  %9441 = vmatprep.subr.mxu0 0.0
  %9442 = vmatpush1.msra.mxu0 0.0
  %9443 = vmatprep.subr.mxu0 0.0
  %9444 = vmatpush1.msra.mxu0 0.0
  %9445 = vmatprep.subr.mxu0 0.0
  %9446 = vmatpush1.msra.mxu0 0.0
  %9447 = vmatprep.subr.mxu0 0.0
  %9448 = vmatpush1.msra.mxu0 0.0
  %9449 = vmatprep.subr.mxu0 0.0
  %9450 = vmatpush1.msra.mxu0 0.0
  %9451 = vmatprep.subr.mxu0 0.0
  %9452 = vmatpush1.msra.mxu0 0.0
  %9453 = vmatprep.mubr.f32.mxu0 0.0
  %9454 = vmatmul.mubr.f32.gmra.mrb[0].mxu0 %v9387
  %v9455 = vpop.f32.mrb[0].mxu0
  %v9456 = vadd.f32 %v9384, %v9455
  %v9457 = vpop.f32.mrb[0].mxu0
  %9458 = vdwg.mxu0
  %v9459 = vxor.u32 %v9456, 2147483648
  %v9460 = vmul.f32 %v9459, 1.442695
  %v9461 = vpow.pop %v9460
  %v9462 = vadd.f32 %v9461, 1.0
  %v9463 = vrcp.pop %v9462
  %v9464 = vmul.f32 1.0, %v9463
  %v9465 = vmul.f32 %v9456, %v9464
  %s9466 = scalar_lea.vmem %s7, 512
  %v9467 = vld [vmem:[%s9466] sm:$0xff]
  %v9468 = vld [vmem:[%s9466 + $0x8] sm:$0xff]
  %v9469 = vld [vmem:[%s9466 + $0x10] sm:$0xff]
  %v9470 = vld [vmem:[%s9466 + $0x18] sm:$0xff]
  %s9471 = scalar_lea.vmem %s8, 12
  %v9472 = vld [vmem:[%s9471] sm:$0x1]
  %v9474 = vlaneseq
  %v9475 = vshrl.u32 %v9474, 7
  %v9476 = vsub.s32 0, %v9475
  %v9477 = vrot.slane %v9472, %v9476
  %v9480 = vsel %vm530, %v9465, 0
  %9482 = vmatprep.subr.mxu0 0.0
  %9483 = vmatpush1.msra.mxu0 %v9467
  %9484 = vmatprep.subr.mxu0 0.0
  %9485 = vmatpush1.msra.mxu0 %v9468
  %9486 = vmatprep.subr.mxu0 0.0
  %9487 = vmatpush1.msra.mxu0 %v9469
  %9488 = vmatprep.subr.mxu0 0.0
  %9489 = vmatpush1.msra.mxu0 %v9470
  %9490 = vmatprep.subr.mxu0 0.0
  %9491 = vmatpush1.msra.mxu0 0.0
  %9492 = vmatprep.subr.mxu0 0.0
  %9493 = vmatpush1.msra.mxu0 0.0
  %9494 = vmatprep.subr.mxu0 0.0
  %9495 = vmatpush1.msra.mxu0 0.0
  %9496 = vmatprep.subr.mxu0 0.0
  %9497 = vmatpush1.msra.mxu0 0.0
  %9498 = vmatprep.subr.mxu0 0.0
  %9499 = vmatpush1.msra.mxu0 0.0
  %9500 = vmatprep.subr.mxu0 0.0
  %9501 = vmatpush1.msra.mxu0 0.0
  %9502 = vmatprep.subr.mxu0 0.0
  %9503 = vmatpush1.msra.mxu0 0.0
  %9504 = vmatprep.subr.mxu0 0.0
  %9505 = vmatpush1.msra.mxu0 0.0
  %9506 = vmatprep.subr.mxu0 0.0
  %9507 = vmatpush1.msra.mxu0 0.0
  %9508 = vmatprep.subr.mxu0 0.0
  %9509 = vmatpush1.msra.mxu0 0.0
  %9510 = vmatprep.subr.mxu0 0.0
  %9511 = vmatpush1.msra.mxu0 0.0
  %9512 = vmatprep.subr.mxu0 0.0
  %9513 = vmatpush1.msra.mxu0 0.0
  %9514 = vmatprep.subr.mxu0 0.0
  %9515 = vmatpush1.msra.mxu0 0.0
  %9516 = vmatprep.subr.mxu0 0.0
  %9517 = vmatpush1.msra.mxu0 0.0
  %9518 = vmatprep.subr.mxu0 0.0
  %9519 = vmatpush1.msra.mxu0 0.0
  %9520 = vmatprep.subr.mxu0 0.0
  %9521 = vmatpush1.msra.mxu0 0.0
  %9522 = vmatprep.subr.mxu0 0.0
  %9523 = vmatpush1.msra.mxu0 0.0
  %9524 = vmatprep.subr.mxu0 0.0
  %9525 = vmatpush1.msra.mxu0 0.0
  %9526 = vmatprep.subr.mxu0 0.0
  %9527 = vmatpush1.msra.mxu0 0.0
  %9528 = vmatprep.subr.mxu0 0.0
  %9529 = vmatpush1.msra.mxu0 0.0
  %9530 = vmatprep.subr.mxu0 0.0
  %9531 = vmatpush1.msra.mxu0 0.0
  %9532 = vmatprep.subr.mxu0 0.0
  %9533 = vmatpush1.msra.mxu0 0.0
  %9534 = vmatprep.subr.mxu0 0.0
  %9535 = vmatpush1.msra.mxu0 0.0
  %9536 = vmatprep.subr.mxu0 0.0
  %9537 = vmatpush1.msra.mxu0 0.0
  %9538 = vmatprep.subr.mxu0 0.0
  %9539 = vmatpush1.msra.mxu0 0.0
  %9540 = vmatprep.subr.mxu0 0.0
  %9541 = vmatpush1.msra.mxu0 0.0
  %9542 = vmatprep.subr.mxu0 0.0
  %9543 = vmatpush1.msra.mxu0 0.0
  %9544 = vmatprep.subr.mxu0 0.0
  %9545 = vmatpush1.msra.mxu0 0.0
  %9546 = vmatprep.mubr.f32.mxu0 0.0
  %9547 = vmatmul.mubr.f32.gmra.mrb[0].mxu0 %v9480
  %v9548 = vpop.f32.mrb[0].mxu0
  %v9549 = vadd.f32 %v9477, %v9548
  %v9550 = vpop.f32.mrb[0].mxu0
  %9551 = vdwg.mxu0
  %v9552 = vxor.u32 %v9549, 2147483648
  %v9553 = vmul.f32 %v9552, 1.442695
  %v9554 = vpow.pop %v9553
  %v9555 = vadd.f32 %v9554, 1.0
  %v9556 = vrcp.pop %v9555
  %v9557 = vmul.f32 1.0, %v9556
  %v9558 = vmul.f32 %v9549, %v9557
  %s9559 = scalar_lea.vmem %s7, 544
  %v9560 = vld [vmem:[%s9559] sm:$0xff]
  %v9561 = vld [vmem:[%s9559 + $0x8] sm:$0xff]
  %v9562 = vld [vmem:[%s9559 + $0x10] sm:$0xff]
  %v9563 = vld [vmem:[%s9559 + $0x18] sm:$0xff]
  %s9564 = scalar_lea.vmem %s8, 13
  %v9565 = vld [vmem:[%s9564] sm:$0x1]
  %v9567 = vlaneseq
  %v9568 = vshrl.u32 %v9567, 7
  %v9569 = vsub.s32 0, %v9568
  %v9570 = vrot.slane %v9565, %v9569
  %v9573 = vsel %vm530, %v9558, 0
  %9575 = vmatprep.subr.mxu0 0.0
  %9576 = vmatpush1.msra.mxu0 %v9560
  %9577 = vmatprep.subr.mxu0 0.0
  %9578 = vmatpush1.msra.mxu0 %v9561
  %9579 = vmatprep.subr.mxu0 0.0
  %9580 = vmatpush1.msra.mxu0 %v9562
  %9581 = vmatprep.subr.mxu0 0.0
  %9582 = vmatpush1.msra.mxu0 %v9563
  %9583 = vmatprep.subr.mxu0 0.0
  %9584 = vmatpush1.msra.mxu0 0.0
  %9585 = vmatprep.subr.mxu0 0.0
  %9586 = vmatpush1.msra.mxu0 0.0
  %9587 = vmatprep.subr.mxu0 0.0
  %9588 = vmatpush1.msra.mxu0 0.0
  %9589 = vmatprep.subr.mxu0 0.0
  %9590 = vmatpush1.msra.mxu0 0.0
  %9591 = vmatprep.subr.mxu0 0.0
  %9592 = vmatpush1.msra.mxu0 0.0
  %9593 = vmatprep.subr.mxu0 0.0
  %9594 = vmatpush1.msra.mxu0 0.0
  %9595 = vmatprep.subr.mxu0 0.0
  %9596 = vmatpush1.msra.mxu0 0.0
  %9597 = vmatprep.subr.mxu0 0.0
  %9598 = vmatpush1.msra.mxu0 0.0
  %9599 = vmatprep.subr.mxu0 0.0
  %9600 = vmatpush1.msra.mxu0 0.0
  %9601 = vmatprep.subr.mxu0 0.0
  %9602 = vmatpush1.msra.mxu0 0.0
  %9603 = vmatprep.subr.mxu0 0.0
  %9604 = vmatpush1.msra.mxu0 0.0
  %9605 = vmatprep.subr.mxu0 0.0
  %9606 = vmatpush1.msra.mxu0 0.0
  %9607 = vmatprep.subr.mxu0 0.0
  %9608 = vmatpush1.msra.mxu0 0.0
  %9609 = vmatprep.subr.mxu0 0.0
  %9610 = vmatpush1.msra.mxu0 0.0
  %9611 = vmatprep.subr.mxu0 0.0
  %9612 = vmatpush1.msra.mxu0 0.0
  %9613 = vmatprep.subr.mxu0 0.0
  %9614 = vmatpush1.msra.mxu0 0.0
  %9615 = vmatprep.subr.mxu0 0.0
  %9616 = vmatpush1.msra.mxu0 0.0
  %9617 = vmatprep.subr.mxu0 0.0
  %9618 = vmatpush1.msra.mxu0 0.0
  %9619 = vmatprep.subr.mxu0 0.0
  %9620 = vmatpush1.msra.mxu0 0.0
  %9621 = vmatprep.subr.mxu0 0.0
  %9622 = vmatpush1.msra.mxu0 0.0
  %9623 = vmatprep.subr.mxu0 0.0
  %9624 = vmatpush1.msra.mxu0 0.0
  %9625 = vmatprep.subr.mxu0 0.0
  %9626 = vmatpush1.msra.mxu0 0.0
  %9627 = vmatprep.subr.mxu0 0.0
  %9628 = vmatpush1.msra.mxu0 0.0
  %9629 = vmatprep.subr.mxu0 0.0
  %9630 = vmatpush1.msra.mxu0 0.0
  %9631 = vmatprep.subr.mxu0 0.0
  %9632 = vmatpush1.msra.mxu0 0.0
  %9633 = vmatprep.subr.mxu0 0.0
  %9634 = vmatpush1.msra.mxu0 0.0
  %9635 = vmatprep.subr.mxu0 0.0
  %9636 = vmatpush1.msra.mxu0 0.0
  %9637 = vmatprep.subr.mxu0 0.0
  %9638 = vmatpush1.msra.mxu0 0.0
  %9639 = vmatprep.mubr.f32.mxu0 0.0
  %9640 = vmatmul.mubr.f32.gmra.mrb[0].mxu0 %v9573
  %v9641 = vpop.f32.mrb[0].mxu0
  %v9642 = vadd.f32 %v9570, %v9641
  %v9643 = vpop.f32.mrb[0].mxu0
  %9644 = vdwg.mxu0
  %v9645 = vxor.u32 %v9642, 2147483648
  %v9646 = vmul.f32 %v9645, 1.442695
  %v9647 = vpow.pop %v9646
  %v9648 = vadd.f32 %v9647, 1.0
  %v9649 = vrcp.pop %v9648
  %v9650 = vmul.f32 1.0, %v9649
  %v9651 = vmul.f32 %v9642, %v9650
  %s9652 = scalar_lea.vmem %s7, 576
  %v9653 = vld [vmem:[%s9652] sm:$0xff]
  %v9654 = vld [vmem:[%s9652 + $0x8] sm:$0xff]
  %v9655 = vld [vmem:[%s9652 + $0x10] sm:$0xff]
  %v9656 = vld [vmem:[%s9652 + $0x18] sm:$0xff]
  %v9658 = vsel %vm530, %v9651, 0
  %9660 = vmatprep.subr.mxu0 0.0
  %9661 = vmatpush1.msra.mxu0 %v9653
  %9662 = vmatprep.subr.mxu0 0.0
  %9663 = vmatpush1.msra.mxu0 %v9654
  %9664 = vmatprep.subr.mxu0 0.0
  %9665 = vmatpush1.msra.mxu0 %v9655
  %9666 = vmatprep.subr.mxu0 0.0
  %9667 = vmatpush1.msra.mxu0 %v9656
  %9668 = vmatprep.subr.mxu0 0.0
  %9669 = vmatpush1.msra.mxu0 0.0
  %9670 = vmatprep.subr.mxu0 0.0
  %9671 = vmatpush1.msra.mxu0 0.0
  %9672 = vmatprep.subr.mxu0 0.0
  %9673 = vmatpush1.msra.mxu0 0.0
  %9674 = vmatprep.subr.mxu0 0.0
  %9675 = vmatpush1.msra.mxu0 0.0
  %9676 = vmatprep.subr.mxu0 0.0
  %9677 = vmatpush1.msra.mxu0 0.0
  %9678 = vmatprep.subr.mxu0 0.0
  %9679 = vmatpush1.msra.mxu0 0.0
  %9680 = vmatprep.subr.mxu0 0.0
  %9681 = vmatpush1.msra.mxu0 0.0
  %9682 = vmatprep.subr.mxu0 0.0
  %9683 = vmatpush1.msra.mxu0 0.0
  %9684 = vmatprep.subr.mxu0 0.0
  %9685 = vmatpush1.msra.mxu0 0.0
  %9686 = vmatprep.subr.mxu0 0.0
  %9687 = vmatpush1.msra.mxu0 0.0
  %9688 = vmatprep.subr.mxu0 0.0
  %9689 = vmatpush1.msra.mxu0 0.0
  %9690 = vmatprep.subr.mxu0 0.0
  %9691 = vmatpush1.msra.mxu0 0.0
  %9692 = vmatprep.subr.mxu0 0.0
  %9693 = vmatpush1.msra.mxu0 0.0
  %9694 = vmatprep.subr.mxu0 0.0
  %9695 = vmatpush1.msra.mxu0 0.0
  %9696 = vmatprep.subr.mxu0 0.0
  %9697 = vmatpush1.msra.mxu0 0.0
  %9698 = vmatprep.subr.mxu0 0.0
  %9699 = vmatpush1.msra.mxu0 0.0
  %9700 = vmatprep.subr.mxu0 0.0
  %9701 = vmatpush1.msra.mxu0 0.0
  %9702 = vmatprep.subr.mxu0 0.0
  %9703 = vmatpush1.msra.mxu0 0.0
  %9704 = vmatprep.subr.mxu0 0.0
  %9705 = vmatpush1.msra.mxu0 0.0
  %9706 = vmatprep.subr.mxu0 0.0
  %9707 = vmatpush1.msra.mxu0 0.0
  %9708 = vmatprep.subr.mxu0 0.0
  %9709 = vmatpush1.msra.mxu0 0.0
  %9710 = vmatprep.subr.mxu0 0.0
  %9711 = vmatpush1.msra.mxu0 0.0
  %9712 = vmatprep.subr.mxu0 0.0
  %9713 = vmatpush1.msra.mxu0 0.0
  %9714 = vmatprep.subr.mxu0 0.0
  %9715 = vmatpush1.msra.mxu0 0.0
  %9716 = vmatprep.subr.mxu0 0.0
  %9717 = vmatpush1.msra.mxu0 0.0
  %9718 = vmatprep.subr.mxu0 0.0
  %9719 = vmatpush1.msra.mxu0 0.0
  %9720 = vmatprep.subr.mxu0 0.0
  %9721 = vmatpush1.msra.mxu0 0.0
  %9722 = vmatprep.subr.mxu0 0.0
  %9723 = vmatpush1.msra.mxu0 0.0
  %9724 = vmatprep.mubr.f32.mxu0 0.0
  %9725 = vmatmul.mubr.f32.gmra.mrb[0].mxu0 %v9658
  %v9726 = vpop.f32.mrb[0].mxu0
  %v9727 = vadd.f32 0.0, %v9726
  %v9728 = vpop.f32.mrb[0].mxu0
  %9729 = vdwg.mxu0
  %v9730 = vadd.f32 %v7002, %v9727
  %v9731 = vld [vmem:[%s5] sm:$0x3]
  %v9733 = vsel %vm61, %v9731, 0
  %9735 = vmatprep.subr.mxu0 0.0
  %9736 = vmatpush1.msra.mxu0 %v9730
  %9737 = vmatprep.subr.mxu0 0.0
  %9738 = vmatpush1.msra.mxu0 0.0
  %9739 = vmatprep.subr.mxu0 0.0
  %9740 = vmatpush1.msra.mxu0 0.0
  %9741 = vmatprep.subr.mxu0 0.0
  %9742 = vmatpush1.msra.mxu0 0.0
  %9743 = vmatprep.subr.mxu0 0.0
  %9744 = vmatpush1.msra.mxu0 0.0
  %9745 = vmatprep.subr.mxu0 0.0
  %9746 = vmatpush1.msra.mxu0 0.0
  %9747 = vmatprep.subr.mxu0 0.0
  %9748 = vmatpush1.msra.mxu0 0.0
  %9749 = vmatprep.subr.mxu0 0.0
  %9750 = vmatpush1.msra.mxu0 0.0
  %9751 = vmatprep.subr.mxu0 0.0
  %9752 = vmatpush1.msra.mxu0 0.0
  %9753 = vmatprep.subr.mxu0 0.0
  %9754 = vmatpush1.msra.mxu0 0.0
  %9755 = vmatprep.subr.mxu0 0.0
  %9756 = vmatpush1.msra.mxu0 0.0
  %9757 = vmatprep.subr.mxu0 0.0
  %9758 = vmatpush1.msra.mxu0 0.0
  %9759 = vmatprep.subr.mxu0 0.0
  %9760 = vmatpush1.msra.mxu0 0.0
  %9761 = vmatprep.subr.mxu0 0.0
  %9762 = vmatpush1.msra.mxu0 0.0
  %9763 = vmatprep.subr.mxu0 0.0
  %9764 = vmatpush1.msra.mxu0 0.0
  %9765 = vmatprep.subr.mxu0 0.0
  %9766 = vmatpush1.msra.mxu0 0.0
  %9767 = vmatprep.subr.mxu0 0.0
  %9768 = vmatpush1.msra.mxu0 0.0
  %9769 = vmatprep.subr.mxu0 0.0
  %9770 = vmatpush1.msra.mxu0 0.0
  %9771 = vmatprep.subr.mxu0 0.0
  %9772 = vmatpush1.msra.mxu0 0.0
  %9773 = vmatprep.subr.mxu0 0.0
  %9774 = vmatpush1.msra.mxu0 0.0
  %9775 = vmatprep.subr.mxu0 0.0
  %9776 = vmatpush1.msra.mxu0 0.0
  %9777 = vmatprep.subr.mxu0 0.0
  %9778 = vmatpush1.msra.mxu0 0.0
  %9779 = vmatprep.subr.mxu0 0.0
  %9780 = vmatpush1.msra.mxu0 0.0
  %9781 = vmatprep.subr.mxu0 0.0
  %9782 = vmatpush1.msra.mxu0 0.0
  %9783 = vmatprep.subr.mxu0 0.0
  %9784 = vmatpush1.msra.mxu0 0.0
  %9785 = vmatprep.subr.mxu0 0.0
  %9786 = vmatpush1.msra.mxu0 0.0
  %9787 = vmatprep.subr.mxu0 0.0
  %9788 = vmatpush1.msra.mxu0 0.0
  %9789 = vmatprep.subr.mxu0 0.0
  %9790 = vmatpush1.msra.mxu0 0.0
  %9791 = vmatprep.subr.mxu0 0.0
  %9792 = vmatpush1.msra.mxu0 0.0
  %9793 = vmatprep.subr.mxu0 0.0
  %9794 = vmatpush1.msra.mxu0 0.0
  %9795 = vmatprep.subr.mxu0 0.0
  %9796 = vmatpush1.msra.mxu0 0.0
  %9797 = vmatprep.subr.mxu0 0.0
  %9798 = vmatpush1.msra.mxu0 0.0
  %9799 = vmatprep.mubr.f32.mxu0 0.0
  %9800 = vmatmul.mubr.f32.gmra.mrb[0].mxu0 %v9733
  %v9801 = vpop.f32.mrb[0].mxu0
  %v9802 = vadd.f32 0.0, %v9801
  %v9803 = vpop.f32.mrb[0].mxu0
  %9804 = vdwg.mxu0
  %v9805 = vld [vmem:[%s10] sm:$0x1]
  %v9807 = vlaneseq
  %v9808 = vshrl.u32 %v9807, 7
  %v9809 = vsub.s32 0, %v9808
  %v9810 = vrot.slane %v9805, %v9809
  %v9812 = vmul.f32 %v9802, %v9810
  %vm9813 = vcmask 254976
  %v9814 = vsel %vm9813, %v9812, 0.0
  %9815 = vadd.xlane.f32.xlu0 %v9814
  %v9816 = vpop.xlane.xlu0 %9815
  %v9817 = vld [vmem:[#allocation2] sm:$0x1]
  %v9819 = vlaneseq
  %v9820 = vshrl.u32 %v9819, 7
  %v9821 = vsub.s32 0, %v9820
  %v9822 = vrot.slane %v9817, %v9821
  %v9824 = vadd.f32 %v9816, %v9822
  %vm9825 = vcmask 1024
  %9826 = vst.msk [vmem:[%s12] sm:$0x3] %vm9825, %v9824
  // Predicated region
  $region50: #{forward.1} parent=0 // pred_check
    _
  $region51: #{forward.1} parent=0 // pred_check_branch
    %9828 = sbr.rel (0) target = $region53
  $region52: #{forward.1} parent=0 // pred_region
    _
  $region53: #{forward.1} parent=0 // pred_fallthru
    _
  // Predicated region
  $region54: #{forward.1} parent=0 // pred_check
    _
  $region55: #{forward.1} parent=0 // pred_check_branch
    %9830 = sbr.rel (0) target = $region57
  $region56: #{forward.1} parent=0 // pred_region
    _
  $region57: #{forward.1} parent=0 // pred_fallthru
    _

</llo_original>
